<compile_context>
chip_gen: v7x
topology: tpu7x:2x2x1
jax: 0.10.0
libtpu: 0.0.40
codegen_flags: <defaults>
</compile_context>

<pallas_src>
import math

import jax
import jax.numpy as jnp
from jax.experimental import pallas as pl
from jax.experimental.pallas import tpu as pltpu

EPS = 1e-5                                     # nn.GroupNorm default eps
RRELU_SLOPE = (1.0 / 8.0 + 1.0 / 3.0) / 2.0    # RReLU eval-mode slope = 11/48
# TODO(synk): RReLU training-mode per-element random slopes are not implemented;
# the deterministic eval-mode slope (lower+upper)/2 is used (model.eval() semantics).


def _round_up(x, m):
    return (x + m - 1) // m * m


def _leaky(x):
    return jnp.where(x >= 0, x, x * RRELU_SLOPE)


def _geom(d, h, w):
    dp, hp, wp = d + 2, h + 2, w + 2
    sp = dp * hp * wp                    # flat size of the zero-padded volume
    sp_pad = _round_up(sp, 128)          # lane-dense compute width
    max_off = hp * wp + wp + 1           # largest |flat shift| of a 3x3x3 tap
    m_off = _round_up(max_off, 128)      # 128-aligned margin (both sides)
    buf_len = m_off + sp_pad + m_off
    return dp, hp, wp, sp, sp_pad, max_off, m_off, buf_len


def _build_kernel(cin_p, cout_p, d, h, w, n_tap_pad):
    _, hp, wp, _, sp_pad, _, m_off, buf_len = _geom(d, h, w)
    inv_n = 1.0 / float(d * h * w)

    # Flat offsets of the 27 taps, (kd, kh, kw) in C order (matches weight prep).
    offsets = [(kd - 1) * hp * wp + (kh - 1) * wp + (kw - 1)
               for kd in range(3) for kh in range(3) for kw in range(3)]

    def kernel(x_ref, mask_ref, w1_ref, w2_ref, w3_ref, vec_ref, o_ref,
               stack, hbuf):
        mask = mask_ref[...]                                    # (1, sp_pad)
        # Hoist the mask broadcasts once (JAX does not CSE broadcast_in_dim).
        mask_ci = jnp.broadcast_to(mask, (cin_p, sp_pad))
        mask_co = (mask_ci if cout_p == cin_p
                   else jnp.broadcast_to(mask, (cout_p, sp_pad)))

        def build_stack(src_ref):
            # im2col: stack[tap*cin_p + c, q] = src[c, m_off + off[tap] + q].
            # Written two taps at a time (2*cin_p rows, a multiple of 16) so
            # the bf16 stores stay tile-aligned; the padded 28th tap is zero.
            for p in range(n_tap_pad // 2):
                k0, k1 = 2 * p, 2 * p + 1
                s0 = src_ref[:, m_off + offsets[k0]:
                                m_off + offsets[k0] + sp_pad]
                if k1 < len(offsets):
                    s1 = src_ref[:, m_off + offsets[k1]:
                                    m_off + offsets[k1] + sp_pad]
                else:
                    s1 = jnp.zeros_like(s0)
                blk = jnp.concatenate([s0, s1], axis=0)
                stack[2 * p * cin_p:(2 * p + 2) * cin_p, :] = (
                    blk.astype(jnp.bfloat16))

        def conv(w_ref, bias):
            # Single MXU contraction, K = n_tap_pad*cin_p, bf16 operands,
            # f32 accumulation (instead of 27 tiny K=cin matmuls).
            return jnp.dot(w_ref[...], stack[...],
                           preferred_element_type=jnp.float32) + bias

        def group_norm(x, gamma, beta, mask_b):
            # num_groups == num_channels: per-channel stats over the interior
            # voxels, single masked pass (var = E[x^2] - mean^2, clamped).
            xm = x * mask_b
            mean = jnp.sum(xm, axis=1, keepdims=True) * inv_n
            ex2 = jnp.sum(xm * x, axis=1, keepdims=True) * inv_n
            var = jnp.maximum(ex2 - mean * mean, 0.0)
            return (x - mean) * jax.lax.rsqrt(var + EPS) * gamma + beta

        # Packed per-channel vectors: columns = b1,g1,bb1,b2,g2,bb2,b3,g3,bb3.
        b1 = vec_ref[0:cin_p, 0:1]
        g1 = vec_ref[0:cin_p, 1:2]
        bb1 = vec_ref[0:cin_p, 2:3]
        b2 = vec_ref[0:cin_p, 3:4]
        g2 = vec_ref[0:cin_p, 4:5]
        bb2 = vec_ref[0:cin_p, 5:6]
        b3 = vec_ref[0:cout_p, 6:7]
        g3 = vec_ref[0:cout_p, 7:8]
        bb3 = vec_ref[0:cout_p, 8:9]

        res = x_ref[:, m_off:m_off + sp_pad]                    # residual (f32)

        # Scratch persists across (per-core) grid iterations: re-zero only the
        # two 128-aligned margins every step; the interior is always rewritten.
        hbuf[:, 0:m_off] = jnp.zeros((cin_p, m_off), jnp.float32)
        hbuf[:, m_off + sp_pad:buf_len] = jnp.zeros((cin_p, m_off), jnp.float32)

        # --- DoubleConvBlock.conv1: Conv3d + GroupNorm + RReLU ---
        build_stack(x_ref)
        h1 = _leaky(group_norm(conv(w1_ref, b1), g1, bb1, mask_ci))
        hbuf[:, m_off:m_off + sp_pad] = h1 * mask_ci    # zero ring for conv2

        # --- DoubleConvBlock.conv2: Conv3d + GroupNorm (no activation) ---
        build_stack(hbuf)
        h2 = group_norm(conv(w2_ref, b2), g2, bb2, mask_ci)

        # --- residual add + RReLU ---
        h3 = _leaky(h2 + res)
        hbuf[:, m_off:m_off + sp_pad] = h3 * mask_ci    # zero ring for conv3

        # --- SingleConvBlock: Conv3d(cin->cout) + GroupNorm + RReLU ---
        build_stack(hbuf)
        h4 = _leaky(group_norm(conv(w3_ref, b3), g3, bb3, mask_co))
        # Non-interior lanes are discarded by the host slice, so no output mask.
        o_ref[...] = h4.astype(o_ref.dtype)

    return kernel


def _prep_conv_w(w, cout_p, cin_p, n_tap_pad):
    # (cout, cin, 3,3,3) -> lane-dense (cout_p, n_tap_pad*cin_p) bf16,
    # column index = tap*cin_p + cin with tap in (kd, kh, kw) C order.
    cout, cin = w.shape[0], w.shape[1]
    wt = jnp.transpose(w, (2, 3, 4, 0, 1)).reshape(27, cout, cin)
    wt = jnp.pad(wt, ((0, n_tap_pad - 27), (0, cout_p - cout), (0, cin_p - cin)))
    wt = jnp.transpose(wt, (1, 0, 2)).reshape(cout_p, n_tap_pad * cin_p)
    return wt.astype(jnp.bfloat16)


def _pack_vecs(params, cin, cout, cmax_p):
    keys = (("b1", cin), ("g1", cin), ("bb1", cin),
            ("b2", cin), ("g2", cin), ("bb2", cin),
            ("b3", cout), ("g3", cout), ("bb3", cout))
    cols = [jnp.pad(params[k], (0, cmax_p - c)) for k, c in keys]
    return jnp.stack(cols, axis=1).astype(jnp.float32)          # (cmax_p, 9)


def _interior_mask(d, h, w, sp_pad):
    dp, hp, wp = d + 2, h + 2, w + 2
    q = jnp.arange(sp_pad, dtype=jnp.int32)
    di = q // (hp * wp)
    r = q % (hp * wp)
    hi = r // wp
    wi = r % wp
    inside = ((q < dp * hp * wp)
              & (di >= 1) & (di <= d)
              & (hi >= 1) & (hi <= h)
              & (wi >= 1) & (wi <= w))
    return inside.astype(jnp.float32).reshape(1, sp_pad)


def res_conv_block_forward(x, params):
    """x: (B, Cin, D, H, W) float32 -> (B, Cout, D, H, W) float32."""
    bsz, cin, d, h, w = x.shape
    cout = params["w3"].shape[0]
    cin_p, cout_p = _round_up(cin, 8), _round_up(cout, 8)
    cmax_p = max(cin_p, cout_p)
    n_tap_pad = 28                       # 27 taps padded to an even count
    k_dim = n_tap_pad * cin_p
    dp, hp, wp, sp, sp_pad, _, m_off, buf_len = _geom(d, h, w)
    # TODO(synk): no spatial tiling — the fused per-sample design assumes the
    # padded D*H*W slab fits in VMEM (fine for small volumes).  For large
    # volumes (or B==1 on v7x's two TensorCores) add a D-slab grid axis with a
    # halo of one slice.

    # Zero-padded, channel-major flat slab: (B, cin_p, buf_len).  The two pads
    # and the trivial reshape fuse into a single XLA pass producing x_flat.
    x_pad = jnp.pad(x, ((0, 0), (0, cin_p - cin), (1, 1), (1, 1), (1, 1)))
    x_flat = x_pad.reshape(bsz, cin_p, sp)
    x_flat = jnp.pad(x_flat, ((0, 0), (0, 0), (m_off, buf_len - m_off - sp)))

    mask = _interior_mask(d, h, w, sp_pad)
    w1 = _prep_conv_w(params["w1"], cin_p, cin_p, n_tap_pad)
    w2 = _prep_conv_w(params["w2"], cin_p, cin_p, n_tap_pad)
    w3 = _prep_conv_w(params["w3"], cout_p, cin_p, n_tap_pad)
    vecs = _pack_vecs(params, cin, cout, cmax_p)

    kernel = _build_kernel(cin_p, cout_p, d, h, w, n_tap_pad)

    # Explicit VMEM budget (with headroom) so Mosaic never trips the default
    # scoped cap; capped well below v7x's 64 MiB physical VMEM.
    need = (2 * cin_p * buf_len * 4 + 2 * cout_p * sp_pad * 4   # in/out (dbl buf)
            + k_dim * sp_pad * 2 + cin_p * buf_len * 4          # stack + hbuf
            + 2 * (2 * cin_p + cout_p) * k_dim * 2              # weights
            + 8 * cmax_p * sp_pad * 4)                          # live intermediates
    vmem_limit = int(min(max(2 * need + (4 << 20), 32 << 20), 48 << 20))

    cost = pl.CostEstimate(
        flops=int(2 * bsz * d * h * w * 27 * cin * (cin + cin + cout)),
        transcendentals=int(bsz * (2 * cin + cout)),
        bytes_accessed=int(bsz * cin_p * buf_len * 4
                           + bsz * cout_p * sp_pad * 4
                           + (2 * cin_p + cout_p) * k_dim * 2
                           + cmax_p * 9 * 4 + sp_pad * 4))

    out_p = pl.pallas_call(
        kernel,
        out_shape=jax.ShapeDtypeStruct((bsz, cout_p, sp_pad), x.dtype),
        grid=(bsz,),
        in_specs=[
            pl.BlockSpec((None, cin_p, buf_len), lambda i: (i, 0, 0)),  # x slab
            pl.BlockSpec((1, sp_pad), lambda i: (0, 0)),                # mask
            pl.BlockSpec((cin_p, k_dim), lambda i: (0, 0)),             # w1
            pl.BlockSpec((cin_p, k_dim), lambda i: (0, 0)),             # w2
            pl.BlockSpec((cout_p, k_dim), lambda i: (0, 0)),            # w3
            pl.BlockSpec((cmax_p, 9), lambda i: (0, 0)),                # bias/GN
        ],
        out_specs=pl.BlockSpec((None, cout_p, sp_pad), lambda i: (i, 0, 0)),
        scratch_shapes=[pltpu.VMEM((k_dim, sp_pad), jnp.bfloat16),      # im2col
                        pltpu.VMEM((cin_p, buf_len), jnp.float32)],     # h slab
        compiler_params=pltpu.CompilerParams(
            dimension_semantics=("parallel",),
            vmem_limit_bytes=vmem_limit),
        cost_estimate=cost,
    )(x_flat, mask, w1, w2, w3, vecs)

    out = out_p[:, :cout, :sp].reshape(bsz, cout, dp, hp, wp)
    return out[:, :, 1:-1, 1:-1, 1:-1]


# ----------------------- pure-JAX reference (for checking) -----------------------
def _conv3d_ref(x, w, b):
    out = jax.lax.conv_general_dilated(
        x, w, window_strides=(1, 1, 1),
        padding=((1, 1), (1, 1), (1, 1)),
        dimension_numbers=("NCDHW", "OIDHW", "NCDHW"))
    return out + b[None, :, None, None, None]


def _gn_ref(x, g, b):
    mean = jnp.mean(x, axis=(2, 3, 4), keepdims=True)
    var = jnp.mean((x - mean) ** 2, axis=(2, 3, 4), keepdims=True)
    y = (x - mean) * jax.lax.rsqrt(var + EPS)
    return y * g[None, :, None, None, None] + b[None, :, None, None, None]


def res_conv_block_ref(x, p):
    h = _leaky(_gn_ref(_conv3d_ref(x, p["w1"], p["b1"]), p["g1"], p["bb1"]))
    h = _gn_ref(_conv3d_ref(h, p["w2"], p["b2"]), p["g2"], p["bb2"])
    h = _leaky(h + x)
    h = _leaky(_gn_ref(_conv3d_ref(h, p["w3"], p["b3"]), p["g3"], p["bb3"]))
    return h


if __name__ == "__main__":
    B, in_ch, out_ch = 2, 4, 8
    D = H = W = 8

    key = jax.random.PRNGKey(0)
    ks = jax.random.split(key, 8)
    x = jax.random.normal(ks[0], (B, in_ch, D, H, W), dtype=jnp.float32)

    def conv_params(k, ci, co):
        k1, k2 = jax.random.split(k)
        wgt = jax.random.normal(k1, (co, ci, 3, 3, 3), jnp.float32) / math.sqrt(ci * 27)
        bias = 0.1 * jax.random.normal(k2, (co,), jnp.float32)
        return wgt, bias

    def gn_params(k, c):
        k1, k2 = jax.random.split(k)
        return (1.0 + 0.1 * jax.random.normal(k1, (c,), jnp.float32),
                0.1 * jax.random.normal(k2, (c,), jnp.float32))

    w1, b1 = conv_params(ks[1], in_ch, in_ch)
    g1, bb1 = gn_params(ks[2], in_ch)
    w2, b2 = conv_params(ks[3], in_ch, in_ch)
    g2, bb2 = gn_params(ks[4], in_ch)
    w3, b3 = conv_params(ks[5], in_ch, out_ch)
    g3, bb3 = gn_params(ks[6], out_ch)
    params = dict(w1=w1, b1=b1, g1=g1, bb1=bb1,
                  w2=w2, b2=b2, g2=g2, bb2=bb2,
                  w3=w3, b3=b3, g3=g3, bb3=bb3)

    forward = jax.jit(res_conv_block_forward)
    out = jax.block_until_ready(forward(x, params))
    assert out.shape == (B, out_ch, D, H, W)

    # Reference check.  The kernel contracts bf16 operands on the MXU with f32
    # accumulation (the reference conv also runs at default TPU precision), so
    # allow a small normalized slack; structural bugs (wrong tap offsets /
    # masks / norm) would produce O(1) errors.
    ref = res_conv_block_ref(x, params)
    rel_err = float(jnp.max(jnp.abs(out - ref)) / (jnp.max(jnp.abs(ref)) + 1e-6))
    assert rel_err < 0.05, f"normalized max error too large: {rel_err}"

    print("KERNEL_OK")
</pallas_src>

<mosaic_0001>
module attributes {stable_mosaic.version = 11 : i64} {
  func.func @kernel(%arg0: i32, %arg1: memref<1x8x1280xf32, #tpu.memory_space<vmem>>, %arg2: memref<1x1024xf32, #tpu.memory_space<vmem>>, %arg3: memref<8x224xbf16, #tpu.memory_space<vmem>>, %arg4: memref<8x224xbf16, #tpu.memory_space<vmem>>, %arg5: memref<8x224xbf16, #tpu.memory_space<vmem>>, %arg6: memref<8x9xf32, #tpu.memory_space<vmem>>, %arg7: memref<1x8x1024xf32, #tpu.memory_space<vmem>>, %arg8: memref<224x1024xbf16, #tpu.memory_space<vmem>>, %arg9: memref<8x1280xf32, #tpu.memory_space<vmem>>) attributes {dimension_semantics = [#tpu.dimension_semantics<parallel>], iteration_bounds = array<i64: 2>, scalar_prefetch = 0 : i64, scratch_operands = 2 : i64, tpu.core_type = #tpu.core_type<tc>, window_params = [{transform_indices = @transform_0, window_bounds = array<i64: 1, 8, 1280>}, {pipeline_mode = #tpu.pipeline_mode<synchronous>, transform_indices = @transform_1, window_bounds = array<i64: 1, 1024>}, {pipeline_mode = #tpu.pipeline_mode<synchronous>, transform_indices = @transform_2, window_bounds = array<i64: 8, 224>}, {pipeline_mode = #tpu.pipeline_mode<synchronous>, transform_indices = @transform_3, window_bounds = array<i64: 8, 224>}, {pipeline_mode = #tpu.pipeline_mode<synchronous>, transform_indices = @transform_4, window_bounds = array<i64: 8, 224>}, {pipeline_mode = #tpu.pipeline_mode<synchronous>, transform_indices = @transform_5, window_bounds = array<i64: 8, 9>}, {transform_indices = @transform_6, window_bounds = array<i64: 1, 8, 1024>}]} {
    %c0 = arith.constant 0 : index
    %c0_0 = arith.constant 0 : index
    %0 = vector.load %arg2[%c0, %c0_0] : memref<1x1024xf32, #tpu.memory_space<vmem>>, vector<1x1024xf32>
    %1 = vector.shape_cast %0 : vector<1x1024xf32> to vector<1x1024xf32>
    %2 = vector.broadcast %1 : vector<1x1024xf32> to vector<8x1024xf32>
    %c0_1 = arith.constant 0 : index
    %c0_2 = arith.constant 0 : index
    %3 = vector.load %arg6[%c0_1, %c0_2] : memref<8x9xf32, #tpu.memory_space<vmem>>, vector<8x1xf32>
    %c0_3 = arith.constant 0 : index
    %c1 = arith.constant 1 : index
    %4 = vector.load %arg6[%c0_3, %c1] : memref<8x9xf32, #tpu.memory_space<vmem>>, vector<8x1xf32>
    %c0_4 = arith.constant 0 : index
    %c2 = arith.constant 2 : index
    %5 = vector.load %arg6[%c0_4, %c2] : memref<8x9xf32, #tpu.memory_space<vmem>>, vector<8x1xf32>
    %c0_5 = arith.constant 0 : index
    %c3 = arith.constant 3 : index
    %6 = vector.load %arg6[%c0_5, %c3] : memref<8x9xf32, #tpu.memory_space<vmem>>, vector<8x1xf32>
    %c0_6 = arith.constant 0 : index
    %c4 = arith.constant 4 : index
    %7 = vector.load %arg6[%c0_6, %c4] : memref<8x9xf32, #tpu.memory_space<vmem>>, vector<8x1xf32>
    %c0_7 = arith.constant 0 : index
    %c5 = arith.constant 5 : index
    %8 = vector.load %arg6[%c0_7, %c5] : memref<8x9xf32, #tpu.memory_space<vmem>>, vector<8x1xf32>
    %c0_8 = arith.constant 0 : index
    %c6 = arith.constant 6 : index
    %9 = vector.load %arg6[%c0_8, %c6] : memref<8x9xf32, #tpu.memory_space<vmem>>, vector<8x1xf32>
    %c0_9 = arith.constant 0 : index
    %c7 = arith.constant 7 : index
    %10 = vector.load %arg6[%c0_9, %c7] : memref<8x9xf32, #tpu.memory_space<vmem>>, vector<8x1xf32>
    %c0_10 = arith.constant 0 : index
    %c8 = arith.constant 8 : index
    %11 = vector.load %arg6[%c0_10, %c8] : memref<8x9xf32, #tpu.memory_space<vmem>>, vector<8x1xf32>
    %c0_11 = arith.constant 0 : index
    %c0_12 = arith.constant 0 : index
    %c128 = arith.constant 128 : index
    %12 = vector.load %arg1[%c0_11, %c0_12, %c128] : memref<1x8x1280xf32, #tpu.memory_space<vmem>>, vector<1x8x1024xf32>
    %13 = vector.shape_cast %12 : vector<1x8x1024xf32> to vector<8x1024xf32>
    %cst = arith.constant 0.000000e+00 : f32
    %14 = vector.broadcast %cst : f32 to vector<8x128xf32>
    %c0_13 = arith.constant 0 : index
    %c0_14 = arith.constant 0 : index
    %15 = vector.load %arg9[%c0_13, %c0_14] : memref<8x1280xf32, #tpu.memory_space<vmem>>, vector<8x128xf32>
    tpu.vector_store %arg9[%c0_13, %c0_14], %14 {strides = array<i32>} : memref<8x1280xf32, #tpu.memory_space<vmem>>, vector<8x128xf32>,
    %cst_15 = arith.constant 0.000000e+00 : f32
    %16 = vector.broadcast %cst_15 : f32 to vector<8x128xf32>
    %c0_16 = arith.constant 0 : index
    %c1152 = arith.constant 1152 : index
    %17 = vector.load %arg9[%c0_16, %c1152] : memref<8x1280xf32, #tpu.memory_space<vmem>>, vector<8x128xf32>
    tpu.vector_store %arg9[%c0_16, %c1152], %16 {strides = array<i32>} : memref<8x1280xf32, #tpu.memory_space<vmem>>, vector<8x128xf32>,
    %c0_17 = arith.constant 0 : index
    %c0_18 = arith.constant 0 : index
    %c17 = arith.constant 17 : index
    %18 = vector.load %arg1[%c0_17, %c0_18, %c17] : memref<1x8x1280xf32, #tpu.memory_space<vmem>>, vector<1x8x1024xf32>
    %19 = vector.shape_cast %18 : vector<1x8x1024xf32> to vector<8x1024xf32>
    %c0_19 = arith.constant 0 : index
    %c0_20 = arith.constant 0 : index
    %c18 = arith.constant 18 : index
    %20 = vector.load %arg1[%c0_19, %c0_20, %c18] : memref<1x8x1280xf32, #tpu.memory_space<vmem>>, vector<1x8x1024xf32>
    %21 = vector.shape_cast %20 : vector<1x8x1024xf32> to vector<8x1024xf32>
    %22 = tpu.concatenate %19, %21 in 0 : vector<8x1024xf32>, vector<8x1024xf32> -> vector<16x1024xf32>
    %23 = arith.truncf %22 : vector<16x1024xf32> to vector<16x1024xbf16>
    %c0_21 = arith.constant 0 : index
    %c0_22 = arith.constant 0 : index
    %24 = vector.load %arg8[%c0_21, %c0_22] : memref<224x1024xbf16, #tpu.memory_space<vmem>>, vector<16x1024xbf16>
    tpu.vector_store %arg8[%c0_21, %c0_22], %23 {strides = array<i32>} : memref<224x1024xbf16, #tpu.memory_space<vmem>>, vector<16x1024xbf16>,
    %c0_23 = arith.constant 0 : index
    %c0_24 = arith.constant 0 : index
    %c19 = arith.constant 19 : index
    %25 = vector.load %arg1[%c0_23, %c0_24, %c19] : memref<1x8x1280xf32, #tpu.memory_space<vmem>>, vector<1x8x1024xf32>
    %26 = vector.shape_cast %25 : vector<1x8x1024xf32> to vector<8x1024xf32>
    %c0_25 = arith.constant 0 : index
    %c0_26 = arith.constant 0 : index
    %c27 = arith.constant 27 : index
    %27 = vector.load %arg1[%c0_25, %c0_26, %c27] : memref<1x8x1280xf32, #tpu.memory_space<vmem>>, vector<1x8x1024xf32>
    %28 = vector.shape_cast %27 : vector<1x8x1024xf32> to vector<8x1024xf32>
    %29 = tpu.concatenate %26, %28 in 0 : vector<8x1024xf32>, vector<8x1024xf32> -> vector<16x1024xf32>
    %30 = arith.truncf %29 : vector<16x1024xf32> to vector<16x1024xbf16>
    %c16 = arith.constant 16 : index
    %c0_27 = arith.constant 0 : index
    %31 = vector.load %arg8[%c16, %c0_27] : memref<224x1024xbf16, #tpu.memory_space<vmem>>, vector<16x1024xbf16>
    tpu.vector_store %arg8[%c16, %c0_27], %30 {strides = array<i32>} : memref<224x1024xbf16, #tpu.memory_space<vmem>>, vector<16x1024xbf16>,
    %c0_28 = arith.constant 0 : index
    %c0_29 = arith.constant 0 : index
    %c28 = arith.constant 28 : index
    %32 = vector.load %arg1[%c0_28, %c0_29, %c28] : memref<1x8x1280xf32, #tpu.memory_space<vmem>>, vector<1x8x1024xf32>
    %33 = vector.shape_cast %32 : vector<1x8x1024xf32> to vector<8x1024xf32>
    %c0_30 = arith.constant 0 : index
    %c0_31 = arith.constant 0 : index
    %c29 = arith.constant 29 : index
    %34 = vector.load %arg1[%c0_30, %c0_31, %c29] : memref<1x8x1280xf32, #tpu.memory_space<vmem>>, vector<1x8x1024xf32>
    %35 = vector.shape_cast %34 : vector<1x8x1024xf32> to vector<8x1024xf32>
    %36 = tpu.concatenate %33, %35 in 0 : vector<8x1024xf32>, vector<8x1024xf32> -> vector<16x1024xf32>
    %37 = arith.truncf %36 : vector<16x1024xf32> to vector<16x1024xbf16>
    %c32 = arith.constant 32 : index
    %c0_32 = arith.constant 0 : index
    %38 = vector.load %arg8[%c32, %c0_32] : memref<224x1024xbf16, #tpu.memory_space<vmem>>, vector<16x1024xbf16>
    tpu.vector_store %arg8[%c32, %c0_32], %37 {strides = array<i32>} : memref<224x1024xbf16, #tpu.memory_space<vmem>>, vector<16x1024xbf16>,
    %c0_33 = arith.constant 0 : index
    %c0_34 = arith.constant 0 : index
    %c37 = arith.constant 37 : index
    %39 = vector.load %arg1[%c0_33, %c0_34, %c37] : memref<1x8x1280xf32, #tpu.memory_space<vmem>>, vector<1x8x1024xf32>
    %40 = vector.shape_cast %39 : vector<1x8x1024xf32> to vector<8x1024xf32>
    %c0_35 = arith.constant 0 : index
    %c0_36 = arith.constant 0 : index
    %c38 = arith.constant 38 : index
    %41 = vector.load %arg1[%c0_35, %c0_36, %c38] : memref<1x8x1280xf32, #tpu.memory_space<vmem>>, vector<1x8x1024xf32>
    %42 = vector.shape_cast %41 : vector<1x8x1024xf32> to vector<8x1024xf32>
    %43 = tpu.concatenate %40, %42 in 0 : vector<8x1024xf32>, vector<8x1024xf32> -> vector<16x1024xf32>
    %44 = arith.truncf %43 : vector<16x1024xf32> to vector<16x1024xbf16>
    %c48 = arith.constant 48 : index
    %c0_37 = arith.constant 0 : index
    %45 = vector.load %arg8[%c48, %c0_37] : memref<224x1024xbf16, #tpu.memory_space<vmem>>, vector<16x1024xbf16>
    tpu.vector_store %arg8[%c48, %c0_37], %44 {strides = array<i32>} : memref<224x1024xbf16, #tpu.memory_space<vmem>>, vector<16x1024xbf16>,
    %c0_38 = arith.constant 0 : index
    %c0_39 = arith.constant 0 : index
    %c39 = arith.constant 39 : index
    %46 = vector.load %arg1[%c0_38, %c0_39, %c39] : memref<1x8x1280xf32, #tpu.memory_space<vmem>>, vector<1x8x1024xf32>
    %47 = vector.shape_cast %46 : vector<1x8x1024xf32> to vector<8x1024xf32>
    %c0_40 = arith.constant 0 : index
    %c0_41 = arith.constant 0 : index
    %c117 = arith.constant 117 : index
    %48 = vector.load %arg1[%c0_40, %c0_41, %c117] : memref<1x8x1280xf32, #tpu.memory_space<vmem>>, vector<1x8x1024xf32>
    %49 = vector.shape_cast %48 : vector<1x8x1024xf32> to vector<8x1024xf32>
    %50 = tpu.concatenate %47, %49 in 0 : vector<8x1024xf32>, vector<8x1024xf32> -> vector<16x1024xf32>
    %51 = arith.truncf %50 : vector<16x1024xf32> to vector<16x1024xbf16>
    %c64 = arith.constant 64 : index
    %c0_42 = arith.constant 0 : index
    %52 = vector.load %arg8[%c64, %c0_42] : memref<224x1024xbf16, #tpu.memory_space<vmem>>, vector<16x1024xbf16>
    tpu.vector_store %arg8[%c64, %c0_42], %51 {strides = array<i32>} : memref<224x1024xbf16, #tpu.memory_space<vmem>>, vector<16x1024xbf16>,
    %c0_43 = arith.constant 0 : index
    %c0_44 = arith.constant 0 : index
    %c118 = arith.constant 118 : index
    %53 = vector.load %arg1[%c0_43, %c0_44, %c118] : memref<1x8x1280xf32, #tpu.memory_space<vmem>>, vector<1x8x1024xf32>
    %54 = vector.shape_cast %53 : vector<1x8x1024xf32> to vector<8x1024xf32>
    %c0_45 = arith.constant 0 : index
    %c0_46 = arith.constant 0 : index
    %c119 = arith.constant 119 : index
    %55 = vector.load %arg1[%c0_45, %c0_46, %c119] : memref<1x8x1280xf32, #tpu.memory_space<vmem>>, vector<1x8x1024xf32>
    %56 = vector.shape_cast %55 : vector<1x8x1024xf32> to vector<8x1024xf32>
    %57 = tpu.concatenate %54, %56 in 0 : vector<8x1024xf32>, vector<8x1024xf32> -> vector<16x1024xf32>
    %58 = arith.truncf %57 : vector<16x1024xf32> to vector<16x1024xbf16>
    %c80 = arith.constant 80 : index
    %c0_47 = arith.constant 0 : index
    %59 = vector.load %arg8[%c80, %c0_47] : memref<224x1024xbf16, #tpu.memory_space<vmem>>, vector<16x1024xbf16>
    tpu.vector_store %arg8[%c80, %c0_47], %58 {strides = array<i32>} : memref<224x1024xbf16, #tpu.memory_space<vmem>>, vector<16x1024xbf16>,
    %c0_48 = arith.constant 0 : index
    %c0_49 = arith.constant 0 : index
    %c127 = arith.constant 127 : index
    %60 = vector.load %arg1[%c0_48, %c0_49, %c127] : memref<1x8x1280xf32, #tpu.memory_space<vmem>>, vector<1x8x1024xf32>
    %61 = vector.shape_cast %60 : vector<1x8x1024xf32> to vector<8x1024xf32>
    %c0_50 = arith.constant 0 : index
    %c0_51 = arith.constant 0 : index
    %c128_52 = arith.constant 128 : index
    %62 = vector.load %arg1[%c0_50, %c0_51, %c128_52] : memref<1x8x1280xf32, #tpu.memory_space<vmem>>, vector<1x8x1024xf32>
    %63 = vector.shape_cast %62 : vector<1x8x1024xf32> to vector<8x1024xf32>
    %64 = tpu.concatenate %61, %63 in 0 : vector<8x1024xf32>, vector<8x1024xf32> -> vector<16x1024xf32>
    %65 = arith.truncf %64 : vector<16x1024xf32> to vector<16x1024xbf16>
    %c96 = arith.constant 96 : index
    %c0_53 = arith.constant 0 : index
    %66 = vector.load %arg8[%c96, %c0_53] : memref<224x1024xbf16, #tpu.memory_space<vmem>>, vector<16x1024xbf16>
    tpu.vector_store %arg8[%c96, %c0_53], %65 {strides = array<i32>} : memref<224x1024xbf16, #tpu.memory_space<vmem>>, vector<16x1024xbf16>,
    %c0_54 = arith.constant 0 : index
    %c0_55 = arith.constant 0 : index
    %c129 = arith.constant 129 : index
    %67 = vector.load %arg1[%c0_54, %c0_55, %c129] : memref<1x8x1280xf32, #tpu.memory_space<vmem>>, vector<1x8x1024xf32>
    %68 = vector.shape_cast %67 : vector<1x8x1024xf32> to vector<8x1024xf32>
    %c0_56 = arith.constant 0 : index
    %c0_57 = arith.constant 0 : index
    %c137 = arith.constant 137 : index
    %69 = vector.load %arg1[%c0_56, %c0_57, %c137] : memref<1x8x1280xf32, #tpu.memory_space<vmem>>, vector<1x8x1024xf32>
    %70 = vector.shape_cast %69 : vector<1x8x1024xf32> to vector<8x1024xf32>
    %71 = tpu.concatenate %68, %70 in 0 : vector<8x1024xf32>, vector<8x1024xf32> -> vector<16x1024xf32>
    %72 = arith.truncf %71 : vector<16x1024xf32> to vector<16x1024xbf16>
    %c112 = arith.constant 112 : index
    %c0_58 = arith.constant 0 : index
    %73 = vector.load %arg8[%c112, %c0_58] : memref<224x1024xbf16, #tpu.memory_space<vmem>>, vector<16x1024xbf16>
    tpu.vector_store %arg8[%c112, %c0_58], %72 {strides = array<i32>} : memref<224x1024xbf16, #tpu.memory_space<vmem>>, vector<16x1024xbf16>,
    %c0_59 = arith.constant 0 : index
    %c0_60 = arith.constant 0 : index
    %c138 = arith.constant 138 : index
    %74 = vector.load %arg1[%c0_59, %c0_60, %c138] : memref<1x8x1280xf32, #tpu.memory_space<vmem>>, vector<1x8x1024xf32>
    %75 = vector.shape_cast %74 : vector<1x8x1024xf32> to vector<8x1024xf32>
    %c0_61 = arith.constant 0 : index
    %c0_62 = arith.constant 0 : index
    %c139 = arith.constant 139 : index
    %76 = vector.load %arg1[%c0_61, %c0_62, %c139] : memref<1x8x1280xf32, #tpu.memory_space<vmem>>, vector<1x8x1024xf32>
    %77 = vector.shape_cast %76 : vector<1x8x1024xf32> to vector<8x1024xf32>
    %78 = tpu.concatenate %75, %77 in 0 : vector<8x1024xf32>, vector<8x1024xf32> -> vector<16x1024xf32>
    %79 = arith.truncf %78 : vector<16x1024xf32> to vector<16x1024xbf16>
    %c128_63 = arith.constant 128 : index
    %c0_64 = arith.constant 0 : index
    %80 = vector.load %arg8[%c128_63, %c0_64] : memref<224x1024xbf16, #tpu.memory_space<vmem>>, vector<16x1024xbf16>
    tpu.vector_store %arg8[%c128_63, %c0_64], %79 {strides = array<i32>} : memref<224x1024xbf16, #tpu.memory_space<vmem>>, vector<16x1024xbf16>,
    %c0_65 = arith.constant 0 : index
    %c0_66 = arith.constant 0 : index
    %c217 = arith.constant 217 : index
    %81 = vector.load %arg1[%c0_65, %c0_66, %c217] : memref<1x8x1280xf32, #tpu.memory_space<vmem>>, vector<1x8x1024xf32>
    %82 = vector.shape_cast %81 : vector<1x8x1024xf32> to vector<8x1024xf32>
    %c0_67 = arith.constant 0 : index
    %c0_68 = arith.constant 0 : index
    %c218 = arith.constant 218 : index
    %83 = vector.load %arg1[%c0_67, %c0_68, %c218] : memref<1x8x1280xf32, #tpu.memory_space<vmem>>, vector<1x8x1024xf32>
    %84 = vector.shape_cast %83 : vector<1x8x1024xf32> to vector<8x1024xf32>
    %85 = tpu.concatenate %82, %84 in 0 : vector<8x1024xf32>, vector<8x1024xf32> -> vector<16x1024xf32>
    %86 = arith.truncf %85 : vector<16x1024xf32> to vector<16x1024xbf16>
    %c144 = arith.constant 144 : index
    %c0_69 = arith.constant 0 : index
    %87 = vector.load %arg8[%c144, %c0_69] : memref<224x1024xbf16, #tpu.memory_space<vmem>>, vector<16x1024xbf16>
    tpu.vector_store %arg8[%c144, %c0_69], %86 {strides = array<i32>} : memref<224x1024xbf16, #tpu.memory_space<vmem>>, vector<16x1024xbf16>,
    %c0_70 = arith.constant 0 : index
    %c0_71 = arith.constant 0 : index
    %c219 = arith.constant 219 : index
    %88 = vector.load %arg1[%c0_70, %c0_71, %c219] : memref<1x8x1280xf32, #tpu.memory_space<vmem>>, vector<1x8x1024xf32>
    %89 = vector.shape_cast %88 : vector<1x8x1024xf32> to vector<8x1024xf32>
    %c0_72 = arith.constant 0 : index
    %c0_73 = arith.constant 0 : index
    %c227 = arith.constant 227 : index
    %90 = vector.load %arg1[%c0_72, %c0_73, %c227] : memref<1x8x1280xf32, #tpu.memory_space<vmem>>, vector<1x8x1024xf32>
    %91 = vector.shape_cast %90 : vector<1x8x1024xf32> to vector<8x1024xf32>
    %92 = tpu.concatenate %89, %91 in 0 : vector<8x1024xf32>, vector<8x1024xf32> -> vector<16x1024xf32>
    %93 = arith.truncf %92 : vector<16x1024xf32> to vector<16x1024xbf16>
    %c160 = arith.constant 160 : index
    %c0_74 = arith.constant 0 : index
    %94 = vector.load %arg8[%c160, %c0_74] : memref<224x1024xbf16, #tpu.memory_space<vmem>>, vector<16x1024xbf16>
    tpu.vector_store %arg8[%c160, %c0_74], %93 {strides = array<i32>} : memref<224x1024xbf16, #tpu.memory_space<vmem>>, vector<16x1024xbf16>,
    %c0_75 = arith.constant 0 : index
    %c0_76 = arith.constant 0 : index
    %c228 = arith.constant 228 : index
    %95 = vector.load %arg1[%c0_75, %c0_76, %c228] : memref<1x8x1280xf32, #tpu.memory_space<vmem>>, vector<1x8x1024xf32>
    %96 = vector.shape_cast %95 : vector<1x8x1024xf32> to vector<8x1024xf32>
    %c0_77 = arith.constant 0 : index
    %c0_78 = arith.constant 0 : index
    %c229 = arith.constant 229 : index
    %97 = vector.load %arg1[%c0_77, %c0_78, %c229] : memref<1x8x1280xf32, #tpu.memory_space<vmem>>, vector<1x8x1024xf32>
    %98 = vector.shape_cast %97 : vector<1x8x1024xf32> to vector<8x1024xf32>
    %99 = tpu.concatenate %96, %98 in 0 : vector<8x1024xf32>, vector<8x1024xf32> -> vector<16x1024xf32>
    %100 = arith.truncf %99 : vector<16x1024xf32> to vector<16x1024xbf16>
    %c176 = arith.constant 176 : index
    %c0_79 = arith.constant 0 : index
    %101 = vector.load %arg8[%c176, %c0_79] : memref<224x1024xbf16, #tpu.memory_space<vmem>>, vector<16x1024xbf16>
    tpu.vector_store %arg8[%c176, %c0_79], %100 {strides = array<i32>} : memref<224x1024xbf16, #tpu.memory_space<vmem>>, vector<16x1024xbf16>,
    %c0_80 = arith.constant 0 : index
    %c0_81 = arith.constant 0 : index
    %c237 = arith.constant 237 : index
    %102 = vector.load %arg1[%c0_80, %c0_81, %c237] : memref<1x8x1280xf32, #tpu.memory_space<vmem>>, vector<1x8x1024xf32>
    %103 = vector.shape_cast %102 : vector<1x8x1024xf32> to vector<8x1024xf32>
    %c0_82 = arith.constant 0 : index
    %c0_83 = arith.constant 0 : index
    %c238 = arith.constant 238 : index
    %104 = vector.load %arg1[%c0_82, %c0_83, %c238] : memref<1x8x1280xf32, #tpu.memory_space<vmem>>, vector<1x8x1024xf32>
    %105 = vector.shape_cast %104 : vector<1x8x1024xf32> to vector<8x1024xf32>
    %106 = tpu.concatenate %103, %105 in 0 : vector<8x1024xf32>, vector<8x1024xf32> -> vector<16x1024xf32>
    %107 = arith.truncf %106 : vector<16x1024xf32> to vector<16x1024xbf16>
    %c192 = arith.constant 192 : index
    %c0_84 = arith.constant 0 : index
    %108 = vector.load %arg8[%c192, %c0_84] : memref<224x1024xbf16, #tpu.memory_space<vmem>>, vector<16x1024xbf16>
    tpu.vector_store %arg8[%c192, %c0_84], %107 {strides = array<i32>} : memref<224x1024xbf16, #tpu.memory_space<vmem>>, vector<16x1024xbf16>,
    %c0_85 = arith.constant 0 : index
    %c0_86 = arith.constant 0 : index
    %c239 = arith.constant 239 : index
    %109 = vector.load %arg1[%c0_85, %c0_86, %c239] : memref<1x8x1280xf32, #tpu.memory_space<vmem>>, vector<1x8x1024xf32>
    %110 = vector.shape_cast %109 : vector<1x8x1024xf32> to vector<8x1024xf32>
    %cst_87 = arith.constant 0.000000e+00 : f32
    %111 = vector.broadcast %cst_87 : f32 to vector<8x1024xf32>
    %112 = tpu.concatenate %110, %111 in 0 : vector<8x1024xf32>, vector<8x1024xf32> -> vector<16x1024xf32>
    %113 = arith.truncf %112 : vector<16x1024xf32> to vector<16x1024xbf16>
    %c208 = arith.constant 208 : index
    %c0_88 = arith.constant 0 : index
    %114 = vector.load %arg8[%c208, %c0_88] : memref<224x1024xbf16, #tpu.memory_space<vmem>>, vector<16x1024xbf16>
    tpu.vector_store %arg8[%c208, %c0_88], %113 {strides = array<i32>} : memref<224x1024xbf16, #tpu.memory_space<vmem>>, vector<16x1024xbf16>,
    %c0_89 = arith.constant 0 : index
    %c0_90 = arith.constant 0 : index
    %115 = vector.load %arg3[%c0_89, %c0_90] : memref<8x224xbf16, #tpu.memory_space<vmem>>, vector<8x224xbf16>
    %c0_91 = arith.constant 0 : index
    %c0_92 = arith.constant 0 : index
    %116 = vector.load %arg8[%c0_91, %c0_92] : memref<224x1024xbf16, #tpu.memory_space<vmem>>, vector<224x1024xbf16>
    %cst_93 = arith.constant dense<0.000000e+00> : vector<8x1024xf32>
    %117 = tpu.matmul %115, %116, %cst_93 {dimension_numbers = #tpu.dot_dimension_numbers<[1], [0], [0], [1], [0, 0, 1, 1], [], []>} : vector<8x224xbf16>, vector<224x1024xbf16>, vector<8x1024xf32> -> vector<8x1024xf32>
    %118 = vector.broadcast %3 : vector<8x1xf32> to vector<8x1024xf32>
    %119 = arith.addf %117, %118 : vector<8x1024xf32>
    %120 = arith.mulf %119, %2 : vector<8x1024xf32>
    %cst_94 = arith.constant dense<0.000000e+00> : vector<8xf32>
    %121 = vector.multi_reduction <add>, %120, %cst_94 [1] : vector<8x1024xf32> to vector<8xf32>
    %122 = vector.shape_cast %121 : vector<8xf32> to vector<8x1xf32>
    %cst_95 = arith.constant 0.001953125 : f32
    %123 = vector.broadcast %cst_95 : f32 to vector<8x1xf32>
    %124 = arith.mulf %122, %123 : vector<8x1xf32>
    %125 = arith.mulf %120, %119 : vector<8x1024xf32>
    %cst_96 = arith.constant dense<0.000000e+00> : vector<8xf32>
    %126 = vector.multi_reduction <add>, %125, %cst_96 [1] : vector<8x1024xf32> to vector<8xf32>
    %127 = vector.shape_cast %126 : vector<8xf32> to vector<8x1xf32>
    %cst_97 = arith.constant 0.001953125 : f32
    %128 = vector.broadcast %cst_97 : f32 to vector<8x1xf32>
    %129 = arith.mulf %127, %128 : vector<8x1xf32>
    %130 = arith.mulf %124, %124 : vector<8x1xf32>
    %131 = arith.subf %129, %130 : vector<8x1xf32>
    %cst_98 = arith.constant 0.000000e+00 : f32
    %132 = vector.broadcast %cst_98 : f32 to vector<8x1xf32>
    %133 = arith.maximumf %131, %132 : vector<8x1xf32>
    %134 = vector.broadcast %124 : vector<8x1xf32> to vector<8x1024xf32>
    %135 = arith.subf %119, %134 : vector<8x1024xf32>
    %cst_99 = arith.constant 9.99999974E-6 : f32
    %136 = vector.broadcast %cst_99 : f32 to vector<8x1xf32>
    %137 = arith.addf %133, %136 : vector<8x1xf32>
    %138 = math.rsqrt %137 : vector<8x1xf32>
    %139 = vector.broadcast %138 : vector<8x1xf32> to vector<8x1024xf32>
    %140 = arith.mulf %135, %139 : vector<8x1024xf32>
    %141 = vector.broadcast %4 : vector<8x1xf32> to vector<8x1024xf32>
    %142 = arith.mulf %140, %141 : vector<8x1024xf32>
    %143 = vector.broadcast %5 : vector<8x1xf32> to vector<8x1024xf32>
    %144 = arith.addf %142, %143 : vector<8x1024xf32>
    %cst_100 = arith.constant 0.000000e+00 : f32
    %145 = vector.broadcast %cst_100 : f32 to vector<8x1024xf32>
    %146 = arith.cmpf oge, %144, %145 : vector<8x1024xf32>
    %cst_101 = arith.constant 0.229166672 : f32
    %147 = vector.broadcast %cst_101 : f32 to vector<8x1024xf32>
    %148 = arith.mulf %144, %147 : vector<8x1024xf32>
    %149 = arith.select %146, %144, %148 : vector<8x1024xi1>, vector<8x1024xf32>
    %150 = arith.mulf %149, %2 : vector<8x1024xf32>
    %c0_102 = arith.constant 0 : index
    %c128_103 = arith.constant 128 : index
    %151 = vector.load %arg9[%c0_102, %c128_103] : memref<8x1280xf32, #tpu.memory_space<vmem>>, vector<8x1024xf32>
    tpu.vector_store %arg9[%c0_102, %c128_103], %150 {strides = array<i32>} : memref<8x1280xf32, #tpu.memory_space<vmem>>, vector<8x1024xf32>,
    %c0_104 = arith.constant 0 : index
    %c17_105 = arith.constant 17 : index
    %152 = vector.load %arg9[%c0_104, %c17_105] : memref<8x1280xf32, #tpu.memory_space<vmem>>, vector<8x1024xf32>
    %c0_106 = arith.constant 0 : index
    %c18_107 = arith.constant 18 : index
    %153 = vector.load %arg9[%c0_106, %c18_107] : memref<8x1280xf32, #tpu.memory_space<vmem>>, vector<8x1024xf32>
    %154 = tpu.concatenate %152, %153 in 0 : vector<8x1024xf32>, vector<8x1024xf32> -> vector<16x1024xf32>
    %155 = arith.truncf %154 : vector<16x1024xf32> to vector<16x1024xbf16>
    %c0_108 = arith.constant 0 : index
    %c0_109 = arith.constant 0 : index
    %156 = vector.load %arg8[%c0_108, %c0_109] : memref<224x1024xbf16, #tpu.memory_space<vmem>>, vector<16x1024xbf16>
    tpu.vector_store %arg8[%c0_108, %c0_109], %155 {strides = array<i32>} : memref<224x1024xbf16, #tpu.memory_space<vmem>>, vector<16x1024xbf16>,
    %c0_110 = arith.constant 0 : index
    %c19_111 = arith.constant 19 : index
    %157 = vector.load %arg9[%c0_110, %c19_111] : memref<8x1280xf32, #tpu.memory_space<vmem>>, vector<8x1024xf32>
    %c0_112 = arith.constant 0 : index
    %c27_113 = arith.constant 27 : index
    %158 = vector.load %arg9[%c0_112, %c27_113] : memref<8x1280xf32, #tpu.memory_space<vmem>>, vector<8x1024xf32>
    %159 = tpu.concatenate %157, %158 in 0 : vector<8x1024xf32>, vector<8x1024xf32> -> vector<16x1024xf32>
    %160 = arith.truncf %159 : vector<16x1024xf32> to vector<16x1024xbf16>
    %c16_114 = arith.constant 16 : index
    %c0_115 = arith.constant 0 : index
    %161 = vector.load %arg8[%c16_114, %c0_115] : memref<224x1024xbf16, #tpu.memory_space<vmem>>, vector<16x1024xbf16>
    tpu.vector_store %arg8[%c16_114, %c0_115], %160 {strides = array<i32>} : memref<224x1024xbf16, #tpu.memory_space<vmem>>, vector<16x1024xbf16>,
    %c0_116 = arith.constant 0 : index
    %c28_117 = arith.constant 28 : index
    %162 = vector.load %arg9[%c0_116, %c28_117] : memref<8x1280xf32, #tpu.memory_space<vmem>>, vector<8x1024xf32>
    %c0_118 = arith.constant 0 : index
    %c29_119 = arith.constant 29 : index
    %163 = vector.load %arg9[%c0_118, %c29_119] : memref<8x1280xf32, #tpu.memory_space<vmem>>, vector<8x1024xf32>
    %164 = tpu.concatenate %162, %163 in 0 : vector<8x1024xf32>, vector<8x1024xf32> -> vector<16x1024xf32>
    %165 = arith.truncf %164 : vector<16x1024xf32> to vector<16x1024xbf16>
    %c32_120 = arith.constant 32 : index
    %c0_121 = arith.constant 0 : index
    %166 = vector.load %arg8[%c32_120, %c0_121] : memref<224x1024xbf16, #tpu.memory_space<vmem>>, vector<16x1024xbf16>
    tpu.vector_store %arg8[%c32_120, %c0_121], %165 {strides = array<i32>} : memref<224x1024xbf16, #tpu.memory_space<vmem>>, vector<16x1024xbf16>,
    %c0_122 = arith.constant 0 : index
    %c37_123 = arith.constant 37 : index
    %167 = vector.load %arg9[%c0_122, %c37_123] : memref<8x1280xf32, #tpu.memory_space<vmem>>, vector<8x1024xf32>
    %c0_124 = arith.constant 0 : index
    %c38_125 = arith.constant 38 : index
    %168 = vector.load %arg9[%c0_124, %c38_125] : memref<8x1280xf32, #tpu.memory_space<vmem>>, vector<8x1024xf32>
    %169 = tpu.concatenate %167, %168 in 0 : vector<8x1024xf32>, vector<8x1024xf32> -> vector<16x1024xf32>
    %170 = arith.truncf %169 : vector<16x1024xf32> to vector<16x1024xbf16>
    %c48_126 = arith.constant 48 : index
    %c0_127 = arith.constant 0 : index
    %171 = vector.load %arg8[%c48_126, %c0_127] : memref<224x1024xbf16, #tpu.memory_space<vmem>>, vector<16x1024xbf16>
    tpu.vector_store %arg8[%c48_126, %c0_127], %170 {strides = array<i32>} : memref<224x1024xbf16, #tpu.memory_space<vmem>>, vector<16x1024xbf16>,
    %c0_128 = arith.constant 0 : index
    %c39_129 = arith.constant 39 : index
    %172 = vector.load %arg9[%c0_128, %c39_129] : memref<8x1280xf32, #tpu.memory_space<vmem>>, vector<8x1024xf32>
    %c0_130 = arith.constant 0 : index
    %c117_131 = arith.constant 117 : index
    %173 = vector.load %arg9[%c0_130, %c117_131] : memref<8x1280xf32, #tpu.memory_space<vmem>>, vector<8x1024xf32>
    %174 = tpu.concatenate %172, %173 in 0 : vector<8x1024xf32>, vector<8x1024xf32> -> vector<16x1024xf32>
    %175 = arith.truncf %174 : vector<16x1024xf32> to vector<16x1024xbf16>
    %c64_132 = arith.constant 64 : index
    %c0_133 = arith.constant 0 : index
    %176 = vector.load %arg8[%c64_132, %c0_133] : memref<224x1024xbf16, #tpu.memory_space<vmem>>, vector<16x1024xbf16>
    tpu.vector_store %arg8[%c64_132, %c0_133], %175 {strides = array<i32>} : memref<224x1024xbf16, #tpu.memory_space<vmem>>, vector<16x1024xbf16>,
    %c0_134 = arith.constant 0 : index
    %c118_135 = arith.constant 118 : index
    %177 = vector.load %arg9[%c0_134, %c118_135] : memref<8x1280xf32, #tpu.memory_space<vmem>>, vector<8x1024xf32>
    %c0_136 = arith.constant 0 : index
    %c119_137 = arith.constant 119 : index
    %178 = vector.load %arg9[%c0_136, %c119_137] : memref<8x1280xf32, #tpu.memory_space<vmem>>, vector<8x1024xf32>
    %179 = tpu.concatenate %177, %178 in 0 : vector<8x1024xf32>, vector<8x1024xf32> -> vector<16x1024xf32>
    %180 = arith.truncf %179 : vector<16x1024xf32> to vector<16x1024xbf16>
    %c80_138 = arith.constant 80 : index
    %c0_139 = arith.constant 0 : index
    %181 = vector.load %arg8[%c80_138, %c0_139] : memref<224x1024xbf16, #tpu.memory_space<vmem>>, vector<16x1024xbf16>
    tpu.vector_store %arg8[%c80_138, %c0_139], %180 {strides = array<i32>} : memref<224x1024xbf16, #tpu.memory_space<vmem>>, vector<16x1024xbf16>,
    %c0_140 = arith.constant 0 : index
    %c127_141 = arith.constant 127 : index
    %182 = vector.load %arg9[%c0_140, %c127_141] : memref<8x1280xf32, #tpu.memory_space<vmem>>, vector<8x1024xf32>
    %c0_142 = arith.constant 0 : index
    %c128_143 = arith.constant 128 : index
    %183 = vector.load %arg9[%c0_142, %c128_143] : memref<8x1280xf32, #tpu.memory_space<vmem>>, vector<8x1024xf32>
    %184 = tpu.concatenate %182, %183 in 0 : vector<8x1024xf32>, vector<8x1024xf32> -> vector<16x1024xf32>
    %185 = arith.truncf %184 : vector<16x1024xf32> to vector<16x1024xbf16>
    %c96_144 = arith.constant 96 : index
    %c0_145 = arith.constant 0 : index
    %186 = vector.load %arg8[%c96_144, %c0_145] : memref<224x1024xbf16, #tpu.memory_space<vmem>>, vector<16x1024xbf16>
    tpu.vector_store %arg8[%c96_144, %c0_145], %185 {strides = array<i32>} : memref<224x1024xbf16, #tpu.memory_space<vmem>>, vector<16x1024xbf16>,
    %c0_146 = arith.constant 0 : index
    %c129_147 = arith.constant 129 : index
    %187 = vector.load %arg9[%c0_146, %c129_147] : memref<8x1280xf32, #tpu.memory_space<vmem>>, vector<8x1024xf32>
    %c0_148 = arith.constant 0 : index
    %c137_149 = arith.constant 137 : index
    %188 = vector.load %arg9[%c0_148, %c137_149] : memref<8x1280xf32, #tpu.memory_space<vmem>>, vector<8x1024xf32>
    %189 = tpu.concatenate %187, %188 in 0 : vector<8x1024xf32>, vector<8x1024xf32> -> vector<16x1024xf32>
    %190 = arith.truncf %189 : vector<16x1024xf32> to vector<16x1024xbf16>
    %c112_150 = arith.constant 112 : index
    %c0_151 = arith.constant 0 : index
    %191 = vector.load %arg8[%c112_150, %c0_151] : memref<224x1024xbf16, #tpu.memory_space<vmem>>, vector<16x1024xbf16>
    tpu.vector_store %arg8[%c112_150, %c0_151], %190 {strides = array<i32>} : memref<224x1024xbf16, #tpu.memory_space<vmem>>, vector<16x1024xbf16>,
    %c0_152 = arith.constant 0 : index
    %c138_153 = arith.constant 138 : index
    %192 = vector.load %arg9[%c0_152, %c138_153] : memref<8x1280xf32, #tpu.memory_space<vmem>>, vector<8x1024xf32>
    %c0_154 = arith.constant 0 : index
    %c139_155 = arith.constant 139 : index
    %193 = vector.load %arg9[%c0_154, %c139_155] : memref<8x1280xf32, #tpu.memory_space<vmem>>, vector<8x1024xf32>
    %194 = tpu.concatenate %192, %193 in 0 : vector<8x1024xf32>, vector<8x1024xf32> -> vector<16x1024xf32>
    %195 = arith.truncf %194 : vector<16x1024xf32> to vector<16x1024xbf16>
    %c128_156 = arith.constant 128 : index
    %c0_157 = arith.constant 0 : index
    %196 = vector.load %arg8[%c128_156, %c0_157] : memref<224x1024xbf16, #tpu.memory_space<vmem>>, vector<16x1024xbf16>
    tpu.vector_store %arg8[%c128_156, %c0_157], %195 {strides = array<i32>} : memref<224x1024xbf16, #tpu.memory_space<vmem>>, vector<16x1024xbf16>,
    %c0_158 = arith.constant 0 : index
    %c217_159 = arith.constant 217 : index
    %197 = vector.load %arg9[%c0_158, %c217_159] : memref<8x1280xf32, #tpu.memory_space<vmem>>, vector<8x1024xf32>
    %c0_160 = arith.constant 0 : index
    %c218_161 = arith.constant 218 : index
    %198 = vector.load %arg9[%c0_160, %c218_161] : memref<8x1280xf32, #tpu.memory_space<vmem>>, vector<8x1024xf32>
    %199 = tpu.concatenate %197, %198 in 0 : vector<8x1024xf32>, vector<8x1024xf32> -> vector<16x1024xf32>
    %200 = arith.truncf %199 : vector<16x1024xf32> to vector<16x1024xbf16>
    %c144_162 = arith.constant 144 : index
    %c0_163 = arith.constant 0 : index
    %201 = vector.load %arg8[%c144_162, %c0_163] : memref<224x1024xbf16, #tpu.memory_space<vmem>>, vector<16x1024xbf16>
    tpu.vector_store %arg8[%c144_162, %c0_163], %200 {strides = array<i32>} : memref<224x1024xbf16, #tpu.memory_space<vmem>>, vector<16x1024xbf16>,
    %c0_164 = arith.constant 0 : index
    %c219_165 = arith.constant 219 : index
    %202 = vector.load %arg9[%c0_164, %c219_165] : memref<8x1280xf32, #tpu.memory_space<vmem>>, vector<8x1024xf32>
    %c0_166 = arith.constant 0 : index
    %c227_167 = arith.constant 227 : index
    %203 = vector.load %arg9[%c0_166, %c227_167] : memref<8x1280xf32, #tpu.memory_space<vmem>>, vector<8x1024xf32>
    %204 = tpu.concatenate %202, %203 in 0 : vector<8x1024xf32>, vector<8x1024xf32> -> vector<16x1024xf32>
    %205 = arith.truncf %204 : vector<16x1024xf32> to vector<16x1024xbf16>
    %c160_168 = arith.constant 160 : index
    %c0_169 = arith.constant 0 : index
    %206 = vector.load %arg8[%c160_168, %c0_169] : memref<224x1024xbf16, #tpu.memory_space<vmem>>, vector<16x1024xbf16>
    tpu.vector_store %arg8[%c160_168, %c0_169], %205 {strides = array<i32>} : memref<224x1024xbf16, #tpu.memory_space<vmem>>, vector<16x1024xbf16>,
    %c0_170 = arith.constant 0 : index
    %c228_171 = arith.constant 228 : index
    %207 = vector.load %arg9[%c0_170, %c228_171] : memref<8x1280xf32, #tpu.memory_space<vmem>>, vector<8x1024xf32>
    %c0_172 = arith.constant 0 : index
    %c229_173 = arith.constant 229 : index
    %208 = vector.load %arg9[%c0_172, %c229_173] : memref<8x1280xf32, #tpu.memory_space<vmem>>, vector<8x1024xf32>
    %209 = tpu.concatenate %207, %208 in 0 : vector<8x1024xf32>, vector<8x1024xf32> -> vector<16x1024xf32>
    %210 = arith.truncf %209 : vector<16x1024xf32> to vector<16x1024xbf16>
    %c176_174 = arith.constant 176 : index
    %c0_175 = arith.constant 0 : index
    %211 = vector.load %arg8[%c176_174, %c0_175] : memref<224x1024xbf16, #tpu.memory_space<vmem>>, vector<16x1024xbf16>
    tpu.vector_store %arg8[%c176_174, %c0_175], %210 {strides = array<i32>} : memref<224x1024xbf16, #tpu.memory_space<vmem>>, vector<16x1024xbf16>,
    %c0_176 = arith.constant 0 : index
    %c237_177 = arith.constant 237 : index
    %212 = vector.load %arg9[%c0_176, %c237_177] : memref<8x1280xf32, #tpu.memory_space<vmem>>, vector<8x1024xf32>
    %c0_178 = arith.constant 0 : index
    %c238_179 = arith.constant 238 : index
    %213 = vector.load %arg9[%c0_178, %c238_179] : memref<8x1280xf32, #tpu.memory_space<vmem>>, vector<8x1024xf32>
    %214 = tpu.concatenate %212, %213 in 0 : vector<8x1024xf32>, vector<8x1024xf32> -> vector<16x1024xf32>
    %215 = arith.truncf %214 : vector<16x1024xf32> to vector<16x1024xbf16>
    %c192_180 = arith.constant 192 : index
    %c0_181 = arith.constant 0 : index
    %216 = vector.load %arg8[%c192_180, %c0_181] : memref<224x1024xbf16, #tpu.memory_space<vmem>>, vector<16x1024xbf16>
    tpu.vector_store %arg8[%c192_180, %c0_181], %215 {strides = array<i32>} : memref<224x1024xbf16, #tpu.memory_space<vmem>>, vector<16x1024xbf16>,
    %c0_182 = arith.constant 0 : index
    %c239_183 = arith.constant 239 : index
    %217 = vector.load %arg9[%c0_182, %c239_183] : memref<8x1280xf32, #tpu.memory_space<vmem>>, vector<8x1024xf32>
    %cst_184 = arith.constant 0.000000e+00 : f32
    %218 = vector.broadcast %cst_184 : f32 to vector<8x1024xf32>
    %219 = tpu.concatenate %217, %218 in 0 : vector<8x1024xf32>, vector<8x1024xf32> -> vector<16x1024xf32>
    %220 = arith.truncf %219 : vector<16x1024xf32> to vector<16x1024xbf16>
    %c208_185 = arith.constant 208 : index
    %c0_186 = arith.constant 0 : index
    %221 = vector.load %arg8[%c208_185, %c0_186] : memref<224x1024xbf16, #tpu.memory_space<vmem>>, vector<16x1024xbf16>
    tpu.vector_store %arg8[%c208_185, %c0_186], %220 {strides = array<i32>} : memref<224x1024xbf16, #tpu.memory_space<vmem>>, vector<16x1024xbf16>,
    %c0_187 = arith.constant 0 : index
    %c0_188 = arith.constant 0 : index
    %222 = vector.load %arg4[%c0_187, %c0_188] : memref<8x224xbf16, #tpu.memory_space<vmem>>, vector<8x224xbf16>
    %c0_189 = arith.constant 0 : index
    %c0_190 = arith.constant 0 : index
    %223 = vector.load %arg8[%c0_189, %c0_190] : memref<224x1024xbf16, #tpu.memory_space<vmem>>, vector<224x1024xbf16>
    %cst_191 = arith.constant dense<0.000000e+00> : vector<8x1024xf32>
    %224 = tpu.matmul %222, %223, %cst_191 {dimension_numbers = #tpu.dot_dimension_numbers<[1], [0], [0], [1], [0, 0, 1, 1], [], []>} : vector<8x224xbf16>, vector<224x1024xbf16>, vector<8x1024xf32> -> vector<8x1024xf32>
    %225 = vector.broadcast %6 : vector<8x1xf32> to vector<8x1024xf32>
    %226 = arith.addf %224, %225 : vector<8x1024xf32>
    %227 = arith.mulf %226, %2 : vector<8x1024xf32>
    %cst_192 = arith.constant dense<0.000000e+00> : vector<8xf32>
    %228 = vector.multi_reduction <add>, %227, %cst_192 [1] : vector<8x1024xf32> to vector<8xf32>
    %229 = vector.shape_cast %228 : vector<8xf32> to vector<8x1xf32>
    %cst_193 = arith.constant 0.001953125 : f32
    %230 = vector.broadcast %cst_193 : f32 to vector<8x1xf32>
    %231 = arith.mulf %229, %230 : vector<8x1xf32>
    %232 = arith.mulf %227, %226 : vector<8x1024xf32>
    %cst_194 = arith.constant dense<0.000000e+00> : vector<8xf32>
    %233 = vector.multi_reduction <add>, %232, %cst_194 [1] : vector<8x1024xf32> to vector<8xf32>
    %234 = vector.shape_cast %233 : vector<8xf32> to vector<8x1xf32>
    %cst_195 = arith.constant 0.001953125 : f32
    %235 = vector.broadcast %cst_195 : f32 to vector<8x1xf32>
    %236 = arith.mulf %234, %235 : vector<8x1xf32>
    %237 = arith.mulf %231, %231 : vector<8x1xf32>
    %238 = arith.subf %236, %237 : vector<8x1xf32>
    %cst_196 = arith.constant 0.000000e+00 : f32
    %239 = vector.broadcast %cst_196 : f32 to vector<8x1xf32>
    %240 = arith.maximumf %238, %239 : vector<8x1xf32>
    %241 = vector.broadcast %231 : vector<8x1xf32> to vector<8x1024xf32>
    %242 = arith.subf %226, %241 : vector<8x1024xf32>
    %cst_197 = arith.constant 9.99999974E-6 : f32
    %243 = vector.broadcast %cst_197 : f32 to vector<8x1xf32>
    %244 = arith.addf %240, %243 : vector<8x1xf32>
    %245 = math.rsqrt %244 : vector<8x1xf32>
    %246 = vector.broadcast %245 : vector<8x1xf32> to vector<8x1024xf32>
    %247 = arith.mulf %242, %246 : vector<8x1024xf32>
    %248 = vector.broadcast %7 : vector<8x1xf32> to vector<8x1024xf32>
    %249 = arith.mulf %247, %248 : vector<8x1024xf32>
    %250 = vector.broadcast %8 : vector<8x1xf32> to vector<8x1024xf32>
    %251 = arith.addf %249, %250 : vector<8x1024xf32>
    %252 = arith.addf %251, %13 : vector<8x1024xf32>
    %cst_198 = arith.constant 0.000000e+00 : f32
    %253 = vector.broadcast %cst_198 : f32 to vector<8x1024xf32>
    %254 = arith.cmpf oge, %252, %253 : vector<8x1024xf32>
    %cst_199 = arith.constant 0.229166672 : f32
    %255 = vector.broadcast %cst_199 : f32 to vector<8x1024xf32>
    %256 = arith.mulf %252, %255 : vector<8x1024xf32>
    %257 = arith.select %254, %252, %256 : vector<8x1024xi1>, vector<8x1024xf32>
    %258 = arith.mulf %257, %2 : vector<8x1024xf32>
    %c0_200 = arith.constant 0 : index
    %c128_201 = arith.constant 128 : index
    %259 = vector.load %arg9[%c0_200, %c128_201] : memref<8x1280xf32, #tpu.memory_space<vmem>>, vector<8x1024xf32>
    tpu.vector_store %arg9[%c0_200, %c128_201], %258 {strides = array<i32>} : memref<8x1280xf32, #tpu.memory_space<vmem>>, vector<8x1024xf32>,
    %c0_202 = arith.constant 0 : index
    %c17_203 = arith.constant 17 : index
    %260 = vector.load %arg9[%c0_202, %c17_203] : memref<8x1280xf32, #tpu.memory_space<vmem>>, vector<8x1024xf32>
    %c0_204 = arith.constant 0 : index
    %c18_205 = arith.constant 18 : index
    %261 = vector.load %arg9[%c0_204, %c18_205] : memref<8x1280xf32, #tpu.memory_space<vmem>>, vector<8x1024xf32>
    %262 = tpu.concatenate %260, %261 in 0 : vector<8x1024xf32>, vector<8x1024xf32> -> vector<16x1024xf32>
    %263 = arith.truncf %262 : vector<16x1024xf32> to vector<16x1024xbf16>
    %c0_206 = arith.constant 0 : index
    %c0_207 = arith.constant 0 : index
    %264 = vector.load %arg8[%c0_206, %c0_207] : memref<224x1024xbf16, #tpu.memory_space<vmem>>, vector<16x1024xbf16>
    tpu.vector_store %arg8[%c0_206, %c0_207], %263 {strides = array<i32>} : memref<224x1024xbf16, #tpu.memory_space<vmem>>, vector<16x1024xbf16>,
    %c0_208 = arith.constant 0 : index
    %c19_209 = arith.constant 19 : index
    %265 = vector.load %arg9[%c0_208, %c19_209] : memref<8x1280xf32, #tpu.memory_space<vmem>>, vector<8x1024xf32>
    %c0_210 = arith.constant 0 : index
    %c27_211 = arith.constant 27 : index
    %266 = vector.load %arg9[%c0_210, %c27_211] : memref<8x1280xf32, #tpu.memory_space<vmem>>, vector<8x1024xf32>
    %267 = tpu.concatenate %265, %266 in 0 : vector<8x1024xf32>, vector<8x1024xf32> -> vector<16x1024xf32>
    %268 = arith.truncf %267 : vector<16x1024xf32> to vector<16x1024xbf16>
    %c16_212 = arith.constant 16 : index
    %c0_213 = arith.constant 0 : index
    %269 = vector.load %arg8[%c16_212, %c0_213] : memref<224x1024xbf16, #tpu.memory_space<vmem>>, vector<16x1024xbf16>
    tpu.vector_store %arg8[%c16_212, %c0_213], %268 {strides = array<i32>} : memref<224x1024xbf16, #tpu.memory_space<vmem>>, vector<16x1024xbf16>,
    %c0_214 = arith.constant 0 : index
    %c28_215 = arith.constant 28 : index
    %270 = vector.load %arg9[%c0_214, %c28_215] : memref<8x1280xf32, #tpu.memory_space<vmem>>, vector<8x1024xf32>
    %c0_216 = arith.constant 0 : index
    %c29_217 = arith.constant 29 : index
    %271 = vector.load %arg9[%c0_216, %c29_217] : memref<8x1280xf32, #tpu.memory_space<vmem>>, vector<8x1024xf32>
    %272 = tpu.concatenate %270, %271 in 0 : vector<8x1024xf32>, vector<8x1024xf32> -> vector<16x1024xf32>
    %273 = arith.truncf %272 : vector<16x1024xf32> to vector<16x1024xbf16>
    %c32_218 = arith.constant 32 : index
    %c0_219 = arith.constant 0 : index
    %274 = vector.load %arg8[%c32_218, %c0_219] : memref<224x1024xbf16, #tpu.memory_space<vmem>>, vector<16x1024xbf16>
    tpu.vector_store %arg8[%c32_218, %c0_219], %273 {strides = array<i32>} : memref<224x1024xbf16, #tpu.memory_space<vmem>>, vector<16x1024xbf16>,
    %c0_220 = arith.constant 0 : index
    %c37_221 = arith.constant 37 : index
    %275 = vector.load %arg9[%c0_220, %c37_221] : memref<8x1280xf32, #tpu.memory_space<vmem>>, vector<8x1024xf32>
    %c0_222 = arith.constant 0 : index
    %c38_223 = arith.constant 38 : index
    %276 = vector.load %arg9[%c0_222, %c38_223] : memref<8x1280xf32, #tpu.memory_space<vmem>>, vector<8x1024xf32>
    %277 = tpu.concatenate %275, %276 in 0 : vector<8x1024xf32>, vector<8x1024xf32> -> vector<16x1024xf32>
    %278 = arith.truncf %277 : vector<16x1024xf32> to vector<16x1024xbf16>
    %c48_224 = arith.constant 48 : index
    %c0_225 = arith.constant 0 : index
    %279 = vector.load %arg8[%c48_224, %c0_225] : memref<224x1024xbf16, #tpu.memory_space<vmem>>, vector<16x1024xbf16>
    tpu.vector_store %arg8[%c48_224, %c0_225], %278 {strides = array<i32>} : memref<224x1024xbf16, #tpu.memory_space<vmem>>, vector<16x1024xbf16>,
    %c0_226 = arith.constant 0 : index
    %c39_227 = arith.constant 39 : index
    %280 = vector.load %arg9[%c0_226, %c39_227] : memref<8x1280xf32, #tpu.memory_space<vmem>>, vector<8x1024xf32>
    %c0_228 = arith.constant 0 : index
    %c117_229 = arith.constant 117 : index
    %281 = vector.load %arg9[%c0_228, %c117_229] : memref<8x1280xf32, #tpu.memory_space<vmem>>, vector<8x1024xf32>
    %282 = tpu.concatenate %280, %281 in 0 : vector<8x1024xf32>, vector<8x1024xf32> -> vector<16x1024xf32>
    %283 = arith.truncf %282 : vector<16x1024xf32> to vector<16x1024xbf16>
    %c64_230 = arith.constant 64 : index
    %c0_231 = arith.constant 0 : index
    %284 = vector.load %arg8[%c64_230, %c0_231] : memref<224x1024xbf16, #tpu.memory_space<vmem>>, vector<16x1024xbf16>
    tpu.vector_store %arg8[%c64_230, %c0_231], %283 {strides = array<i32>} : memref<224x1024xbf16, #tpu.memory_space<vmem>>, vector<16x1024xbf16>,
    %c0_232 = arith.constant 0 : index
    %c118_233 = arith.constant 118 : index
    %285 = vector.load %arg9[%c0_232, %c118_233] : memref<8x1280xf32, #tpu.memory_space<vmem>>, vector<8x1024xf32>
    %c0_234 = arith.constant 0 : index
    %c119_235 = arith.constant 119 : index
    %286 = vector.load %arg9[%c0_234, %c119_235] : memref<8x1280xf32, #tpu.memory_space<vmem>>, vector<8x1024xf32>
    %287 = tpu.concatenate %285, %286 in 0 : vector<8x1024xf32>, vector<8x1024xf32> -> vector<16x1024xf32>
    %288 = arith.truncf %287 : vector<16x1024xf32> to vector<16x1024xbf16>
    %c80_236 = arith.constant 80 : index
    %c0_237 = arith.constant 0 : index
    %289 = vector.load %arg8[%c80_236, %c0_237] : memref<224x1024xbf16, #tpu.memory_space<vmem>>, vector<16x1024xbf16>
    tpu.vector_store %arg8[%c80_236, %c0_237], %288 {strides = array<i32>} : memref<224x1024xbf16, #tpu.memory_space<vmem>>, vector<16x1024xbf16>,
    %c0_238 = arith.constant 0 : index
    %c127_239 = arith.constant 127 : index
    %290 = vector.load %arg9[%c0_238, %c127_239] : memref<8x1280xf32, #tpu.memory_space<vmem>>, vector<8x1024xf32>
    %c0_240 = arith.constant 0 : index
    %c128_241 = arith.constant 128 : index
    %291 = vector.load %arg9[%c0_240, %c128_241] : memref<8x1280xf32, #tpu.memory_space<vmem>>, vector<8x1024xf32>
    %292 = tpu.concatenate %290, %291 in 0 : vector<8x1024xf32>, vector<8x1024xf32> -> vector<16x1024xf32>
    %293 = arith.truncf %292 : vector<16x1024xf32> to vector<16x1024xbf16>
    %c96_242 = arith.constant 96 : index
    %c0_243 = arith.constant 0 : index
    %294 = vector.load %arg8[%c96_242, %c0_243] : memref<224x1024xbf16, #tpu.memory_space<vmem>>, vector<16x1024xbf16>
    tpu.vector_store %arg8[%c96_242, %c0_243], %293 {strides = array<i32>} : memref<224x1024xbf16, #tpu.memory_space<vmem>>, vector<16x1024xbf16>,
    %c0_244 = arith.constant 0 : index
    %c129_245 = arith.constant 129 : index
    %295 = vector.load %arg9[%c0_244, %c129_245] : memref<8x1280xf32, #tpu.memory_space<vmem>>, vector<8x1024xf32>
    %c0_246 = arith.constant 0 : index
    %c137_247 = arith.constant 137 : index
    %296 = vector.load %arg9[%c0_246, %c137_247] : memref<8x1280xf32, #tpu.memory_space<vmem>>, vector<8x1024xf32>
    %297 = tpu.concatenate %295, %296 in 0 : vector<8x1024xf32>, vector<8x1024xf32> -> vector<16x1024xf32>
    %298 = arith.truncf %297 : vector<16x1024xf32> to vector<16x1024xbf16>
    %c112_248 = arith.constant 112 : index
    %c0_249 = arith.constant 0 : index
    %299 = vector.load %arg8[%c112_248, %c0_249] : memref<224x1024xbf16, #tpu.memory_space<vmem>>, vector<16x1024xbf16>
    tpu.vector_store %arg8[%c112_248, %c0_249], %298 {strides = array<i32>} : memref<224x1024xbf16, #tpu.memory_space<vmem>>, vector<16x1024xbf16>,
    %c0_250 = arith.constant 0 : index
    %c138_251 = arith.constant 138 : index
    %300 = vector.load %arg9[%c0_250, %c138_251] : memref<8x1280xf32, #tpu.memory_space<vmem>>, vector<8x1024xf32>
    %c0_252 = arith.constant 0 : index
    %c139_253 = arith.constant 139 : index
    %301 = vector.load %arg9[%c0_252, %c139_253] : memref<8x1280xf32, #tpu.memory_space<vmem>>, vector<8x1024xf32>
    %302 = tpu.concatenate %300, %301 in 0 : vector<8x1024xf32>, vector<8x1024xf32> -> vector<16x1024xf32>
    %303 = arith.truncf %302 : vector<16x1024xf32> to vector<16x1024xbf16>
    %c128_254 = arith.constant 128 : index
    %c0_255 = arith.constant 0 : index
    %304 = vector.load %arg8[%c128_254, %c0_255] : memref<224x1024xbf16, #tpu.memory_space<vmem>>, vector<16x1024xbf16>
    tpu.vector_store %arg8[%c128_254, %c0_255], %303 {strides = array<i32>} : memref<224x1024xbf16, #tpu.memory_space<vmem>>, vector<16x1024xbf16>,
    %c0_256 = arith.constant 0 : index
    %c217_257 = arith.constant 217 : index
    %305 = vector.load %arg9[%c0_256, %c217_257] : memref<8x1280xf32, #tpu.memory_space<vmem>>, vector<8x1024xf32>
    %c0_258 = arith.constant 0 : index
    %c218_259 = arith.constant 218 : index
    %306 = vector.load %arg9[%c0_258, %c218_259] : memref<8x1280xf32, #tpu.memory_space<vmem>>, vector<8x1024xf32>
    %307 = tpu.concatenate %305, %306 in 0 : vector<8x1024xf32>, vector<8x1024xf32> -> vector<16x1024xf32>
    %308 = arith.truncf %307 : vector<16x1024xf32> to vector<16x1024xbf16>
    %c144_260 = arith.constant 144 : index
    %c0_261 = arith.constant 0 : index
    %309 = vector.load %arg8[%c144_260, %c0_261] : memref<224x1024xbf16, #tpu.memory_space<vmem>>, vector<16x1024xbf16>
    tpu.vector_store %arg8[%c144_260, %c0_261], %308 {strides = array<i32>} : memref<224x1024xbf16, #tpu.memory_space<vmem>>, vector<16x1024xbf16>,
    %c0_262 = arith.constant 0 : index
    %c219_263 = arith.constant 219 : index
    %310 = vector.load %arg9[%c0_262, %c219_263] : memref<8x1280xf32, #tpu.memory_space<vmem>>, vector<8x1024xf32>
    %c0_264 = arith.constant 0 : index
    %c227_265 = arith.constant 227 : index
    %311 = vector.load %arg9[%c0_264, %c227_265] : memref<8x1280xf32, #tpu.memory_space<vmem>>, vector<8x1024xf32>
    %312 = tpu.concatenate %310, %311 in 0 : vector<8x1024xf32>, vector<8x1024xf32> -> vector<16x1024xf32>
    %313 = arith.truncf %312 : vector<16x1024xf32> to vector<16x1024xbf16>
    %c160_266 = arith.constant 160 : index
    %c0_267 = arith.constant 0 : index
    %314 = vector.load %arg8[%c160_266, %c0_267] : memref<224x1024xbf16, #tpu.memory_space<vmem>>, vector<16x1024xbf16>
    tpu.vector_store %arg8[%c160_266, %c0_267], %313 {strides = array<i32>} : memref<224x1024xbf16, #tpu.memory_space<vmem>>, vector<16x1024xbf16>,
    %c0_268 = arith.constant 0 : index
    %c228_269 = arith.constant 228 : index
    %315 = vector.load %arg9[%c0_268, %c228_269] : memref<8x1280xf32, #tpu.memory_space<vmem>>, vector<8x1024xf32>
    %c0_270 = arith.constant 0 : index
    %c229_271 = arith.constant 229 : index
    %316 = vector.load %arg9[%c0_270, %c229_271] : memref<8x1280xf32, #tpu.memory_space<vmem>>, vector<8x1024xf32>
    %317 = tpu.concatenate %315, %316 in 0 : vector<8x1024xf32>, vector<8x1024xf32> -> vector<16x1024xf32>
    %318 = arith.truncf %317 : vector<16x1024xf32> to vector<16x1024xbf16>
    %c176_272 = arith.constant 176 : index
    %c0_273 = arith.constant 0 : index
    %319 = vector.load %arg8[%c176_272, %c0_273] : memref<224x1024xbf16, #tpu.memory_space<vmem>>, vector<16x1024xbf16>
    tpu.vector_store %arg8[%c176_272, %c0_273], %318 {strides = array<i32>} : memref<224x1024xbf16, #tpu.memory_space<vmem>>, vector<16x1024xbf16>,
    %c0_274 = arith.constant 0 : index
    %c237_275 = arith.constant 237 : index
    %320 = vector.load %arg9[%c0_274, %c237_275] : memref<8x1280xf32, #tpu.memory_space<vmem>>, vector<8x1024xf32>
    %c0_276 = arith.constant 0 : index
    %c238_277 = arith.constant 238 : index
    %321 = vector.load %arg9[%c0_276, %c238_277] : memref<8x1280xf32, #tpu.memory_space<vmem>>, vector<8x1024xf32>
    %322 = tpu.concatenate %320, %321 in 0 : vector<8x1024xf32>, vector<8x1024xf32> -> vector<16x1024xf32>
    %323 = arith.truncf %322 : vector<16x1024xf32> to vector<16x1024xbf16>
    %c192_278 = arith.constant 192 : index
    %c0_279 = arith.constant 0 : index
    %324 = vector.load %arg8[%c192_278, %c0_279] : memref<224x1024xbf16, #tpu.memory_space<vmem>>, vector<16x1024xbf16>
    tpu.vector_store %arg8[%c192_278, %c0_279], %323 {strides = array<i32>} : memref<224x1024xbf16, #tpu.memory_space<vmem>>, vector<16x1024xbf16>,
    %c0_280 = arith.constant 0 : index
    %c239_281 = arith.constant 239 : index
    %325 = vector.load %arg9[%c0_280, %c239_281] : memref<8x1280xf32, #tpu.memory_space<vmem>>, vector<8x1024xf32>
    %cst_282 = arith.constant 0.000000e+00 : f32
    %326 = vector.broadcast %cst_282 : f32 to vector<8x1024xf32>
    %327 = tpu.concatenate %325, %326 in 0 : vector<8x1024xf32>, vector<8x1024xf32> -> vector<16x1024xf32>
    %328 = arith.truncf %327 : vector<16x1024xf32> to vector<16x1024xbf16>
    %c208_283 = arith.constant 208 : index
    %c0_284 = arith.constant 0 : index
    %329 = vector.load %arg8[%c208_283, %c0_284] : memref<224x1024xbf16, #tpu.memory_space<vmem>>, vector<16x1024xbf16>
    tpu.vector_store %arg8[%c208_283, %c0_284], %328 {strides = array<i32>} : memref<224x1024xbf16, #tpu.memory_space<vmem>>, vector<16x1024xbf16>,
    %c0_285 = arith.constant 0 : index
    %c0_286 = arith.constant 0 : index
    %330 = vector.load %arg5[%c0_285, %c0_286] : memref<8x224xbf16, #tpu.memory_space<vmem>>, vector<8x224xbf16>
    %c0_287 = arith.constant 0 : index
    %c0_288 = arith.constant 0 : index
    %331 = vector.load %arg8[%c0_287, %c0_288] : memref<224x1024xbf16, #tpu.memory_space<vmem>>, vector<224x1024xbf16>
    %cst_289 = arith.constant dense<0.000000e+00> : vector<8x1024xf32>
    %332 = tpu.matmul %330, %331, %cst_289 {dimension_numbers = #tpu.dot_dimension_numbers<[1], [0], [0], [1], [0, 0, 1, 1], [], []>} : vector<8x224xbf16>, vector<224x1024xbf16>, vector<8x1024xf32> -> vector<8x1024xf32>
    %333 = vector.broadcast %9 : vector<8x1xf32> to vector<8x1024xf32>
    %334 = arith.addf %332, %333 : vector<8x1024xf32>
    %335 = arith.mulf %334, %2 : vector<8x1024xf32>
    %cst_290 = arith.constant dense<0.000000e+00> : vector<8xf32>
    %336 = vector.multi_reduction <add>, %335, %cst_290 [1] : vector<8x1024xf32> to vector<8xf32>
    %337 = vector.shape_cast %336 : vector<8xf32> to vector<8x1xf32>
    %cst_291 = arith.constant 0.001953125 : f32
    %338 = vector.broadcast %cst_291 : f32 to vector<8x1xf32>
    %339 = arith.mulf %337, %338 : vector<8x1xf32>
    %340 = arith.mulf %335, %334 : vector<8x1024xf32>
    %cst_292 = arith.constant dense<0.000000e+00> : vector<8xf32>
    %341 = vector.multi_reduction <add>, %340, %cst_292 [1] : vector<8x1024xf32> to vector<8xf32>
    %342 = vector.shape_cast %341 : vector<8xf32> to vector<8x1xf32>
    %cst_293 = arith.constant 0.001953125 : f32
    %343 = vector.broadcast %cst_293 : f32 to vector<8x1xf32>
    %344 = arith.mulf %342, %343 : vector<8x1xf32>
    %345 = arith.mulf %339, %339 : vector<8x1xf32>
    %346 = arith.subf %344, %345 : vector<8x1xf32>
    %cst_294 = arith.constant 0.000000e+00 : f32
    %347 = vector.broadcast %cst_294 : f32 to vector<8x1xf32>
    %348 = arith.maximumf %346, %347 : vector<8x1xf32>
    %349 = vector.broadcast %339 : vector<8x1xf32> to vector<8x1024xf32>
    %350 = arith.subf %334, %349 : vector<8x1024xf32>
    %cst_295 = arith.constant 9.99999974E-6 : f32
    %351 = vector.broadcast %cst_295 : f32 to vector<8x1xf32>
    %352 = arith.addf %348, %351 : vector<8x1xf32>
    %353 = math.rsqrt %352 : vector<8x1xf32>
    %354 = vector.broadcast %353 : vector<8x1xf32> to vector<8x1024xf32>
    %355 = arith.mulf %350, %354 : vector<8x1024xf32>
    %356 = vector.broadcast %10 : vector<8x1xf32> to vector<8x1024xf32>
    %357 = arith.mulf %355, %356 : vector<8x1024xf32>
    %358 = vector.broadcast %11 : vector<8x1xf32> to vector<8x1024xf32>
    %359 = arith.addf %357, %358 : vector<8x1024xf32>
    %cst_296 = arith.constant 0.000000e+00 : f32
    %360 = vector.broadcast %cst_296 : f32 to vector<8x1024xf32>
    %361 = arith.cmpf oge, %359, %360 : vector<8x1024xf32>
    %cst_297 = arith.constant 0.229166672 : f32
    %362 = vector.broadcast %cst_297 : f32 to vector<8x1024xf32>
    %363 = arith.mulf %359, %362 : vector<8x1024xf32>
    %364 = arith.select %361, %359, %363 : vector<8x1024xi1>, vector<8x1024xf32>
    %c0_298 = arith.constant 0 : index
    %c0_299 = arith.constant 0 : index
    %c0_300 = arith.constant 0 : index
    %365 = vector.load %arg7[%c0_298, %c0_299, %c0_300] : memref<1x8x1024xf32, #tpu.memory_space<vmem>>, vector<1x8x1024xf32>
    %366 = vector.shape_cast %365 : vector<1x8x1024xf32> to vector<8x1024xf32>
    %367 = vector.shape_cast %364 : vector<8x1024xf32> to vector<1x8x1024xf32>
    tpu.vector_store %arg7[%c0_298, %c0_299, %c0_300], %367 {strides = array<i32>} : memref<1x8x1024xf32, #tpu.memory_space<vmem>>, vector<1x8x1024xf32>,
    return
  }
  func.func @transform_0(%arg0: i32) -> (i32, i32, i32) {
    %c0_i32 = arith.constant 0 : i32
    %c0_i32_0 = arith.constant 0 : i32
    %c0_i32_1 = arith.constant 0 : i32
    return %arg0, %c0_i32, %c0_i32_0 : i32, i32, i32
  }
  func.func @transform_1(%arg0: i32) -> (i32, i32) {
    %c0_i32 = arith.constant 0 : i32
    %c0_i32_0 = arith.constant 0 : i32
    %c0_i32_1 = arith.constant 0 : i32
    return %c0_i32, %c0_i32_0 : i32, i32
  }
  func.func @transform_2(%arg0: i32) -> (i32, i32) {
    %c0_i32 = arith.constant 0 : i32
    %c0_i32_0 = arith.constant 0 : i32
    %c0_i32_1 = arith.constant 0 : i32
    return %c0_i32, %c0_i32_0 : i32, i32
  }
  func.func @transform_3(%arg0: i32) -> (i32, i32) {
    %c0_i32 = arith.constant 0 : i32
    %c0_i32_0 = arith.constant 0 : i32
    %c0_i32_1 = arith.constant 0 : i32
    return %c0_i32, %c0_i32_0 : i32, i32
  }
  func.func @transform_4(%arg0: i32) -> (i32, i32) {
    %c0_i32 = arith.constant 0 : i32
    %c0_i32_0 = arith.constant 0 : i32
    %c0_i32_1 = arith.constant 0 : i32
    return %c0_i32, %c0_i32_0 : i32, i32
  }
  func.func @transform_5(%arg0: i32) -> (i32, i32) {
    %c0_i32 = arith.constant 0 : i32
    %c0_i32_0 = arith.constant 0 : i32
    %c0_i32_1 = arith.constant 0 : i32
    return %c0_i32, %c0_i32_0 : i32, i32
  }
  func.func @transform_6(%arg0: i32) -> (i32, i32, i32) {
    %c0_i32 = arith.constant 0 : i32
    %c0_i32_0 = arith.constant 0 : i32
    %c0_i32_1 = arith.constant 0 : i32
    return %arg0, %c0_i32, %c0_i32_0 : i32, i32, i32
  }
}

</mosaic_0001>

<llo_original>
// kernel: res_conv_block_forward.1
$region0: #{res_conv_block_forward.1}
  #allocation0 [shape = 'u32[]', space=smem, size = 0x4, offset = 0x4, fixed_abs, tag = 'smem constant byte address 0x4 - core index']
  #allocation1 [shape = 'u32[144,128]{1,0:T(1,128)}', space=vmem, size = 0x12000, scoped, tag = 'internal scratch']
  #allocation2 [shape = 'bf16[224,1024]{1,0:T(16,128)(2,1)}', space=vmem, size = 0x70000, scoped, tag = 'scratch operand']
  #allocation3 [shape = 'f32[8,1280]{1,0:T(8,128)}', space=vmem, size = 0xa000, scoped, tag = 'scratch operand']
  %s0 = inlined_call_operand.vmem [shape: f32[2,8,1280], index: 0, kind: input, shape index: {}]
  %s1 = inlined_call_operand.vmem [shape: f32[1,1024], index: 1, kind: input, shape index: {}]
  %s2 = inlined_call_operand.vmem [shape: bf16[8,224], index: 2, kind: input, shape index: {}]
  %s3 = inlined_call_operand.vmem [shape: bf16[8,224], index: 3, kind: input, shape index: {}]
  %s4 = inlined_call_operand.vmem [shape: bf16[8,224], index: 4, kind: input, shape index: {}]
  %s5 = inlined_call_operand.vmem [shape: f32[8,9], index: 5, kind: input, shape index: {}]
  %s6 = inlined_call_operand.vmem [shape: f32[2,8,1024], index: 6, kind: output, shape index: {}]
  %s7 = sld [smem:[#allocation0]]
  $region57: #{res_conv_block_forward.1} parent=0
    _
  %s9 = ssub.s32 1, %s7
  %s10 = scalar_select 0, %s9, %s7
  loop: start=0, step=1, limit=4
  $region2: #{res_conv_block_forward.1} parent=0 // loop_pre_header
    _
  $region3: #{res_conv_block_forward.1} parent=0 // loop_header
    %s12 = sphi 0, %s16
    %p13 = scmp.ge.s32.totalorder %s12, 4
    %s22 = sphi 0, %s24
    %s25 = sphi 0, %s22
    %s26 = sphi 0, %s25
    %s42 = sphi 0, %s26
    %s46 = sphi 0, %s46
    %s48 = sphi 0, %s46
    %s49 = sphi 0, %s48
    %s63 = sphi 0, %s49
    %s67 = sphi 0, %s67
    %s69 = sphi 0, %s67
    %s70 = sphi 0, %s69
    %s84 = sphi 0, %s70
    %s88 = sphi 0, %s88
    %s90 = sphi 0, %s88
    %s91 = sphi 0, %s90
    %s105 = sphi 0, %s91
    %s109 = sphi 0, %s109
    %s111 = sphi 0, %s109
    %s112 = sphi 0, %s111
    %s126 = sphi 0, %s112
    %s130 = sphi 0, %s130
    %s132 = sphi 0, %s130
    %s133 = sphi 0, %s132
    %s147 = sphi 0, %s133
    %s153 = sphi 0, %s155
    %s156 = sphi 0, %s153
    %s157 = sphi 0, %s156
    %s173 = sphi 0, %s157
  $region4: #{res_conv_block_forward.1} parent=0 // loop_header_branch
    %15 = sbr.rel (%p13) target = $region8
  $region5: #{res_conv_block_forward.1} parent=0 // loop_body
    %s17 = ssub.s32 %s12, 1
    %s18 = ssub.s32 %s12, 2
    %s19 = sadd.s32 %s12, 1
    %s20 = ssub.s32 %s12, %s19
    %p21 = scmp.eq.s32.totalorder %s20, 0
    %s23 = sadd.s32 %s22, 1
    %s24 = scalar_select %p21, %s22, %s23
    %p27 = pneg %p21
    %p28 = scmp.eq.s32.totalorder %s12, 1
    %p29 = por %p27, %p28
    %p30 = scmp.ne.s32.totalorder %s22, %s25
    %p31 = scmp.eq.s32.totalorder %s12, 0
    %p32 = por %p30, %p31
    %p33 = scmp.ne.s32.totalorder %s22, %s25
    %p34 = scmp.eq.s32.totalorder %s17, 1
    %p35 = por %p33, %p34
    %p36 = scmp.ne.s32.totalorder %s25, %s26
    %p37 = scmp.eq.s32.totalorder %s17, 0
    %p38 = por %p36, %p37
    %p39 = scmp.ne.s32.totalorder %s25, %s26
    %p40 = scmp.eq.s32.totalorder %s18, 1
    %p41 = por %p39, %p40
    %p43 = scmp.ne.s32.totalorder %s26, %s42
    %p44 = scmp.eq.s32.totalorder %s18, 0
    %p45 = por %p43, %p44
    %s47 = sadd.s32 %s46, 1
    %p50 = scmp.eq.s32.totalorder %s12, 1
    %p51 = scmp.ne.s32.totalorder %s46, %s48
    %p52 = scmp.eq.s32.totalorder %s12, 0
    %p53 = por %p51, %p52
    %p54 = scmp.ne.s32.totalorder %s46, %s48
    %p55 = scmp.eq.s32.totalorder %s17, 1
    %p56 = por %p54, %p55
    %p57 = scmp.ne.s32.totalorder %s48, %s49
    %p58 = scmp.eq.s32.totalorder %s17, 0
    %p59 = por %p57, %p58
    %p60 = scmp.ne.s32.totalorder %s48, %s49
    %p61 = scmp.eq.s32.totalorder %s18, 1
    %p62 = por %p60, %p61
    %p64 = scmp.ne.s32.totalorder %s49, %s63
    %p65 = scmp.eq.s32.totalorder %s18, 0
    %p66 = por %p64, %p65
    %s68 = sadd.s32 %s67, 1
    %p71 = scmp.eq.s32.totalorder %s12, 1
    %p72 = scmp.ne.s32.totalorder %s67, %s69
    %p73 = scmp.eq.s32.totalorder %s12, 0
    %p74 = por %p72, %p73
    %p75 = scmp.ne.s32.totalorder %s67, %s69
    %p76 = scmp.eq.s32.totalorder %s17, 1
    %p77 = por %p75, %p76
    %p78 = scmp.ne.s32.totalorder %s69, %s70
    %p79 = scmp.eq.s32.totalorder %s17, 0
    %p80 = por %p78, %p79
    %p81 = scmp.ne.s32.totalorder %s69, %s70
    %p82 = scmp.eq.s32.totalorder %s18, 1
    %p83 = por %p81, %p82
    %p85 = scmp.ne.s32.totalorder %s70, %s84
    %p86 = scmp.eq.s32.totalorder %s18, 0
    %p87 = por %p85, %p86
    %s89 = sadd.s32 %s88, 1
    %p92 = scmp.eq.s32.totalorder %s12, 1
    %p93 = scmp.ne.s32.totalorder %s88, %s90
    %p94 = scmp.eq.s32.totalorder %s12, 0
    %p95 = por %p93, %p94
    %p96 = scmp.ne.s32.totalorder %s88, %s90
    %p97 = scmp.eq.s32.totalorder %s17, 1
    %p98 = por %p96, %p97
    %p99 = scmp.ne.s32.totalorder %s90, %s91
    %p100 = scmp.eq.s32.totalorder %s17, 0
    %p101 = por %p99, %p100
    %p102 = scmp.ne.s32.totalorder %s90, %s91
    %p103 = scmp.eq.s32.totalorder %s18, 1
    %p104 = por %p102, %p103
    %p106 = scmp.ne.s32.totalorder %s91, %s105
    %p107 = scmp.eq.s32.totalorder %s18, 0
    %p108 = por %p106, %p107
    %s110 = sadd.s32 %s109, 1
    %p113 = scmp.eq.s32.totalorder %s12, 1
    %p114 = scmp.ne.s32.totalorder %s109, %s111
    %p115 = scmp.eq.s32.totalorder %s12, 0
    %p116 = por %p114, %p115
    %p117 = scmp.ne.s32.totalorder %s109, %s111
    %p118 = scmp.eq.s32.totalorder %s17, 1
    %p119 = por %p117, %p118
    %p120 = scmp.ne.s32.totalorder %s111, %s112
    %p121 = scmp.eq.s32.totalorder %s17, 0
    %p122 = por %p120, %p121
    %p123 = scmp.ne.s32.totalorder %s111, %s112
    %p124 = scmp.eq.s32.totalorder %s18, 1
    %p125 = por %p123, %p124
    %p127 = scmp.ne.s32.totalorder %s112, %s126
    %p128 = scmp.eq.s32.totalorder %s18, 0
    %p129 = por %p127, %p128
    %s131 = sadd.s32 %s130, 1
    %p134 = scmp.eq.s32.totalorder %s12, 1
    %p135 = scmp.ne.s32.totalorder %s130, %s132
    %p136 = scmp.eq.s32.totalorder %s12, 0
    %p137 = por %p135, %p136
    %p138 = scmp.ne.s32.totalorder %s130, %s132
    %p139 = scmp.eq.s32.totalorder %s17, 1
    %p140 = por %p138, %p139
    %p141 = scmp.ne.s32.totalorder %s132, %s133
    %p142 = scmp.eq.s32.totalorder %s17, 0
    %p143 = por %p141, %p142
    %p144 = scmp.ne.s32.totalorder %s132, %s133
    %p145 = scmp.eq.s32.totalorder %s18, 1
    %p146 = por %p144, %p145
    %p148 = scmp.ne.s32.totalorder %s133, %s147
    %p149 = scmp.eq.s32.totalorder %s18, 0
    %p150 = por %p148, %p149
    %s151 = ssub.s32 %s12, %s19
    %p152 = scmp.eq.s32.totalorder %s151, 0
    %s154 = sadd.s32 %s153, 1
    %s155 = scalar_select %p152, %s153, %s154
    %p158 = pneg %p152
    %p159 = scmp.eq.s32.totalorder %s12, 1
    %p160 = por %p158, %p159
    %p161 = scmp.ne.s32.totalorder %s153, %s156
    %p162 = scmp.eq.s32.totalorder %s12, 0
    %p163 = por %p161, %p162
    %p164 = scmp.ne.s32.totalorder %s153, %s156
    %p165 = scmp.eq.s32.totalorder %s17, 1
    %p166 = por %p164, %p165
    %p167 = scmp.ne.s32.totalorder %s156, %s157
    %p168 = scmp.eq.s32.totalorder %s17, 0
    %p169 = por %p167, %p168
    %p170 = scmp.ne.s32.totalorder %s156, %s157
    %p171 = scmp.eq.s32.totalorder %s18, 1
    %p172 = por %p170, %p171
    %p174 = scmp.ne.s32.totalorder %s157, %s173
    %p175 = scmp.eq.s32.totalorder %s18, 0
    %p176 = por %p174, %p175
    %p177 = scmp.le.s32.totalorder 1, %s12
    %p178 = scmp.lt.s32.totalorder %s12, 3
    %p179 = pnand %p177, %p178
    %p180 = pneg %p179
    // Predicated region
    $region9: #{res_conv_block_forward.1} parent=5 // pred_check
      _
    $region10: #{res_conv_block_forward.1} parent=5 // pred_check_branch
      %182 = sbr.rel (%p179) target = $region12
    $region11: #{res_conv_block_forward.1} parent=5 // pred_region
      %s183 = ssub.s32 %s12, 1
      // Predicated region
      $region13: #{res_conv_block_forward.1} parent=11 // pred_check
        %p184 = pneg %p59
      $region14: #{res_conv_block_forward.1} parent=11 // pred_check_branch
        %186 = sbr.rel (%p184) target = $region16
      $region15: #{res_conv_block_forward.1} parent=11 // pred_region
        _
      $region16: #{res_conv_block_forward.1} parent=11 // pred_fallthru
        _
      // Predicated region
      $region17: #{res_conv_block_forward.1} parent=11 // pred_check
        %p187 = pneg %p80
      $region18: #{res_conv_block_forward.1} parent=11 // pred_check_branch
        %189 = sbr.rel (%p187) target = $region20
      $region19: #{res_conv_block_forward.1} parent=11 // pred_region
        _
      $region20: #{res_conv_block_forward.1} parent=11 // pred_fallthru
        _
      // Predicated region
      $region21: #{res_conv_block_forward.1} parent=11 // pred_check
        %p190 = pneg %p101
      $region22: #{res_conv_block_forward.1} parent=11 // pred_check_branch
        %192 = sbr.rel (%p190) target = $region24
      $region23: #{res_conv_block_forward.1} parent=11 // pred_region
        _
      $region24: #{res_conv_block_forward.1} parent=11 // pred_fallthru
        _
      // Predicated region
      $region25: #{res_conv_block_forward.1} parent=11 // pred_check
        %p193 = pneg %p122
      $region26: #{res_conv_block_forward.1} parent=11 // pred_check_branch
        %195 = sbr.rel (%p193) target = $region28
      $region27: #{res_conv_block_forward.1} parent=11 // pred_region
        _
      $region28: #{res_conv_block_forward.1} parent=11 // pred_fallthru
        _
      // Predicated region
      $region29: #{res_conv_block_forward.1} parent=11 // pred_check
        %p196 = pneg %p143
      $region30: #{res_conv_block_forward.1} parent=11 // pred_check_branch
        %198 = sbr.rel (%p196) target = $region32
      $region31: #{res_conv_block_forward.1} parent=11 // pred_region
        _
      $region32: #{res_conv_block_forward.1} parent=11 // pred_fallthru
        _
    $region12: #{res_conv_block_forward.1} parent=5 // pred_fallthru
      _
    %p199 = scmp.lt.s32.totalorder %s12, 2
    // Predicated region
    $region33: #{res_conv_block_forward.1} parent=5 // pred_check
      %p200 = pneg %p199
    $region34: #{res_conv_block_forward.1} parent=5 // pred_check_branch
      %202 = sbr.rel (%p200) target = $region36
    $region35: #{res_conv_block_forward.1} parent=5 // pred_region
      // Predicated region
      $region37: #{res_conv_block_forward.1} parent=35 // pred_check
        %p203 = pneg %p32
      $region38: #{res_conv_block_forward.1} parent=35 // pred_check_branch
        %205 = sbr.rel (%p203) target = $region40
      $region39: #{res_conv_block_forward.1} parent=35 // pred_region
        %p206 = scmp.lt.s32.totalorder %s12, 1
        %s207 = scalar_select %p206, %s12, 1
        %s208 = smul.addr %s207, 10
        %s209 = smul.addr %s208, 8
        %s210 = scalar_lea.vmem %s0, %s209
      $region40: #{res_conv_block_forward.1} parent=35 // pred_fallthru
        _
    $region36: #{res_conv_block_forward.1} parent=5 // pred_fallthru
      _
    %p211 = scmp.le.s32.totalorder 1, %s12
    %p212 = scmp.lt.s32.totalorder %s12, 3
    %p213 = pnand %p211, %p212
    %p214 = pneg %p213
    // Predicated region
    $region41: #{res_conv_block_forward.1} parent=5 // pred_check
      _
    $region42: #{res_conv_block_forward.1} parent=5 // pred_check_branch
      %216 = sbr.rel (%p213) target = $region44
    $region43: #{res_conv_block_forward.1} parent=5 // pred_region
      %s217 = ssub.s32 %s12, 1
      %p218 = scmp.lt.s32.totalorder %s17, 1
      %s219 = scalar_select %p218, %s17, 1
      %s220 = smul.addr %s219, 10
      %s221 = smul.addr %s220, 8
      %s222 = scalar_lea.vmem %s0, %s221
      %p223 = pneg %p38
      %p224 = pneg %p35
      %p225 = pneg %p59
      %p226 = pneg %p56
      %p227 = pneg %p80
      %p228 = pneg %p77
      %p229 = pneg %p101
      %p230 = pneg %p98
      %p231 = pneg %p122
      %p232 = pneg %p119
      %p233 = pneg %p143
      %p234 = pneg %p140
      %p235 = pneg %p169
      %p236 = pneg %p166
      %p237 = scmp.lt.s32.totalorder %s17, 1
      %s238 = scalar_select %p237, %s17, 1
      %s239 = smul.addr %s238, 8
      %s240 = smul.addr %s239, 8
      %s241 = scalar_lea.vmem %s6, %s240
      %p242 = scmp.lt.s32.totalorder %s17, 1
      %s243 = scalar_select %p242, %s17, 1
      %s244 = smul.addr %s243, 10
      %s245 = smul.addr %s244, 8
      %s246 = scalar_lea.vmem %s0, %s245
      %p247 = scmp.lt.s32.totalorder %s17, 1
      %s248 = scalar_select %p247, %s17, 1
      %s249 = smul.addr %s248, 8
      %s250 = smul.addr %s249, 8
      %s251 = scalar_lea.vmem %s6, %s250
      %v253 = vld [vmem:[%s1] sm:$0xff]
      %v255 = vlaneseq
      %v256 = vshrl.u32 %v255, 7
      %v257 = vsub.s32 0, %v256
      %v258 = vrot.slane %v253, %v257
      %v259 = vlaneseq
      %v260 = vshrl.u32 %v259, 7
      %v261 = vsub.s32 1, %v260
      %v262 = vrot.slane %v253, %v261
      %v263 = vlaneseq
      %v264 = vshrl.u32 %v263, 7
      %v265 = vsub.s32 2, %v264
      %v266 = vrot.slane %v253, %v265
      %v267 = vlaneseq
      %v268 = vshrl.u32 %v267, 7
      %v269 = vsub.s32 3, %v268
      %v270 = vrot.slane %v253, %v269
      %v271 = vlaneseq
      %v272 = vshrl.u32 %v271, 7
      %v273 = vsub.s32 4, %v272
      %v274 = vrot.slane %v253, %v273
      %v275 = vlaneseq
      %v276 = vshrl.u32 %v275, 7
      %v277 = vsub.s32 5, %v276
      %v278 = vrot.slane %v253, %v277
      %v279 = vlaneseq
      %v280 = vshrl.u32 %v279, 7
      %v281 = vsub.s32 6, %v280
      %v282 = vrot.slane %v253, %v281
      %v283 = vlaneseq
      %v284 = vshrl.u32 %v283, 7
      %v285 = vsub.s32 7, %v284
      %v286 = vrot.slane %v253, %v285
      %v295 = vld [vmem:[%s5] sm:$0xff]
      %v296 = vld [vmem:[%s246 + $0x8] sm:$0xff]
      %v297 = vld [vmem:[%s246 + $0x10] sm:$0xff]
      %v298 = vld [vmem:[%s246 + $0x18] sm:$0xff]
      %v299 = vld [vmem:[%s246 + $0x20] sm:$0xff]
      %v300 = vld [vmem:[%s246 + $0x28] sm:$0xff]
      %v301 = vld [vmem:[%s246 + $0x30] sm:$0xff]
      %v302 = vld [vmem:[%s246 + $0x38] sm:$0xff]
      %v303 = vld [vmem:[%s246 + $0x40] sm:$0xff]
      %304 = vst [vmem:[#allocation3] sm:$0xff] 0.0
      %305 = vst [vmem:[#allocation3 + $0x48] sm:$0xff] 0.0
      %v306 = vld [vmem:[%s246] sm:$0xff]
      %v307 = vld [vmem:[%s246 + $0x8] sm:$0xff]
      %v308 = vld [vmem:[%s246 + $0x10] sm:$0xff]
      %v309 = vld [vmem:[%s246 + $0x18] sm:$0xff]
      %v310 = vld [vmem:[%s246 + $0x20] sm:$0xff]
      %v311 = vld [vmem:[%s246 + $0x28] sm:$0xff]
      %v312 = vld [vmem:[%s246 + $0x30] sm:$0xff]
      %v313 = vld [vmem:[%s246 + $0x38] sm:$0xff]
      %v314 = vld [vmem:[%s246 + $0x40] sm:$0xff]
      %324 = vrot.lane.b32.xlu0 %v306, 127
      %v325 = vpop.permute.xlu0 %324
      %326 = vrot.lane.b32.xlu0 %v307, 127
      %v327 = vpop.permute.xlu0 %326
      %328 = vrot.lane.b32.xlu0 %v308, 127
      %v329 = vpop.permute.xlu0 %328
      %330 = vrot.lane.b32.xlu0 %v309, 127
      %v331 = vpop.permute.xlu0 %330
      %332 = vrot.lane.b32.xlu0 %v310, 127
      %v333 = vpop.permute.xlu0 %332
      %334 = vrot.lane.b32.xlu0 %v311, 127
      %v335 = vpop.permute.xlu0 %334
      %336 = vrot.lane.b32.xlu0 %v312, 127
      %v337 = vpop.permute.xlu0 %336
      %338 = vrot.lane.b32.xlu0 %v313, 127
      %v339 = vpop.permute.xlu0 %338
      %340 = vrot.lane.b32.xlu0 %v314, 127
      %v341 = vpop.permute.xlu0 %340
      %vm342 = vcmask 1039360
      %v343 = vsel %vm342, %v325, %v327
      %v344 = vsel %vm342, %v327, %v329
      %v345 = vsel %vm342, %v329, %v331
      %v346 = vsel %vm342, %v331, %v333
      %v347 = vsel %vm342, %v333, %v335
      %v348 = vsel %vm342, %v335, %v337
      %v349 = vsel %vm342, %v337, %v339
      %v350 = vsel %vm342, %v339, %v341
      %v360 = vpack.c.bf16 %v343, %v306
      %v361 = vpack.c.bf16 %v344, %v307
      %v362 = vpack.c.bf16 %v345, %v308
      %v363 = vpack.c.bf16 %v346, %v309
      %v364 = vpack.c.bf16 %v347, %v310
      %v365 = vpack.c.bf16 %v348, %v311
      %v366 = vpack.c.bf16 %v349, %v312
      %v367 = vpack.c.bf16 %v350, %v313
      %v368 = vpack.c.bf16 %v341, %v314
      %378 = vrot.lane.b32.xlu0 %v360, 111
      %v379 = vpop.permute.xlu0 %378
      %380 = vrot.lane.b32.xlu0 %v361, 111
      %v381 = vpop.permute.xlu0 %380
      %382 = vrot.lane.b32.xlu0 %v362, 111
      %v383 = vpop.permute.xlu0 %382
      %384 = vrot.lane.b32.xlu0 %v363, 111
      %v385 = vpop.permute.xlu0 %384
      %386 = vrot.lane.b32.xlu0 %v364, 111
      %v387 = vpop.permute.xlu0 %386
      %388 = vrot.lane.b32.xlu0 %v365, 111
      %v389 = vpop.permute.xlu0 %388
      %390 = vrot.lane.b32.xlu0 %v366, 111
      %v391 = vpop.permute.xlu0 %390
      %392 = vrot.lane.b32.xlu0 %v367, 111
      %v393 = vpop.permute.xlu0 %392
      %394 = vrot.lane.b32.xlu0 %v368, 111
      %v395 = vpop.permute.xlu0 %394
      %vm396 = vcmask 908288
      %v397 = vsel %vm396, %v379, %v381
      %v398 = vsel %vm396, %v381, %v383
      %v399 = vsel %vm396, %v383, %v385
      %v400 = vsel %vm396, %v385, %v387
      %v401 = vsel %vm396, %v387, %v389
      %v402 = vsel %vm396, %v389, %v391
      %v403 = vsel %vm396, %v391, %v393
      %v404 = vsel %vm396, %v393, %v395
      %413 = vst [vmem:[#allocation2] sm:$0xff] %v397
      %414 = vst [vmem:[#allocation2 + $0x8] sm:$0xff] %v398
      %415 = vst [vmem:[#allocation2 + $0x10] sm:$0xff] %v399
      %416 = vst [vmem:[#allocation2 + $0x18] sm:$0xff] %v400
      %417 = vst [vmem:[#allocation2 + $0x20] sm:$0xff] %v401
      %418 = vst [vmem:[#allocation2 + $0x28] sm:$0xff] %v402
      %419 = vst [vmem:[#allocation2 + $0x30] sm:$0xff] %v403
      %420 = vst [vmem:[#allocation2 + $0x38] sm:$0xff] %v404
      %v421 = vld [vmem:[%s246] sm:$0xff]
      %v422 = vld [vmem:[%s246 + $0x8] sm:$0xff]
      %v423 = vld [vmem:[%s246 + $0x10] sm:$0xff]
      %v424 = vld [vmem:[%s246 + $0x18] sm:$0xff]
      %v425 = vld [vmem:[%s246 + $0x20] sm:$0xff]
      %v426 = vld [vmem:[%s246 + $0x28] sm:$0xff]
      %v427 = vld [vmem:[%s246 + $0x30] sm:$0xff]
      %v428 = vld [vmem:[%s246 + $0x38] sm:$0xff]
      %v429 = vld [vmem:[%s246 + $0x40] sm:$0xff]
      %439 = vrot.lane.b32.xlu0 %v421, 120
      %v440 = vpop.permute.xlu0 %439
      %441 = vrot.lane.b32.xlu0 %v422, 120
      %v442 = vpop.permute.xlu0 %441
      %443 = vrot.lane.b32.xlu0 %v423, 120
      %v444 = vpop.permute.xlu0 %443
      %445 = vrot.lane.b32.xlu0 %v424, 120
      %v446 = vpop.permute.xlu0 %445
      %447 = vrot.lane.b32.xlu0 %v425, 120
      %v448 = vpop.permute.xlu0 %447
      %449 = vrot.lane.b32.xlu0 %v426, 120
      %v450 = vpop.permute.xlu0 %449
      %451 = vrot.lane.b32.xlu0 %v427, 120
      %v452 = vpop.permute.xlu0 %451
      %453 = vrot.lane.b32.xlu0 %v428, 120
      %v454 = vpop.permute.xlu0 %453
      %455 = vrot.lane.b32.xlu0 %v429, 120
      %v456 = vpop.permute.xlu0 %455
      %vm457 = vcmask 982016
      %v458 = vsel %vm457, %v440, %v442
      %v459 = vsel %vm457, %v442, %v444
      %v460 = vsel %vm457, %v444, %v446
      %v461 = vsel %vm457, %v446, %v448
      %v462 = vsel %vm457, %v448, %v450
      %v463 = vsel %vm457, %v450, %v452
      %v464 = vsel %vm457, %v452, %v454
      %v465 = vsel %vm457, %v454, %v456
      %v475 = vpack.c.bf16 %v458, %v421
      %v476 = vpack.c.bf16 %v459, %v422
      %v477 = vpack.c.bf16 %v460, %v423
      %v478 = vpack.c.bf16 %v461, %v424
      %v479 = vpack.c.bf16 %v462, %v425
      %v480 = vpack.c.bf16 %v463, %v426
      %v481 = vpack.c.bf16 %v464, %v427
      %v482 = vpack.c.bf16 %v465, %v428
      %v483 = vpack.c.bf16 %v456, %v429
      %493 = vrot.lane.b32.xlu0 %v475, 109
      %v494 = vpop.permute.xlu0 %493
      %495 = vrot.lane.b32.xlu0 %v476, 109
      %v496 = vpop.permute.xlu0 %495
      %497 = vrot.lane.b32.xlu0 %v477, 109
      %v498 = vpop.permute.xlu0 %497
      %499 = vrot.lane.b32.xlu0 %v478, 109
      %v500 = vpop.permute.xlu0 %499
      %501 = vrot.lane.b32.xlu0 %v479, 109
      %v502 = vpop.permute.xlu0 %501
      %503 = vrot.lane.b32.xlu0 %v480, 109
      %v504 = vpop.permute.xlu0 %503
      %505 = vrot.lane.b32.xlu0 %v481, 109
      %v506 = vpop.permute.xlu0 %505
      %507 = vrot.lane.b32.xlu0 %v482, 109
      %v508 = vpop.permute.xlu0 %507
      %509 = vrot.lane.b32.xlu0 %v483, 109
      %v510 = vpop.permute.xlu0 %509
      %vm511 = vcmask 891904
      %v512 = vsel %vm511, %v494, %v496
      %v513 = vsel %vm511, %v496, %v498
      %v514 = vsel %vm511, %v498, %v500
      %v515 = vsel %vm511, %v500, %v502
      %v516 = vsel %vm511, %v502, %v504
      %v517 = vsel %vm511, %v504, %v506
      %v518 = vsel %vm511, %v506, %v508
      %v519 = vsel %vm511, %v508, %v510
      %528 = vst [vmem:[#allocation2 + $0x40] sm:$0xff] %v512
      %529 = vst [vmem:[#allocation2 + $0x48] sm:$0xff] %v513
      %530 = vst [vmem:[#allocation2 + $0x50] sm:$0xff] %v514
      %531 = vst [vmem:[#allocation2 + $0x58] sm:$0xff] %v515
      %532 = vst [vmem:[#allocation2 + $0x60] sm:$0xff] %v516
      %533 = vst [vmem:[#allocation2 + $0x68] sm:$0xff] %v517
      %534 = vst [vmem:[#allocation2 + $0x70] sm:$0xff] %v518
      %535 = vst [vmem:[#allocation2 + $0x78] sm:$0xff] %v519
      %v536 = vld [vmem:[%s246] sm:$0xff]
      %v537 = vld [vmem:[%s246 + $0x8] sm:$0xff]
      %v538 = vld [vmem:[%s246 + $0x10] sm:$0xff]
      %v539 = vld [vmem:[%s246 + $0x18] sm:$0xff]
      %v540 = vld [vmem:[%s246 + $0x20] sm:$0xff]
      %v541 = vld [vmem:[%s246 + $0x28] sm:$0xff]
      %v542 = vld [vmem:[%s246 + $0x30] sm:$0xff]
      %v543 = vld [vmem:[%s246 + $0x38] sm:$0xff]
      %v544 = vld [vmem:[%s246 + $0x40] sm:$0xff]
      %554 = vrot.lane.b32.xlu0 %v536, 127
      %v555 = vpop.permute.xlu0 %554
      %556 = vrot.lane.b32.xlu0 %v537, 127
      %v557 = vpop.permute.xlu0 %556
      %558 = vrot.lane.b32.xlu0 %v538, 127
      %v559 = vpop.permute.xlu0 %558
      %560 = vrot.lane.b32.xlu0 %v539, 127
      %v561 = vpop.permute.xlu0 %560
      %562 = vrot.lane.b32.xlu0 %v540, 127
      %v563 = vpop.permute.xlu0 %562
      %564 = vrot.lane.b32.xlu0 %v541, 127
      %v565 = vpop.permute.xlu0 %564
      %566 = vrot.lane.b32.xlu0 %v542, 127
      %v567 = vpop.permute.xlu0 %566
      %568 = vrot.lane.b32.xlu0 %v543, 127
      %v569 = vpop.permute.xlu0 %568
      %570 = vrot.lane.b32.xlu0 %v544, 127
      %v571 = vpop.permute.xlu0 %570
      %v572 = vsel %vm342, %v555, %v557
      %v573 = vsel %vm342, %v557, %v559
      %v574 = vsel %vm342, %v559, %v561
      %v575 = vsel %vm342, %v561, %v563
      %v576 = vsel %vm342, %v563, %v565
      %v577 = vsel %vm342, %v565, %v567
      %v578 = vsel %vm342, %v567, %v569
      %v579 = vsel %vm342, %v569, %v571
      %v589 = vpack.c.bf16 %v572, %v536
      %v590 = vpack.c.bf16 %v573, %v537
      %v591 = vpack.c.bf16 %v574, %v538
      %v592 = vpack.c.bf16 %v575, %v539
      %v593 = vpack.c.bf16 %v576, %v540
      %v594 = vpack.c.bf16 %v577, %v541
      %v595 = vpack.c.bf16 %v578, %v542
      %v596 = vpack.c.bf16 %v579, %v543
      %v597 = vpack.c.bf16 %v571, %v544
      %607 = vrot.lane.b32.xlu0 %v589, 100
      %v608 = vpop.permute.xlu0 %607
      %609 = vrot.lane.b32.xlu0 %v590, 100
      %v610 = vpop.permute.xlu0 %609
      %611 = vrot.lane.b32.xlu0 %v591, 100
      %v612 = vpop.permute.xlu0 %611
      %613 = vrot.lane.b32.xlu0 %v592, 100
      %v614 = vpop.permute.xlu0 %613
      %615 = vrot.lane.b32.xlu0 %v593, 100
      %v616 = vpop.permute.xlu0 %615
      %617 = vrot.lane.b32.xlu0 %v594, 100
      %v618 = vpop.permute.xlu0 %617
      %619 = vrot.lane.b32.xlu0 %v595, 100
      %v620 = vpop.permute.xlu0 %619
      %621 = vrot.lane.b32.xlu0 %v596, 100
      %v622 = vpop.permute.xlu0 %621
      %623 = vrot.lane.b32.xlu0 %v597, 100
      %v624 = vpop.permute.xlu0 %623
      %vm625 = vcmask 818176
      %v626 = vsel %vm625, %v608, %v610
      %v627 = vsel %vm625, %v610, %v612
      %v628 = vsel %vm625, %v612, %v614
      %v629 = vsel %vm625, %v614, %v616
      %v630 = vsel %vm625, %v616, %v618
      %v631 = vsel %vm625, %v618, %v620
      %v632 = vsel %vm625, %v620, %v622
      %v633 = vsel %vm625, %v622, %v624
      %642 = vst [vmem:[#allocation2 + $0x80] sm:$0xff] %v626
      %643 = vst [vmem:[#allocation2 + $0x88] sm:$0xff] %v627
      %644 = vst [vmem:[#allocation2 + $0x90] sm:$0xff] %v628
      %645 = vst [vmem:[#allocation2 + $0x98] sm:$0xff] %v629
      %646 = vst [vmem:[#allocation2 + $0xa0] sm:$0xff] %v630
      %647 = vst [vmem:[#allocation2 + $0xa8] sm:$0xff] %v631
      %648 = vst [vmem:[#allocation2 + $0xb0] sm:$0xff] %v632
      %649 = vst [vmem:[#allocation2 + $0xb8] sm:$0xff] %v633
      %v650 = vld [vmem:[%s246] sm:$0xff]
      %v651 = vld [vmem:[%s246 + $0x8] sm:$0xff]
      %v652 = vld [vmem:[%s246 + $0x10] sm:$0xff]
      %v653 = vld [vmem:[%s246 + $0x18] sm:$0xff]
      %v654 = vld [vmem:[%s246 + $0x20] sm:$0xff]
      %v655 = vld [vmem:[%s246 + $0x28] sm:$0xff]
      %v656 = vld [vmem:[%s246 + $0x30] sm:$0xff]
      %v657 = vld [vmem:[%s246 + $0x38] sm:$0xff]
      %v658 = vld [vmem:[%s246 + $0x40] sm:$0xff]
      %668 = vrot.lane.b32.xlu0 %v650, 127
      %v669 = vpop.permute.xlu0 %668
      %670 = vrot.lane.b32.xlu0 %v651, 127
      %v671 = vpop.permute.xlu0 %670
      %672 = vrot.lane.b32.xlu0 %v652, 127
      %v673 = vpop.permute.xlu0 %672
      %674 = vrot.lane.b32.xlu0 %v653, 127
      %v675 = vpop.permute.xlu0 %674
      %676 = vrot.lane.b32.xlu0 %v654, 127
      %v677 = vpop.permute.xlu0 %676
      %678 = vrot.lane.b32.xlu0 %v655, 127
      %v679 = vpop.permute.xlu0 %678
      %680 = vrot.lane.b32.xlu0 %v656, 127
      %v681 = vpop.permute.xlu0 %680
      %682 = vrot.lane.b32.xlu0 %v657, 127
      %v683 = vpop.permute.xlu0 %682
      %684 = vrot.lane.b32.xlu0 %v658, 127
      %v685 = vpop.permute.xlu0 %684
      %v686 = vsel %vm342, %v669, %v671
      %v687 = vsel %vm342, %v671, %v673
      %v688 = vsel %vm342, %v673, %v675
      %v689 = vsel %vm342, %v675, %v677
      %v690 = vsel %vm342, %v677, %v679
      %v691 = vsel %vm342, %v679, %v681
      %v692 = vsel %vm342, %v681, %v683
      %v693 = vsel %vm342, %v683, %v685
      %v703 = vpack.c.bf16 %v686, %v650
      %v704 = vpack.c.bf16 %v687, %v651
      %v705 = vpack.c.bf16 %v688, %v652
      %v706 = vpack.c.bf16 %v689, %v653
      %v707 = vpack.c.bf16 %v690, %v654
      %v708 = vpack.c.bf16 %v691, %v655
      %v709 = vpack.c.bf16 %v692, %v656
      %v710 = vpack.c.bf16 %v693, %v657
      %v711 = vpack.c.bf16 %v685, %v658
      %721 = vrot.lane.b32.xlu0 %v703, 91
      %v722 = vpop.permute.xlu0 %721
      %723 = vrot.lane.b32.xlu0 %v704, 91
      %v724 = vpop.permute.xlu0 %723
      %725 = vrot.lane.b32.xlu0 %v705, 91
      %v726 = vpop.permute.xlu0 %725
      %727 = vrot.lane.b32.xlu0 %v706, 91
      %v728 = vpop.permute.xlu0 %727
      %729 = vrot.lane.b32.xlu0 %v707, 91
      %v730 = vpop.permute.xlu0 %729
      %731 = vrot.lane.b32.xlu0 %v708, 91
      %v732 = vpop.permute.xlu0 %731
      %733 = vrot.lane.b32.xlu0 %v709, 91
      %v734 = vpop.permute.xlu0 %733
      %735 = vrot.lane.b32.xlu0 %v710, 91
      %v736 = vpop.permute.xlu0 %735
      %737 = vrot.lane.b32.xlu0 %v711, 91
      %v738 = vpop.permute.xlu0 %737
      %vm739 = vcmask 744448
      %v740 = vsel %vm739, %v722, %v724
      %v741 = vsel %vm739, %v724, %v726
      %v742 = vsel %vm739, %v726, %v728
      %v743 = vsel %vm739, %v728, %v730
      %v744 = vsel %vm739, %v730, %v732
      %v745 = vsel %vm739, %v732, %v734
      %v746 = vsel %vm739, %v734, %v736
      %v747 = vsel %vm739, %v736, %v738
      %756 = vst [vmem:[#allocation2 + $0xc0] sm:$0xff] %v740
      %757 = vst [vmem:[#allocation2 + $0xc8] sm:$0xff] %v741
      %758 = vst [vmem:[#allocation2 + $0xd0] sm:$0xff] %v742
      %759 = vst [vmem:[#allocation2 + $0xd8] sm:$0xff] %v743
      %760 = vst [vmem:[#allocation2 + $0xe0] sm:$0xff] %v744
      %761 = vst [vmem:[#allocation2 + $0xe8] sm:$0xff] %v745
      %762 = vst [vmem:[#allocation2 + $0xf0] sm:$0xff] %v746
      %763 = vst [vmem:[#allocation2 + $0xf8] sm:$0xff] %v747
      %v764 = vld [vmem:[%s246] sm:$0xff]
      %v765 = vld [vmem:[%s246 + $0x8] sm:$0xff]
      %v766 = vld [vmem:[%s246 + $0x10] sm:$0xff]
      %v767 = vld [vmem:[%s246 + $0x18] sm:$0xff]
      %v768 = vld [vmem:[%s246 + $0x20] sm:$0xff]
      %v769 = vld [vmem:[%s246 + $0x28] sm:$0xff]
      %v770 = vld [vmem:[%s246 + $0x30] sm:$0xff]
      %v771 = vld [vmem:[%s246 + $0x38] sm:$0xff]
      %v772 = vld [vmem:[%s246 + $0x40] sm:$0xff]
      %782 = vrot.lane.b32.xlu0 %v764, 50
      %v783 = vpop.permute.xlu0 %782
      %784 = vrot.lane.b32.xlu0 %v765, 50
      %v785 = vpop.permute.xlu0 %784
      %786 = vrot.lane.b32.xlu0 %v766, 50
      %v787 = vpop.permute.xlu0 %786
      %788 = vrot.lane.b32.xlu0 %v767, 50
      %v789 = vpop.permute.xlu0 %788
      %790 = vrot.lane.b32.xlu0 %v768, 50
      %v791 = vpop.permute.xlu0 %790
      %792 = vrot.lane.b32.xlu0 %v769, 50
      %v793 = vpop.permute.xlu0 %792
      %794 = vrot.lane.b32.xlu0 %v770, 50
      %v795 = vpop.permute.xlu0 %794
      %796 = vrot.lane.b32.xlu0 %v771, 50
      %v797 = vpop.permute.xlu0 %796
      %798 = vrot.lane.b32.xlu0 %v772, 50
      %v799 = vpop.permute.xlu0 %798
      %vm800 = vcmask 408576
      %v801 = vsel %vm800, %v783, %v785
      %v802 = vsel %vm800, %v785, %v787
      %v803 = vsel %vm800, %v787, %v789
      %v804 = vsel %vm800, %v789, %v791
      %v805 = vsel %vm800, %v791, %v793
      %v806 = vsel %vm800, %v793, %v795
      %v807 = vsel %vm800, %v795, %v797
      %v808 = vsel %vm800, %v797, %v799
      %v818 = vpack.c.bf16 %v801, %v764
      %v819 = vpack.c.bf16 %v802, %v765
      %v820 = vpack.c.bf16 %v803, %v766
      %v821 = vpack.c.bf16 %v804, %v767
      %v822 = vpack.c.bf16 %v805, %v768
      %v823 = vpack.c.bf16 %v806, %v769
      %v824 = vpack.c.bf16 %v807, %v770
      %v825 = vpack.c.bf16 %v808, %v771
      %v826 = vpack.c.bf16 %v799, %v772
      %836 = vrot.lane.b32.xlu0 %v818, 89
      %v837 = vpop.permute.xlu0 %836
      %838 = vrot.lane.b32.xlu0 %v819, 89
      %v839 = vpop.permute.xlu0 %838
      %840 = vrot.lane.b32.xlu0 %v820, 89
      %v841 = vpop.permute.xlu0 %840
      %842 = vrot.lane.b32.xlu0 %v821, 89
      %v843 = vpop.permute.xlu0 %842
      %844 = vrot.lane.b32.xlu0 %v822, 89
      %v845 = vpop.permute.xlu0 %844
      %846 = vrot.lane.b32.xlu0 %v823, 89
      %v847 = vpop.permute.xlu0 %846
      %848 = vrot.lane.b32.xlu0 %v824, 89
      %v849 = vpop.permute.xlu0 %848
      %850 = vrot.lane.b32.xlu0 %v825, 89
      %v851 = vpop.permute.xlu0 %850
      %852 = vrot.lane.b32.xlu0 %v826, 89
      %v853 = vpop.permute.xlu0 %852
      %vm854 = vcmask 728064
      %v855 = vsel %vm854, %v837, %v839
      %v856 = vsel %vm854, %v839, %v841
      %v857 = vsel %vm854, %v841, %v843
      %v858 = vsel %vm854, %v843, %v845
      %v859 = vsel %vm854, %v845, %v847
      %v860 = vsel %vm854, %v847, %v849
      %v861 = vsel %vm854, %v849, %v851
      %v862 = vsel %vm854, %v851, %v853
      %871 = vst [vmem:[#allocation2 + $0x100] sm:$0xff] %v855
      %872 = vst [vmem:[#allocation2 + $0x108] sm:$0xff] %v856
      %873 = vst [vmem:[#allocation2 + $0x110] sm:$0xff] %v857
      %874 = vst [vmem:[#allocation2 + $0x118] sm:$0xff] %v858
      %875 = vst [vmem:[#allocation2 + $0x120] sm:$0xff] %v859
      %876 = vst [vmem:[#allocation2 + $0x128] sm:$0xff] %v860
      %877 = vst [vmem:[#allocation2 + $0x130] sm:$0xff] %v861
      %878 = vst [vmem:[#allocation2 + $0x138] sm:$0xff] %v862
      %v879 = vld [vmem:[%s246] sm:$0xff]
      %v880 = vld [vmem:[%s246 + $0x8] sm:$0xff]
      %v881 = vld [vmem:[%s246 + $0x10] sm:$0xff]
      %v882 = vld [vmem:[%s246 + $0x18] sm:$0xff]
      %v883 = vld [vmem:[%s246 + $0x20] sm:$0xff]
      %v884 = vld [vmem:[%s246 + $0x28] sm:$0xff]
      %v885 = vld [vmem:[%s246 + $0x30] sm:$0xff]
      %v886 = vld [vmem:[%s246 + $0x38] sm:$0xff]
      %v887 = vld [vmem:[%s246 + $0x40] sm:$0xff]
      %897 = vrot.lane.b32.xlu0 %v879, 127
      %v898 = vpop.permute.xlu0 %897
      %899 = vrot.lane.b32.xlu0 %v880, 127
      %v900 = vpop.permute.xlu0 %899
      %901 = vrot.lane.b32.xlu0 %v881, 127
      %v902 = vpop.permute.xlu0 %901
      %903 = vrot.lane.b32.xlu0 %v882, 127
      %v904 = vpop.permute.xlu0 %903
      %905 = vrot.lane.b32.xlu0 %v883, 127
      %v906 = vpop.permute.xlu0 %905
      %907 = vrot.lane.b32.xlu0 %v884, 127
      %v908 = vpop.permute.xlu0 %907
      %909 = vrot.lane.b32.xlu0 %v885, 127
      %v910 = vpop.permute.xlu0 %909
      %911 = vrot.lane.b32.xlu0 %v886, 127
      %v912 = vpop.permute.xlu0 %911
      %913 = vrot.lane.b32.xlu0 %v887, 127
      %v914 = vpop.permute.xlu0 %913
      %v915 = vsel %vm342, %v898, %v900
      %v916 = vsel %vm342, %v900, %v902
      %v917 = vsel %vm342, %v902, %v904
      %v918 = vsel %vm342, %v904, %v906
      %v919 = vsel %vm342, %v906, %v908
      %v920 = vsel %vm342, %v908, %v910
      %v921 = vsel %vm342, %v910, %v912
      %v922 = vsel %vm342, %v912, %v914
      %v932 = vpack.c.bf16 %v915, %v879
      %v933 = vpack.c.bf16 %v916, %v880
      %v934 = vpack.c.bf16 %v917, %v881
      %v935 = vpack.c.bf16 %v918, %v882
      %v936 = vpack.c.bf16 %v919, %v883
      %v937 = vpack.c.bf16 %v920, %v884
      %v938 = vpack.c.bf16 %v921, %v885
      %v939 = vpack.c.bf16 %v922, %v886
      %v940 = vpack.c.bf16 %v914, %v887
      %950 = vrot.lane.b32.xlu0 %v932, 10
      %v951 = vpop.permute.xlu0 %950
      %952 = vrot.lane.b32.xlu0 %v933, 10
      %v953 = vpop.permute.xlu0 %952
      %954 = vrot.lane.b32.xlu0 %v934, 10
      %v955 = vpop.permute.xlu0 %954
      %956 = vrot.lane.b32.xlu0 %v935, 10
      %v957 = vpop.permute.xlu0 %956
      %958 = vrot.lane.b32.xlu0 %v936, 10
      %v959 = vpop.permute.xlu0 %958
      %960 = vrot.lane.b32.xlu0 %v937, 10
      %v961 = vpop.permute.xlu0 %960
      %962 = vrot.lane.b32.xlu0 %v938, 10
      %v963 = vpop.permute.xlu0 %962
      %964 = vrot.lane.b32.xlu0 %v939, 10
      %v965 = vpop.permute.xlu0 %964
      %966 = vrot.lane.b32.xlu0 %v940, 10
      %v967 = vpop.permute.xlu0 %966
      %vm968 = vcmask 80896
      %v969 = vsel %vm968, %v951, %v953
      %v970 = vsel %vm968, %v953, %v955
      %v971 = vsel %vm968, %v955, %v957
      %v972 = vsel %vm968, %v957, %v959
      %v973 = vsel %vm968, %v959, %v961
      %v974 = vsel %vm968, %v961, %v963
      %v975 = vsel %vm968, %v963, %v965
      %v976 = vsel %vm968, %v965, %v967
      %985 = vst [vmem:[#allocation2 + $0x140] sm:$0xff] %v969
      %986 = vst [vmem:[#allocation2 + $0x148] sm:$0xff] %v970
      %987 = vst [vmem:[#allocation2 + $0x150] sm:$0xff] %v971
      %988 = vst [vmem:[#allocation2 + $0x158] sm:$0xff] %v972
      %989 = vst [vmem:[#allocation2 + $0x160] sm:$0xff] %v973
      %990 = vst [vmem:[#allocation2 + $0x168] sm:$0xff] %v974
      %991 = vst [vmem:[#allocation2 + $0x170] sm:$0xff] %v975
      %992 = vst [vmem:[#allocation2 + $0x178] sm:$0xff] %v976
      %v993 = vld [vmem:[%s246] sm:$0xff]
      %v994 = vld [vmem:[%s246 + $0x8] sm:$0xff]
      %v995 = vld [vmem:[%s246 + $0x10] sm:$0xff]
      %v996 = vld [vmem:[%s246 + $0x18] sm:$0xff]
      %v997 = vld [vmem:[%s246 + $0x20] sm:$0xff]
      %v998 = vld [vmem:[%s246 + $0x28] sm:$0xff]
      %v999 = vld [vmem:[%s246 + $0x30] sm:$0xff]
      %v1000 = vld [vmem:[%s246 + $0x38] sm:$0xff]
      %v1001 = vld [vmem:[%s246 + $0x40] sm:$0xff]
      %1010 = vrot.lane.b32.xlu0 %v994, 127
      %v1011 = vpop.permute.xlu0 %1010
      %1012 = vrot.lane.b32.xlu0 %v995, 127
      %v1013 = vpop.permute.xlu0 %1012
      %1014 = vrot.lane.b32.xlu0 %v996, 127
      %v1015 = vpop.permute.xlu0 %1014
      %1016 = vrot.lane.b32.xlu0 %v997, 127
      %v1017 = vpop.permute.xlu0 %1016
      %1018 = vrot.lane.b32.xlu0 %v998, 127
      %v1019 = vpop.permute.xlu0 %1018
      %1020 = vrot.lane.b32.xlu0 %v999, 127
      %v1021 = vpop.permute.xlu0 %1020
      %1022 = vrot.lane.b32.xlu0 %v1000, 127
      %v1023 = vpop.permute.xlu0 %1022
      %1024 = vrot.lane.b32.xlu0 %v1001, 127
      %v1025 = vpop.permute.xlu0 %1024
      %v1026 = vsel %vm342, %v1011, %v1013
      %v1027 = vsel %vm342, %v1013, %v1015
      %v1028 = vsel %vm342, %v1015, %v1017
      %v1029 = vsel %vm342, %v1017, %v1019
      %v1030 = vsel %vm342, %v1019, %v1021
      %v1031 = vsel %vm342, %v1021, %v1023
      %v1032 = vsel %vm342, %v1023, %v1025
      %v1042 = vpack.c.bf16 %v1011, %v993
      %v1043 = vpack.c.bf16 %v1026, %v994
      %v1044 = vpack.c.bf16 %v1027, %v995
      %v1045 = vpack.c.bf16 %v1028, %v996
      %v1046 = vpack.c.bf16 %v1029, %v997
      %v1047 = vpack.c.bf16 %v1030, %v998
      %v1048 = vpack.c.bf16 %v1031, %v999
      %v1049 = vpack.c.bf16 %v1032, %v1000
      %v1050 = vpack.c.bf16 %v1025, %v1001
      %1060 = vrot.lane.b32.xlu0 %v1042, 1
      %v1061 = vpop.permute.xlu0 %1060
      %1062 = vrot.lane.b32.xlu0 %v1043, 1
      %v1063 = vpop.permute.xlu0 %1062
      %1064 = vrot.lane.b32.xlu0 %v1044, 1
      %v1065 = vpop.permute.xlu0 %1064
      %1066 = vrot.lane.b32.xlu0 %v1045, 1
      %v1067 = vpop.permute.xlu0 %1066
      %1068 = vrot.lane.b32.xlu0 %v1046, 1
      %v1069 = vpop.permute.xlu0 %1068
      %1070 = vrot.lane.b32.xlu0 %v1047, 1
      %v1071 = vpop.permute.xlu0 %1070
      %1072 = vrot.lane.b32.xlu0 %v1048, 1
      %v1073 = vpop.permute.xlu0 %1072
      %1074 = vrot.lane.b32.xlu0 %v1049, 1
      %v1075 = vpop.permute.xlu0 %1074
      %1076 = vrot.lane.b32.xlu0 %v1050, 1
      %v1077 = vpop.permute.xlu0 %1076
      %vm1078 = vcmask 7168
      %v1079 = vsel %vm1078, %v1061, %v1063
      %v1080 = vsel %vm1078, %v1063, %v1065
      %v1081 = vsel %vm1078, %v1065, %v1067
      %v1082 = vsel %vm1078, %v1067, %v1069
      %v1083 = vsel %vm1078, %v1069, %v1071
      %v1084 = vsel %vm1078, %v1071, %v1073
      %v1085 = vsel %vm1078, %v1073, %v1075
      %v1086 = vsel %vm1078, %v1075, %v1077
      %1095 = vst [vmem:[#allocation2 + $0x180] sm:$0xff] %v1079
      %1096 = vst [vmem:[#allocation2 + $0x188] sm:$0xff] %v1080
      %1097 = vst [vmem:[#allocation2 + $0x190] sm:$0xff] %v1081
      %1098 = vst [vmem:[#allocation2 + $0x198] sm:$0xff] %v1082
      %1099 = vst [vmem:[#allocation2 + $0x1a0] sm:$0xff] %v1083
      %1100 = vst [vmem:[#allocation2 + $0x1a8] sm:$0xff] %v1084
      %1101 = vst [vmem:[#allocation2 + $0x1b0] sm:$0xff] %v1085
      %1102 = vst [vmem:[#allocation2 + $0x1b8] sm:$0xff] %v1086
      %v1103 = vld [vmem:[%s246 + $0x8] sm:$0xff]
      %v1104 = vld [vmem:[%s246 + $0x10] sm:$0xff]
      %v1105 = vld [vmem:[%s246 + $0x18] sm:$0xff]
      %v1106 = vld [vmem:[%s246 + $0x20] sm:$0xff]
      %v1107 = vld [vmem:[%s246 + $0x28] sm:$0xff]
      %v1108 = vld [vmem:[%s246 + $0x30] sm:$0xff]
      %v1109 = vld [vmem:[%s246 + $0x38] sm:$0xff]
      %v1110 = vld [vmem:[%s246 + $0x40] sm:$0xff]
      %v1111 = vld [vmem:[%s246 + $0x48] sm:$0xff]
      %1121 = vrot.lane.b32.xlu0 %v1103, 120
      %v1122 = vpop.permute.xlu0 %1121
      %1123 = vrot.lane.b32.xlu0 %v1104, 120
      %v1124 = vpop.permute.xlu0 %1123
      %1125 = vrot.lane.b32.xlu0 %v1105, 120
      %v1126 = vpop.permute.xlu0 %1125
      %1127 = vrot.lane.b32.xlu0 %v1106, 120
      %v1128 = vpop.permute.xlu0 %1127
      %1129 = vrot.lane.b32.xlu0 %v1107, 120
      %v1130 = vpop.permute.xlu0 %1129
      %1131 = vrot.lane.b32.xlu0 %v1108, 120
      %v1132 = vpop.permute.xlu0 %1131
      %1133 = vrot.lane.b32.xlu0 %v1109, 120
      %v1134 = vpop.permute.xlu0 %1133
      %1135 = vrot.lane.b32.xlu0 %v1110, 120
      %v1136 = vpop.permute.xlu0 %1135
      %1137 = vrot.lane.b32.xlu0 %v1111, 120
      %v1138 = vpop.permute.xlu0 %1137
      %v1139 = vsel %vm457, %v1122, %v1124
      %v1140 = vsel %vm457, %v1124, %v1126
      %v1141 = vsel %vm457, %v1126, %v1128
      %v1142 = vsel %vm457, %v1128, %v1130
      %v1143 = vsel %vm457, %v1130, %v1132
      %v1144 = vsel %vm457, %v1132, %v1134
      %v1145 = vsel %vm457, %v1134, %v1136
      %v1146 = vsel %vm457, %v1136, %v1138
      %v1156 = vpack.c.bf16 %v1139, %v1103
      %v1157 = vpack.c.bf16 %v1140, %v1104
      %v1158 = vpack.c.bf16 %v1141, %v1105
      %v1159 = vpack.c.bf16 %v1142, %v1106
      %v1160 = vpack.c.bf16 %v1143, %v1107
      %v1161 = vpack.c.bf16 %v1144, %v1108
      %v1162 = vpack.c.bf16 %v1145, %v1109
      %v1163 = vpack.c.bf16 %v1146, %v1110
      %v1164 = vpack.c.bf16 %v1138, %v1111
      %1174 = vrot.lane.b32.xlu0 %v1156, 127
      %v1175 = vpop.permute.xlu0 %1174
      %1176 = vrot.lane.b32.xlu0 %v1157, 127
      %v1177 = vpop.permute.xlu0 %1176
      %1178 = vrot.lane.b32.xlu0 %v1158, 127
      %v1179 = vpop.permute.xlu0 %1178
      %1180 = vrot.lane.b32.xlu0 %v1159, 127
      %v1181 = vpop.permute.xlu0 %1180
      %1182 = vrot.lane.b32.xlu0 %v1160, 127
      %v1183 = vpop.permute.xlu0 %1182
      %1184 = vrot.lane.b32.xlu0 %v1161, 127
      %v1185 = vpop.permute.xlu0 %1184
      %1186 = vrot.lane.b32.xlu0 %v1162, 127
      %v1187 = vpop.permute.xlu0 %1186
      %1188 = vrot.lane.b32.xlu0 %v1163, 127
      %v1189 = vpop.permute.xlu0 %1188
      %1190 = vrot.lane.b32.xlu0 %v1164, 127
      %v1191 = vpop.permute.xlu0 %1190
      %vm1192 = vcmask 1039360
      %v1193 = vsel %vm1192, %v1175, %v1177
      %v1194 = vsel %vm1192, %v1177, %v1179
      %v1195 = vsel %vm1192, %v1179, %v1181
      %v1196 = vsel %vm1192, %v1181, %v1183
      %v1197 = vsel %vm1192, %v1183, %v1185
      %v1198 = vsel %vm1192, %v1185, %v1187
      %v1199 = vsel %vm1192, %v1187, %v1189
      %v1200 = vsel %vm1192, %v1189, %v1191
      %1209 = vst [vmem:[#allocation2 + $0x1c0] sm:$0xff] %v1193
      %1210 = vst [vmem:[#allocation2 + $0x1c8] sm:$0xff] %v1194
      %1211 = vst [vmem:[#allocation2 + $0x1d0] sm:$0xff] %v1195
      %1212 = vst [vmem:[#allocation2 + $0x1d8] sm:$0xff] %v1196
      %1213 = vst [vmem:[#allocation2 + $0x1e0] sm:$0xff] %v1197
      %1214 = vst [vmem:[#allocation2 + $0x1e8] sm:$0xff] %v1198
      %1215 = vst [vmem:[#allocation2 + $0x1f0] sm:$0xff] %v1199
      %1216 = vst [vmem:[#allocation2 + $0x1f8] sm:$0xff] %v1200
      %v1217 = vld [vmem:[%s246 + $0x8] sm:$0xff]
      %v1218 = vld [vmem:[%s246 + $0x10] sm:$0xff]
      %v1219 = vld [vmem:[%s246 + $0x18] sm:$0xff]
      %v1220 = vld [vmem:[%s246 + $0x20] sm:$0xff]
      %v1221 = vld [vmem:[%s246 + $0x28] sm:$0xff]
      %v1222 = vld [vmem:[%s246 + $0x30] sm:$0xff]
      %v1223 = vld [vmem:[%s246 + $0x38] sm:$0xff]
      %v1224 = vld [vmem:[%s246 + $0x40] sm:$0xff]
      %v1225 = vld [vmem:[%s246 + $0x48] sm:$0xff]
      %1235 = vrot.lane.b32.xlu0 %v1217, 127
      %v1236 = vpop.permute.xlu0 %1235
      %1237 = vrot.lane.b32.xlu0 %v1218, 127
      %v1238 = vpop.permute.xlu0 %1237
      %1239 = vrot.lane.b32.xlu0 %v1219, 127
      %v1240 = vpop.permute.xlu0 %1239
      %1241 = vrot.lane.b32.xlu0 %v1220, 127
      %v1242 = vpop.permute.xlu0 %1241
      %1243 = vrot.lane.b32.xlu0 %v1221, 127
      %v1244 = vpop.permute.xlu0 %1243
      %1245 = vrot.lane.b32.xlu0 %v1222, 127
      %v1246 = vpop.permute.xlu0 %1245
      %1247 = vrot.lane.b32.xlu0 %v1223, 127
      %v1248 = vpop.permute.xlu0 %1247
      %1249 = vrot.lane.b32.xlu0 %v1224, 127
      %v1250 = vpop.permute.xlu0 %1249
      %1251 = vrot.lane.b32.xlu0 %v1225, 127
      %v1252 = vpop.permute.xlu0 %1251
      %v1253 = vsel %vm342, %v1236, %v1238
      %v1254 = vsel %vm342, %v1238, %v1240
      %v1255 = vsel %vm342, %v1240, %v1242
      %v1256 = vsel %vm342, %v1242, %v1244
      %v1257 = vsel %vm342, %v1244, %v1246
      %v1258 = vsel %vm342, %v1246, %v1248
      %v1259 = vsel %vm342, %v1248, %v1250
      %v1260 = vsel %vm342, %v1250, %v1252
      %v1270 = vpack.c.bf16 %v1253, %v1217
      %v1271 = vpack.c.bf16 %v1254, %v1218
      %v1272 = vpack.c.bf16 %v1255, %v1219
      %v1273 = vpack.c.bf16 %v1256, %v1220
      %v1274 = vpack.c.bf16 %v1257, %v1221
      %v1275 = vpack.c.bf16 %v1258, %v1222
      %v1276 = vpack.c.bf16 %v1259, %v1223
      %v1277 = vpack.c.bf16 %v1260, %v1224
      %v1278 = vpack.c.bf16 %v1252, %v1225
      %1288 = vrot.lane.b32.xlu0 %v1270, 118
      %v1289 = vpop.permute.xlu0 %1288
      %1290 = vrot.lane.b32.xlu0 %v1271, 118
      %v1291 = vpop.permute.xlu0 %1290
      %1292 = vrot.lane.b32.xlu0 %v1272, 118
      %v1293 = vpop.permute.xlu0 %1292
      %1294 = vrot.lane.b32.xlu0 %v1273, 118
      %v1295 = vpop.permute.xlu0 %1294
      %1296 = vrot.lane.b32.xlu0 %v1274, 118
      %v1297 = vpop.permute.xlu0 %1296
      %1298 = vrot.lane.b32.xlu0 %v1275, 118
      %v1299 = vpop.permute.xlu0 %1298
      %1300 = vrot.lane.b32.xlu0 %v1276, 118
      %v1301 = vpop.permute.xlu0 %1300
      %1302 = vrot.lane.b32.xlu0 %v1277, 118
      %v1303 = vpop.permute.xlu0 %1302
      %1304 = vrot.lane.b32.xlu0 %v1278, 118
      %v1305 = vpop.permute.xlu0 %1304
      %vm1306 = vcmask 965632
      %v1307 = vsel %vm1306, %v1289, %v1291
      %v1308 = vsel %vm1306, %v1291, %v1293
      %v1309 = vsel %vm1306, %v1293, %v1295
      %v1310 = vsel %vm1306, %v1295, %v1297
      %v1311 = vsel %vm1306, %v1297, %v1299
      %v1312 = vsel %vm1306, %v1299, %v1301
      %v1313 = vsel %vm1306, %v1301, %v1303
      %v1314 = vsel %vm1306, %v1303, %v1305
      %1323 = vst [vmem:[#allocation2 + $0x200] sm:$0xff] %v1307
      %1324 = vst [vmem:[#allocation2 + $0x208] sm:$0xff] %v1308
      %1325 = vst [vmem:[#allocation2 + $0x210] sm:$0xff] %v1309
      %1326 = vst [vmem:[#allocation2 + $0x218] sm:$0xff] %v1310
      %1327 = vst [vmem:[#allocation2 + $0x220] sm:$0xff] %v1311
      %1328 = vst [vmem:[#allocation2 + $0x228] sm:$0xff] %v1312
      %1329 = vst [vmem:[#allocation2 + $0x230] sm:$0xff] %v1313
      %1330 = vst [vmem:[#allocation2 + $0x238] sm:$0xff] %v1314
      %v1331 = vld [vmem:[%s246 + $0x8] sm:$0xff]
      %v1332 = vld [vmem:[%s246 + $0x10] sm:$0xff]
      %v1333 = vld [vmem:[%s246 + $0x18] sm:$0xff]
      %v1334 = vld [vmem:[%s246 + $0x20] sm:$0xff]
      %v1335 = vld [vmem:[%s246 + $0x28] sm:$0xff]
      %v1336 = vld [vmem:[%s246 + $0x30] sm:$0xff]
      %v1337 = vld [vmem:[%s246 + $0x38] sm:$0xff]
      %v1338 = vld [vmem:[%s246 + $0x40] sm:$0xff]
      %v1339 = vld [vmem:[%s246 + $0x48] sm:$0xff]
      %1349 = vrot.lane.b32.xlu0 %v1331, 127
      %v1350 = vpop.permute.xlu0 %1349
      %1351 = vrot.lane.b32.xlu0 %v1332, 127
      %v1352 = vpop.permute.xlu0 %1351
      %1353 = vrot.lane.b32.xlu0 %v1333, 127
      %v1354 = vpop.permute.xlu0 %1353
      %1355 = vrot.lane.b32.xlu0 %v1334, 127
      %v1356 = vpop.permute.xlu0 %1355
      %1357 = vrot.lane.b32.xlu0 %v1335, 127
      %v1358 = vpop.permute.xlu0 %1357
      %1359 = vrot.lane.b32.xlu0 %v1336, 127
      %v1360 = vpop.permute.xlu0 %1359
      %1361 = vrot.lane.b32.xlu0 %v1337, 127
      %v1362 = vpop.permute.xlu0 %1361
      %1363 = vrot.lane.b32.xlu0 %v1338, 127
      %v1364 = vpop.permute.xlu0 %1363
      %1365 = vrot.lane.b32.xlu0 %v1339, 127
      %v1366 = vpop.permute.xlu0 %1365
      %v1367 = vsel %vm342, %v1350, %v1352
      %v1368 = vsel %vm342, %v1352, %v1354
      %v1369 = vsel %vm342, %v1354, %v1356
      %v1370 = vsel %vm342, %v1356, %v1358
      %v1371 = vsel %vm342, %v1358, %v1360
      %v1372 = vsel %vm342, %v1360, %v1362
      %v1373 = vsel %vm342, %v1362, %v1364
      %v1374 = vsel %vm342, %v1364, %v1366
      %v1384 = vpack.c.bf16 %v1367, %v1331
      %v1385 = vpack.c.bf16 %v1368, %v1332
      %v1386 = vpack.c.bf16 %v1369, %v1333
      %v1387 = vpack.c.bf16 %v1370, %v1334
      %v1388 = vpack.c.bf16 %v1371, %v1335
      %v1389 = vpack.c.bf16 %v1372, %v1336
      %v1390 = vpack.c.bf16 %v1373, %v1337
      %v1391 = vpack.c.bf16 %v1374, %v1338
      %v1392 = vpack.c.bf16 %v1366, %v1339
      %1402 = vrot.lane.b32.xlu0 %v1384, 39
      %v1403 = vpop.permute.xlu0 %1402
      %1404 = vrot.lane.b32.xlu0 %v1385, 39
      %v1405 = vpop.permute.xlu0 %1404
      %1406 = vrot.lane.b32.xlu0 %v1386, 39
      %v1407 = vpop.permute.xlu0 %1406
      %1408 = vrot.lane.b32.xlu0 %v1387, 39
      %v1409 = vpop.permute.xlu0 %1408
      %1410 = vrot.lane.b32.xlu0 %v1388, 39
      %v1411 = vpop.permute.xlu0 %1410
      %1412 = vrot.lane.b32.xlu0 %v1389, 39
      %v1413 = vpop.permute.xlu0 %1412
      %1414 = vrot.lane.b32.xlu0 %v1390, 39
      %v1415 = vpop.permute.xlu0 %1414
      %1416 = vrot.lane.b32.xlu0 %v1391, 39
      %v1417 = vpop.permute.xlu0 %1416
      %1418 = vrot.lane.b32.xlu0 %v1392, 39
      %v1419 = vpop.permute.xlu0 %1418
      %vm1420 = vcmask 318464
      %v1421 = vsel %vm1420, %v1403, %v1405
      %v1422 = vsel %vm1420, %v1405, %v1407
      %v1423 = vsel %vm1420, %v1407, %v1409
      %v1424 = vsel %vm1420, %v1409, %v1411
      %v1425 = vsel %vm1420, %v1411, %v1413
      %v1426 = vsel %vm1420, %v1413, %v1415
      %v1427 = vsel %vm1420, %v1415, %v1417
      %v1428 = vsel %vm1420, %v1417, %v1419
      %1437 = vst [vmem:[#allocation2 + $0x240] sm:$0xff] %v1421
      %1438 = vst [vmem:[#allocation2 + $0x248] sm:$0xff] %v1422
      %1439 = vst [vmem:[#allocation2 + $0x250] sm:$0xff] %v1423
      %1440 = vst [vmem:[#allocation2 + $0x258] sm:$0xff] %v1424
      %1441 = vst [vmem:[#allocation2 + $0x260] sm:$0xff] %v1425
      %1442 = vst [vmem:[#allocation2 + $0x268] sm:$0xff] %v1426
      %1443 = vst [vmem:[#allocation2 + $0x270] sm:$0xff] %v1427
      %1444 = vst [vmem:[#allocation2 + $0x278] sm:$0xff] %v1428
      %v1445 = vld [vmem:[%s246 + $0x8] sm:$0xff]
      %v1446 = vld [vmem:[%s246 + $0x10] sm:$0xff]
      %v1447 = vld [vmem:[%s246 + $0x18] sm:$0xff]
      %v1448 = vld [vmem:[%s246 + $0x20] sm:$0xff]
      %v1449 = vld [vmem:[%s246 + $0x28] sm:$0xff]
      %v1450 = vld [vmem:[%s246 + $0x30] sm:$0xff]
      %v1451 = vld [vmem:[%s246 + $0x38] sm:$0xff]
      %v1452 = vld [vmem:[%s246 + $0x40] sm:$0xff]
      %v1453 = vld [vmem:[%s246 + $0x48] sm:$0xff]
      %1463 = vrot.lane.b32.xlu0 %v1445, 120
      %v1464 = vpop.permute.xlu0 %1463
      %1465 = vrot.lane.b32.xlu0 %v1446, 120
      %v1466 = vpop.permute.xlu0 %1465
      %1467 = vrot.lane.b32.xlu0 %v1447, 120
      %v1468 = vpop.permute.xlu0 %1467
      %1469 = vrot.lane.b32.xlu0 %v1448, 120
      %v1470 = vpop.permute.xlu0 %1469
      %1471 = vrot.lane.b32.xlu0 %v1449, 120
      %v1472 = vpop.permute.xlu0 %1471
      %1473 = vrot.lane.b32.xlu0 %v1450, 120
      %v1474 = vpop.permute.xlu0 %1473
      %1475 = vrot.lane.b32.xlu0 %v1451, 120
      %v1476 = vpop.permute.xlu0 %1475
      %1477 = vrot.lane.b32.xlu0 %v1452, 120
      %v1478 = vpop.permute.xlu0 %1477
      %1479 = vrot.lane.b32.xlu0 %v1453, 120
      %v1480 = vpop.permute.xlu0 %1479
      %v1481 = vsel %vm457, %v1464, %v1466
      %v1482 = vsel %vm457, %v1466, %v1468
      %v1483 = vsel %vm457, %v1468, %v1470
      %v1484 = vsel %vm457, %v1470, %v1472
      %v1485 = vsel %vm457, %v1472, %v1474
      %v1486 = vsel %vm457, %v1474, %v1476
      %v1487 = vsel %vm457, %v1476, %v1478
      %v1488 = vsel %vm457, %v1478, %v1480
      %v1498 = vpack.c.bf16 %v1481, %v1445
      %v1499 = vpack.c.bf16 %v1482, %v1446
      %v1500 = vpack.c.bf16 %v1483, %v1447
      %v1501 = vpack.c.bf16 %v1484, %v1448
      %v1502 = vpack.c.bf16 %v1485, %v1449
      %v1503 = vpack.c.bf16 %v1486, %v1450
      %v1504 = vpack.c.bf16 %v1487, %v1451
      %v1505 = vpack.c.bf16 %v1488, %v1452
      %v1506 = vpack.c.bf16 %v1480, %v1453
      %1516 = vrot.lane.b32.xlu0 %v1498, 37
      %v1517 = vpop.permute.xlu0 %1516
      %1518 = vrot.lane.b32.xlu0 %v1499, 37
      %v1519 = vpop.permute.xlu0 %1518
      %1520 = vrot.lane.b32.xlu0 %v1500, 37
      %v1521 = vpop.permute.xlu0 %1520
      %1522 = vrot.lane.b32.xlu0 %v1501, 37
      %v1523 = vpop.permute.xlu0 %1522
      %1524 = vrot.lane.b32.xlu0 %v1502, 37
      %v1525 = vpop.permute.xlu0 %1524
      %1526 = vrot.lane.b32.xlu0 %v1503, 37
      %v1527 = vpop.permute.xlu0 %1526
      %1528 = vrot.lane.b32.xlu0 %v1504, 37
      %v1529 = vpop.permute.xlu0 %1528
      %1530 = vrot.lane.b32.xlu0 %v1505, 37
      %v1531 = vpop.permute.xlu0 %1530
      %1532 = vrot.lane.b32.xlu0 %v1506, 37
      %v1533 = vpop.permute.xlu0 %1532
      %vm1534 = vcmask 302080
      %v1535 = vsel %vm1534, %v1517, %v1519
      %v1536 = vsel %vm1534, %v1519, %v1521
      %v1537 = vsel %vm1534, %v1521, %v1523
      %v1538 = vsel %vm1534, %v1523, %v1525
      %v1539 = vsel %vm1534, %v1525, %v1527
      %v1540 = vsel %vm1534, %v1527, %v1529
      %v1541 = vsel %vm1534, %v1529, %v1531
      %v1542 = vsel %vm1534, %v1531, %v1533
      %1551 = vst [vmem:[#allocation2 + $0x280] sm:$0xff] %v1535
      %1552 = vst [vmem:[#allocation2 + $0x288] sm:$0xff] %v1536
      %1553 = vst [vmem:[#allocation2 + $0x290] sm:$0xff] %v1537
      %1554 = vst [vmem:[#allocation2 + $0x298] sm:$0xff] %v1538
      %1555 = vst [vmem:[#allocation2 + $0x2a0] sm:$0xff] %v1539
      %1556 = vst [vmem:[#allocation2 + $0x2a8] sm:$0xff] %v1540
      %1557 = vst [vmem:[#allocation2 + $0x2b0] sm:$0xff] %v1541
      %1558 = vst [vmem:[#allocation2 + $0x2b8] sm:$0xff] %v1542
      %v1559 = vld [vmem:[%s246 + $0x8] sm:$0xff]
      %v1560 = vld [vmem:[%s246 + $0x10] sm:$0xff]
      %v1561 = vld [vmem:[%s246 + $0x18] sm:$0xff]
      %v1562 = vld [vmem:[%s246 + $0x20] sm:$0xff]
      %v1563 = vld [vmem:[%s246 + $0x28] sm:$0xff]
      %v1564 = vld [vmem:[%s246 + $0x30] sm:$0xff]
      %v1565 = vld [vmem:[%s246 + $0x38] sm:$0xff]
      %v1566 = vld [vmem:[%s246 + $0x40] sm:$0xff]
      %v1567 = vld [vmem:[%s246 + $0x48] sm:$0xff]
      %1577 = vrot.lane.b32.xlu0 %v1559, 127
      %v1578 = vpop.permute.xlu0 %1577
      %1579 = vrot.lane.b32.xlu0 %v1560, 127
      %v1580 = vpop.permute.xlu0 %1579
      %1581 = vrot.lane.b32.xlu0 %v1561, 127
      %v1582 = vpop.permute.xlu0 %1581
      %1583 = vrot.lane.b32.xlu0 %v1562, 127
      %v1584 = vpop.permute.xlu0 %1583
      %1585 = vrot.lane.b32.xlu0 %v1563, 127
      %v1586 = vpop.permute.xlu0 %1585
      %1587 = vrot.lane.b32.xlu0 %v1564, 127
      %v1588 = vpop.permute.xlu0 %1587
      %1589 = vrot.lane.b32.xlu0 %v1565, 127
      %v1590 = vpop.permute.xlu0 %1589
      %1591 = vrot.lane.b32.xlu0 %v1566, 127
      %v1592 = vpop.permute.xlu0 %1591
      %1593 = vrot.lane.b32.xlu0 %v1567, 127
      %v1594 = vpop.permute.xlu0 %1593
      %v1595 = vsel %vm342, %v1578, %v1580
      %v1596 = vsel %vm342, %v1580, %v1582
      %v1597 = vsel %vm342, %v1582, %v1584
      %v1598 = vsel %vm342, %v1584, %v1586
      %v1599 = vsel %vm342, %v1586, %v1588
      %v1600 = vsel %vm342, %v1588, %v1590
      %v1601 = vsel %vm342, %v1590, %v1592
      %v1602 = vsel %vm342, %v1592, %v1594
      %v1612 = vpack.c.bf16 %v1595, %v1559
      %v1613 = vpack.c.bf16 %v1596, %v1560
      %v1614 = vpack.c.bf16 %v1597, %v1561
      %v1615 = vpack.c.bf16 %v1598, %v1562
      %v1616 = vpack.c.bf16 %v1599, %v1563
      %v1617 = vpack.c.bf16 %v1600, %v1564
      %v1618 = vpack.c.bf16 %v1601, %v1565
      %v1619 = vpack.c.bf16 %v1602, %v1566
      %v1620 = vpack.c.bf16 %v1594, %v1567
      %1630 = vrot.lane.b32.xlu0 %v1612, 28
      %v1631 = vpop.permute.xlu0 %1630
      %1632 = vrot.lane.b32.xlu0 %v1613, 28
      %v1633 = vpop.permute.xlu0 %1632
      %1634 = vrot.lane.b32.xlu0 %v1614, 28
      %v1635 = vpop.permute.xlu0 %1634
      %1636 = vrot.lane.b32.xlu0 %v1615, 28
      %v1637 = vpop.permute.xlu0 %1636
      %1638 = vrot.lane.b32.xlu0 %v1616, 28
      %v1639 = vpop.permute.xlu0 %1638
      %1640 = vrot.lane.b32.xlu0 %v1617, 28
      %v1641 = vpop.permute.xlu0 %1640
      %1642 = vrot.lane.b32.xlu0 %v1618, 28
      %v1643 = vpop.permute.xlu0 %1642
      %1644 = vrot.lane.b32.xlu0 %v1619, 28
      %v1645 = vpop.permute.xlu0 %1644
      %1646 = vrot.lane.b32.xlu0 %v1620, 28
      %v1647 = vpop.permute.xlu0 %1646
      %vm1648 = vcmask 228352
      %v1649 = vsel %vm1648, %v1631, %v1633
      %v1650 = vsel %vm1648, %v1633, %v1635
      %v1651 = vsel %vm1648, %v1635, %v1637
      %v1652 = vsel %vm1648, %v1637, %v1639
      %v1653 = vsel %vm1648, %v1639, %v1641
      %v1654 = vsel %vm1648, %v1641, %v1643
      %v1655 = vsel %vm1648, %v1643, %v1645
      %v1656 = vsel %vm1648, %v1645, %v1647
      %1665 = vst [vmem:[#allocation2 + $0x2c0] sm:$0xff] %v1649
      %1666 = vst [vmem:[#allocation2 + $0x2c8] sm:$0xff] %v1650
      %1667 = vst [vmem:[#allocation2 + $0x2d0] sm:$0xff] %v1651
      %1668 = vst [vmem:[#allocation2 + $0x2d8] sm:$0xff] %v1652
      %1669 = vst [vmem:[#allocation2 + $0x2e0] sm:$0xff] %v1653
      %1670 = vst [vmem:[#allocation2 + $0x2e8] sm:$0xff] %v1654
      %1671 = vst [vmem:[#allocation2 + $0x2f0] sm:$0xff] %v1655
      %1672 = vst [vmem:[#allocation2 + $0x2f8] sm:$0xff] %v1656
      %v1673 = vld [vmem:[%s246 + $0x8] sm:$0xff]
      %v1674 = vld [vmem:[%s246 + $0x10] sm:$0xff]
      %v1675 = vld [vmem:[%s246 + $0x18] sm:$0xff]
      %v1676 = vld [vmem:[%s246 + $0x20] sm:$0xff]
      %v1677 = vld [vmem:[%s246 + $0x28] sm:$0xff]
      %v1678 = vld [vmem:[%s246 + $0x30] sm:$0xff]
      %v1679 = vld [vmem:[%s246 + $0x38] sm:$0xff]
      %v1680 = vld [vmem:[%s246 + $0x40] sm:$0xff]
      %v1681 = vld [vmem:[%s246 + $0x48] sm:$0xff]
      %1691 = vrot.lane.b32.xlu0 %v1673, 127
      %v1692 = vpop.permute.xlu0 %1691
      %1693 = vrot.lane.b32.xlu0 %v1674, 127
      %v1694 = vpop.permute.xlu0 %1693
      %1695 = vrot.lane.b32.xlu0 %v1675, 127
      %v1696 = vpop.permute.xlu0 %1695
      %1697 = vrot.lane.b32.xlu0 %v1676, 127
      %v1698 = vpop.permute.xlu0 %1697
      %1699 = vrot.lane.b32.xlu0 %v1677, 127
      %v1700 = vpop.permute.xlu0 %1699
      %1701 = vrot.lane.b32.xlu0 %v1678, 127
      %v1702 = vpop.permute.xlu0 %1701
      %1703 = vrot.lane.b32.xlu0 %v1679, 127
      %v1704 = vpop.permute.xlu0 %1703
      %1705 = vrot.lane.b32.xlu0 %v1680, 127
      %v1706 = vpop.permute.xlu0 %1705
      %1707 = vrot.lane.b32.xlu0 %v1681, 127
      %v1708 = vpop.permute.xlu0 %1707
      %v1709 = vsel %vm342, %v1692, %v1694
      %v1710 = vsel %vm342, %v1694, %v1696
      %v1711 = vsel %vm342, %v1696, %v1698
      %v1712 = vsel %vm342, %v1698, %v1700
      %v1713 = vsel %vm342, %v1700, %v1702
      %v1714 = vsel %vm342, %v1702, %v1704
      %v1715 = vsel %vm342, %v1704, %v1706
      %v1716 = vsel %vm342, %v1706, %v1708
      %v1726 = vpack.c.bf16 %v1709, %v1673
      %v1727 = vpack.c.bf16 %v1710, %v1674
      %v1728 = vpack.c.bf16 %v1711, %v1675
      %v1729 = vpack.c.bf16 %v1712, %v1676
      %v1730 = vpack.c.bf16 %v1713, %v1677
      %v1731 = vpack.c.bf16 %v1714, %v1678
      %v1732 = vpack.c.bf16 %v1715, %v1679
      %v1733 = vpack.c.bf16 %v1716, %v1680
      %v1734 = vpack.c.bf16 %v1708, %v1681
      %1744 = vrot.lane.b32.xlu0 %v1726, 19
      %v1745 = vpop.permute.xlu0 %1744
      %1746 = vrot.lane.b32.xlu0 %v1727, 19
      %v1747 = vpop.permute.xlu0 %1746
      %1748 = vrot.lane.b32.xlu0 %v1728, 19
      %v1749 = vpop.permute.xlu0 %1748
      %1750 = vrot.lane.b32.xlu0 %v1729, 19
      %v1751 = vpop.permute.xlu0 %1750
      %1752 = vrot.lane.b32.xlu0 %v1730, 19
      %v1753 = vpop.permute.xlu0 %1752
      %1754 = vrot.lane.b32.xlu0 %v1731, 19
      %v1755 = vpop.permute.xlu0 %1754
      %1756 = vrot.lane.b32.xlu0 %v1732, 19
      %v1757 = vpop.permute.xlu0 %1756
      %1758 = vrot.lane.b32.xlu0 %v1733, 19
      %v1759 = vpop.permute.xlu0 %1758
      %1760 = vrot.lane.b32.xlu0 %v1734, 19
      %v1761 = vpop.permute.xlu0 %1760
      %vm1762 = vcmask 154624
      %v1763 = vsel %vm1762, %v1745, %v1747
      %v1764 = vsel %vm1762, %v1747, %v1749
      %v1765 = vsel %vm1762, %v1749, %v1751
      %v1766 = vsel %vm1762, %v1751, %v1753
      %v1767 = vsel %vm1762, %v1753, %v1755
      %v1768 = vsel %vm1762, %v1755, %v1757
      %v1769 = vsel %vm1762, %v1757, %v1759
      %v1770 = vsel %vm1762, %v1759, %v1761
      %1779 = vst [vmem:[#allocation2 + $0x300] sm:$0xff] %v1763
      %1780 = vst [vmem:[#allocation2 + $0x308] sm:$0xff] %v1764
      %1781 = vst [vmem:[#allocation2 + $0x310] sm:$0xff] %v1765
      %1782 = vst [vmem:[#allocation2 + $0x318] sm:$0xff] %v1766
      %1783 = vst [vmem:[#allocation2 + $0x320] sm:$0xff] %v1767
      %1784 = vst [vmem:[#allocation2 + $0x328] sm:$0xff] %v1768
      %1785 = vst [vmem:[#allocation2 + $0x330] sm:$0xff] %v1769
      %1786 = vst [vmem:[#allocation2 + $0x338] sm:$0xff] %v1770
      %v1787 = vld [vmem:[%s246 + $0x8] sm:$0xff]
      %v1788 = vld [vmem:[%s246 + $0x10] sm:$0xff]
      %v1789 = vld [vmem:[%s246 + $0x18] sm:$0xff]
      %v1790 = vld [vmem:[%s246 + $0x20] sm:$0xff]
      %v1791 = vld [vmem:[%s246 + $0x28] sm:$0xff]
      %v1792 = vld [vmem:[%s246 + $0x30] sm:$0xff]
      %v1793 = vld [vmem:[%s246 + $0x38] sm:$0xff]
      %v1794 = vld [vmem:[%s246 + $0x40] sm:$0xff]
      %v1795 = vld [vmem:[%s246 + $0x48] sm:$0xff]
      %v1796 = vpack.c.bf16 0.0, %v1787
      %v1797 = vpack.c.bf16 0.0, %v1788
      %v1798 = vpack.c.bf16 0.0, %v1789
      %v1799 = vpack.c.bf16 0.0, %v1790
      %v1800 = vpack.c.bf16 0.0, %v1791
      %v1801 = vpack.c.bf16 0.0, %v1792
      %v1802 = vpack.c.bf16 0.0, %v1793
      %v1803 = vpack.c.bf16 0.0, %v1794
      %v1804 = vpack.c.bf16 0.0, %v1795
      %1814 = vrot.lane.b32.xlu0 %v1796, 17
      %v1815 = vpop.permute.xlu0 %1814
      %1816 = vrot.lane.b32.xlu0 %v1797, 17
      %v1817 = vpop.permute.xlu0 %1816
      %1818 = vrot.lane.b32.xlu0 %v1798, 17
      %v1819 = vpop.permute.xlu0 %1818
      %1820 = vrot.lane.b32.xlu0 %v1799, 17
      %v1821 = vpop.permute.xlu0 %1820
      %1822 = vrot.lane.b32.xlu0 %v1800, 17
      %v1823 = vpop.permute.xlu0 %1822
      %1824 = vrot.lane.b32.xlu0 %v1801, 17
      %v1825 = vpop.permute.xlu0 %1824
      %1826 = vrot.lane.b32.xlu0 %v1802, 17
      %v1827 = vpop.permute.xlu0 %1826
      %1828 = vrot.lane.b32.xlu0 %v1803, 17
      %v1829 = vpop.permute.xlu0 %1828
      %1830 = vrot.lane.b32.xlu0 %v1804, 17
      %v1831 = vpop.permute.xlu0 %1830
      %vm1832 = vcmask 138240
      %v1833 = vsel %vm1832, %v1815, %v1817
      %v1834 = vsel %vm1832, %v1817, %v1819
      %v1835 = vsel %vm1832, %v1819, %v1821
      %v1836 = vsel %vm1832, %v1821, %v1823
      %v1837 = vsel %vm1832, %v1823, %v1825
      %v1838 = vsel %vm1832, %v1825, %v1827
      %v1839 = vsel %vm1832, %v1827, %v1829
      %v1840 = vsel %vm1832, %v1829, %v1831
      %1849 = vst [vmem:[#allocation2 + $0x340] sm:$0xff] %v1833
      %1850 = vst [vmem:[#allocation2 + $0x348] sm:$0xff] %v1834
      %1851 = vst [vmem:[#allocation2 + $0x350] sm:$0xff] %v1835
      %1852 = vst [vmem:[#allocation2 + $0x358] sm:$0xff] %v1836
      %1853 = vst [vmem:[#allocation2 + $0x360] sm:$0xff] %v1837
      %1854 = vst [vmem:[#allocation2 + $0x368] sm:$0xff] %v1838
      %1855 = vst [vmem:[#allocation2 + $0x370] sm:$0xff] %v1839
      %1856 = vst [vmem:[#allocation2 + $0x378] sm:$0xff] %v1840
      %v1857 = vld [vmem:[%s2] sm:$0xff]
      %v1858 = vld [vmem:[#allocation2] sm:$0xff]
      %v1859 = vld [vmem:[#allocation2 + $0x8] sm:$0xff]
      %v1860 = vld [vmem:[#allocation2 + $0x10] sm:$0xff]
      %v1861 = vld [vmem:[#allocation2 + $0x18] sm:$0xff]
      %v1862 = vld [vmem:[#allocation2 + $0x20] sm:$0xff]
      %v1863 = vld [vmem:[#allocation2 + $0x28] sm:$0xff]
      %v1864 = vld [vmem:[#allocation2 + $0x30] sm:$0xff]
      %v1865 = vld [vmem:[#allocation2 + $0x38] sm:$0xff]
      %v1866 = vld [vmem:[#allocation2 + $0x40] sm:$0xff]
      %v1867 = vld [vmem:[#allocation2 + $0x48] sm:$0xff]
      %v1868 = vld [vmem:[#allocation2 + $0x50] sm:$0xff]
      %v1869 = vld [vmem:[#allocation2 + $0x58] sm:$0xff]
      %v1870 = vld [vmem:[#allocation2 + $0x60] sm:$0xff]
      %v1871 = vld [vmem:[#allocation2 + $0x68] sm:$0xff]
      %v1872 = vld [vmem:[#allocation2 + $0x70] sm:$0xff]
      %v1873 = vld [vmem:[#allocation2 + $0x78] sm:$0xff]
      %v1874 = vld [vmem:[#allocation2 + $0x80] sm:$0xff]
      %v1875 = vld [vmem:[#allocation2 + $0x88] sm:$0xff]
      %v1876 = vld [vmem:[#allocation2 + $0x90] sm:$0xff]
      %v1877 = vld [vmem:[#allocation2 + $0x98] sm:$0xff]
      %v1878 = vld [vmem:[#allocation2 + $0xa0] sm:$0xff]
      %v1879 = vld [vmem:[#allocation2 + $0xa8] sm:$0xff]
      %v1880 = vld [vmem:[#allocation2 + $0xb0] sm:$0xff]
      %v1881 = vld [vmem:[#allocation2 + $0xb8] sm:$0xff]
      %v1882 = vld [vmem:[#allocation2 + $0xc0] sm:$0xff]
      %v1883 = vld [vmem:[#allocation2 + $0xc8] sm:$0xff]
      %v1884 = vld [vmem:[#allocation2 + $0xd0] sm:$0xff]
      %v1885 = vld [vmem:[#allocation2 + $0xd8] sm:$0xff]
      %v1886 = vld [vmem:[#allocation2 + $0xe0] sm:$0xff]
      %v1887 = vld [vmem:[#allocation2 + $0xe8] sm:$0xff]
      %v1888 = vld [vmem:[#allocation2 + $0xf0] sm:$0xff]
      %v1889 = vld [vmem:[#allocation2 + $0xf8] sm:$0xff]
      %v1890 = vld [vmem:[#allocation2 + $0x100] sm:$0xff]
      %v1891 = vld [vmem:[#allocation2 + $0x108] sm:$0xff]
      %v1892 = vld [vmem:[#allocation2 + $0x110] sm:$0xff]
      %v1893 = vld [vmem:[#allocation2 + $0x118] sm:$0xff]
      %v1894 = vld [vmem:[#allocation2 + $0x120] sm:$0xff]
      %v1895 = vld [vmem:[#allocation2 + $0x128] sm:$0xff]
      %v1896 = vld [vmem:[#allocation2 + $0x130] sm:$0xff]
      %v1897 = vld [vmem:[#allocation2 + $0x138] sm:$0xff]
      %v1898 = vld [vmem:[#allocation2 + $0x140] sm:$0xff]
      %v1899 = vld [vmem:[#allocation2 + $0x148] sm:$0xff]
      %v1900 = vld [vmem:[#allocation2 + $0x150] sm:$0xff]
      %v1901 = vld [vmem:[#allocation2 + $0x158] sm:$0xff]
      %v1902 = vld [vmem:[#allocation2 + $0x160] sm:$0xff]
      %v1903 = vld [vmem:[#allocation2 + $0x168] sm:$0xff]
      %v1904 = vld [vmem:[#allocation2 + $0x170] sm:$0xff]
      %v1905 = vld [vmem:[#allocation2 + $0x178] sm:$0xff]
      %v1906 = vld [vmem:[#allocation2 + $0x180] sm:$0xff]
      %v1907 = vld [vmem:[#allocation2 + $0x188] sm:$0xff]
      %v1908 = vld [vmem:[#allocation2 + $0x190] sm:$0xff]
      %v1909 = vld [vmem:[#allocation2 + $0x198] sm:$0xff]
      %v1910 = vld [vmem:[#allocation2 + $0x1a0] sm:$0xff]
      %v1911 = vld [vmem:[#allocation2 + $0x1a8] sm:$0xff]
      %v1912 = vld [vmem:[#allocation2 + $0x1b0] sm:$0xff]
      %v1913 = vld [vmem:[#allocation2 + $0x1b8] sm:$0xff]
      %v1914 = vld [vmem:[#allocation2 + $0x1c0] sm:$0xff]
      %v1915 = vld [vmem:[#allocation2 + $0x1c8] sm:$0xff]
      %v1916 = vld [vmem:[#allocation2 + $0x1d0] sm:$0xff]
      %v1917 = vld [vmem:[#allocation2 + $0x1d8] sm:$0xff]
      %v1918 = vld [vmem:[#allocation2 + $0x1e0] sm:$0xff]
      %v1919 = vld [vmem:[#allocation2 + $0x1e8] sm:$0xff]
      %v1920 = vld [vmem:[#allocation2 + $0x1f0] sm:$0xff]
      %v1921 = vld [vmem:[#allocation2 + $0x1f8] sm:$0xff]
      %v1922 = vld [vmem:[#allocation2 + $0x200] sm:$0xff]
      %v1923 = vld [vmem:[#allocation2 + $0x208] sm:$0xff]
      %v1924 = vld [vmem:[#allocation2 + $0x210] sm:$0xff]
      %v1925 = vld [vmem:[#allocation2 + $0x218] sm:$0xff]
      %v1926 = vld [vmem:[#allocation2 + $0x220] sm:$0xff]
      %v1927 = vld [vmem:[#allocation2 + $0x228] sm:$0xff]
      %v1928 = vld [vmem:[#allocation2 + $0x230] sm:$0xff]
      %v1929 = vld [vmem:[#allocation2 + $0x238] sm:$0xff]
      %v1930 = vld [vmem:[#allocation2 + $0x240] sm:$0xff]
      %v1931 = vld [vmem:[#allocation2 + $0x248] sm:$0xff]
      %v1932 = vld [vmem:[#allocation2 + $0x250] sm:$0xff]
      %v1933 = vld [vmem:[#allocation2 + $0x258] sm:$0xff]
      %v1934 = vld [vmem:[#allocation2 + $0x260] sm:$0xff]
      %v1935 = vld [vmem:[#allocation2 + $0x268] sm:$0xff]
      %v1936 = vld [vmem:[#allocation2 + $0x270] sm:$0xff]
      %v1937 = vld [vmem:[#allocation2 + $0x278] sm:$0xff]
      %v1938 = vld [vmem:[#allocation2 + $0x280] sm:$0xff]
      %v1939 = vld [vmem:[#allocation2 + $0x288] sm:$0xff]
      %v1940 = vld [vmem:[#allocation2 + $0x290] sm:$0xff]
      %v1941 = vld [vmem:[#allocation2 + $0x298] sm:$0xff]
      %v1942 = vld [vmem:[#allocation2 + $0x2a0] sm:$0xff]
      %v1943 = vld [vmem:[#allocation2 + $0x2a8] sm:$0xff]
      %v1944 = vld [vmem:[#allocation2 + $0x2b0] sm:$0xff]
      %v1945 = vld [vmem:[#allocation2 + $0x2b8] sm:$0xff]
      %v1946 = vld [vmem:[#allocation2 + $0x2c0] sm:$0xff]
      %v1947 = vld [vmem:[#allocation2 + $0x2c8] sm:$0xff]
      %v1948 = vld [vmem:[#allocation2 + $0x2d0] sm:$0xff]
      %v1949 = vld [vmem:[#allocation2 + $0x2d8] sm:$0xff]
      %v1950 = vld [vmem:[#allocation2 + $0x2e0] sm:$0xff]
      %v1951 = vld [vmem:[#allocation2 + $0x2e8] sm:$0xff]
      %v1952 = vld [vmem:[#allocation2 + $0x2f0] sm:$0xff]
      %v1953 = vld [vmem:[#allocation2 + $0x2f8] sm:$0xff]
      %v1954 = vld [vmem:[#allocation2 + $0x300] sm:$0xff]
      %v1955 = vld [vmem:[#allocation2 + $0x308] sm:$0xff]
      %v1956 = vld [vmem:[#allocation2 + $0x310] sm:$0xff]
      %v1957 = vld [vmem:[#allocation2 + $0x318] sm:$0xff]
      %v1958 = vld [vmem:[#allocation2 + $0x320] sm:$0xff]
      %v1959 = vld [vmem:[#allocation2 + $0x328] sm:$0xff]
      %v1960 = vld [vmem:[#allocation2 + $0x330] sm:$0xff]
      %v1961 = vld [vmem:[#allocation2 + $0x338] sm:$0xff]
      %v1962 = vld [vmem:[#allocation2 + $0x340] sm:$0xff]
      %v1963 = vld [vmem:[#allocation2 + $0x348] sm:$0xff]
      %v1964 = vld [vmem:[#allocation2 + $0x350] sm:$0xff]
      %v1965 = vld [vmem:[#allocation2 + $0x358] sm:$0xff]
      %v1966 = vld [vmem:[#allocation2 + $0x360] sm:$0xff]
      %v1967 = vld [vmem:[#allocation2 + $0x368] sm:$0xff]
      %v1968 = vld [vmem:[#allocation2 + $0x370] sm:$0xff]
      %v1969 = vld [vmem:[#allocation2 + $0x378] sm:$0xff]
      %1971 = vset.pattern.permute.xlu0 0
      %1972 = vperm.xlu0 %1971, %v295
      %v1973 = vpop.permute.xlu0 %1972
      %v1976 = vunpack.c.l.b16 %v1857
      %v1977 = vunpack.c.h.b16 %v1857
      %v1978 = vpack.c.b16 %v1976, %v1976
      %v1979 = vpack.c.b16 %v1977, %v1977
      %vm1981 = vcmask 785408
      %v1983 = vsel %vm1981, %v1979, 0
      %1985 = vmatprep.subr.bf16.mxu0 %v1859
      %1986 = vmatpush1.bf16.msra.mxu0 %v1858
      %1987 = vmatprep.subr.bf16.mxu0 %v1867
      %1988 = vmatpush1.bf16.msra.mxu0 %v1866
      %1989 = vmatprep.subr.bf16.mxu0 %v1875
      %1990 = vmatpush1.bf16.msra.mxu0 %v1874
      %1991 = vmatprep.subr.bf16.mxu0 %v1883
      %1992 = vmatpush1.bf16.msra.mxu0 %v1882
      %1993 = vmatprep.subr.bf16.mxu0 %v1891
      %1994 = vmatpush1.bf16.msra.mxu0 %v1890
      %1995 = vmatprep.subr.bf16.mxu0 %v1899
      %1996 = vmatpush1.bf16.msra.mxu0 %v1898
      %1997 = vmatprep.subr.bf16.mxu0 %v1907
      %1998 = vmatpush1.bf16.msra.mxu0 %v1906
      %1999 = vmatprep.subr.bf16.mxu0 %v1915
      %2000 = vmatpush1.bf16.msra.mxu0 %v1914
      %2001 = vmatprep.subr.bf16.mxu0 %v1923
      %2002 = vmatpush1.bf16.msra.mxu0 %v1922
      %2003 = vmatprep.subr.bf16.mxu0 %v1931
      %2004 = vmatpush1.bf16.msra.mxu0 %v1930
      %2005 = vmatprep.subr.bf16.mxu0 %v1939
      %2006 = vmatpush1.bf16.msra.mxu0 %v1938
      %2007 = vmatprep.subr.bf16.mxu0 %v1947
      %2008 = vmatpush1.bf16.msra.mxu0 %v1946
      %2009 = vmatprep.subr.bf16.mxu0 %v1955
      %2010 = vmatpush1.bf16.msra.mxu0 %v1954
      %2011 = vmatprep.subr.bf16.mxu0 %v1963
      %2012 = vmatpush1.bf16.msra.mxu0 %v1962
      %2013 = vmatprep.subr.bf16.mxu0 0
      %2014 = vmatpush1.bf16.msra.mxu0 0
      %2015 = vmatprep.subr.bf16.mxu0 0
      %2016 = vmatpush1.bf16.msra.mxu0 0
      %2017 = vmatprep.mubr.bf16.mxu0 %v1983
      %2018 = vmatmul.mubr.bf16.gmra.mrb[0].mxu0 %v1978
      %v2019 = vpop.f32.mrb[0].mxu0
      %v2020 = vadd.f32 %v1973, %v2019
      %v2021 = vpop.f32.mrb[0].mxu0
      %v2022 = vadd.f32 %v1973, %v2021
      %v2023 = vpop.f32.mrb[0].mxu0
      %v2024 = vpop.f32.mrb[0].mxu0
      %2025 = vdwg.mxu0
      %2026 = vmatprep.subr.bf16.mxu0 %v1861
      %2027 = vmatpush1.bf16.msra.mxu0 %v1860
      %2028 = vmatprep.subr.bf16.mxu0 %v1869
      %2029 = vmatpush1.bf16.msra.mxu0 %v1868
      %2030 = vmatprep.subr.bf16.mxu0 %v1877
      %2031 = vmatpush1.bf16.msra.mxu0 %v1876
      %2032 = vmatprep.subr.bf16.mxu0 %v1885
      %2033 = vmatpush1.bf16.msra.mxu0 %v1884
      %2034 = vmatprep.subr.bf16.mxu0 %v1893
      %2035 = vmatpush1.bf16.msra.mxu0 %v1892
      %2036 = vmatprep.subr.bf16.mxu0 %v1901
      %2037 = vmatpush1.bf16.msra.mxu0 %v1900
      %2038 = vmatprep.subr.bf16.mxu0 %v1909
      %2039 = vmatpush1.bf16.msra.mxu0 %v1908
      %2040 = vmatprep.subr.bf16.mxu0 %v1917
      %2041 = vmatpush1.bf16.msra.mxu0 %v1916
      %2042 = vmatprep.subr.bf16.mxu0 %v1925
      %2043 = vmatpush1.bf16.msra.mxu0 %v1924
      %2044 = vmatprep.subr.bf16.mxu0 %v1933
      %2045 = vmatpush1.bf16.msra.mxu0 %v1932
      %2046 = vmatprep.subr.bf16.mxu0 %v1941
      %2047 = vmatpush1.bf16.msra.mxu0 %v1940
      %2048 = vmatprep.subr.bf16.mxu0 %v1949
      %2049 = vmatpush1.bf16.msra.mxu0 %v1948
      %2050 = vmatprep.subr.bf16.mxu0 %v1957
      %2051 = vmatpush1.bf16.msra.mxu0 %v1956
      %2052 = vmatprep.subr.bf16.mxu0 %v1965
      %2053 = vmatpush1.bf16.msra.mxu0 %v1964
      %2054 = vmatprep.subr.bf16.mxu0 0
      %2055 = vmatpush1.bf16.msra.mxu0 0
      %2056 = vmatprep.subr.bf16.mxu0 0
      %2057 = vmatpush1.bf16.msra.mxu0 0
      %2058 = vmatprep.mubr.bf16.mxu0 %v1983
      %2059 = vmatmul.mubr.bf16.gmra.mrb[0].mxu0 %v1978
      %v2060 = vpop.f32.mrb[0].mxu0
      %v2061 = vadd.f32 %v1973, %v2060
      %v2062 = vpop.f32.mrb[0].mxu0
      %v2063 = vadd.f32 %v1973, %v2062
      %v2064 = vpop.f32.mrb[0].mxu0
      %v2065 = vpop.f32.mrb[0].mxu0
      %2066 = vdwg.mxu0
      %2067 = vmatprep.subr.bf16.mxu0 %v1863
      %2068 = vmatpush1.bf16.msra.mxu0 %v1862
      %2069 = vmatprep.subr.bf16.mxu0 %v1871
      %2070 = vmatpush1.bf16.msra.mxu0 %v1870
      %2071 = vmatprep.subr.bf16.mxu0 %v1879
      %2072 = vmatpush1.bf16.msra.mxu0 %v1878
      %2073 = vmatprep.subr.bf16.mxu0 %v1887
      %2074 = vmatpush1.bf16.msra.mxu0 %v1886
      %2075 = vmatprep.subr.bf16.mxu0 %v1895
      %2076 = vmatpush1.bf16.msra.mxu0 %v1894
      %2077 = vmatprep.subr.bf16.mxu0 %v1903
      %2078 = vmatpush1.bf16.msra.mxu0 %v1902
      %2079 = vmatprep.subr.bf16.mxu0 %v1911
      %2080 = vmatpush1.bf16.msra.mxu0 %v1910
      %2081 = vmatprep.subr.bf16.mxu0 %v1919
      %2082 = vmatpush1.bf16.msra.mxu0 %v1918
      %2083 = vmatprep.subr.bf16.mxu0 %v1927
      %2084 = vmatpush1.bf16.msra.mxu0 %v1926
      %2085 = vmatprep.subr.bf16.mxu0 %v1935
      %2086 = vmatpush1.bf16.msra.mxu0 %v1934
      %2087 = vmatprep.subr.bf16.mxu0 %v1943
      %2088 = vmatpush1.bf16.msra.mxu0 %v1942
      %2089 = vmatprep.subr.bf16.mxu0 %v1951
      %2090 = vmatpush1.bf16.msra.mxu0 %v1950
      %2091 = vmatprep.subr.bf16.mxu0 %v1959
      %2092 = vmatpush1.bf16.msra.mxu0 %v1958
      %2093 = vmatprep.subr.bf16.mxu0 %v1967
      %2094 = vmatpush1.bf16.msra.mxu0 %v1966
      %2095 = vmatprep.subr.bf16.mxu0 0
      %2096 = vmatpush1.bf16.msra.mxu0 0
      %2097 = vmatprep.subr.bf16.mxu0 0
      %2098 = vmatpush1.bf16.msra.mxu0 0
      %2099 = vmatprep.mubr.bf16.mxu0 %v1983
      %2100 = vmatmul.mubr.bf16.gmra.mrb[0].mxu0 %v1978
      %v2101 = vpop.f32.mrb[0].mxu0
      %v2102 = vadd.f32 %v1973, %v2101
      %v2103 = vpop.f32.mrb[0].mxu0
      %v2104 = vadd.f32 %v1973, %v2103
      %v2105 = vpop.f32.mrb[0].mxu0
      %v2106 = vpop.f32.mrb[0].mxu0
      %2107 = vdwg.mxu0
      %2108 = vmatprep.subr.bf16.mxu0 %v1865
      %2109 = vmatpush1.bf16.msra.mxu0 %v1864
      %2110 = vmatprep.subr.bf16.mxu0 %v1873
      %2111 = vmatpush1.bf16.msra.mxu0 %v1872
      %2112 = vmatprep.subr.bf16.mxu0 %v1881
      %2113 = vmatpush1.bf16.msra.mxu0 %v1880
      %2114 = vmatprep.subr.bf16.mxu0 %v1889
      %2115 = vmatpush1.bf16.msra.mxu0 %v1888
      %2116 = vmatprep.subr.bf16.mxu0 %v1897
      %2117 = vmatpush1.bf16.msra.mxu0 %v1896
      %2118 = vmatprep.subr.bf16.mxu0 %v1905
      %2119 = vmatpush1.bf16.msra.mxu0 %v1904
      %2120 = vmatprep.subr.bf16.mxu0 %v1913
      %2121 = vmatpush1.bf16.msra.mxu0 %v1912
      %2122 = vmatprep.subr.bf16.mxu0 %v1921
      %2123 = vmatpush1.bf16.msra.mxu0 %v1920
      %2124 = vmatprep.subr.bf16.mxu0 %v1929
      %2125 = vmatpush1.bf16.msra.mxu0 %v1928
      %2126 = vmatprep.subr.bf16.mxu0 %v1937
      %2127 = vmatpush1.bf16.msra.mxu0 %v1936
      %2128 = vmatprep.subr.bf16.mxu0 %v1945
      %2129 = vmatpush1.bf16.msra.mxu0 %v1944
      %2130 = vmatprep.subr.bf16.mxu0 %v1953
      %2131 = vmatpush1.bf16.msra.mxu0 %v1952
      %2132 = vmatprep.subr.bf16.mxu0 %v1961
      %2133 = vmatpush1.bf16.msra.mxu0 %v1960
      %2134 = vmatprep.subr.bf16.mxu0 %v1969
      %2135 = vmatpush1.bf16.msra.mxu0 %v1968
      %2136 = vmatprep.subr.bf16.mxu0 0
      %2137 = vmatpush1.bf16.msra.mxu0 0
      %2138 = vmatprep.subr.bf16.mxu0 0
      %2139 = vmatpush1.bf16.msra.mxu0 0
      %2140 = vmatprep.mubr.bf16.mxu0 %v1983
      %2141 = vmatmul.mubr.bf16.gmra.mrb[0].mxu0 %v1978
      %v2142 = vpop.f32.mrb[0].mxu0
      %v2143 = vadd.f32 %v1973, %v2142
      %v2144 = vpop.f32.mrb[0].mxu0
      %v2145 = vadd.f32 %v1973, %v2144
      %v2146 = vpop.f32.mrb[0].mxu0
      %v2147 = vpop.f32.mrb[0].mxu0
      %2148 = vdwg.mxu0
      %v2149 = vmul.f32 %v2020, %v258
      %v2150 = vmul.f32 %v2022, %v262
      %v2151 = vmul.f32 %v2061, %v266
      %v2152 = vmul.f32 %v2063, %v270
      %v2153 = vmul.f32 %v2102, %v274
      %v2154 = vmul.f32 %v2104, %v278
      %v2155 = vmul.f32 %v2143, %v282
      %v2156 = vmul.f32 %v2145, %v286
      %v2157 = vadd.f32 %v2149, %v2150
      %v2158 = vadd.f32 %v2157, %v2151
      %v2159 = vadd.f32 %v2158, %v2152
      %v2160 = vadd.f32 %v2159, %v2153
      %v2161 = vadd.f32 %v2160, %v2154
      %v2162 = vadd.f32 %v2161, %v2155
      %v2163 = vadd.f32 %v2162, %v2156
      %2164 = vadd.xlane.f32.xlu0 %v2163
      %v2165 = vpop.xlane.xlu0 %2164
      %v2166 = vmul.f32 %v2165, 0.001953125
      %v2167 = vmul.f32 %v2149, %v2020
      %v2168 = vmul.f32 %v2150, %v2022
      %v2169 = vmul.f32 %v2151, %v2061
      %v2170 = vmul.f32 %v2152, %v2063
      %v2171 = vmul.f32 %v2153, %v2102
      %v2172 = vmul.f32 %v2154, %v2104
      %v2173 = vmul.f32 %v2155, %v2143
      %v2174 = vmul.f32 %v2156, %v2145
      %v2175 = vadd.f32 %v2167, %v2168
      %v2176 = vadd.f32 %v2175, %v2169
      %v2177 = vadd.f32 %v2176, %v2170
      %v2178 = vadd.f32 %v2177, %v2171
      %v2179 = vadd.f32 %v2178, %v2172
      %v2180 = vadd.f32 %v2179, %v2173
      %v2181 = vadd.f32 %v2180, %v2174
      %2182 = vadd.xlane.f32.xlu0 %v2181
      %v2183 = vpop.xlane.xlu0 %2182
      %v2184 = vmul.f32 %v2183, 0.001953125
      %v2185 = vmul.f32 %v2166, %v2166
      %v2186 = vsub.f32 %v2184, %v2185
      %v2187 = vmax.f32 %v2186, 0.0
      %v2188 = vsub.f32 %v2020, %v2166
      %v2189 = vsub.f32 %v2022, %v2166
      %v2190 = vsub.f32 %v2061, %v2166
      %v2191 = vsub.f32 %v2063, %v2166
      %v2192 = vsub.f32 %v2102, %v2166
      %v2193 = vsub.f32 %v2104, %v2166
      %v2194 = vsub.f32 %v2143, %v2166
      %v2195 = vsub.f32 %v2145, %v2166
      %v2196 = vadd.f32 %v2187, 1e-05
      %v2197 = vrsqrt.pop %v2196
      %v2198 = vmul.f32 %v2188, %v2197
      %v2199 = vmul.f32 %v2189, %v2197
      %v2200 = vmul.f32 %v2190, %v2197
      %v2201 = vmul.f32 %v2191, %v2197
      %v2202 = vmul.f32 %v2192, %v2197
      %v2203 = vmul.f32 %v2193, %v2197
      %v2204 = vmul.f32 %v2194, %v2197
      %v2205 = vmul.f32 %v2195, %v2197
      %2206 = vset.pattern.permute.xlu0 1
      %2207 = vperm.xlu0 %2206, %v295
      %v2208 = vpop.permute.xlu0 %2207
      %v2210 = vmul.f32 %v2198, %v2208
      %v2211 = vmul.f32 %v2199, %v2208
      %v2212 = vmul.f32 %v2200, %v2208
      %v2213 = vmul.f32 %v2201, %v2208
      %v2214 = vmul.f32 %v2202, %v2208
      %v2215 = vmul.f32 %v2203, %v2208
      %v2216 = vmul.f32 %v2204, %v2208
      %v2217 = vmul.f32 %v2205, %v2208
      %2218 = vset.pattern.permute.xlu0 2
      %2219 = vperm.xlu0 %2218, %v295
      %v2220 = vpop.permute.xlu0 %2219
      %v2222 = vadd.f32 %v2210, %v2220
      %v2223 = vadd.f32 %v2211, %v2220
      %v2224 = vadd.f32 %v2212, %v2220
      %v2225 = vadd.f32 %v2213, %v2220
      %v2226 = vadd.f32 %v2214, %v2220
      %v2227 = vadd.f32 %v2215, %v2220
      %v2228 = vadd.f32 %v2216, %v2220
      %v2229 = vadd.f32 %v2217, %v2220
      %vm2230 = vcmp.ge.f32.partialorder %v2222, 0.0
      %vm2231 = vcmp.ge.f32.partialorder %v2223, 0.0
      %vm2232 = vcmp.ge.f32.partialorder %v2224, 0.0
      %vm2233 = vcmp.ge.f32.partialorder %v2225, 0.0
      %vm2234 = vcmp.ge.f32.partialorder %v2226, 0.0
      %vm2235 = vcmp.ge.f32.partialorder %v2227, 0.0
      %vm2236 = vcmp.ge.f32.partialorder %v2228, 0.0
      %vm2237 = vcmp.ge.f32.partialorder %v2229, 0.0
      %v2238 = vmul.f32 %v2222, 0.22916667
      %v2239 = vmul.f32 %v2223, 0.22916667
      %v2240 = vmul.f32 %v2224, 0.22916667
      %v2241 = vmul.f32 %v2225, 0.22916667
      %v2242 = vmul.f32 %v2226, 0.22916667
      %v2243 = vmul.f32 %v2227, 0.22916667
      %v2244 = vmul.f32 %v2228, 0.22916667
      %v2245 = vmul.f32 %v2229, 0.22916667
      %v2246 = vsel %vm2230, %v2222, %v2238
      %v2247 = vsel %vm2231, %v2223, %v2239
      %v2248 = vsel %vm2232, %v2224, %v2240
      %v2249 = vsel %vm2233, %v2225, %v2241
      %v2250 = vsel %vm2234, %v2226, %v2242
      %v2251 = vsel %vm2235, %v2227, %v2243
      %v2252 = vsel %vm2236, %v2228, %v2244
      %v2253 = vsel %vm2237, %v2229, %v2245
      %v2254 = vmul.f32 %v2246, %v258
      %v2255 = vmul.f32 %v2247, %v262
      %v2256 = vmul.f32 %v2248, %v266
      %v2257 = vmul.f32 %v2249, %v270
      %v2258 = vmul.f32 %v2250, %v274
      %v2259 = vmul.f32 %v2251, %v278
      %v2260 = vmul.f32 %v2252, %v282
      %v2261 = vmul.f32 %v2253, %v286
      %2262 = vst [vmem:[#allocation3 + $0x8] sm:$0xff] %v2254
      %2263 = vst [vmem:[#allocation3 + $0x10] sm:$0xff] %v2255
      %2264 = vst [vmem:[#allocation3 + $0x18] sm:$0xff] %v2256
      %2265 = vst [vmem:[#allocation3 + $0x20] sm:$0xff] %v2257
      %2266 = vst [vmem:[#allocation3 + $0x28] sm:$0xff] %v2258
      %2267 = vst [vmem:[#allocation3 + $0x30] sm:$0xff] %v2259
      %2268 = vst [vmem:[#allocation3 + $0x38] sm:$0xff] %v2260
      %2269 = vst [vmem:[#allocation3 + $0x40] sm:$0xff] %v2261
      %v2270 = vld [vmem:[#allocation3] sm:$0xff]
      %v2271 = vld [vmem:[#allocation3 + $0x8] sm:$0xff]
      %v2272 = vld [vmem:[#allocation3 + $0x10] sm:$0xff]
      %v2273 = vld [vmem:[#allocation3 + $0x18] sm:$0xff]
      %v2274 = vld [vmem:[#allocation3 + $0x20] sm:$0xff]
      %v2275 = vld [vmem:[#allocation3 + $0x28] sm:$0xff]
      %v2276 = vld [vmem:[#allocation3 + $0x30] sm:$0xff]
      %v2277 = vld [vmem:[#allocation3 + $0x38] sm:$0xff]
      %v2278 = vld [vmem:[#allocation3 + $0x40] sm:$0xff]
      %2288 = vrot.lane.b32.xlu0 %v2270, 127
      %v2289 = vpop.permute.xlu0 %2288
      %2290 = vrot.lane.b32.xlu0 %v2271, 127
      %v2291 = vpop.permute.xlu0 %2290
      %2292 = vrot.lane.b32.xlu0 %v2272, 127
      %v2293 = vpop.permute.xlu0 %2292
      %2294 = vrot.lane.b32.xlu0 %v2273, 127
      %v2295 = vpop.permute.xlu0 %2294
      %2296 = vrot.lane.b32.xlu0 %v2274, 127
      %v2297 = vpop.permute.xlu0 %2296
      %2298 = vrot.lane.b32.xlu0 %v2275, 127
      %v2299 = vpop.permute.xlu0 %2298
      %2300 = vrot.lane.b32.xlu0 %v2276, 127
      %v2301 = vpop.permute.xlu0 %2300
      %2302 = vrot.lane.b32.xlu0 %v2277, 127
      %v2303 = vpop.permute.xlu0 %2302
      %2304 = vrot.lane.b32.xlu0 %v2278, 127
      %v2305 = vpop.permute.xlu0 %2304
      %v2306 = vsel %vm342, %v2289, %v2291
      %v2307 = vsel %vm342, %v2291, %v2293
      %v2308 = vsel %vm342, %v2293, %v2295
      %v2309 = vsel %vm342, %v2295, %v2297
      %v2310 = vsel %vm342, %v2297, %v2299
      %v2311 = vsel %vm342, %v2299, %v2301
      %v2312 = vsel %vm342, %v2301, %v2303
      %v2313 = vsel %vm342, %v2303, %v2305
      %v2323 = vpack.c.bf16 %v2306, %v2270
      %v2324 = vpack.c.bf16 %v2307, %v2271
      %v2325 = vpack.c.bf16 %v2308, %v2272
      %v2326 = vpack.c.bf16 %v2309, %v2273
      %v2327 = vpack.c.bf16 %v2310, %v2274
      %v2328 = vpack.c.bf16 %v2311, %v2275
      %v2329 = vpack.c.bf16 %v2312, %v2276
      %v2330 = vpack.c.bf16 %v2313, %v2277
      %v2331 = vpack.c.bf16 %v2305, %v2278
      %2341 = vrot.lane.b32.xlu0 %v2323, 111
      %v2342 = vpop.permute.xlu0 %2341
      %2343 = vrot.lane.b32.xlu0 %v2324, 111
      %v2344 = vpop.permute.xlu0 %2343
      %2345 = vrot.lane.b32.xlu0 %v2325, 111
      %v2346 = vpop.permute.xlu0 %2345
      %2347 = vrot.lane.b32.xlu0 %v2326, 111
      %v2348 = vpop.permute.xlu0 %2347
      %2349 = vrot.lane.b32.xlu0 %v2327, 111
      %v2350 = vpop.permute.xlu0 %2349
      %2351 = vrot.lane.b32.xlu0 %v2328, 111
      %v2352 = vpop.permute.xlu0 %2351
      %2353 = vrot.lane.b32.xlu0 %v2329, 111
      %v2354 = vpop.permute.xlu0 %2353
      %2355 = vrot.lane.b32.xlu0 %v2330, 111
      %v2356 = vpop.permute.xlu0 %2355
      %2357 = vrot.lane.b32.xlu0 %v2331, 111
      %v2358 = vpop.permute.xlu0 %2357
      %v2359 = vsel %vm396, %v2342, %v2344
      %v2360 = vsel %vm396, %v2344, %v2346
      %v2361 = vsel %vm396, %v2346, %v2348
      %v2362 = vsel %vm396, %v2348, %v2350
      %v2363 = vsel %vm396, %v2350, %v2352
      %v2364 = vsel %vm396, %v2352, %v2354
      %v2365 = vsel %vm396, %v2354, %v2356
      %v2366 = vsel %vm396, %v2356, %v2358
      %2375 = vst [vmem:[#allocation2] sm:$0xff] %v2359
      %2376 = vst [vmem:[#allocation2 + $0x8] sm:$0xff] %v2360
      %2377 = vst [vmem:[#allocation2 + $0x10] sm:$0xff] %v2361
      %2378 = vst [vmem:[#allocation2 + $0x18] sm:$0xff] %v2362
      %2379 = vst [vmem:[#allocation2 + $0x20] sm:$0xff] %v2363
      %2380 = vst [vmem:[#allocation2 + $0x28] sm:$0xff] %v2364
      %2381 = vst [vmem:[#allocation2 + $0x30] sm:$0xff] %v2365
      %2382 = vst [vmem:[#allocation2 + $0x38] sm:$0xff] %v2366
      %v2383 = vld [vmem:[#allocation3] sm:$0xff]
      %v2384 = vld [vmem:[#allocation3 + $0x8] sm:$0xff]
      %v2385 = vld [vmem:[#allocation3 + $0x10] sm:$0xff]
      %v2386 = vld [vmem:[#allocation3 + $0x18] sm:$0xff]
      %v2387 = vld [vmem:[#allocation3 + $0x20] sm:$0xff]
      %v2388 = vld [vmem:[#allocation3 + $0x28] sm:$0xff]
      %v2389 = vld [vmem:[#allocation3 + $0x30] sm:$0xff]
      %v2390 = vld [vmem:[#allocation3 + $0x38] sm:$0xff]
      %v2391 = vld [vmem:[#allocation3 + $0x40] sm:$0xff]
      %2401 = vrot.lane.b32.xlu0 %v2383, 120
      %v2402 = vpop.permute.xlu0 %2401
      %2403 = vrot.lane.b32.xlu0 %v2384, 120
      %v2404 = vpop.permute.xlu0 %2403
      %2405 = vrot.lane.b32.xlu0 %v2385, 120
      %v2406 = vpop.permute.xlu0 %2405
      %2407 = vrot.lane.b32.xlu0 %v2386, 120
      %v2408 = vpop.permute.xlu0 %2407
      %2409 = vrot.lane.b32.xlu0 %v2387, 120
      %v2410 = vpop.permute.xlu0 %2409
      %2411 = vrot.lane.b32.xlu0 %v2388, 120
      %v2412 = vpop.permute.xlu0 %2411
      %2413 = vrot.lane.b32.xlu0 %v2389, 120
      %v2414 = vpop.permute.xlu0 %2413
      %2415 = vrot.lane.b32.xlu0 %v2390, 120
      %v2416 = vpop.permute.xlu0 %2415
      %2417 = vrot.lane.b32.xlu0 %v2391, 120
      %v2418 = vpop.permute.xlu0 %2417
      %v2419 = vsel %vm457, %v2402, %v2404
      %v2420 = vsel %vm457, %v2404, %v2406
      %v2421 = vsel %vm457, %v2406, %v2408
      %v2422 = vsel %vm457, %v2408, %v2410
      %v2423 = vsel %vm457, %v2410, %v2412
      %v2424 = vsel %vm457, %v2412, %v2414
      %v2425 = vsel %vm457, %v2414, %v2416
      %v2426 = vsel %vm457, %v2416, %v2418
      %v2436 = vpack.c.bf16 %v2419, %v2383
      %v2437 = vpack.c.bf16 %v2420, %v2384
      %v2438 = vpack.c.bf16 %v2421, %v2385
      %v2439 = vpack.c.bf16 %v2422, %v2386
      %v2440 = vpack.c.bf16 %v2423, %v2387
      %v2441 = vpack.c.bf16 %v2424, %v2388
      %v2442 = vpack.c.bf16 %v2425, %v2389
      %v2443 = vpack.c.bf16 %v2426, %v2390
      %v2444 = vpack.c.bf16 %v2418, %v2391
      %2454 = vrot.lane.b32.xlu0 %v2436, 109
      %v2455 = vpop.permute.xlu0 %2454
      %2456 = vrot.lane.b32.xlu0 %v2437, 109
      %v2457 = vpop.permute.xlu0 %2456
      %2458 = vrot.lane.b32.xlu0 %v2438, 109
      %v2459 = vpop.permute.xlu0 %2458
      %2460 = vrot.lane.b32.xlu0 %v2439, 109
      %v2461 = vpop.permute.xlu0 %2460
      %2462 = vrot.lane.b32.xlu0 %v2440, 109
      %v2463 = vpop.permute.xlu0 %2462
      %2464 = vrot.lane.b32.xlu0 %v2441, 109
      %v2465 = vpop.permute.xlu0 %2464
      %2466 = vrot.lane.b32.xlu0 %v2442, 109
      %v2467 = vpop.permute.xlu0 %2466
      %2468 = vrot.lane.b32.xlu0 %v2443, 109
      %v2469 = vpop.permute.xlu0 %2468
      %2470 = vrot.lane.b32.xlu0 %v2444, 109
      %v2471 = vpop.permute.xlu0 %2470
      %v2472 = vsel %vm511, %v2455, %v2457
      %v2473 = vsel %vm511, %v2457, %v2459
      %v2474 = vsel %vm511, %v2459, %v2461
      %v2475 = vsel %vm511, %v2461, %v2463
      %v2476 = vsel %vm511, %v2463, %v2465
      %v2477 = vsel %vm511, %v2465, %v2467
      %v2478 = vsel %vm511, %v2467, %v2469
      %v2479 = vsel %vm511, %v2469, %v2471
      %2488 = vst [vmem:[#allocation2 + $0x40] sm:$0xff] %v2472
      %2489 = vst [vmem:[#allocation2 + $0x48] sm:$0xff] %v2473
      %2490 = vst [vmem:[#allocation2 + $0x50] sm:$0xff] %v2474
      %2491 = vst [vmem:[#allocation2 + $0x58] sm:$0xff] %v2475
      %2492 = vst [vmem:[#allocation2 + $0x60] sm:$0xff] %v2476
      %2493 = vst [vmem:[#allocation2 + $0x68] sm:$0xff] %v2477
      %2494 = vst [vmem:[#allocation2 + $0x70] sm:$0xff] %v2478
      %2495 = vst [vmem:[#allocation2 + $0x78] sm:$0xff] %v2479
      %v2496 = vld [vmem:[#allocation3] sm:$0xff]
      %v2497 = vld [vmem:[#allocation3 + $0x8] sm:$0xff]
      %v2498 = vld [vmem:[#allocation3 + $0x10] sm:$0xff]
      %v2499 = vld [vmem:[#allocation3 + $0x18] sm:$0xff]
      %v2500 = vld [vmem:[#allocation3 + $0x20] sm:$0xff]
      %v2501 = vld [vmem:[#allocation3 + $0x28] sm:$0xff]
      %v2502 = vld [vmem:[#allocation3 + $0x30] sm:$0xff]
      %v2503 = vld [vmem:[#allocation3 + $0x38] sm:$0xff]
      %v2504 = vld [vmem:[#allocation3 + $0x40] sm:$0xff]
      %2514 = vrot.lane.b32.xlu0 %v2496, 127
      %v2515 = vpop.permute.xlu0 %2514
      %2516 = vrot.lane.b32.xlu0 %v2497, 127
      %v2517 = vpop.permute.xlu0 %2516
      %2518 = vrot.lane.b32.xlu0 %v2498, 127
      %v2519 = vpop.permute.xlu0 %2518
      %2520 = vrot.lane.b32.xlu0 %v2499, 127
      %v2521 = vpop.permute.xlu0 %2520
      %2522 = vrot.lane.b32.xlu0 %v2500, 127
      %v2523 = vpop.permute.xlu0 %2522
      %2524 = vrot.lane.b32.xlu0 %v2501, 127
      %v2525 = vpop.permute.xlu0 %2524
      %2526 = vrot.lane.b32.xlu0 %v2502, 127
      %v2527 = vpop.permute.xlu0 %2526
      %2528 = vrot.lane.b32.xlu0 %v2503, 127
      %v2529 = vpop.permute.xlu0 %2528
      %2530 = vrot.lane.b32.xlu0 %v2504, 127
      %v2531 = vpop.permute.xlu0 %2530
      %v2532 = vsel %vm342, %v2515, %v2517
      %v2533 = vsel %vm342, %v2517, %v2519
      %v2534 = vsel %vm342, %v2519, %v2521
      %v2535 = vsel %vm342, %v2521, %v2523
      %v2536 = vsel %vm342, %v2523, %v2525
      %v2537 = vsel %vm342, %v2525, %v2527
      %v2538 = vsel %vm342, %v2527, %v2529
      %v2539 = vsel %vm342, %v2529, %v2531
      %v2549 = vpack.c.bf16 %v2532, %v2496
      %v2550 = vpack.c.bf16 %v2533, %v2497
      %v2551 = vpack.c.bf16 %v2534, %v2498
      %v2552 = vpack.c.bf16 %v2535, %v2499
      %v2553 = vpack.c.bf16 %v2536, %v2500
      %v2554 = vpack.c.bf16 %v2537, %v2501
      %v2555 = vpack.c.bf16 %v2538, %v2502
      %v2556 = vpack.c.bf16 %v2539, %v2503
      %v2557 = vpack.c.bf16 %v2531, %v2504
      %2567 = vrot.lane.b32.xlu0 %v2549, 100
      %v2568 = vpop.permute.xlu0 %2567
      %2569 = vrot.lane.b32.xlu0 %v2550, 100
      %v2570 = vpop.permute.xlu0 %2569
      %2571 = vrot.lane.b32.xlu0 %v2551, 100
      %v2572 = vpop.permute.xlu0 %2571
      %2573 = vrot.lane.b32.xlu0 %v2552, 100
      %v2574 = vpop.permute.xlu0 %2573
      %2575 = vrot.lane.b32.xlu0 %v2553, 100
      %v2576 = vpop.permute.xlu0 %2575
      %2577 = vrot.lane.b32.xlu0 %v2554, 100
      %v2578 = vpop.permute.xlu0 %2577
      %2579 = vrot.lane.b32.xlu0 %v2555, 100
      %v2580 = vpop.permute.xlu0 %2579
      %2581 = vrot.lane.b32.xlu0 %v2556, 100
      %v2582 = vpop.permute.xlu0 %2581
      %2583 = vrot.lane.b32.xlu0 %v2557, 100
      %v2584 = vpop.permute.xlu0 %2583
      %v2585 = vsel %vm625, %v2568, %v2570
      %v2586 = vsel %vm625, %v2570, %v2572
      %v2587 = vsel %vm625, %v2572, %v2574
      %v2588 = vsel %vm625, %v2574, %v2576
      %v2589 = vsel %vm625, %v2576, %v2578
      %v2590 = vsel %vm625, %v2578, %v2580
      %v2591 = vsel %vm625, %v2580, %v2582
      %v2592 = vsel %vm625, %v2582, %v2584
      %2601 = vst [vmem:[#allocation2 + $0x80] sm:$0xff] %v2585
      %2602 = vst [vmem:[#allocation2 + $0x88] sm:$0xff] %v2586
      %2603 = vst [vmem:[#allocation2 + $0x90] sm:$0xff] %v2587
      %2604 = vst [vmem:[#allocation2 + $0x98] sm:$0xff] %v2588
      %2605 = vst [vmem:[#allocation2 + $0xa0] sm:$0xff] %v2589
      %2606 = vst [vmem:[#allocation2 + $0xa8] sm:$0xff] %v2590
      %2607 = vst [vmem:[#allocation2 + $0xb0] sm:$0xff] %v2591
      %2608 = vst [vmem:[#allocation2 + $0xb8] sm:$0xff] %v2592
      %v2609 = vld [vmem:[#allocation3] sm:$0xff]
      %v2610 = vld [vmem:[#allocation3 + $0x8] sm:$0xff]
      %v2611 = vld [vmem:[#allocation3 + $0x10] sm:$0xff]
      %v2612 = vld [vmem:[#allocation3 + $0x18] sm:$0xff]
      %v2613 = vld [vmem:[#allocation3 + $0x20] sm:$0xff]
      %v2614 = vld [vmem:[#allocation3 + $0x28] sm:$0xff]
      %v2615 = vld [vmem:[#allocation3 + $0x30] sm:$0xff]
      %v2616 = vld [vmem:[#allocation3 + $0x38] sm:$0xff]
      %v2617 = vld [vmem:[#allocation3 + $0x40] sm:$0xff]
      %2627 = vrot.lane.b32.xlu0 %v2609, 127
      %v2628 = vpop.permute.xlu0 %2627
      %2629 = vrot.lane.b32.xlu0 %v2610, 127
      %v2630 = vpop.permute.xlu0 %2629
      %2631 = vrot.lane.b32.xlu0 %v2611, 127
      %v2632 = vpop.permute.xlu0 %2631
      %2633 = vrot.lane.b32.xlu0 %v2612, 127
      %v2634 = vpop.permute.xlu0 %2633
      %2635 = vrot.lane.b32.xlu0 %v2613, 127
      %v2636 = vpop.permute.xlu0 %2635
      %2637 = vrot.lane.b32.xlu0 %v2614, 127
      %v2638 = vpop.permute.xlu0 %2637
      %2639 = vrot.lane.b32.xlu0 %v2615, 127
      %v2640 = vpop.permute.xlu0 %2639
      %2641 = vrot.lane.b32.xlu0 %v2616, 127
      %v2642 = vpop.permute.xlu0 %2641
      %2643 = vrot.lane.b32.xlu0 %v2617, 127
      %v2644 = vpop.permute.xlu0 %2643
      %v2645 = vsel %vm342, %v2628, %v2630
      %v2646 = vsel %vm342, %v2630, %v2632
      %v2647 = vsel %vm342, %v2632, %v2634
      %v2648 = vsel %vm342, %v2634, %v2636
      %v2649 = vsel %vm342, %v2636, %v2638
      %v2650 = vsel %vm342, %v2638, %v2640
      %v2651 = vsel %vm342, %v2640, %v2642
      %v2652 = vsel %vm342, %v2642, %v2644
      %v2662 = vpack.c.bf16 %v2645, %v2609
      %v2663 = vpack.c.bf16 %v2646, %v2610
      %v2664 = vpack.c.bf16 %v2647, %v2611
      %v2665 = vpack.c.bf16 %v2648, %v2612
      %v2666 = vpack.c.bf16 %v2649, %v2613
      %v2667 = vpack.c.bf16 %v2650, %v2614
      %v2668 = vpack.c.bf16 %v2651, %v2615
      %v2669 = vpack.c.bf16 %v2652, %v2616
      %v2670 = vpack.c.bf16 %v2644, %v2617
      %2680 = vrot.lane.b32.xlu0 %v2662, 91
      %v2681 = vpop.permute.xlu0 %2680
      %2682 = vrot.lane.b32.xlu0 %v2663, 91
      %v2683 = vpop.permute.xlu0 %2682
      %2684 = vrot.lane.b32.xlu0 %v2664, 91
      %v2685 = vpop.permute.xlu0 %2684
      %2686 = vrot.lane.b32.xlu0 %v2665, 91
      %v2687 = vpop.permute.xlu0 %2686
      %2688 = vrot.lane.b32.xlu0 %v2666, 91
      %v2689 = vpop.permute.xlu0 %2688
      %2690 = vrot.lane.b32.xlu0 %v2667, 91
      %v2691 = vpop.permute.xlu0 %2690
      %2692 = vrot.lane.b32.xlu0 %v2668, 91
      %v2693 = vpop.permute.xlu0 %2692
      %2694 = vrot.lane.b32.xlu0 %v2669, 91
      %v2695 = vpop.permute.xlu0 %2694
      %2696 = vrot.lane.b32.xlu0 %v2670, 91
      %v2697 = vpop.permute.xlu0 %2696
      %v2698 = vsel %vm739, %v2681, %v2683
      %v2699 = vsel %vm739, %v2683, %v2685
      %v2700 = vsel %vm739, %v2685, %v2687
      %v2701 = vsel %vm739, %v2687, %v2689
      %v2702 = vsel %vm739, %v2689, %v2691
      %v2703 = vsel %vm739, %v2691, %v2693
      %v2704 = vsel %vm739, %v2693, %v2695
      %v2705 = vsel %vm739, %v2695, %v2697
      %2714 = vst [vmem:[#allocation2 + $0xc0] sm:$0xff] %v2698
      %2715 = vst [vmem:[#allocation2 + $0xc8] sm:$0xff] %v2699
      %2716 = vst [vmem:[#allocation2 + $0xd0] sm:$0xff] %v2700
      %2717 = vst [vmem:[#allocation2 + $0xd8] sm:$0xff] %v2701
      %2718 = vst [vmem:[#allocation2 + $0xe0] sm:$0xff] %v2702
      %2719 = vst [vmem:[#allocation2 + $0xe8] sm:$0xff] %v2703
      %2720 = vst [vmem:[#allocation2 + $0xf0] sm:$0xff] %v2704
      %2721 = vst [vmem:[#allocation2 + $0xf8] sm:$0xff] %v2705
      %v2722 = vld [vmem:[#allocation3] sm:$0xff]
      %v2723 = vld [vmem:[#allocation3 + $0x8] sm:$0xff]
      %v2724 = vld [vmem:[#allocation3 + $0x10] sm:$0xff]
      %v2725 = vld [vmem:[#allocation3 + $0x18] sm:$0xff]
      %v2726 = vld [vmem:[#allocation3 + $0x20] sm:$0xff]
      %v2727 = vld [vmem:[#allocation3 + $0x28] sm:$0xff]
      %v2728 = vld [vmem:[#allocation3 + $0x30] sm:$0xff]
      %v2729 = vld [vmem:[#allocation3 + $0x38] sm:$0xff]
      %v2730 = vld [vmem:[#allocation3 + $0x40] sm:$0xff]
      %2740 = vrot.lane.b32.xlu0 %v2722, 50
      %v2741 = vpop.permute.xlu0 %2740
      %2742 = vrot.lane.b32.xlu0 %v2723, 50
      %v2743 = vpop.permute.xlu0 %2742
      %2744 = vrot.lane.b32.xlu0 %v2724, 50
      %v2745 = vpop.permute.xlu0 %2744
      %2746 = vrot.lane.b32.xlu0 %v2725, 50
      %v2747 = vpop.permute.xlu0 %2746
      %2748 = vrot.lane.b32.xlu0 %v2726, 50
      %v2749 = vpop.permute.xlu0 %2748
      %2750 = vrot.lane.b32.xlu0 %v2727, 50
      %v2751 = vpop.permute.xlu0 %2750
      %2752 = vrot.lane.b32.xlu0 %v2728, 50
      %v2753 = vpop.permute.xlu0 %2752
      %2754 = vrot.lane.b32.xlu0 %v2729, 50
      %v2755 = vpop.permute.xlu0 %2754
      %2756 = vrot.lane.b32.xlu0 %v2730, 50
      %v2757 = vpop.permute.xlu0 %2756
      %v2758 = vsel %vm800, %v2741, %v2743
      %v2759 = vsel %vm800, %v2743, %v2745
      %v2760 = vsel %vm800, %v2745, %v2747
      %v2761 = vsel %vm800, %v2747, %v2749
      %v2762 = vsel %vm800, %v2749, %v2751
      %v2763 = vsel %vm800, %v2751, %v2753
      %v2764 = vsel %vm800, %v2753, %v2755
      %v2765 = vsel %vm800, %v2755, %v2757
      %v2775 = vpack.c.bf16 %v2758, %v2722
      %v2776 = vpack.c.bf16 %v2759, %v2723
      %v2777 = vpack.c.bf16 %v2760, %v2724
      %v2778 = vpack.c.bf16 %v2761, %v2725
      %v2779 = vpack.c.bf16 %v2762, %v2726
      %v2780 = vpack.c.bf16 %v2763, %v2727
      %v2781 = vpack.c.bf16 %v2764, %v2728
      %v2782 = vpack.c.bf16 %v2765, %v2729
      %v2783 = vpack.c.bf16 %v2757, %v2730
      %2793 = vrot.lane.b32.xlu0 %v2775, 89
      %v2794 = vpop.permute.xlu0 %2793
      %2795 = vrot.lane.b32.xlu0 %v2776, 89
      %v2796 = vpop.permute.xlu0 %2795
      %2797 = vrot.lane.b32.xlu0 %v2777, 89
      %v2798 = vpop.permute.xlu0 %2797
      %2799 = vrot.lane.b32.xlu0 %v2778, 89
      %v2800 = vpop.permute.xlu0 %2799
      %2801 = vrot.lane.b32.xlu0 %v2779, 89
      %v2802 = vpop.permute.xlu0 %2801
      %2803 = vrot.lane.b32.xlu0 %v2780, 89
      %v2804 = vpop.permute.xlu0 %2803
      %2805 = vrot.lane.b32.xlu0 %v2781, 89
      %v2806 = vpop.permute.xlu0 %2805
      %2807 = vrot.lane.b32.xlu0 %v2782, 89
      %v2808 = vpop.permute.xlu0 %2807
      %2809 = vrot.lane.b32.xlu0 %v2783, 89
      %v2810 = vpop.permute.xlu0 %2809
      %v2811 = vsel %vm854, %v2794, %v2796
      %v2812 = vsel %vm854, %v2796, %v2798
      %v2813 = vsel %vm854, %v2798, %v2800
      %v2814 = vsel %vm854, %v2800, %v2802
      %v2815 = vsel %vm854, %v2802, %v2804
      %v2816 = vsel %vm854, %v2804, %v2806
      %v2817 = vsel %vm854, %v2806, %v2808
      %v2818 = vsel %vm854, %v2808, %v2810
      %2827 = vst [vmem:[#allocation2 + $0x100] sm:$0xff] %v2811
      %2828 = vst [vmem:[#allocation2 + $0x108] sm:$0xff] %v2812
      %2829 = vst [vmem:[#allocation2 + $0x110] sm:$0xff] %v2813
      %2830 = vst [vmem:[#allocation2 + $0x118] sm:$0xff] %v2814
      %2831 = vst [vmem:[#allocation2 + $0x120] sm:$0xff] %v2815
      %2832 = vst [vmem:[#allocation2 + $0x128] sm:$0xff] %v2816
      %2833 = vst [vmem:[#allocation2 + $0x130] sm:$0xff] %v2817
      %2834 = vst [vmem:[#allocation2 + $0x138] sm:$0xff] %v2818
      %v2835 = vld [vmem:[#allocation3] sm:$0xff]
      %v2836 = vld [vmem:[#allocation3 + $0x8] sm:$0xff]
      %v2837 = vld [vmem:[#allocation3 + $0x10] sm:$0xff]
      %v2838 = vld [vmem:[#allocation3 + $0x18] sm:$0xff]
      %v2839 = vld [vmem:[#allocation3 + $0x20] sm:$0xff]
      %v2840 = vld [vmem:[#allocation3 + $0x28] sm:$0xff]
      %v2841 = vld [vmem:[#allocation3 + $0x30] sm:$0xff]
      %v2842 = vld [vmem:[#allocation3 + $0x38] sm:$0xff]
      %v2843 = vld [vmem:[#allocation3 + $0x40] sm:$0xff]
      %2853 = vrot.lane.b32.xlu0 %v2835, 127
      %v2854 = vpop.permute.xlu0 %2853
      %2855 = vrot.lane.b32.xlu0 %v2836, 127
      %v2856 = vpop.permute.xlu0 %2855
      %2857 = vrot.lane.b32.xlu0 %v2837, 127
      %v2858 = vpop.permute.xlu0 %2857
      %2859 = vrot.lane.b32.xlu0 %v2838, 127
      %v2860 = vpop.permute.xlu0 %2859
      %2861 = vrot.lane.b32.xlu0 %v2839, 127
      %v2862 = vpop.permute.xlu0 %2861
      %2863 = vrot.lane.b32.xlu0 %v2840, 127
      %v2864 = vpop.permute.xlu0 %2863
      %2865 = vrot.lane.b32.xlu0 %v2841, 127
      %v2866 = vpop.permute.xlu0 %2865
      %2867 = vrot.lane.b32.xlu0 %v2842, 127
      %v2868 = vpop.permute.xlu0 %2867
      %2869 = vrot.lane.b32.xlu0 %v2843, 127
      %v2870 = vpop.permute.xlu0 %2869
      %v2871 = vsel %vm342, %v2854, %v2856
      %v2872 = vsel %vm342, %v2856, %v2858
      %v2873 = vsel %vm342, %v2858, %v2860
      %v2874 = vsel %vm342, %v2860, %v2862
      %v2875 = vsel %vm342, %v2862, %v2864
      %v2876 = vsel %vm342, %v2864, %v2866
      %v2877 = vsel %vm342, %v2866, %v2868
      %v2878 = vsel %vm342, %v2868, %v2870
      %v2888 = vpack.c.bf16 %v2871, %v2835
      %v2889 = vpack.c.bf16 %v2872, %v2836
      %v2890 = vpack.c.bf16 %v2873, %v2837
      %v2891 = vpack.c.bf16 %v2874, %v2838
      %v2892 = vpack.c.bf16 %v2875, %v2839
      %v2893 = vpack.c.bf16 %v2876, %v2840
      %v2894 = vpack.c.bf16 %v2877, %v2841
      %v2895 = vpack.c.bf16 %v2878, %v2842
      %v2896 = vpack.c.bf16 %v2870, %v2843
      %2906 = vrot.lane.b32.xlu0 %v2888, 10
      %v2907 = vpop.permute.xlu0 %2906
      %2908 = vrot.lane.b32.xlu0 %v2889, 10
      %v2909 = vpop.permute.xlu0 %2908
      %2910 = vrot.lane.b32.xlu0 %v2890, 10
      %v2911 = vpop.permute.xlu0 %2910
      %2912 = vrot.lane.b32.xlu0 %v2891, 10
      %v2913 = vpop.permute.xlu0 %2912
      %2914 = vrot.lane.b32.xlu0 %v2892, 10
      %v2915 = vpop.permute.xlu0 %2914
      %2916 = vrot.lane.b32.xlu0 %v2893, 10
      %v2917 = vpop.permute.xlu0 %2916
      %2918 = vrot.lane.b32.xlu0 %v2894, 10
      %v2919 = vpop.permute.xlu0 %2918
      %2920 = vrot.lane.b32.xlu0 %v2895, 10
      %v2921 = vpop.permute.xlu0 %2920
      %2922 = vrot.lane.b32.xlu0 %v2896, 10
      %v2923 = vpop.permute.xlu0 %2922
      %v2924 = vsel %vm968, %v2907, %v2909
      %v2925 = vsel %vm968, %v2909, %v2911
      %v2926 = vsel %vm968, %v2911, %v2913
      %v2927 = vsel %vm968, %v2913, %v2915
      %v2928 = vsel %vm968, %v2915, %v2917
      %v2929 = vsel %vm968, %v2917, %v2919
      %v2930 = vsel %vm968, %v2919, %v2921
      %v2931 = vsel %vm968, %v2921, %v2923
      %2940 = vst [vmem:[#allocation2 + $0x140] sm:$0xff] %v2924
      %2941 = vst [vmem:[#allocation2 + $0x148] sm:$0xff] %v2925
      %2942 = vst [vmem:[#allocation2 + $0x150] sm:$0xff] %v2926
      %2943 = vst [vmem:[#allocation2 + $0x158] sm:$0xff] %v2927
      %2944 = vst [vmem:[#allocation2 + $0x160] sm:$0xff] %v2928
      %2945 = vst [vmem:[#allocation2 + $0x168] sm:$0xff] %v2929
      %2946 = vst [vmem:[#allocation2 + $0x170] sm:$0xff] %v2930
      %2947 = vst [vmem:[#allocation2 + $0x178] sm:$0xff] %v2931
      %v2948 = vld [vmem:[#allocation3] sm:$0xff]
      %v2949 = vld [vmem:[#allocation3 + $0x8] sm:$0xff]
      %v2950 = vld [vmem:[#allocation3 + $0x10] sm:$0xff]
      %v2951 = vld [vmem:[#allocation3 + $0x18] sm:$0xff]
      %v2952 = vld [vmem:[#allocation3 + $0x20] sm:$0xff]
      %v2953 = vld [vmem:[#allocation3 + $0x28] sm:$0xff]
      %v2954 = vld [vmem:[#allocation3 + $0x30] sm:$0xff]
      %v2955 = vld [vmem:[#allocation3 + $0x38] sm:$0xff]
      %v2956 = vld [vmem:[#allocation3 + $0x40] sm:$0xff]
      %2965 = vrot.lane.b32.xlu0 %v2949, 127
      %v2966 = vpop.permute.xlu0 %2965
      %2967 = vrot.lane.b32.xlu0 %v2950, 127
      %v2968 = vpop.permute.xlu0 %2967
      %2969 = vrot.lane.b32.xlu0 %v2951, 127
      %v2970 = vpop.permute.xlu0 %2969
      %2971 = vrot.lane.b32.xlu0 %v2952, 127
      %v2972 = vpop.permute.xlu0 %2971
      %2973 = vrot.lane.b32.xlu0 %v2953, 127
      %v2974 = vpop.permute.xlu0 %2973
      %2975 = vrot.lane.b32.xlu0 %v2954, 127
      %v2976 = vpop.permute.xlu0 %2975
      %2977 = vrot.lane.b32.xlu0 %v2955, 127
      %v2978 = vpop.permute.xlu0 %2977
      %2979 = vrot.lane.b32.xlu0 %v2956, 127
      %v2980 = vpop.permute.xlu0 %2979
      %v2981 = vsel %vm342, %v2966, %v2968
      %v2982 = vsel %vm342, %v2968, %v2970
      %v2983 = vsel %vm342, %v2970, %v2972
      %v2984 = vsel %vm342, %v2972, %v2974
      %v2985 = vsel %vm342, %v2974, %v2976
      %v2986 = vsel %vm342, %v2976, %v2978
      %v2987 = vsel %vm342, %v2978, %v2980
      %v2997 = vpack.c.bf16 %v2966, %v2948
      %v2998 = vpack.c.bf16 %v2981, %v2949
      %v2999 = vpack.c.bf16 %v2982, %v2950
      %v3000 = vpack.c.bf16 %v2983, %v2951
      %v3001 = vpack.c.bf16 %v2984, %v2952
      %v3002 = vpack.c.bf16 %v2985, %v2953
      %v3003 = vpack.c.bf16 %v2986, %v2954
      %v3004 = vpack.c.bf16 %v2987, %v2955
      %v3005 = vpack.c.bf16 %v2980, %v2956
      %3015 = vrot.lane.b32.xlu0 %v2997, 1
      %v3016 = vpop.permute.xlu0 %3015
      %3017 = vrot.lane.b32.xlu0 %v2998, 1
      %v3018 = vpop.permute.xlu0 %3017
      %3019 = vrot.lane.b32.xlu0 %v2999, 1
      %v3020 = vpop.permute.xlu0 %3019
      %3021 = vrot.lane.b32.xlu0 %v3000, 1
      %v3022 = vpop.permute.xlu0 %3021
      %3023 = vrot.lane.b32.xlu0 %v3001, 1
      %v3024 = vpop.permute.xlu0 %3023
      %3025 = vrot.lane.b32.xlu0 %v3002, 1
      %v3026 = vpop.permute.xlu0 %3025
      %3027 = vrot.lane.b32.xlu0 %v3003, 1
      %v3028 = vpop.permute.xlu0 %3027
      %3029 = vrot.lane.b32.xlu0 %v3004, 1
      %v3030 = vpop.permute.xlu0 %3029
      %3031 = vrot.lane.b32.xlu0 %v3005, 1
      %v3032 = vpop.permute.xlu0 %3031
      %v3033 = vsel %vm1078, %v3016, %v3018
      %v3034 = vsel %vm1078, %v3018, %v3020
      %v3035 = vsel %vm1078, %v3020, %v3022
      %v3036 = vsel %vm1078, %v3022, %v3024
      %v3037 = vsel %vm1078, %v3024, %v3026
      %v3038 = vsel %vm1078, %v3026, %v3028
      %v3039 = vsel %vm1078, %v3028, %v3030
      %v3040 = vsel %vm1078, %v3030, %v3032
      %3049 = vst [vmem:[#allocation2 + $0x180] sm:$0xff] %v3033
      %3050 = vst [vmem:[#allocation2 + $0x188] sm:$0xff] %v3034
      %3051 = vst [vmem:[#allocation2 + $0x190] sm:$0xff] %v3035
      %3052 = vst [vmem:[#allocation2 + $0x198] sm:$0xff] %v3036
      %3053 = vst [vmem:[#allocation2 + $0x1a0] sm:$0xff] %v3037
      %3054 = vst [vmem:[#allocation2 + $0x1a8] sm:$0xff] %v3038
      %3055 = vst [vmem:[#allocation2 + $0x1b0] sm:$0xff] %v3039
      %3056 = vst [vmem:[#allocation2 + $0x1b8] sm:$0xff] %v3040
      %v3057 = vld [vmem:[#allocation3 + $0x8] sm:$0xff]
      %v3058 = vld [vmem:[#allocation3 + $0x10] sm:$0xff]
      %v3059 = vld [vmem:[#allocation3 + $0x18] sm:$0xff]
      %v3060 = vld [vmem:[#allocation3 + $0x20] sm:$0xff]
      %v3061 = vld [vmem:[#allocation3 + $0x28] sm:$0xff]
      %v3062 = vld [vmem:[#allocation3 + $0x30] sm:$0xff]
      %v3063 = vld [vmem:[#allocation3 + $0x38] sm:$0xff]
      %v3064 = vld [vmem:[#allocation3 + $0x40] sm:$0xff]
      %v3065 = vld [vmem:[#allocation3 + $0x48] sm:$0xff]
      %3075 = vrot.lane.b32.xlu0 %v3057, 120
      %v3076 = vpop.permute.xlu0 %3075
      %3077 = vrot.lane.b32.xlu0 %v3058, 120
      %v3078 = vpop.permute.xlu0 %3077
      %3079 = vrot.lane.b32.xlu0 %v3059, 120
      %v3080 = vpop.permute.xlu0 %3079
      %3081 = vrot.lane.b32.xlu0 %v3060, 120
      %v3082 = vpop.permute.xlu0 %3081
      %3083 = vrot.lane.b32.xlu0 %v3061, 120
      %v3084 = vpop.permute.xlu0 %3083
      %3085 = vrot.lane.b32.xlu0 %v3062, 120
      %v3086 = vpop.permute.xlu0 %3085
      %3087 = vrot.lane.b32.xlu0 %v3063, 120
      %v3088 = vpop.permute.xlu0 %3087
      %3089 = vrot.lane.b32.xlu0 %v3064, 120
      %v3090 = vpop.permute.xlu0 %3089
      %3091 = vrot.lane.b32.xlu0 %v3065, 120
      %v3092 = vpop.permute.xlu0 %3091
      %v3093 = vsel %vm457, %v3076, %v3078
      %v3094 = vsel %vm457, %v3078, %v3080
      %v3095 = vsel %vm457, %v3080, %v3082
      %v3096 = vsel %vm457, %v3082, %v3084
      %v3097 = vsel %vm457, %v3084, %v3086
      %v3098 = vsel %vm457, %v3086, %v3088
      %v3099 = vsel %vm457, %v3088, %v3090
      %v3100 = vsel %vm457, %v3090, %v3092
      %v3110 = vpack.c.bf16 %v3093, %v3057
      %v3111 = vpack.c.bf16 %v3094, %v3058
      %v3112 = vpack.c.bf16 %v3095, %v3059
      %v3113 = vpack.c.bf16 %v3096, %v3060
      %v3114 = vpack.c.bf16 %v3097, %v3061
      %v3115 = vpack.c.bf16 %v3098, %v3062
      %v3116 = vpack.c.bf16 %v3099, %v3063
      %v3117 = vpack.c.bf16 %v3100, %v3064
      %v3118 = vpack.c.bf16 %v3092, %v3065
      %3128 = vrot.lane.b32.xlu0 %v3110, 127
      %v3129 = vpop.permute.xlu0 %3128
      %3130 = vrot.lane.b32.xlu0 %v3111, 127
      %v3131 = vpop.permute.xlu0 %3130
      %3132 = vrot.lane.b32.xlu0 %v3112, 127
      %v3133 = vpop.permute.xlu0 %3132
      %3134 = vrot.lane.b32.xlu0 %v3113, 127
      %v3135 = vpop.permute.xlu0 %3134
      %3136 = vrot.lane.b32.xlu0 %v3114, 127
      %v3137 = vpop.permute.xlu0 %3136
      %3138 = vrot.lane.b32.xlu0 %v3115, 127
      %v3139 = vpop.permute.xlu0 %3138
      %3140 = vrot.lane.b32.xlu0 %v3116, 127
      %v3141 = vpop.permute.xlu0 %3140
      %3142 = vrot.lane.b32.xlu0 %v3117, 127
      %v3143 = vpop.permute.xlu0 %3142
      %3144 = vrot.lane.b32.xlu0 %v3118, 127
      %v3145 = vpop.permute.xlu0 %3144
      %v3146 = vsel %vm1192, %v3129, %v3131
      %v3147 = vsel %vm1192, %v3131, %v3133
      %v3148 = vsel %vm1192, %v3133, %v3135
      %v3149 = vsel %vm1192, %v3135, %v3137
      %v3150 = vsel %vm1192, %v3137, %v3139
      %v3151 = vsel %vm1192, %v3139, %v3141
      %v3152 = vsel %vm1192, %v3141, %v3143
      %v3153 = vsel %vm1192, %v3143, %v3145
      %3162 = vst [vmem:[#allocation2 + $0x1c0] sm:$0xff] %v3146
      %3163 = vst [vmem:[#allocation2 + $0x1c8] sm:$0xff] %v3147
      %3164 = vst [vmem:[#allocation2 + $0x1d0] sm:$0xff] %v3148
      %3165 = vst [vmem:[#allocation2 + $0x1d8] sm:$0xff] %v3149
      %3166 = vst [vmem:[#allocation2 + $0x1e0] sm:$0xff] %v3150
      %3167 = vst [vmem:[#allocation2 + $0x1e8] sm:$0xff] %v3151
      %3168 = vst [vmem:[#allocation2 + $0x1f0] sm:$0xff] %v3152
      %3169 = vst [vmem:[#allocation2 + $0x1f8] sm:$0xff] %v3153
      %v3170 = vld [vmem:[#allocation3 + $0x8] sm:$0xff]
      %v3171 = vld [vmem:[#allocation3 + $0x10] sm:$0xff]
      %v3172 = vld [vmem:[#allocation3 + $0x18] sm:$0xff]
      %v3173 = vld [vmem:[#allocation3 + $0x20] sm:$0xff]
      %v3174 = vld [vmem:[#allocation3 + $0x28] sm:$0xff]
      %v3175 = vld [vmem:[#allocation3 + $0x30] sm:$0xff]
      %v3176 = vld [vmem:[#allocation3 + $0x38] sm:$0xff]
      %v3177 = vld [vmem:[#allocation3 + $0x40] sm:$0xff]
      %v3178 = vld [vmem:[#allocation3 + $0x48] sm:$0xff]
      %3188 = vrot.lane.b32.xlu0 %v3170, 127
      %v3189 = vpop.permute.xlu0 %3188
      %3190 = vrot.lane.b32.xlu0 %v3171, 127
      %v3191 = vpop.permute.xlu0 %3190
      %3192 = vrot.lane.b32.xlu0 %v3172, 127
      %v3193 = vpop.permute.xlu0 %3192
      %3194 = vrot.lane.b32.xlu0 %v3173, 127
      %v3195 = vpop.permute.xlu0 %3194
      %3196 = vrot.lane.b32.xlu0 %v3174, 127
      %v3197 = vpop.permute.xlu0 %3196
      %3198 = vrot.lane.b32.xlu0 %v3175, 127
      %v3199 = vpop.permute.xlu0 %3198
      %3200 = vrot.lane.b32.xlu0 %v3176, 127
      %v3201 = vpop.permute.xlu0 %3200
      %3202 = vrot.lane.b32.xlu0 %v3177, 127
      %v3203 = vpop.permute.xlu0 %3202
      %3204 = vrot.lane.b32.xlu0 %v3178, 127
      %v3205 = vpop.permute.xlu0 %3204
      %v3206 = vsel %vm342, %v3189, %v3191
      %v3207 = vsel %vm342, %v3191, %v3193
      %v3208 = vsel %vm342, %v3193, %v3195
      %v3209 = vsel %vm342, %v3195, %v3197
      %v3210 = vsel %vm342, %v3197, %v3199
      %v3211 = vsel %vm342, %v3199, %v3201
      %v3212 = vsel %vm342, %v3201, %v3203
      %v3213 = vsel %vm342, %v3203, %v3205
      %v3223 = vpack.c.bf16 %v3206, %v3170
      %v3224 = vpack.c.bf16 %v3207, %v3171
      %v3225 = vpack.c.bf16 %v3208, %v3172
      %v3226 = vpack.c.bf16 %v3209, %v3173
      %v3227 = vpack.c.bf16 %v3210, %v3174
      %v3228 = vpack.c.bf16 %v3211, %v3175
      %v3229 = vpack.c.bf16 %v3212, %v3176
      %v3230 = vpack.c.bf16 %v3213, %v3177
      %v3231 = vpack.c.bf16 %v3205, %v3178
      %3241 = vrot.lane.b32.xlu0 %v3223, 118
      %v3242 = vpop.permute.xlu0 %3241
      %3243 = vrot.lane.b32.xlu0 %v3224, 118
      %v3244 = vpop.permute.xlu0 %3243
      %3245 = vrot.lane.b32.xlu0 %v3225, 118
      %v3246 = vpop.permute.xlu0 %3245
      %3247 = vrot.lane.b32.xlu0 %v3226, 118
      %v3248 = vpop.permute.xlu0 %3247
      %3249 = vrot.lane.b32.xlu0 %v3227, 118
      %v3250 = vpop.permute.xlu0 %3249
      %3251 = vrot.lane.b32.xlu0 %v3228, 118
      %v3252 = vpop.permute.xlu0 %3251
      %3253 = vrot.lane.b32.xlu0 %v3229, 118
      %v3254 = vpop.permute.xlu0 %3253
      %3255 = vrot.lane.b32.xlu0 %v3230, 118
      %v3256 = vpop.permute.xlu0 %3255
      %3257 = vrot.lane.b32.xlu0 %v3231, 118
      %v3258 = vpop.permute.xlu0 %3257
      %v3259 = vsel %vm1306, %v3242, %v3244
      %v3260 = vsel %vm1306, %v3244, %v3246
      %v3261 = vsel %vm1306, %v3246, %v3248
      %v3262 = vsel %vm1306, %v3248, %v3250
      %v3263 = vsel %vm1306, %v3250, %v3252
      %v3264 = vsel %vm1306, %v3252, %v3254
      %v3265 = vsel %vm1306, %v3254, %v3256
      %v3266 = vsel %vm1306, %v3256, %v3258
      %3275 = vst [vmem:[#allocation2 + $0x200] sm:$0xff] %v3259
      %3276 = vst [vmem:[#allocation2 + $0x208] sm:$0xff] %v3260
      %3277 = vst [vmem:[#allocation2 + $0x210] sm:$0xff] %v3261
      %3278 = vst [vmem:[#allocation2 + $0x218] sm:$0xff] %v3262
      %3279 = vst [vmem:[#allocation2 + $0x220] sm:$0xff] %v3263
      %3280 = vst [vmem:[#allocation2 + $0x228] sm:$0xff] %v3264
      %3281 = vst [vmem:[#allocation2 + $0x230] sm:$0xff] %v3265
      %3282 = vst [vmem:[#allocation2 + $0x238] sm:$0xff] %v3266
      %v3283 = vld [vmem:[#allocation3 + $0x8] sm:$0xff]
      %v3284 = vld [vmem:[#allocation3 + $0x10] sm:$0xff]
      %v3285 = vld [vmem:[#allocation3 + $0x18] sm:$0xff]
      %v3286 = vld [vmem:[#allocation3 + $0x20] sm:$0xff]
      %v3287 = vld [vmem:[#allocation3 + $0x28] sm:$0xff]
      %v3288 = vld [vmem:[#allocation3 + $0x30] sm:$0xff]
      %v3289 = vld [vmem:[#allocation3 + $0x38] sm:$0xff]
      %v3290 = vld [vmem:[#allocation3 + $0x40] sm:$0xff]
      %v3291 = vld [vmem:[#allocation3 + $0x48] sm:$0xff]
      %3301 = vrot.lane.b32.xlu0 %v3283, 127
      %v3302 = vpop.permute.xlu0 %3301
      %3303 = vrot.lane.b32.xlu0 %v3284, 127
      %v3304 = vpop.permute.xlu0 %3303
      %3305 = vrot.lane.b32.xlu0 %v3285, 127
      %v3306 = vpop.permute.xlu0 %3305
      %3307 = vrot.lane.b32.xlu0 %v3286, 127
      %v3308 = vpop.permute.xlu0 %3307
      %3309 = vrot.lane.b32.xlu0 %v3287, 127
      %v3310 = vpop.permute.xlu0 %3309
      %3311 = vrot.lane.b32.xlu0 %v3288, 127
      %v3312 = vpop.permute.xlu0 %3311
      %3313 = vrot.lane.b32.xlu0 %v3289, 127
      %v3314 = vpop.permute.xlu0 %3313
      %3315 = vrot.lane.b32.xlu0 %v3290, 127
      %v3316 = vpop.permute.xlu0 %3315
      %3317 = vrot.lane.b32.xlu0 %v3291, 127
      %v3318 = vpop.permute.xlu0 %3317
      %v3319 = vsel %vm342, %v3302, %v3304
      %v3320 = vsel %vm342, %v3304, %v3306
      %v3321 = vsel %vm342, %v3306, %v3308
      %v3322 = vsel %vm342, %v3308, %v3310
      %v3323 = vsel %vm342, %v3310, %v3312
      %v3324 = vsel %vm342, %v3312, %v3314
      %v3325 = vsel %vm342, %v3314, %v3316
      %v3326 = vsel %vm342, %v3316, %v3318
      %v3336 = vpack.c.bf16 %v3319, %v3283
      %v3337 = vpack.c.bf16 %v3320, %v3284
      %v3338 = vpack.c.bf16 %v3321, %v3285
      %v3339 = vpack.c.bf16 %v3322, %v3286
      %v3340 = vpack.c.bf16 %v3323, %v3287
      %v3341 = vpack.c.bf16 %v3324, %v3288
      %v3342 = vpack.c.bf16 %v3325, %v3289
      %v3343 = vpack.c.bf16 %v3326, %v3290
      %v3344 = vpack.c.bf16 %v3318, %v3291
      %3354 = vrot.lane.b32.xlu0 %v3336, 39
      %v3355 = vpop.permute.xlu0 %3354
      %3356 = vrot.lane.b32.xlu0 %v3337, 39
      %v3357 = vpop.permute.xlu0 %3356
      %3358 = vrot.lane.b32.xlu0 %v3338, 39
      %v3359 = vpop.permute.xlu0 %3358
      %3360 = vrot.lane.b32.xlu0 %v3339, 39
      %v3361 = vpop.permute.xlu0 %3360
      %3362 = vrot.lane.b32.xlu0 %v3340, 39
      %v3363 = vpop.permute.xlu0 %3362
      %3364 = vrot.lane.b32.xlu0 %v3341, 39
      %v3365 = vpop.permute.xlu0 %3364
      %3366 = vrot.lane.b32.xlu0 %v3342, 39
      %v3367 = vpop.permute.xlu0 %3366
      %3368 = vrot.lane.b32.xlu0 %v3343, 39
      %v3369 = vpop.permute.xlu0 %3368
      %3370 = vrot.lane.b32.xlu0 %v3344, 39
      %v3371 = vpop.permute.xlu0 %3370
      %v3372 = vsel %vm1420, %v3355, %v3357
      %v3373 = vsel %vm1420, %v3357, %v3359
      %v3374 = vsel %vm1420, %v3359, %v3361
      %v3375 = vsel %vm1420, %v3361, %v3363
      %v3376 = vsel %vm1420, %v3363, %v3365
      %v3377 = vsel %vm1420, %v3365, %v3367
      %v3378 = vsel %vm1420, %v3367, %v3369
      %v3379 = vsel %vm1420, %v3369, %v3371
      %3388 = vst [vmem:[#allocation2 + $0x240] sm:$0xff] %v3372
      %3389 = vst [vmem:[#allocation2 + $0x248] sm:$0xff] %v3373
      %3390 = vst [vmem:[#allocation2 + $0x250] sm:$0xff] %v3374
      %3391 = vst [vmem:[#allocation2 + $0x258] sm:$0xff] %v3375
      %3392 = vst [vmem:[#allocation2 + $0x260] sm:$0xff] %v3376
      %3393 = vst [vmem:[#allocation2 + $0x268] sm:$0xff] %v3377
      %3394 = vst [vmem:[#allocation2 + $0x270] sm:$0xff] %v3378
      %3395 = vst [vmem:[#allocation2 + $0x278] sm:$0xff] %v3379
      %v3396 = vld [vmem:[#allocation3 + $0x8] sm:$0xff]
      %v3397 = vld [vmem:[#allocation3 + $0x10] sm:$0xff]
      %v3398 = vld [vmem:[#allocation3 + $0x18] sm:$0xff]
      %v3399 = vld [vmem:[#allocation3 + $0x20] sm:$0xff]
      %v3400 = vld [vmem:[#allocation3 + $0x28] sm:$0xff]
      %v3401 = vld [vmem:[#allocation3 + $0x30] sm:$0xff]
      %v3402 = vld [vmem:[#allocation3 + $0x38] sm:$0xff]
      %v3403 = vld [vmem:[#allocation3 + $0x40] sm:$0xff]
      %v3404 = vld [vmem:[#allocation3 + $0x48] sm:$0xff]
      %3414 = vrot.lane.b32.xlu0 %v3396, 120
      %v3415 = vpop.permute.xlu0 %3414
      %3416 = vrot.lane.b32.xlu0 %v3397, 120
      %v3417 = vpop.permute.xlu0 %3416
      %3418 = vrot.lane.b32.xlu0 %v3398, 120
      %v3419 = vpop.permute.xlu0 %3418
      %3420 = vrot.lane.b32.xlu0 %v3399, 120
      %v3421 = vpop.permute.xlu0 %3420
      %3422 = vrot.lane.b32.xlu0 %v3400, 120
      %v3423 = vpop.permute.xlu0 %3422
      %3424 = vrot.lane.b32.xlu0 %v3401, 120
      %v3425 = vpop.permute.xlu0 %3424
      %3426 = vrot.lane.b32.xlu0 %v3402, 120
      %v3427 = vpop.permute.xlu0 %3426
      %3428 = vrot.lane.b32.xlu0 %v3403, 120
      %v3429 = vpop.permute.xlu0 %3428
      %3430 = vrot.lane.b32.xlu0 %v3404, 120
      %v3431 = vpop.permute.xlu0 %3430
      %v3432 = vsel %vm457, %v3415, %v3417
      %v3433 = vsel %vm457, %v3417, %v3419
      %v3434 = vsel %vm457, %v3419, %v3421
      %v3435 = vsel %vm457, %v3421, %v3423
      %v3436 = vsel %vm457, %v3423, %v3425
      %v3437 = vsel %vm457, %v3425, %v3427
      %v3438 = vsel %vm457, %v3427, %v3429
      %v3439 = vsel %vm457, %v3429, %v3431
      %v3449 = vpack.c.bf16 %v3432, %v3396
      %v3450 = vpack.c.bf16 %v3433, %v3397
      %v3451 = vpack.c.bf16 %v3434, %v3398
      %v3452 = vpack.c.bf16 %v3435, %v3399
      %v3453 = vpack.c.bf16 %v3436, %v3400
      %v3454 = vpack.c.bf16 %v3437, %v3401
      %v3455 = vpack.c.bf16 %v3438, %v3402
      %v3456 = vpack.c.bf16 %v3439, %v3403
      %v3457 = vpack.c.bf16 %v3431, %v3404
      %3467 = vrot.lane.b32.xlu0 %v3449, 37
      %v3468 = vpop.permute.xlu0 %3467
      %3469 = vrot.lane.b32.xlu0 %v3450, 37
      %v3470 = vpop.permute.xlu0 %3469
      %3471 = vrot.lane.b32.xlu0 %v3451, 37
      %v3472 = vpop.permute.xlu0 %3471
      %3473 = vrot.lane.b32.xlu0 %v3452, 37
      %v3474 = vpop.permute.xlu0 %3473
      %3475 = vrot.lane.b32.xlu0 %v3453, 37
      %v3476 = vpop.permute.xlu0 %3475
      %3477 = vrot.lane.b32.xlu0 %v3454, 37
      %v3478 = vpop.permute.xlu0 %3477
      %3479 = vrot.lane.b32.xlu0 %v3455, 37
      %v3480 = vpop.permute.xlu0 %3479
      %3481 = vrot.lane.b32.xlu0 %v3456, 37
      %v3482 = vpop.permute.xlu0 %3481
      %3483 = vrot.lane.b32.xlu0 %v3457, 37
      %v3484 = vpop.permute.xlu0 %3483
      %v3485 = vsel %vm1534, %v3468, %v3470
      %v3486 = vsel %vm1534, %v3470, %v3472
      %v3487 = vsel %vm1534, %v3472, %v3474
      %v3488 = vsel %vm1534, %v3474, %v3476
      %v3489 = vsel %vm1534, %v3476, %v3478
      %v3490 = vsel %vm1534, %v3478, %v3480
      %v3491 = vsel %vm1534, %v3480, %v3482
      %v3492 = vsel %vm1534, %v3482, %v3484
      %3501 = vst [vmem:[#allocation2 + $0x280] sm:$0xff] %v3485
      %3502 = vst [vmem:[#allocation2 + $0x288] sm:$0xff] %v3486
      %3503 = vst [vmem:[#allocation2 + $0x290] sm:$0xff] %v3487
      %3504 = vst [vmem:[#allocation2 + $0x298] sm:$0xff] %v3488
      %3505 = vst [vmem:[#allocation2 + $0x2a0] sm:$0xff] %v3489
      %3506 = vst [vmem:[#allocation2 + $0x2a8] sm:$0xff] %v3490
      %3507 = vst [vmem:[#allocation2 + $0x2b0] sm:$0xff] %v3491
      %3508 = vst [vmem:[#allocation2 + $0x2b8] sm:$0xff] %v3492
      %v3509 = vld [vmem:[#allocation3 + $0x8] sm:$0xff]
      %v3510 = vld [vmem:[#allocation3 + $0x10] sm:$0xff]
      %v3511 = vld [vmem:[#allocation3 + $0x18] sm:$0xff]
      %v3512 = vld [vmem:[#allocation3 + $0x20] sm:$0xff]
      %v3513 = vld [vmem:[#allocation3 + $0x28] sm:$0xff]
      %v3514 = vld [vmem:[#allocation3 + $0x30] sm:$0xff]
      %v3515 = vld [vmem:[#allocation3 + $0x38] sm:$0xff]
      %v3516 = vld [vmem:[#allocation3 + $0x40] sm:$0xff]
      %v3517 = vld [vmem:[#allocation3 + $0x48] sm:$0xff]
      %3527 = vrot.lane.b32.xlu0 %v3509, 127
      %v3528 = vpop.permute.xlu0 %3527
      %3529 = vrot.lane.b32.xlu0 %v3510, 127
      %v3530 = vpop.permute.xlu0 %3529
      %3531 = vrot.lane.b32.xlu0 %v3511, 127
      %v3532 = vpop.permute.xlu0 %3531
      %3533 = vrot.lane.b32.xlu0 %v3512, 127
      %v3534 = vpop.permute.xlu0 %3533
      %3535 = vrot.lane.b32.xlu0 %v3513, 127
      %v3536 = vpop.permute.xlu0 %3535
      %3537 = vrot.lane.b32.xlu0 %v3514, 127
      %v3538 = vpop.permute.xlu0 %3537
      %3539 = vrot.lane.b32.xlu0 %v3515, 127
      %v3540 = vpop.permute.xlu0 %3539
      %3541 = vrot.lane.b32.xlu0 %v3516, 127
      %v3542 = vpop.permute.xlu0 %3541
      %3543 = vrot.lane.b32.xlu0 %v3517, 127
      %v3544 = vpop.permute.xlu0 %3543
      %v3545 = vsel %vm342, %v3528, %v3530
      %v3546 = vsel %vm342, %v3530, %v3532
      %v3547 = vsel %vm342, %v3532, %v3534
      %v3548 = vsel %vm342, %v3534, %v3536
      %v3549 = vsel %vm342, %v3536, %v3538
      %v3550 = vsel %vm342, %v3538, %v3540
      %v3551 = vsel %vm342, %v3540, %v3542
      %v3552 = vsel %vm342, %v3542, %v3544
      %v3562 = vpack.c.bf16 %v3545, %v3509
      %v3563 = vpack.c.bf16 %v3546, %v3510
      %v3564 = vpack.c.bf16 %v3547, %v3511
      %v3565 = vpack.c.bf16 %v3548, %v3512
      %v3566 = vpack.c.bf16 %v3549, %v3513
      %v3567 = vpack.c.bf16 %v3550, %v3514
      %v3568 = vpack.c.bf16 %v3551, %v3515
      %v3569 = vpack.c.bf16 %v3552, %v3516
      %v3570 = vpack.c.bf16 %v3544, %v3517
      %3580 = vrot.lane.b32.xlu0 %v3562, 28
      %v3581 = vpop.permute.xlu0 %3580
      %3582 = vrot.lane.b32.xlu0 %v3563, 28
      %v3583 = vpop.permute.xlu0 %3582
      %3584 = vrot.lane.b32.xlu0 %v3564, 28
      %v3585 = vpop.permute.xlu0 %3584
      %3586 = vrot.lane.b32.xlu0 %v3565, 28
      %v3587 = vpop.permute.xlu0 %3586
      %3588 = vrot.lane.b32.xlu0 %v3566, 28
      %v3589 = vpop.permute.xlu0 %3588
      %3590 = vrot.lane.b32.xlu0 %v3567, 28
      %v3591 = vpop.permute.xlu0 %3590
      %3592 = vrot.lane.b32.xlu0 %v3568, 28
      %v3593 = vpop.permute.xlu0 %3592
      %3594 = vrot.lane.b32.xlu0 %v3569, 28
      %v3595 = vpop.permute.xlu0 %3594
      %3596 = vrot.lane.b32.xlu0 %v3570, 28
      %v3597 = vpop.permute.xlu0 %3596
      %v3598 = vsel %vm1648, %v3581, %v3583
      %v3599 = vsel %vm1648, %v3583, %v3585
      %v3600 = vsel %vm1648, %v3585, %v3587
      %v3601 = vsel %vm1648, %v3587, %v3589
      %v3602 = vsel %vm1648, %v3589, %v3591
      %v3603 = vsel %vm1648, %v3591, %v3593
      %v3604 = vsel %vm1648, %v3593, %v3595
      %v3605 = vsel %vm1648, %v3595, %v3597
      %3614 = vst [vmem:[#allocation2 + $0x2c0] sm:$0xff] %v3598
      %3615 = vst [vmem:[#allocation2 + $0x2c8] sm:$0xff] %v3599
      %3616 = vst [vmem:[#allocation2 + $0x2d0] sm:$0xff] %v3600
      %3617 = vst [vmem:[#allocation2 + $0x2d8] sm:$0xff] %v3601
      %3618 = vst [vmem:[#allocation2 + $0x2e0] sm:$0xff] %v3602
      %3619 = vst [vmem:[#allocation2 + $0x2e8] sm:$0xff] %v3603
      %3620 = vst [vmem:[#allocation2 + $0x2f0] sm:$0xff] %v3604
      %3621 = vst [vmem:[#allocation2 + $0x2f8] sm:$0xff] %v3605
      %v3622 = vld [vmem:[#allocation3 + $0x8] sm:$0xff]
      %v3623 = vld [vmem:[#allocation3 + $0x10] sm:$0xff]
      %v3624 = vld [vmem:[#allocation3 + $0x18] sm:$0xff]
      %v3625 = vld [vmem:[#allocation3 + $0x20] sm:$0xff]
      %v3626 = vld [vmem:[#allocation3 + $0x28] sm:$0xff]
      %v3627 = vld [vmem:[#allocation3 + $0x30] sm:$0xff]
      %v3628 = vld [vmem:[#allocation3 + $0x38] sm:$0xff]
      %v3629 = vld [vmem:[#allocation3 + $0x40] sm:$0xff]
      %v3630 = vld [vmem:[#allocation3 + $0x48] sm:$0xff]
      %3640 = vrot.lane.b32.xlu0 %v3622, 127
      %v3641 = vpop.permute.xlu0 %3640
      %3642 = vrot.lane.b32.xlu0 %v3623, 127
      %v3643 = vpop.permute.xlu0 %3642
      %3644 = vrot.lane.b32.xlu0 %v3624, 127
      %v3645 = vpop.permute.xlu0 %3644
      %3646 = vrot.lane.b32.xlu0 %v3625, 127
      %v3647 = vpop.permute.xlu0 %3646
      %3648 = vrot.lane.b32.xlu0 %v3626, 127
      %v3649 = vpop.permute.xlu0 %3648
      %3650 = vrot.lane.b32.xlu0 %v3627, 127
      %v3651 = vpop.permute.xlu0 %3650
      %3652 = vrot.lane.b32.xlu0 %v3628, 127
      %v3653 = vpop.permute.xlu0 %3652
      %3654 = vrot.lane.b32.xlu0 %v3629, 127
      %v3655 = vpop.permute.xlu0 %3654
      %3656 = vrot.lane.b32.xlu0 %v3630, 127
      %v3657 = vpop.permute.xlu0 %3656
      %v3658 = vsel %vm342, %v3641, %v3643
      %v3659 = vsel %vm342, %v3643, %v3645
      %v3660 = vsel %vm342, %v3645, %v3647
      %v3661 = vsel %vm342, %v3647, %v3649
      %v3662 = vsel %vm342, %v3649, %v3651
      %v3663 = vsel %vm342, %v3651, %v3653
      %v3664 = vsel %vm342, %v3653, %v3655
      %v3665 = vsel %vm342, %v3655, %v3657
      %v3675 = vpack.c.bf16 %v3658, %v3622
      %v3676 = vpack.c.bf16 %v3659, %v3623
      %v3677 = vpack.c.bf16 %v3660, %v3624
      %v3678 = vpack.c.bf16 %v3661, %v3625
      %v3679 = vpack.c.bf16 %v3662, %v3626
      %v3680 = vpack.c.bf16 %v3663, %v3627
      %v3681 = vpack.c.bf16 %v3664, %v3628
      %v3682 = vpack.c.bf16 %v3665, %v3629
      %v3683 = vpack.c.bf16 %v3657, %v3630
      %3693 = vrot.lane.b32.xlu0 %v3675, 19
      %v3694 = vpop.permute.xlu0 %3693
      %3695 = vrot.lane.b32.xlu0 %v3676, 19
      %v3696 = vpop.permute.xlu0 %3695
      %3697 = vrot.lane.b32.xlu0 %v3677, 19
      %v3698 = vpop.permute.xlu0 %3697
      %3699 = vrot.lane.b32.xlu0 %v3678, 19
      %v3700 = vpop.permute.xlu0 %3699
      %3701 = vrot.lane.b32.xlu0 %v3679, 19
      %v3702 = vpop.permute.xlu0 %3701
      %3703 = vrot.lane.b32.xlu0 %v3680, 19
      %v3704 = vpop.permute.xlu0 %3703
      %3705 = vrot.lane.b32.xlu0 %v3681, 19
      %v3706 = vpop.permute.xlu0 %3705
      %3707 = vrot.lane.b32.xlu0 %v3682, 19
      %v3708 = vpop.permute.xlu0 %3707
      %3709 = vrot.lane.b32.xlu0 %v3683, 19
      %v3710 = vpop.permute.xlu0 %3709
      %v3711 = vsel %vm1762, %v3694, %v3696
      %v3712 = vsel %vm1762, %v3696, %v3698
      %v3713 = vsel %vm1762, %v3698, %v3700
      %v3714 = vsel %vm1762, %v3700, %v3702
      %v3715 = vsel %vm1762, %v3702, %v3704
      %v3716 = vsel %vm1762, %v3704, %v3706
      %v3717 = vsel %vm1762, %v3706, %v3708
      %v3718 = vsel %vm1762, %v3708, %v3710
      %3727 = vst [vmem:[#allocation2 + $0x300] sm:$0xff] %v3711
      %3728 = vst [vmem:[#allocation2 + $0x308] sm:$0xff] %v3712
      %3729 = vst [vmem:[#allocation2 + $0x310] sm:$0xff] %v3713
      %3730 = vst [vmem:[#allocation2 + $0x318] sm:$0xff] %v3714
      %3731 = vst [vmem:[#allocation2 + $0x320] sm:$0xff] %v3715
      %3732 = vst [vmem:[#allocation2 + $0x328] sm:$0xff] %v3716
      %3733 = vst [vmem:[#allocation2 + $0x330] sm:$0xff] %v3717
      %3734 = vst [vmem:[#allocation2 + $0x338] sm:$0xff] %v3718
      %v3735 = vld [vmem:[#allocation3 + $0x8] sm:$0xff]
      %v3736 = vld [vmem:[#allocation3 + $0x10] sm:$0xff]
      %v3737 = vld [vmem:[#allocation3 + $0x18] sm:$0xff]
      %v3738 = vld [vmem:[#allocation3 + $0x20] sm:$0xff]
      %v3739 = vld [vmem:[#allocation3 + $0x28] sm:$0xff]
      %v3740 = vld [vmem:[#allocation3 + $0x30] sm:$0xff]
      %v3741 = vld [vmem:[#allocation3 + $0x38] sm:$0xff]
      %v3742 = vld [vmem:[#allocation3 + $0x40] sm:$0xff]
      %v3743 = vld [vmem:[#allocation3 + $0x48] sm:$0xff]
      %v3744 = vpack.c.bf16 0.0, %v3735
      %v3745 = vpack.c.bf16 0.0, %v3736
      %v3746 = vpack.c.bf16 0.0, %v3737
      %v3747 = vpack.c.bf16 0.0, %v3738
      %v3748 = vpack.c.bf16 0.0, %v3739
      %v3749 = vpack.c.bf16 0.0, %v3740
      %v3750 = vpack.c.bf16 0.0, %v3741
      %v3751 = vpack.c.bf16 0.0, %v3742
      %v3752 = vpack.c.bf16 0.0, %v3743
      %3762 = vrot.lane.b32.xlu0 %v3744, 17
      %v3763 = vpop.permute.xlu0 %3762
      %3764 = vrot.lane.b32.xlu0 %v3745, 17
      %v3765 = vpop.permute.xlu0 %3764
      %3766 = vrot.lane.b32.xlu0 %v3746, 17
      %v3767 = vpop.permute.xlu0 %3766
      %3768 = vrot.lane.b32.xlu0 %v3747, 17
      %v3769 = vpop.permute.xlu0 %3768
      %3770 = vrot.lane.b32.xlu0 %v3748, 17
      %v3771 = vpop.permute.xlu0 %3770
      %3772 = vrot.lane.b32.xlu0 %v3749, 17
      %v3773 = vpop.permute.xlu0 %3772
      %3774 = vrot.lane.b32.xlu0 %v3750, 17
      %v3775 = vpop.permute.xlu0 %3774
      %3776 = vrot.lane.b32.xlu0 %v3751, 17
      %v3777 = vpop.permute.xlu0 %3776
      %3778 = vrot.lane.b32.xlu0 %v3752, 17
      %v3779 = vpop.permute.xlu0 %3778
      %v3780 = vsel %vm1832, %v3763, %v3765
      %v3781 = vsel %vm1832, %v3765, %v3767
      %v3782 = vsel %vm1832, %v3767, %v3769
      %v3783 = vsel %vm1832, %v3769, %v3771
      %v3784 = vsel %vm1832, %v3771, %v3773
      %v3785 = vsel %vm1832, %v3773, %v3775
      %v3786 = vsel %vm1832, %v3775, %v3777
      %v3787 = vsel %vm1832, %v3777, %v3779
      %3796 = vst [vmem:[#allocation2 + $0x340] sm:$0xff] %v3780
      %3797 = vst [vmem:[#allocation2 + $0x348] sm:$0xff] %v3781
      %3798 = vst [vmem:[#allocation2 + $0x350] sm:$0xff] %v3782
      %3799 = vst [vmem:[#allocation2 + $0x358] sm:$0xff] %v3783
      %3800 = vst [vmem:[#allocation2 + $0x360] sm:$0xff] %v3784
      %3801 = vst [vmem:[#allocation2 + $0x368] sm:$0xff] %v3785
      %3802 = vst [vmem:[#allocation2 + $0x370] sm:$0xff] %v3786
      %3803 = vst [vmem:[#allocation2 + $0x378] sm:$0xff] %v3787
      %v3804 = vld [vmem:[%s3] sm:$0xff]
      %v3805 = vld [vmem:[#allocation2] sm:$0xff]
      %v3806 = vld [vmem:[#allocation2 + $0x8] sm:$0xff]
      %v3807 = vld [vmem:[#allocation2 + $0x10] sm:$0xff]
      %v3808 = vld [vmem:[#allocation2 + $0x18] sm:$0xff]
      %v3809 = vld [vmem:[#allocation2 + $0x20] sm:$0xff]
      %v3810 = vld [vmem:[#allocation2 + $0x28] sm:$0xff]
      %v3811 = vld [vmem:[#allocation2 + $0x30] sm:$0xff]
      %v3812 = vld [vmem:[#allocation2 + $0x38] sm:$0xff]
      %v3813 = vld [vmem:[#allocation2 + $0x40] sm:$0xff]
      %v3814 = vld [vmem:[#allocation2 + $0x48] sm:$0xff]
      %v3815 = vld [vmem:[#allocation2 + $0x50] sm:$0xff]
      %v3816 = vld [vmem:[#allocation2 + $0x58] sm:$0xff]
      %v3817 = vld [vmem:[#allocation2 + $0x60] sm:$0xff]
      %v3818 = vld [vmem:[#allocation2 + $0x68] sm:$0xff]
      %v3819 = vld [vmem:[#allocation2 + $0x70] sm:$0xff]
      %v3820 = vld [vmem:[#allocation2 + $0x78] sm:$0xff]
      %v3821 = vld [vmem:[#allocation2 + $0x80] sm:$0xff]
      %v3822 = vld [vmem:[#allocation2 + $0x88] sm:$0xff]
      %v3823 = vld [vmem:[#allocation2 + $0x90] sm:$0xff]
      %v3824 = vld [vmem:[#allocation2 + $0x98] sm:$0xff]
      %v3825 = vld [vmem:[#allocation2 + $0xa0] sm:$0xff]
      %v3826 = vld [vmem:[#allocation2 + $0xa8] sm:$0xff]
      %v3827 = vld [vmem:[#allocation2 + $0xb0] sm:$0xff]
      %v3828 = vld [vmem:[#allocation2 + $0xb8] sm:$0xff]
      %v3829 = vld [vmem:[#allocation2 + $0xc0] sm:$0xff]
      %v3830 = vld [vmem:[#allocation2 + $0xc8] sm:$0xff]
      %v3831 = vld [vmem:[#allocation2 + $0xd0] sm:$0xff]
      %v3832 = vld [vmem:[#allocation2 + $0xd8] sm:$0xff]
      %v3833 = vld [vmem:[#allocation2 + $0xe0] sm:$0xff]
      %v3834 = vld [vmem:[#allocation2 + $0xe8] sm:$0xff]
      %v3835 = vld [vmem:[#allocation2 + $0xf0] sm:$0xff]
      %v3836 = vld [vmem:[#allocation2 + $0xf8] sm:$0xff]
      %v3837 = vld [vmem:[#allocation2 + $0x100] sm:$0xff]
      %v3838 = vld [vmem:[#allocation2 + $0x108] sm:$0xff]
      %v3839 = vld [vmem:[#allocation2 + $0x110] sm:$0xff]
      %v3840 = vld [vmem:[#allocation2 + $0x118] sm:$0xff]
      %v3841 = vld [vmem:[#allocation2 + $0x120] sm:$0xff]
      %v3842 = vld [vmem:[#allocation2 + $0x128] sm:$0xff]
      %v3843 = vld [vmem:[#allocation2 + $0x130] sm:$0xff]
      %v3844 = vld [vmem:[#allocation2 + $0x138] sm:$0xff]
      %v3845 = vld [vmem:[#allocation2 + $0x140] sm:$0xff]
      %v3846 = vld [vmem:[#allocation2 + $0x148] sm:$0xff]
      %v3847 = vld [vmem:[#allocation2 + $0x150] sm:$0xff]
      %v3848 = vld [vmem:[#allocation2 + $0x158] sm:$0xff]
      %v3849 = vld [vmem:[#allocation2 + $0x160] sm:$0xff]
      %v3850 = vld [vmem:[#allocation2 + $0x168] sm:$0xff]
      %v3851 = vld [vmem:[#allocation2 + $0x170] sm:$0xff]
      %v3852 = vld [vmem:[#allocation2 + $0x178] sm:$0xff]
      %v3853 = vld [vmem:[#allocation2 + $0x180] sm:$0xff]
      %v3854 = vld [vmem:[#allocation2 + $0x188] sm:$0xff]
      %v3855 = vld [vmem:[#allocation2 + $0x190] sm:$0xff]
      %v3856 = vld [vmem:[#allocation2 + $0x198] sm:$0xff]
      %v3857 = vld [vmem:[#allocation2 + $0x1a0] sm:$0xff]
      %v3858 = vld [vmem:[#allocation2 + $0x1a8] sm:$0xff]
      %v3859 = vld [vmem:[#allocation2 + $0x1b0] sm:$0xff]
      %v3860 = vld [vmem:[#allocation2 + $0x1b8] sm:$0xff]
      %v3861 = vld [vmem:[#allocation2 + $0x1c0] sm:$0xff]
      %v3862 = vld [vmem:[#allocation2 + $0x1c8] sm:$0xff]
      %v3863 = vld [vmem:[#allocation2 + $0x1d0] sm:$0xff]
      %v3864 = vld [vmem:[#allocation2 + $0x1d8] sm:$0xff]
      %v3865 = vld [vmem:[#allocation2 + $0x1e0] sm:$0xff]
      %v3866 = vld [vmem:[#allocation2 + $0x1e8] sm:$0xff]
      %v3867 = vld [vmem:[#allocation2 + $0x1f0] sm:$0xff]
      %v3868 = vld [vmem:[#allocation2 + $0x1f8] sm:$0xff]
      %v3869 = vld [vmem:[#allocation2 + $0x200] sm:$0xff]
      %v3870 = vld [vmem:[#allocation2 + $0x208] sm:$0xff]
      %v3871 = vld [vmem:[#allocation2 + $0x210] sm:$0xff]
      %v3872 = vld [vmem:[#allocation2 + $0x218] sm:$0xff]
      %v3873 = vld [vmem:[#allocation2 + $0x220] sm:$0xff]
      %v3874 = vld [vmem:[#allocation2 + $0x228] sm:$0xff]
      %v3875 = vld [vmem:[#allocation2 + $0x230] sm:$0xff]
      %v3876 = vld [vmem:[#allocation2 + $0x238] sm:$0xff]
      %v3877 = vld [vmem:[#allocation2 + $0x240] sm:$0xff]
      %v3878 = vld [vmem:[#allocation2 + $0x248] sm:$0xff]
      %v3879 = vld [vmem:[#allocation2 + $0x250] sm:$0xff]
      %v3880 = vld [vmem:[#allocation2 + $0x258] sm:$0xff]
      %v3881 = vld [vmem:[#allocation2 + $0x260] sm:$0xff]
      %v3882 = vld [vmem:[#allocation2 + $0x268] sm:$0xff]
      %v3883 = vld [vmem:[#allocation2 + $0x270] sm:$0xff]
      %v3884 = vld [vmem:[#allocation2 + $0x278] sm:$0xff]
      %v3885 = vld [vmem:[#allocation2 + $0x280] sm:$0xff]
      %v3886 = vld [vmem:[#allocation2 + $0x288] sm:$0xff]
      %v3887 = vld [vmem:[#allocation2 + $0x290] sm:$0xff]
      %v3888 = vld [vmem:[#allocation2 + $0x298] sm:$0xff]
      %v3889 = vld [vmem:[#allocation2 + $0x2a0] sm:$0xff]
      %v3890 = vld [vmem:[#allocation2 + $0x2a8] sm:$0xff]
      %v3891 = vld [vmem:[#allocation2 + $0x2b0] sm:$0xff]
      %v3892 = vld [vmem:[#allocation2 + $0x2b8] sm:$0xff]
      %v3893 = vld [vmem:[#allocation2 + $0x2c0] sm:$0xff]
      %v3894 = vld [vmem:[#allocation2 + $0x2c8] sm:$0xff]
      %v3895 = vld [vmem:[#allocation2 + $0x2d0] sm:$0xff]
      %v3896 = vld [vmem:[#allocation2 + $0x2d8] sm:$0xff]
      %v3897 = vld [vmem:[#allocation2 + $0x2e0] sm:$0xff]
      %v3898 = vld [vmem:[#allocation2 + $0x2e8] sm:$0xff]
      %v3899 = vld [vmem:[#allocation2 + $0x2f0] sm:$0xff]
      %v3900 = vld [vmem:[#allocation2 + $0x2f8] sm:$0xff]
      %v3901 = vld [vmem:[#allocation2 + $0x300] sm:$0xff]
      %v3902 = vld [vmem:[#allocation2 + $0x308] sm:$0xff]
      %v3903 = vld [vmem:[#allocation2 + $0x310] sm:$0xff]
      %v3904 = vld [vmem:[#allocation2 + $0x318] sm:$0xff]
      %v3905 = vld [vmem:[#allocation2 + $0x320] sm:$0xff]
      %v3906 = vld [vmem:[#allocation2 + $0x328] sm:$0xff]
      %v3907 = vld [vmem:[#allocation2 + $0x330] sm:$0xff]
      %v3908 = vld [vmem:[#allocation2 + $0x338] sm:$0xff]
      %v3909 = vld [vmem:[#allocation2 + $0x340] sm:$0xff]
      %v3910 = vld [vmem:[#allocation2 + $0x348] sm:$0xff]
      %v3911 = vld [vmem:[#allocation2 + $0x350] sm:$0xff]
      %v3912 = vld [vmem:[#allocation2 + $0x358] sm:$0xff]
      %v3913 = vld [vmem:[#allocation2 + $0x360] sm:$0xff]
      %v3914 = vld [vmem:[#allocation2 + $0x368] sm:$0xff]
      %v3915 = vld [vmem:[#allocation2 + $0x370] sm:$0xff]
      %v3916 = vld [vmem:[#allocation2 + $0x378] sm:$0xff]
      %3917 = vset.pattern.permute.xlu0 3
      %3918 = vperm.xlu0 %3917, %v295
      %v3919 = vpop.permute.xlu0 %3918
      %v3922 = vunpack.c.l.b16 %v3804
      %v3923 = vunpack.c.h.b16 %v3804
      %v3924 = vpack.c.b16 %v3922, %v3922
      %v3925 = vpack.c.b16 %v3923, %v3923
      %v3928 = vsel %vm1981, %v3925, 0
      %3930 = vmatprep.subr.bf16.mxu0 %v3806
      %3931 = vmatpush1.bf16.msra.mxu0 %v3805
      %3932 = vmatprep.subr.bf16.mxu0 %v3814
      %3933 = vmatpush1.bf16.msra.mxu0 %v3813
      %3934 = vmatprep.subr.bf16.mxu0 %v3822
      %3935 = vmatpush1.bf16.msra.mxu0 %v3821
      %3936 = vmatprep.subr.bf16.mxu0 %v3830
      %3937 = vmatpush1.bf16.msra.mxu0 %v3829
      %3938 = vmatprep.subr.bf16.mxu0 %v3838
      %3939 = vmatpush1.bf16.msra.mxu0 %v3837
      %3940 = vmatprep.subr.bf16.mxu0 %v3846
      %3941 = vmatpush1.bf16.msra.mxu0 %v3845
      %3942 = vmatprep.subr.bf16.mxu0 %v3854
      %3943 = vmatpush1.bf16.msra.mxu0 %v3853
      %3944 = vmatprep.subr.bf16.mxu0 %v3862
      %3945 = vmatpush1.bf16.msra.mxu0 %v3861
      %3946 = vmatprep.subr.bf16.mxu0 %v3870
      %3947 = vmatpush1.bf16.msra.mxu0 %v3869
      %3948 = vmatprep.subr.bf16.mxu0 %v3878
      %3949 = vmatpush1.bf16.msra.mxu0 %v3877
      %3950 = vmatprep.subr.bf16.mxu0 %v3886
      %3951 = vmatpush1.bf16.msra.mxu0 %v3885
      %3952 = vmatprep.subr.bf16.mxu0 %v3894
      %3953 = vmatpush1.bf16.msra.mxu0 %v3893
      %3954 = vmatprep.subr.bf16.mxu0 %v3902
      %3955 = vmatpush1.bf16.msra.mxu0 %v3901
      %3956 = vmatprep.subr.bf16.mxu0 %v3910
      %3957 = vmatpush1.bf16.msra.mxu0 %v3909
      %3958 = vmatprep.subr.bf16.mxu0 0
      %3959 = vmatpush1.bf16.msra.mxu0 0
      %3960 = vmatprep.subr.bf16.mxu0 0
      %3961 = vmatpush1.bf16.msra.mxu0 0
      %3962 = vmatprep.mubr.bf16.mxu0 %v3928
      %3963 = vmatmul.mubr.bf16.gmra.mrb[0].mxu0 %v3924
      %v3964 = vpop.f32.mrb[0].mxu0
      %v3965 = vadd.f32 %v3919, %v3964
      %v3966 = vpop.f32.mrb[0].mxu0
      %v3967 = vadd.f32 %v3919, %v3966
      %v3968 = vpop.f32.mrb[0].mxu0
      %v3969 = vpop.f32.mrb[0].mxu0
      %3970 = vdwg.mxu0
      %3971 = vmatprep.subr.bf16.mxu0 %v3808
      %3972 = vmatpush1.bf16.msra.mxu0 %v3807
      %3973 = vmatprep.subr.bf16.mxu0 %v3816
      %3974 = vmatpush1.bf16.msra.mxu0 %v3815
      %3975 = vmatprep.subr.bf16.mxu0 %v3824
      %3976 = vmatpush1.bf16.msra.mxu0 %v3823
      %3977 = vmatprep.subr.bf16.mxu0 %v3832
      %3978 = vmatpush1.bf16.msra.mxu0 %v3831
      %3979 = vmatprep.subr.bf16.mxu0 %v3840
      %3980 = vmatpush1.bf16.msra.mxu0 %v3839
      %3981 = vmatprep.subr.bf16.mxu0 %v3848
      %3982 = vmatpush1.bf16.msra.mxu0 %v3847
      %3983 = vmatprep.subr.bf16.mxu0 %v3856
      %3984 = vmatpush1.bf16.msra.mxu0 %v3855
      %3985 = vmatprep.subr.bf16.mxu0 %v3864
      %3986 = vmatpush1.bf16.msra.mxu0 %v3863
      %3987 = vmatprep.subr.bf16.mxu0 %v3872
      %3988 = vmatpush1.bf16.msra.mxu0 %v3871
      %3989 = vmatprep.subr.bf16.mxu0 %v3880
      %3990 = vmatpush1.bf16.msra.mxu0 %v3879
      %3991 = vmatprep.subr.bf16.mxu0 %v3888
      %3992 = vmatpush1.bf16.msra.mxu0 %v3887
      %3993 = vmatprep.subr.bf16.mxu0 %v3896
      %3994 = vmatpush1.bf16.msra.mxu0 %v3895
      %3995 = vmatprep.subr.bf16.mxu0 %v3904
      %3996 = vmatpush1.bf16.msra.mxu0 %v3903
      %3997 = vmatprep.subr.bf16.mxu0 %v3912
      %3998 = vmatpush1.bf16.msra.mxu0 %v3911
      %3999 = vmatprep.subr.bf16.mxu0 0
      %4000 = vmatpush1.bf16.msra.mxu0 0
      %4001 = vmatprep.subr.bf16.mxu0 0
      %4002 = vmatpush1.bf16.msra.mxu0 0
      %4003 = vmatprep.mubr.bf16.mxu0 %v3928
      %4004 = vmatmul.mubr.bf16.gmra.mrb[0].mxu0 %v3924
      %v4005 = vpop.f32.mrb[0].mxu0
      %v4006 = vadd.f32 %v3919, %v4005
      %v4007 = vpop.f32.mrb[0].mxu0
      %v4008 = vadd.f32 %v3919, %v4007
      %v4009 = vpop.f32.mrb[0].mxu0
      %v4010 = vpop.f32.mrb[0].mxu0
      %4011 = vdwg.mxu0
      %4012 = vmatprep.subr.bf16.mxu0 %v3810
      %4013 = vmatpush1.bf16.msra.mxu0 %v3809
      %4014 = vmatprep.subr.bf16.mxu0 %v3818
      %4015 = vmatpush1.bf16.msra.mxu0 %v3817
      %4016 = vmatprep.subr.bf16.mxu0 %v3826
      %4017 = vmatpush1.bf16.msra.mxu0 %v3825
      %4018 = vmatprep.subr.bf16.mxu0 %v3834
      %4019 = vmatpush1.bf16.msra.mxu0 %v3833
      %4020 = vmatprep.subr.bf16.mxu0 %v3842
      %4021 = vmatpush1.bf16.msra.mxu0 %v3841
      %4022 = vmatprep.subr.bf16.mxu0 %v3850
      %4023 = vmatpush1.bf16.msra.mxu0 %v3849
      %4024 = vmatprep.subr.bf16.mxu0 %v3858
      %4025 = vmatpush1.bf16.msra.mxu0 %v3857
      %4026 = vmatprep.subr.bf16.mxu0 %v3866
      %4027 = vmatpush1.bf16.msra.mxu0 %v3865
      %4028 = vmatprep.subr.bf16.mxu0 %v3874
      %4029 = vmatpush1.bf16.msra.mxu0 %v3873
      %4030 = vmatprep.subr.bf16.mxu0 %v3882
      %4031 = vmatpush1.bf16.msra.mxu0 %v3881
      %4032 = vmatprep.subr.bf16.mxu0 %v3890
      %4033 = vmatpush1.bf16.msra.mxu0 %v3889
      %4034 = vmatprep.subr.bf16.mxu0 %v3898
      %4035 = vmatpush1.bf16.msra.mxu0 %v3897
      %4036 = vmatprep.subr.bf16.mxu0 %v3906
      %4037 = vmatpush1.bf16.msra.mxu0 %v3905
      %4038 = vmatprep.subr.bf16.mxu0 %v3914
      %4039 = vmatpush1.bf16.msra.mxu0 %v3913
      %4040 = vmatprep.subr.bf16.mxu0 0
      %4041 = vmatpush1.bf16.msra.mxu0 0
      %4042 = vmatprep.subr.bf16.mxu0 0
      %4043 = vmatpush1.bf16.msra.mxu0 0
      %4044 = vmatprep.mubr.bf16.mxu0 %v3928
      %4045 = vmatmul.mubr.bf16.gmra.mrb[0].mxu0 %v3924
      %v4046 = vpop.f32.mrb[0].mxu0
      %v4047 = vadd.f32 %v3919, %v4046
      %v4048 = vpop.f32.mrb[0].mxu0
      %v4049 = vadd.f32 %v3919, %v4048
      %v4050 = vpop.f32.mrb[0].mxu0
      %v4051 = vpop.f32.mrb[0].mxu0
      %4052 = vdwg.mxu0
      %4053 = vmatprep.subr.bf16.mxu0 %v3812
      %4054 = vmatpush1.bf16.msra.mxu0 %v3811
      %4055 = vmatprep.subr.bf16.mxu0 %v3820
      %4056 = vmatpush1.bf16.msra.mxu0 %v3819
      %4057 = vmatprep.subr.bf16.mxu0 %v3828
      %4058 = vmatpush1.bf16.msra.mxu0 %v3827
      %4059 = vmatprep.subr.bf16.mxu0 %v3836
      %4060 = vmatpush1.bf16.msra.mxu0 %v3835
      %4061 = vmatprep.subr.bf16.mxu0 %v3844
      %4062 = vmatpush1.bf16.msra.mxu0 %v3843
      %4063 = vmatprep.subr.bf16.mxu0 %v3852
      %4064 = vmatpush1.bf16.msra.mxu0 %v3851
      %4065 = vmatprep.subr.bf16.mxu0 %v3860
      %4066 = vmatpush1.bf16.msra.mxu0 %v3859
      %4067 = vmatprep.subr.bf16.mxu0 %v3868
      %4068 = vmatpush1.bf16.msra.mxu0 %v3867
      %4069 = vmatprep.subr.bf16.mxu0 %v3876
      %4070 = vmatpush1.bf16.msra.mxu0 %v3875
      %4071 = vmatprep.subr.bf16.mxu0 %v3884
      %4072 = vmatpush1.bf16.msra.mxu0 %v3883
      %4073 = vmatprep.subr.bf16.mxu0 %v3892
      %4074 = vmatpush1.bf16.msra.mxu0 %v3891
      %4075 = vmatprep.subr.bf16.mxu0 %v3900
      %4076 = vmatpush1.bf16.msra.mxu0 %v3899
      %4077 = vmatprep.subr.bf16.mxu0 %v3908
      %4078 = vmatpush1.bf16.msra.mxu0 %v3907
      %4079 = vmatprep.subr.bf16.mxu0 %v3916
      %4080 = vmatpush1.bf16.msra.mxu0 %v3915
      %4081 = vmatprep.subr.bf16.mxu0 0
      %4082 = vmatpush1.bf16.msra.mxu0 0
      %4083 = vmatprep.subr.bf16.mxu0 0
      %4084 = vmatpush1.bf16.msra.mxu0 0
      %4085 = vmatprep.mubr.bf16.mxu0 %v3928
      %4086 = vmatmul.mubr.bf16.gmra.mrb[0].mxu0 %v3924
      %v4087 = vpop.f32.mrb[0].mxu0
      %v4088 = vadd.f32 %v3919, %v4087
      %v4089 = vpop.f32.mrb[0].mxu0
      %v4090 = vadd.f32 %v3919, %v4089
      %v4091 = vpop.f32.mrb[0].mxu0
      %v4092 = vpop.f32.mrb[0].mxu0
      %4093 = vdwg.mxu0
      %v4094 = vmul.f32 %v3965, %v258
      %v4095 = vmul.f32 %v3967, %v262
      %v4096 = vmul.f32 %v4006, %v266
      %v4097 = vmul.f32 %v4008, %v270
      %v4098 = vmul.f32 %v4047, %v274
      %v4099 = vmul.f32 %v4049, %v278
      %v4100 = vmul.f32 %v4088, %v282
      %v4101 = vmul.f32 %v4090, %v286
      %v4102 = vadd.f32 %v4094, %v4095
      %v4103 = vadd.f32 %v4102, %v4096
      %v4104 = vadd.f32 %v4103, %v4097
      %v4105 = vadd.f32 %v4104, %v4098
      %v4106 = vadd.f32 %v4105, %v4099
      %v4107 = vadd.f32 %v4106, %v4100
      %v4108 = vadd.f32 %v4107, %v4101
      %4109 = vadd.xlane.f32.xlu0 %v4108
      %v4110 = vpop.xlane.xlu0 %4109
      %v4111 = vmul.f32 %v4110, 0.001953125
      %v4112 = vmul.f32 %v4094, %v3965
      %v4113 = vmul.f32 %v4095, %v3967
      %v4114 = vmul.f32 %v4096, %v4006
      %v4115 = vmul.f32 %v4097, %v4008
      %v4116 = vmul.f32 %v4098, %v4047
      %v4117 = vmul.f32 %v4099, %v4049
      %v4118 = vmul.f32 %v4100, %v4088
      %v4119 = vmul.f32 %v4101, %v4090
      %v4120 = vadd.f32 %v4112, %v4113
      %v4121 = vadd.f32 %v4120, %v4114
      %v4122 = vadd.f32 %v4121, %v4115
      %v4123 = vadd.f32 %v4122, %v4116
      %v4124 = vadd.f32 %v4123, %v4117
      %v4125 = vadd.f32 %v4124, %v4118
      %v4126 = vadd.f32 %v4125, %v4119
      %4127 = vadd.xlane.f32.xlu0 %v4126
      %v4128 = vpop.xlane.xlu0 %4127
      %v4129 = vmul.f32 %v4128, 0.001953125
      %v4130 = vmul.f32 %v4111, %v4111
      %v4131 = vsub.f32 %v4129, %v4130
      %v4132 = vmax.f32 %v4131, 0.0
      %v4133 = vsub.f32 %v3965, %v4111
      %v4134 = vsub.f32 %v3967, %v4111
      %v4135 = vsub.f32 %v4006, %v4111
      %v4136 = vsub.f32 %v4008, %v4111
      %v4137 = vsub.f32 %v4047, %v4111
      %v4138 = vsub.f32 %v4049, %v4111
      %v4139 = vsub.f32 %v4088, %v4111
      %v4140 = vsub.f32 %v4090, %v4111
      %v4141 = vadd.f32 %v4132, 1e-05
      %v4142 = vrsqrt.pop %v4141
      %v4143 = vmul.f32 %v4133, %v4142
      %v4144 = vmul.f32 %v4134, %v4142
      %v4145 = vmul.f32 %v4135, %v4142
      %v4146 = vmul.f32 %v4136, %v4142
      %v4147 = vmul.f32 %v4137, %v4142
      %v4148 = vmul.f32 %v4138, %v4142
      %v4149 = vmul.f32 %v4139, %v4142
      %v4150 = vmul.f32 %v4140, %v4142
      %4151 = vset.pattern.permute.xlu0 4
      %4152 = vperm.xlu0 %4151, %v295
      %v4153 = vpop.permute.xlu0 %4152
      %v4155 = vmul.f32 %v4143, %v4153
      %v4156 = vmul.f32 %v4144, %v4153
      %v4157 = vmul.f32 %v4145, %v4153
      %v4158 = vmul.f32 %v4146, %v4153
      %v4159 = vmul.f32 %v4147, %v4153
      %v4160 = vmul.f32 %v4148, %v4153
      %v4161 = vmul.f32 %v4149, %v4153
      %v4162 = vmul.f32 %v4150, %v4153
      %4163 = vset.pattern.permute.xlu0 5
      %4164 = vperm.xlu0 %4163, %v295
      %v4165 = vpop.permute.xlu0 %4164
      %v4167 = vadd.f32 %v4155, %v4165
      %v4168 = vadd.f32 %v4156, %v4165
      %v4169 = vadd.f32 %v4157, %v4165
      %v4170 = vadd.f32 %v4158, %v4165
      %v4171 = vadd.f32 %v4159, %v4165
      %v4172 = vadd.f32 %v4160, %v4165
      %v4173 = vadd.f32 %v4161, %v4165
      %v4174 = vadd.f32 %v4162, %v4165
      %v4175 = vadd.f32 %v4167, %v296
      %v4176 = vadd.f32 %v4168, %v297
      %v4177 = vadd.f32 %v4169, %v298
      %v4178 = vadd.f32 %v4170, %v299
      %v4179 = vadd.f32 %v4171, %v300
      %v4180 = vadd.f32 %v4172, %v301
      %v4181 = vadd.f32 %v4173, %v302
      %v4182 = vadd.f32 %v4174, %v303
      %vm4183 = vcmp.ge.f32.partialorder %v4175, 0.0
      %vm4184 = vcmp.ge.f32.partialorder %v4176, 0.0
      %vm4185 = vcmp.ge.f32.partialorder %v4177, 0.0
      %vm4186 = vcmp.ge.f32.partialorder %v4178, 0.0
      %vm4187 = vcmp.ge.f32.partialorder %v4179, 0.0
      %vm4188 = vcmp.ge.f32.partialorder %v4180, 0.0
      %vm4189 = vcmp.ge.f32.partialorder %v4181, 0.0
      %vm4190 = vcmp.ge.f32.partialorder %v4182, 0.0
      %v4191 = vmul.f32 %v4175, 0.22916667
      %v4192 = vmul.f32 %v4176, 0.22916667
      %v4193 = vmul.f32 %v4177, 0.22916667
      %v4194 = vmul.f32 %v4178, 0.22916667
      %v4195 = vmul.f32 %v4179, 0.22916667
      %v4196 = vmul.f32 %v4180, 0.22916667
      %v4197 = vmul.f32 %v4181, 0.22916667
      %v4198 = vmul.f32 %v4182, 0.22916667
      %v4199 = vsel %vm4183, %v4175, %v4191
      %v4200 = vsel %vm4184, %v4176, %v4192
      %v4201 = vsel %vm4185, %v4177, %v4193
      %v4202 = vsel %vm4186, %v4178, %v4194
      %v4203 = vsel %vm4187, %v4179, %v4195
      %v4204 = vsel %vm4188, %v4180, %v4196
      %v4205 = vsel %vm4189, %v4181, %v4197
      %v4206 = vsel %vm4190, %v4182, %v4198
      %v4207 = vmul.f32 %v4199, %v258
      %v4208 = vmul.f32 %v4200, %v262
      %v4209 = vmul.f32 %v4201, %v266
      %v4210 = vmul.f32 %v4202, %v270
      %v4211 = vmul.f32 %v4203, %v274
      %v4212 = vmul.f32 %v4204, %v278
      %v4213 = vmul.f32 %v4205, %v282
      %v4214 = vmul.f32 %v4206, %v286
      %4215 = vst [vmem:[#allocation3 + $0x8] sm:$0xff] %v4207
      %4216 = vst [vmem:[#allocation3 + $0x10] sm:$0xff] %v4208
      %4217 = vst [vmem:[#allocation3 + $0x18] sm:$0xff] %v4209
      %4218 = vst [vmem:[#allocation3 + $0x20] sm:$0xff] %v4210
      %4219 = vst [vmem:[#allocation3 + $0x28] sm:$0xff] %v4211
      %4220 = vst [vmem:[#allocation3 + $0x30] sm:$0xff] %v4212
      %4221 = vst [vmem:[#allocation3 + $0x38] sm:$0xff] %v4213
      %4222 = vst [vmem:[#allocation3 + $0x40] sm:$0xff] %v4214
      %v4223 = vld [vmem:[#allocation3] sm:$0xff]
      %v4224 = vld [vmem:[#allocation3 + $0x8] sm:$0xff]
      %v4225 = vld [vmem:[#allocation3 + $0x10] sm:$0xff]
      %v4226 = vld [vmem:[#allocation3 + $0x18] sm:$0xff]
      %v4227 = vld [vmem:[#allocation3 + $0x20] sm:$0xff]
      %v4228 = vld [vmem:[#allocation3 + $0x28] sm:$0xff]
      %v4229 = vld [vmem:[#allocation3 + $0x30] sm:$0xff]
      %v4230 = vld [vmem:[#allocation3 + $0x38] sm:$0xff]
      %v4231 = vld [vmem:[#allocation3 + $0x40] sm:$0xff]
      %4241 = vrot.lane.b32.xlu0 %v4223, 127
      %v4242 = vpop.permute.xlu0 %4241
      %4243 = vrot.lane.b32.xlu0 %v4224, 127
      %v4244 = vpop.permute.xlu0 %4243
      %4245 = vrot.lane.b32.xlu0 %v4225, 127
      %v4246 = vpop.permute.xlu0 %4245
      %4247 = vrot.lane.b32.xlu0 %v4226, 127
      %v4248 = vpop.permute.xlu0 %4247
      %4249 = vrot.lane.b32.xlu0 %v4227, 127
      %v4250 = vpop.permute.xlu0 %4249
      %4251 = vrot.lane.b32.xlu0 %v4228, 127
      %v4252 = vpop.permute.xlu0 %4251
      %4253 = vrot.lane.b32.xlu0 %v4229, 127
      %v4254 = vpop.permute.xlu0 %4253
      %4255 = vrot.lane.b32.xlu0 %v4230, 127
      %v4256 = vpop.permute.xlu0 %4255
      %4257 = vrot.lane.b32.xlu0 %v4231, 127
      %v4258 = vpop.permute.xlu0 %4257
      %v4259 = vsel %vm342, %v4242, %v4244
      %v4260 = vsel %vm342, %v4244, %v4246
      %v4261 = vsel %vm342, %v4246, %v4248
      %v4262 = vsel %vm342, %v4248, %v4250
      %v4263 = vsel %vm342, %v4250, %v4252
      %v4264 = vsel %vm342, %v4252, %v4254
      %v4265 = vsel %vm342, %v4254, %v4256
      %v4266 = vsel %vm342, %v4256, %v4258
      %v4276 = vpack.c.bf16 %v4259, %v4223
      %v4277 = vpack.c.bf16 %v4260, %v4224
      %v4278 = vpack.c.bf16 %v4261, %v4225
      %v4279 = vpack.c.bf16 %v4262, %v4226
      %v4280 = vpack.c.bf16 %v4263, %v4227
      %v4281 = vpack.c.bf16 %v4264, %v4228
      %v4282 = vpack.c.bf16 %v4265, %v4229
      %v4283 = vpack.c.bf16 %v4266, %v4230
      %v4284 = vpack.c.bf16 %v4258, %v4231
      %4294 = vrot.lane.b32.xlu0 %v4276, 111
      %v4295 = vpop.permute.xlu0 %4294
      %4296 = vrot.lane.b32.xlu0 %v4277, 111
      %v4297 = vpop.permute.xlu0 %4296
      %4298 = vrot.lane.b32.xlu0 %v4278, 111
      %v4299 = vpop.permute.xlu0 %4298
      %4300 = vrot.lane.b32.xlu0 %v4279, 111
      %v4301 = vpop.permute.xlu0 %4300
      %4302 = vrot.lane.b32.xlu0 %v4280, 111
      %v4303 = vpop.permute.xlu0 %4302
      %4304 = vrot.lane.b32.xlu0 %v4281, 111
      %v4305 = vpop.permute.xlu0 %4304
      %4306 = vrot.lane.b32.xlu0 %v4282, 111
      %v4307 = vpop.permute.xlu0 %4306
      %4308 = vrot.lane.b32.xlu0 %v4283, 111
      %v4309 = vpop.permute.xlu0 %4308
      %4310 = vrot.lane.b32.xlu0 %v4284, 111
      %v4311 = vpop.permute.xlu0 %4310
      %v4312 = vsel %vm396, %v4295, %v4297
      %v4313 = vsel %vm396, %v4297, %v4299
      %v4314 = vsel %vm396, %v4299, %v4301
      %v4315 = vsel %vm396, %v4301, %v4303
      %v4316 = vsel %vm396, %v4303, %v4305
      %v4317 = vsel %vm396, %v4305, %v4307
      %v4318 = vsel %vm396, %v4307, %v4309
      %v4319 = vsel %vm396, %v4309, %v4311
      %4328 = vst [vmem:[#allocation2] sm:$0xff] %v4312
      %4329 = vst [vmem:[#allocation2 + $0x8] sm:$0xff] %v4313
      %4330 = vst [vmem:[#allocation2 + $0x10] sm:$0xff] %v4314
      %4331 = vst [vmem:[#allocation2 + $0x18] sm:$0xff] %v4315
      %4332 = vst [vmem:[#allocation2 + $0x20] sm:$0xff] %v4316
      %4333 = vst [vmem:[#allocation2 + $0x28] sm:$0xff] %v4317
      %4334 = vst [vmem:[#allocation2 + $0x30] sm:$0xff] %v4318
      %4335 = vst [vmem:[#allocation2 + $0x38] sm:$0xff] %v4319
      %v4336 = vld [vmem:[#allocation3] sm:$0xff]
      %v4337 = vld [vmem:[#allocation3 + $0x8] sm:$0xff]
      %v4338 = vld [vmem:[#allocation3 + $0x10] sm:$0xff]
      %v4339 = vld [vmem:[#allocation3 + $0x18] sm:$0xff]
      %v4340 = vld [vmem:[#allocation3 + $0x20] sm:$0xff]
      %v4341 = vld [vmem:[#allocation3 + $0x28] sm:$0xff]
      %v4342 = vld [vmem:[#allocation3 + $0x30] sm:$0xff]
      %v4343 = vld [vmem:[#allocation3 + $0x38] sm:$0xff]
      %v4344 = vld [vmem:[#allocation3 + $0x40] sm:$0xff]
      %4354 = vrot.lane.b32.xlu0 %v4336, 120
      %v4355 = vpop.permute.xlu0 %4354
      %4356 = vrot.lane.b32.xlu0 %v4337, 120
      %v4357 = vpop.permute.xlu0 %4356
      %4358 = vrot.lane.b32.xlu0 %v4338, 120
      %v4359 = vpop.permute.xlu0 %4358
      %4360 = vrot.lane.b32.xlu0 %v4339, 120
      %v4361 = vpop.permute.xlu0 %4360
      %4362 = vrot.lane.b32.xlu0 %v4340, 120
      %v4363 = vpop.permute.xlu0 %4362
      %4364 = vrot.lane.b32.xlu0 %v4341, 120
      %v4365 = vpop.permute.xlu0 %4364
      %4366 = vrot.lane.b32.xlu0 %v4342, 120
      %v4367 = vpop.permute.xlu0 %4366
      %4368 = vrot.lane.b32.xlu0 %v4343, 120
      %v4369 = vpop.permute.xlu0 %4368
      %4370 = vrot.lane.b32.xlu0 %v4344, 120
      %v4371 = vpop.permute.xlu0 %4370
      %v4372 = vsel %vm457, %v4355, %v4357
      %v4373 = vsel %vm457, %v4357, %v4359
      %v4374 = vsel %vm457, %v4359, %v4361
      %v4375 = vsel %vm457, %v4361, %v4363
      %v4376 = vsel %vm457, %v4363, %v4365
      %v4377 = vsel %vm457, %v4365, %v4367
      %v4378 = vsel %vm457, %v4367, %v4369
      %v4379 = vsel %vm457, %v4369, %v4371
      %v4389 = vpack.c.bf16 %v4372, %v4336
      %v4390 = vpack.c.bf16 %v4373, %v4337
      %v4391 = vpack.c.bf16 %v4374, %v4338
      %v4392 = vpack.c.bf16 %v4375, %v4339
      %v4393 = vpack.c.bf16 %v4376, %v4340
      %v4394 = vpack.c.bf16 %v4377, %v4341
      %v4395 = vpack.c.bf16 %v4378, %v4342
      %v4396 = vpack.c.bf16 %v4379, %v4343
      %v4397 = vpack.c.bf16 %v4371, %v4344
      %4407 = vrot.lane.b32.xlu0 %v4389, 109
      %v4408 = vpop.permute.xlu0 %4407
      %4409 = vrot.lane.b32.xlu0 %v4390, 109
      %v4410 = vpop.permute.xlu0 %4409
      %4411 = vrot.lane.b32.xlu0 %v4391, 109
      %v4412 = vpop.permute.xlu0 %4411
      %4413 = vrot.lane.b32.xlu0 %v4392, 109
      %v4414 = vpop.permute.xlu0 %4413
      %4415 = vrot.lane.b32.xlu0 %v4393, 109
      %v4416 = vpop.permute.xlu0 %4415
      %4417 = vrot.lane.b32.xlu0 %v4394, 109
      %v4418 = vpop.permute.xlu0 %4417
      %4419 = vrot.lane.b32.xlu0 %v4395, 109
      %v4420 = vpop.permute.xlu0 %4419
      %4421 = vrot.lane.b32.xlu0 %v4396, 109
      %v4422 = vpop.permute.xlu0 %4421
      %4423 = vrot.lane.b32.xlu0 %v4397, 109
      %v4424 = vpop.permute.xlu0 %4423
      %v4425 = vsel %vm511, %v4408, %v4410
      %v4426 = vsel %vm511, %v4410, %v4412
      %v4427 = vsel %vm511, %v4412, %v4414
      %v4428 = vsel %vm511, %v4414, %v4416
      %v4429 = vsel %vm511, %v4416, %v4418
      %v4430 = vsel %vm511, %v4418, %v4420
      %v4431 = vsel %vm511, %v4420, %v4422
      %v4432 = vsel %vm511, %v4422, %v4424
      %4441 = vst [vmem:[#allocation2 + $0x40] sm:$0xff] %v4425
      %4442 = vst [vmem:[#allocation2 + $0x48] sm:$0xff] %v4426
      %4443 = vst [vmem:[#allocation2 + $0x50] sm:$0xff] %v4427
      %4444 = vst [vmem:[#allocation2 + $0x58] sm:$0xff] %v4428
      %4445 = vst [vmem:[#allocation2 + $0x60] sm:$0xff] %v4429
      %4446 = vst [vmem:[#allocation2 + $0x68] sm:$0xff] %v4430
      %4447 = vst [vmem:[#allocation2 + $0x70] sm:$0xff] %v4431
      %4448 = vst [vmem:[#allocation2 + $0x78] sm:$0xff] %v4432
      %v4449 = vld [vmem:[#allocation3] sm:$0xff]
      %v4450 = vld [vmem:[#allocation3 + $0x8] sm:$0xff]
      %v4451 = vld [vmem:[#allocation3 + $0x10] sm:$0xff]
      %v4452 = vld [vmem:[#allocation3 + $0x18] sm:$0xff]
      %v4453 = vld [vmem:[#allocation3 + $0x20] sm:$0xff]
      %v4454 = vld [vmem:[#allocation3 + $0x28] sm:$0xff]
      %v4455 = vld [vmem:[#allocation3 + $0x30] sm:$0xff]
      %v4456 = vld [vmem:[#allocation3 + $0x38] sm:$0xff]
      %v4457 = vld [vmem:[#allocation3 + $0x40] sm:$0xff]
      %4467 = vrot.lane.b32.xlu0 %v4449, 127
      %v4468 = vpop.permute.xlu0 %4467
      %4469 = vrot.lane.b32.xlu0 %v4450, 127
      %v4470 = vpop.permute.xlu0 %4469
      %4471 = vrot.lane.b32.xlu0 %v4451, 127
      %v4472 = vpop.permute.xlu0 %4471
      %4473 = vrot.lane.b32.xlu0 %v4452, 127
      %v4474 = vpop.permute.xlu0 %4473
      %4475 = vrot.lane.b32.xlu0 %v4453, 127
      %v4476 = vpop.permute.xlu0 %4475
      %4477 = vrot.lane.b32.xlu0 %v4454, 127
      %v4478 = vpop.permute.xlu0 %4477
      %4479 = vrot.lane.b32.xlu0 %v4455, 127
      %v4480 = vpop.permute.xlu0 %4479
      %4481 = vrot.lane.b32.xlu0 %v4456, 127
      %v4482 = vpop.permute.xlu0 %4481
      %4483 = vrot.lane.b32.xlu0 %v4457, 127
      %v4484 = vpop.permute.xlu0 %4483
      %v4485 = vsel %vm342, %v4468, %v4470
      %v4486 = vsel %vm342, %v4470, %v4472
      %v4487 = vsel %vm342, %v4472, %v4474
      %v4488 = vsel %vm342, %v4474, %v4476
      %v4489 = vsel %vm342, %v4476, %v4478
      %v4490 = vsel %vm342, %v4478, %v4480
      %v4491 = vsel %vm342, %v4480, %v4482
      %v4492 = vsel %vm342, %v4482, %v4484
      %v4502 = vpack.c.bf16 %v4485, %v4449
      %v4503 = vpack.c.bf16 %v4486, %v4450
      %v4504 = vpack.c.bf16 %v4487, %v4451
      %v4505 = vpack.c.bf16 %v4488, %v4452
      %v4506 = vpack.c.bf16 %v4489, %v4453
      %v4507 = vpack.c.bf16 %v4490, %v4454
      %v4508 = vpack.c.bf16 %v4491, %v4455
      %v4509 = vpack.c.bf16 %v4492, %v4456
      %v4510 = vpack.c.bf16 %v4484, %v4457
      %4520 = vrot.lane.b32.xlu0 %v4502, 100
      %v4521 = vpop.permute.xlu0 %4520
      %4522 = vrot.lane.b32.xlu0 %v4503, 100
      %v4523 = vpop.permute.xlu0 %4522
      %4524 = vrot.lane.b32.xlu0 %v4504, 100
      %v4525 = vpop.permute.xlu0 %4524
      %4526 = vrot.lane.b32.xlu0 %v4505, 100
      %v4527 = vpop.permute.xlu0 %4526
      %4528 = vrot.lane.b32.xlu0 %v4506, 100
      %v4529 = vpop.permute.xlu0 %4528
      %4530 = vrot.lane.b32.xlu0 %v4507, 100
      %v4531 = vpop.permute.xlu0 %4530
      %4532 = vrot.lane.b32.xlu0 %v4508, 100
      %v4533 = vpop.permute.xlu0 %4532
      %4534 = vrot.lane.b32.xlu0 %v4509, 100
      %v4535 = vpop.permute.xlu0 %4534
      %4536 = vrot.lane.b32.xlu0 %v4510, 100
      %v4537 = vpop.permute.xlu0 %4536
      %v4538 = vsel %vm625, %v4521, %v4523
      %v4539 = vsel %vm625, %v4523, %v4525
      %v4540 = vsel %vm625, %v4525, %v4527
      %v4541 = vsel %vm625, %v4527, %v4529
      %v4542 = vsel %vm625, %v4529, %v4531
      %v4543 = vsel %vm625, %v4531, %v4533
      %v4544 = vsel %vm625, %v4533, %v4535
      %v4545 = vsel %vm625, %v4535, %v4537
      %4554 = vst [vmem:[#allocation2 + $0x80] sm:$0xff] %v4538
      %4555 = vst [vmem:[#allocation2 + $0x88] sm:$0xff] %v4539
      %4556 = vst [vmem:[#allocation2 + $0x90] sm:$0xff] %v4540
      %4557 = vst [vmem:[#allocation2 + $0x98] sm:$0xff] %v4541
      %4558 = vst [vmem:[#allocation2 + $0xa0] sm:$0xff] %v4542
      %4559 = vst [vmem:[#allocation2 + $0xa8] sm:$0xff] %v4543
      %4560 = vst [vmem:[#allocation2 + $0xb0] sm:$0xff] %v4544
      %4561 = vst [vmem:[#allocation2 + $0xb8] sm:$0xff] %v4545
      %v4562 = vld [vmem:[#allocation3] sm:$0xff]
      %v4563 = vld [vmem:[#allocation3 + $0x8] sm:$0xff]
      %v4564 = vld [vmem:[#allocation3 + $0x10] sm:$0xff]
      %v4565 = vld [vmem:[#allocation3 + $0x18] sm:$0xff]
      %v4566 = vld [vmem:[#allocation3 + $0x20] sm:$0xff]
      %v4567 = vld [vmem:[#allocation3 + $0x28] sm:$0xff]
      %v4568 = vld [vmem:[#allocation3 + $0x30] sm:$0xff]
      %v4569 = vld [vmem:[#allocation3 + $0x38] sm:$0xff]
      %v4570 = vld [vmem:[#allocation3 + $0x40] sm:$0xff]
      %4580 = vrot.lane.b32.xlu0 %v4562, 127
      %v4581 = vpop.permute.xlu0 %4580
      %4582 = vrot.lane.b32.xlu0 %v4563, 127
      %v4583 = vpop.permute.xlu0 %4582
      %4584 = vrot.lane.b32.xlu0 %v4564, 127
      %v4585 = vpop.permute.xlu0 %4584
      %4586 = vrot.lane.b32.xlu0 %v4565, 127
      %v4587 = vpop.permute.xlu0 %4586
      %4588 = vrot.lane.b32.xlu0 %v4566, 127
      %v4589 = vpop.permute.xlu0 %4588
      %4590 = vrot.lane.b32.xlu0 %v4567, 127
      %v4591 = vpop.permute.xlu0 %4590
      %4592 = vrot.lane.b32.xlu0 %v4568, 127
      %v4593 = vpop.permute.xlu0 %4592
      %4594 = vrot.lane.b32.xlu0 %v4569, 127
      %v4595 = vpop.permute.xlu0 %4594
      %4596 = vrot.lane.b32.xlu0 %v4570, 127
      %v4597 = vpop.permute.xlu0 %4596
      %v4598 = vsel %vm342, %v4581, %v4583
      %v4599 = vsel %vm342, %v4583, %v4585
      %v4600 = vsel %vm342, %v4585, %v4587
      %v4601 = vsel %vm342, %v4587, %v4589
      %v4602 = vsel %vm342, %v4589, %v4591
      %v4603 = vsel %vm342, %v4591, %v4593
      %v4604 = vsel %vm342, %v4593, %v4595
      %v4605 = vsel %vm342, %v4595, %v4597
      %v4615 = vpack.c.bf16 %v4598, %v4562
      %v4616 = vpack.c.bf16 %v4599, %v4563
      %v4617 = vpack.c.bf16 %v4600, %v4564
      %v4618 = vpack.c.bf16 %v4601, %v4565
      %v4619 = vpack.c.bf16 %v4602, %v4566
      %v4620 = vpack.c.bf16 %v4603, %v4567
      %v4621 = vpack.c.bf16 %v4604, %v4568
      %v4622 = vpack.c.bf16 %v4605, %v4569
      %v4623 = vpack.c.bf16 %v4597, %v4570
      %4633 = vrot.lane.b32.xlu0 %v4615, 91
      %v4634 = vpop.permute.xlu0 %4633
      %4635 = vrot.lane.b32.xlu0 %v4616, 91
      %v4636 = vpop.permute.xlu0 %4635
      %4637 = vrot.lane.b32.xlu0 %v4617, 91
      %v4638 = vpop.permute.xlu0 %4637
      %4639 = vrot.lane.b32.xlu0 %v4618, 91
      %v4640 = vpop.permute.xlu0 %4639
      %4641 = vrot.lane.b32.xlu0 %v4619, 91
      %v4642 = vpop.permute.xlu0 %4641
      %4643 = vrot.lane.b32.xlu0 %v4620, 91
      %v4644 = vpop.permute.xlu0 %4643
      %4645 = vrot.lane.b32.xlu0 %v4621, 91
      %v4646 = vpop.permute.xlu0 %4645
      %4647 = vrot.lane.b32.xlu0 %v4622, 91
      %v4648 = vpop.permute.xlu0 %4647
      %4649 = vrot.lane.b32.xlu0 %v4623, 91
      %v4650 = vpop.permute.xlu0 %4649
      %v4651 = vsel %vm739, %v4634, %v4636
      %v4652 = vsel %vm739, %v4636, %v4638
      %v4653 = vsel %vm739, %v4638, %v4640
      %v4654 = vsel %vm739, %v4640, %v4642
      %v4655 = vsel %vm739, %v4642, %v4644
      %v4656 = vsel %vm739, %v4644, %v4646
      %v4657 = vsel %vm739, %v4646, %v4648
      %v4658 = vsel %vm739, %v4648, %v4650
      %4667 = vst [vmem:[#allocation2 + $0xc0] sm:$0xff] %v4651
      %4668 = vst [vmem:[#allocation2 + $0xc8] sm:$0xff] %v4652
      %4669 = vst [vmem:[#allocation2 + $0xd0] sm:$0xff] %v4653
      %4670 = vst [vmem:[#allocation2 + $0xd8] sm:$0xff] %v4654
      %4671 = vst [vmem:[#allocation2 + $0xe0] sm:$0xff] %v4655
      %4672 = vst [vmem:[#allocation2 + $0xe8] sm:$0xff] %v4656
      %4673 = vst [vmem:[#allocation2 + $0xf0] sm:$0xff] %v4657
      %4674 = vst [vmem:[#allocation2 + $0xf8] sm:$0xff] %v4658
      %v4675 = vld [vmem:[#allocation3] sm:$0xff]
      %v4676 = vld [vmem:[#allocation3 + $0x8] sm:$0xff]
      %v4677 = vld [vmem:[#allocation3 + $0x10] sm:$0xff]
      %v4678 = vld [vmem:[#allocation3 + $0x18] sm:$0xff]
      %v4679 = vld [vmem:[#allocation3 + $0x20] sm:$0xff]
      %v4680 = vld [vmem:[#allocation3 + $0x28] sm:$0xff]
      %v4681 = vld [vmem:[#allocation3 + $0x30] sm:$0xff]
      %v4682 = vld [vmem:[#allocation3 + $0x38] sm:$0xff]
      %v4683 = vld [vmem:[#allocation3 + $0x40] sm:$0xff]
      %4693 = vrot.lane.b32.xlu0 %v4675, 50
      %v4694 = vpop.permute.xlu0 %4693
      %4695 = vrot.lane.b32.xlu0 %v4676, 50
      %v4696 = vpop.permute.xlu0 %4695
      %4697 = vrot.lane.b32.xlu0 %v4677, 50
      %v4698 = vpop.permute.xlu0 %4697
      %4699 = vrot.lane.b32.xlu0 %v4678, 50
      %v4700 = vpop.permute.xlu0 %4699
      %4701 = vrot.lane.b32.xlu0 %v4679, 50
      %v4702 = vpop.permute.xlu0 %4701
      %4703 = vrot.lane.b32.xlu0 %v4680, 50
      %v4704 = vpop.permute.xlu0 %4703
      %4705 = vrot.lane.b32.xlu0 %v4681, 50
      %v4706 = vpop.permute.xlu0 %4705
      %4707 = vrot.lane.b32.xlu0 %v4682, 50
      %v4708 = vpop.permute.xlu0 %4707
      %4709 = vrot.lane.b32.xlu0 %v4683, 50
      %v4710 = vpop.permute.xlu0 %4709
      %v4711 = vsel %vm800, %v4694, %v4696
      %v4712 = vsel %vm800, %v4696, %v4698
      %v4713 = vsel %vm800, %v4698, %v4700
      %v4714 = vsel %vm800, %v4700, %v4702
      %v4715 = vsel %vm800, %v4702, %v4704
      %v4716 = vsel %vm800, %v4704, %v4706
      %v4717 = vsel %vm800, %v4706, %v4708
      %v4718 = vsel %vm800, %v4708, %v4710
      %v4728 = vpack.c.bf16 %v4711, %v4675
      %v4729 = vpack.c.bf16 %v4712, %v4676
      %v4730 = vpack.c.bf16 %v4713, %v4677
      %v4731 = vpack.c.bf16 %v4714, %v4678
      %v4732 = vpack.c.bf16 %v4715, %v4679
      %v4733 = vpack.c.bf16 %v4716, %v4680
      %v4734 = vpack.c.bf16 %v4717, %v4681
      %v4735 = vpack.c.bf16 %v4718, %v4682
      %v4736 = vpack.c.bf16 %v4710, %v4683
      %4746 = vrot.lane.b32.xlu0 %v4728, 89
      %v4747 = vpop.permute.xlu0 %4746
      %4748 = vrot.lane.b32.xlu0 %v4729, 89
      %v4749 = vpop.permute.xlu0 %4748
      %4750 = vrot.lane.b32.xlu0 %v4730, 89
      %v4751 = vpop.permute.xlu0 %4750
      %4752 = vrot.lane.b32.xlu0 %v4731, 89
      %v4753 = vpop.permute.xlu0 %4752
      %4754 = vrot.lane.b32.xlu0 %v4732, 89
      %v4755 = vpop.permute.xlu0 %4754
      %4756 = vrot.lane.b32.xlu0 %v4733, 89
      %v4757 = vpop.permute.xlu0 %4756
      %4758 = vrot.lane.b32.xlu0 %v4734, 89
      %v4759 = vpop.permute.xlu0 %4758
      %4760 = vrot.lane.b32.xlu0 %v4735, 89
      %v4761 = vpop.permute.xlu0 %4760
      %4762 = vrot.lane.b32.xlu0 %v4736, 89
      %v4763 = vpop.permute.xlu0 %4762
      %v4764 = vsel %vm854, %v4747, %v4749
      %v4765 = vsel %vm854, %v4749, %v4751
      %v4766 = vsel %vm854, %v4751, %v4753
      %v4767 = vsel %vm854, %v4753, %v4755
      %v4768 = vsel %vm854, %v4755, %v4757
      %v4769 = vsel %vm854, %v4757, %v4759
      %v4770 = vsel %vm854, %v4759, %v4761
      %v4771 = vsel %vm854, %v4761, %v4763
      %4780 = vst [vmem:[#allocation2 + $0x100] sm:$0xff] %v4764
      %4781 = vst [vmem:[#allocation2 + $0x108] sm:$0xff] %v4765
      %4782 = vst [vmem:[#allocation2 + $0x110] sm:$0xff] %v4766
      %4783 = vst [vmem:[#allocation2 + $0x118] sm:$0xff] %v4767
      %4784 = vst [vmem:[#allocation2 + $0x120] sm:$0xff] %v4768
      %4785 = vst [vmem:[#allocation2 + $0x128] sm:$0xff] %v4769
      %4786 = vst [vmem:[#allocation2 + $0x130] sm:$0xff] %v4770
      %4787 = vst [vmem:[#allocation2 + $0x138] sm:$0xff] %v4771
      %v4788 = vld [vmem:[#allocation3] sm:$0xff]
      %v4789 = vld [vmem:[#allocation3 + $0x8] sm:$0xff]
      %v4790 = vld [vmem:[#allocation3 + $0x10] sm:$0xff]
      %v4791 = vld [vmem:[#allocation3 + $0x18] sm:$0xff]
      %v4792 = vld [vmem:[#allocation3 + $0x20] sm:$0xff]
      %v4793 = vld [vmem:[#allocation3 + $0x28] sm:$0xff]
      %v4794 = vld [vmem:[#allocation3 + $0x30] sm:$0xff]
      %v4795 = vld [vmem:[#allocation3 + $0x38] sm:$0xff]
      %v4796 = vld [vmem:[#allocation3 + $0x40] sm:$0xff]
      %4806 = vrot.lane.b32.xlu0 %v4788, 127
      %v4807 = vpop.permute.xlu0 %4806
      %4808 = vrot.lane.b32.xlu0 %v4789, 127
      %v4809 = vpop.permute.xlu0 %4808
      %4810 = vrot.lane.b32.xlu0 %v4790, 127
      %v4811 = vpop.permute.xlu0 %4810
      %4812 = vrot.lane.b32.xlu0 %v4791, 127
      %v4813 = vpop.permute.xlu0 %4812
      %4814 = vrot.lane.b32.xlu0 %v4792, 127
      %v4815 = vpop.permute.xlu0 %4814
      %4816 = vrot.lane.b32.xlu0 %v4793, 127
      %v4817 = vpop.permute.xlu0 %4816
      %4818 = vrot.lane.b32.xlu0 %v4794, 127
      %v4819 = vpop.permute.xlu0 %4818
      %4820 = vrot.lane.b32.xlu0 %v4795, 127
      %v4821 = vpop.permute.xlu0 %4820
      %4822 = vrot.lane.b32.xlu0 %v4796, 127
      %v4823 = vpop.permute.xlu0 %4822
      %v4824 = vsel %vm342, %v4807, %v4809
      %v4825 = vsel %vm342, %v4809, %v4811
      %v4826 = vsel %vm342, %v4811, %v4813
      %v4827 = vsel %vm342, %v4813, %v4815
      %v4828 = vsel %vm342, %v4815, %v4817
      %v4829 = vsel %vm342, %v4817, %v4819
      %v4830 = vsel %vm342, %v4819, %v4821
      %v4831 = vsel %vm342, %v4821, %v4823
      %v4841 = vpack.c.bf16 %v4824, %v4788
      %v4842 = vpack.c.bf16 %v4825, %v4789
      %v4843 = vpack.c.bf16 %v4826, %v4790
      %v4844 = vpack.c.bf16 %v4827, %v4791
      %v4845 = vpack.c.bf16 %v4828, %v4792
      %v4846 = vpack.c.bf16 %v4829, %v4793
      %v4847 = vpack.c.bf16 %v4830, %v4794
      %v4848 = vpack.c.bf16 %v4831, %v4795
      %v4849 = vpack.c.bf16 %v4823, %v4796
      %4859 = vrot.lane.b32.xlu0 %v4841, 10
      %v4860 = vpop.permute.xlu0 %4859
      %4861 = vrot.lane.b32.xlu0 %v4842, 10
      %v4862 = vpop.permute.xlu0 %4861
      %4863 = vrot.lane.b32.xlu0 %v4843, 10
      %v4864 = vpop.permute.xlu0 %4863
      %4865 = vrot.lane.b32.xlu0 %v4844, 10
      %v4866 = vpop.permute.xlu0 %4865
      %4867 = vrot.lane.b32.xlu0 %v4845, 10
      %v4868 = vpop.permute.xlu0 %4867
      %4869 = vrot.lane.b32.xlu0 %v4846, 10
      %v4870 = vpop.permute.xlu0 %4869
      %4871 = vrot.lane.b32.xlu0 %v4847, 10
      %v4872 = vpop.permute.xlu0 %4871
      %4873 = vrot.lane.b32.xlu0 %v4848, 10
      %v4874 = vpop.permute.xlu0 %4873
      %4875 = vrot.lane.b32.xlu0 %v4849, 10
      %v4876 = vpop.permute.xlu0 %4875
      %v4877 = vsel %vm968, %v4860, %v4862
      %v4878 = vsel %vm968, %v4862, %v4864
      %v4879 = vsel %vm968, %v4864, %v4866
      %v4880 = vsel %vm968, %v4866, %v4868
      %v4881 = vsel %vm968, %v4868, %v4870
      %v4882 = vsel %vm968, %v4870, %v4872
      %v4883 = vsel %vm968, %v4872, %v4874
      %v4884 = vsel %vm968, %v4874, %v4876
      %4893 = vst [vmem:[#allocation2 + $0x140] sm:$0xff] %v4877
      %4894 = vst [vmem:[#allocation2 + $0x148] sm:$0xff] %v4878
      %4895 = vst [vmem:[#allocation2 + $0x150] sm:$0xff] %v4879
      %4896 = vst [vmem:[#allocation2 + $0x158] sm:$0xff] %v4880
      %4897 = vst [vmem:[#allocation2 + $0x160] sm:$0xff] %v4881
      %4898 = vst [vmem:[#allocation2 + $0x168] sm:$0xff] %v4882
      %4899 = vst [vmem:[#allocation2 + $0x170] sm:$0xff] %v4883
      %4900 = vst [vmem:[#allocation2 + $0x178] sm:$0xff] %v4884
      %v4901 = vld [vmem:[#allocation3] sm:$0xff]
      %v4902 = vld [vmem:[#allocation3 + $0x8] sm:$0xff]
      %v4903 = vld [vmem:[#allocation3 + $0x10] sm:$0xff]
      %v4904 = vld [vmem:[#allocation3 + $0x18] sm:$0xff]
      %v4905 = vld [vmem:[#allocation3 + $0x20] sm:$0xff]
      %v4906 = vld [vmem:[#allocation3 + $0x28] sm:$0xff]
      %v4907 = vld [vmem:[#allocation3 + $0x30] sm:$0xff]
      %v4908 = vld [vmem:[#allocation3 + $0x38] sm:$0xff]
      %v4909 = vld [vmem:[#allocation3 + $0x40] sm:$0xff]
      %4918 = vrot.lane.b32.xlu0 %v4902, 127
      %v4919 = vpop.permute.xlu0 %4918
      %4920 = vrot.lane.b32.xlu0 %v4903, 127
      %v4921 = vpop.permute.xlu0 %4920
      %4922 = vrot.lane.b32.xlu0 %v4904, 127
      %v4923 = vpop.permute.xlu0 %4922
      %4924 = vrot.lane.b32.xlu0 %v4905, 127
      %v4925 = vpop.permute.xlu0 %4924
      %4926 = vrot.lane.b32.xlu0 %v4906, 127
      %v4927 = vpop.permute.xlu0 %4926
      %4928 = vrot.lane.b32.xlu0 %v4907, 127
      %v4929 = vpop.permute.xlu0 %4928
      %4930 = vrot.lane.b32.xlu0 %v4908, 127
      %v4931 = vpop.permute.xlu0 %4930
      %4932 = vrot.lane.b32.xlu0 %v4909, 127
      %v4933 = vpop.permute.xlu0 %4932
      %v4934 = vsel %vm342, %v4919, %v4921
      %v4935 = vsel %vm342, %v4921, %v4923
      %v4936 = vsel %vm342, %v4923, %v4925
      %v4937 = vsel %vm342, %v4925, %v4927
      %v4938 = vsel %vm342, %v4927, %v4929
      %v4939 = vsel %vm342, %v4929, %v4931
      %v4940 = vsel %vm342, %v4931, %v4933
      %v4950 = vpack.c.bf16 %v4919, %v4901
      %v4951 = vpack.c.bf16 %v4934, %v4902
      %v4952 = vpack.c.bf16 %v4935, %v4903
      %v4953 = vpack.c.bf16 %v4936, %v4904
      %v4954 = vpack.c.bf16 %v4937, %v4905
      %v4955 = vpack.c.bf16 %v4938, %v4906
      %v4956 = vpack.c.bf16 %v4939, %v4907
      %v4957 = vpack.c.bf16 %v4940, %v4908
      %v4958 = vpack.c.bf16 %v4933, %v4909
      %4968 = vrot.lane.b32.xlu0 %v4950, 1
      %v4969 = vpop.permute.xlu0 %4968
      %4970 = vrot.lane.b32.xlu0 %v4951, 1
      %v4971 = vpop.permute.xlu0 %4970
      %4972 = vrot.lane.b32.xlu0 %v4952, 1
      %v4973 = vpop.permute.xlu0 %4972
      %4974 = vrot.lane.b32.xlu0 %v4953, 1
      %v4975 = vpop.permute.xlu0 %4974
      %4976 = vrot.lane.b32.xlu0 %v4954, 1
      %v4977 = vpop.permute.xlu0 %4976
      %4978 = vrot.lane.b32.xlu0 %v4955, 1
      %v4979 = vpop.permute.xlu0 %4978
      %4980 = vrot.lane.b32.xlu0 %v4956, 1
      %v4981 = vpop.permute.xlu0 %4980
      %4982 = vrot.lane.b32.xlu0 %v4957, 1
      %v4983 = vpop.permute.xlu0 %4982
      %4984 = vrot.lane.b32.xlu0 %v4958, 1
      %v4985 = vpop.permute.xlu0 %4984
      %v4986 = vsel %vm1078, %v4969, %v4971
      %v4987 = vsel %vm1078, %v4971, %v4973
      %v4988 = vsel %vm1078, %v4973, %v4975
      %v4989 = vsel %vm1078, %v4975, %v4977
      %v4990 = vsel %vm1078, %v4977, %v4979
      %v4991 = vsel %vm1078, %v4979, %v4981
      %v4992 = vsel %vm1078, %v4981, %v4983
      %v4993 = vsel %vm1078, %v4983, %v4985
      %5002 = vst [vmem:[#allocation2 + $0x180] sm:$0xff] %v4986
      %5003 = vst [vmem:[#allocation2 + $0x188] sm:$0xff] %v4987
      %5004 = vst [vmem:[#allocation2 + $0x190] sm:$0xff] %v4988
      %5005 = vst [vmem:[#allocation2 + $0x198] sm:$0xff] %v4989
      %5006 = vst [vmem:[#allocation2 + $0x1a0] sm:$0xff] %v4990
      %5007 = vst [vmem:[#allocation2 + $0x1a8] sm:$0xff] %v4991
      %5008 = vst [vmem:[#allocation2 + $0x1b0] sm:$0xff] %v4992
      %5009 = vst [vmem:[#allocation2 + $0x1b8] sm:$0xff] %v4993
      %v5010 = vld [vmem:[#allocation3 + $0x8] sm:$0xff]
      %v5011 = vld [vmem:[#allocation3 + $0x10] sm:$0xff]
      %v5012 = vld [vmem:[#allocation3 + $0x18] sm:$0xff]
      %v5013 = vld [vmem:[#allocation3 + $0x20] sm:$0xff]
      %v5014 = vld [vmem:[#allocation3 + $0x28] sm:$0xff]
      %v5015 = vld [vmem:[#allocation3 + $0x30] sm:$0xff]
      %v5016 = vld [vmem:[#allocation3 + $0x38] sm:$0xff]
      %v5017 = vld [vmem:[#allocation3 + $0x40] sm:$0xff]
      %v5018 = vld [vmem:[#allocation3 + $0x48] sm:$0xff]
      %5028 = vrot.lane.b32.xlu0 %v5010, 120
      %v5029 = vpop.permute.xlu0 %5028
      %5030 = vrot.lane.b32.xlu0 %v5011, 120
      %v5031 = vpop.permute.xlu0 %5030
      %5032 = vrot.lane.b32.xlu0 %v5012, 120
      %v5033 = vpop.permute.xlu0 %5032
      %5034 = vrot.lane.b32.xlu0 %v5013, 120
      %v5035 = vpop.permute.xlu0 %5034
      %5036 = vrot.lane.b32.xlu0 %v5014, 120
      %v5037 = vpop.permute.xlu0 %5036
      %5038 = vrot.lane.b32.xlu0 %v5015, 120
      %v5039 = vpop.permute.xlu0 %5038
      %5040 = vrot.lane.b32.xlu0 %v5016, 120
      %v5041 = vpop.permute.xlu0 %5040
      %5042 = vrot.lane.b32.xlu0 %v5017, 120
      %v5043 = vpop.permute.xlu0 %5042
      %5044 = vrot.lane.b32.xlu0 %v5018, 120
      %v5045 = vpop.permute.xlu0 %5044
      %v5046 = vsel %vm457, %v5029, %v5031
      %v5047 = vsel %vm457, %v5031, %v5033
      %v5048 = vsel %vm457, %v5033, %v5035
      %v5049 = vsel %vm457, %v5035, %v5037
      %v5050 = vsel %vm457, %v5037, %v5039
      %v5051 = vsel %vm457, %v5039, %v5041
      %v5052 = vsel %vm457, %v5041, %v5043
      %v5053 = vsel %vm457, %v5043, %v5045
      %v5063 = vpack.c.bf16 %v5046, %v5010
      %v5064 = vpack.c.bf16 %v5047, %v5011
      %v5065 = vpack.c.bf16 %v5048, %v5012
      %v5066 = vpack.c.bf16 %v5049, %v5013
      %v5067 = vpack.c.bf16 %v5050, %v5014
      %v5068 = vpack.c.bf16 %v5051, %v5015
      %v5069 = vpack.c.bf16 %v5052, %v5016
      %v5070 = vpack.c.bf16 %v5053, %v5017
      %v5071 = vpack.c.bf16 %v5045, %v5018
      %5081 = vrot.lane.b32.xlu0 %v5063, 127
      %v5082 = vpop.permute.xlu0 %5081
      %5083 = vrot.lane.b32.xlu0 %v5064, 127
      %v5084 = vpop.permute.xlu0 %5083
      %5085 = vrot.lane.b32.xlu0 %v5065, 127
      %v5086 = vpop.permute.xlu0 %5085
      %5087 = vrot.lane.b32.xlu0 %v5066, 127
      %v5088 = vpop.permute.xlu0 %5087
      %5089 = vrot.lane.b32.xlu0 %v5067, 127
      %v5090 = vpop.permute.xlu0 %5089
      %5091 = vrot.lane.b32.xlu0 %v5068, 127
      %v5092 = vpop.permute.xlu0 %5091
      %5093 = vrot.lane.b32.xlu0 %v5069, 127
      %v5094 = vpop.permute.xlu0 %5093
      %5095 = vrot.lane.b32.xlu0 %v5070, 127
      %v5096 = vpop.permute.xlu0 %5095
      %5097 = vrot.lane.b32.xlu0 %v5071, 127
      %v5098 = vpop.permute.xlu0 %5097
      %v5099 = vsel %vm1192, %v5082, %v5084
      %v5100 = vsel %vm1192, %v5084, %v5086
      %v5101 = vsel %vm1192, %v5086, %v5088
      %v5102 = vsel %vm1192, %v5088, %v5090
      %v5103 = vsel %vm1192, %v5090, %v5092
      %v5104 = vsel %vm1192, %v5092, %v5094
      %v5105 = vsel %vm1192, %v5094, %v5096
      %v5106 = vsel %vm1192, %v5096, %v5098
      %5115 = vst [vmem:[#allocation2 + $0x1c0] sm:$0xff] %v5099
      %5116 = vst [vmem:[#allocation2 + $0x1c8] sm:$0xff] %v5100
      %5117 = vst [vmem:[#allocation2 + $0x1d0] sm:$0xff] %v5101
      %5118 = vst [vmem:[#allocation2 + $0x1d8] sm:$0xff] %v5102
      %5119 = vst [vmem:[#allocation2 + $0x1e0] sm:$0xff] %v5103
      %5120 = vst [vmem:[#allocation2 + $0x1e8] sm:$0xff] %v5104
      %5121 = vst [vmem:[#allocation2 + $0x1f0] sm:$0xff] %v5105
      %5122 = vst [vmem:[#allocation2 + $0x1f8] sm:$0xff] %v5106
      %v5123 = vld [vmem:[#allocation3 + $0x8] sm:$0xff]
      %v5124 = vld [vmem:[#allocation3 + $0x10] sm:$0xff]
      %v5125 = vld [vmem:[#allocation3 + $0x18] sm:$0xff]
      %v5126 = vld [vmem:[#allocation3 + $0x20] sm:$0xff]
      %v5127 = vld [vmem:[#allocation3 + $0x28] sm:$0xff]
      %v5128 = vld [vmem:[#allocation3 + $0x30] sm:$0xff]
      %v5129 = vld [vmem:[#allocation3 + $0x38] sm:$0xff]
      %v5130 = vld [vmem:[#allocation3 + $0x40] sm:$0xff]
      %v5131 = vld [vmem:[#allocation3 + $0x48] sm:$0xff]
      %5141 = vrot.lane.b32.xlu0 %v5123, 127
      %v5142 = vpop.permute.xlu0 %5141
      %5143 = vrot.lane.b32.xlu0 %v5124, 127
      %v5144 = vpop.permute.xlu0 %5143
      %5145 = vrot.lane.b32.xlu0 %v5125, 127
      %v5146 = vpop.permute.xlu0 %5145
      %5147 = vrot.lane.b32.xlu0 %v5126, 127
      %v5148 = vpop.permute.xlu0 %5147
      %5149 = vrot.lane.b32.xlu0 %v5127, 127
      %v5150 = vpop.permute.xlu0 %5149
      %5151 = vrot.lane.b32.xlu0 %v5128, 127
      %v5152 = vpop.permute.xlu0 %5151
      %5153 = vrot.lane.b32.xlu0 %v5129, 127
      %v5154 = vpop.permute.xlu0 %5153
      %5155 = vrot.lane.b32.xlu0 %v5130, 127
      %v5156 = vpop.permute.xlu0 %5155
      %5157 = vrot.lane.b32.xlu0 %v5131, 127
      %v5158 = vpop.permute.xlu0 %5157
      %v5159 = vsel %vm342, %v5142, %v5144
      %v5160 = vsel %vm342, %v5144, %v5146
      %v5161 = vsel %vm342, %v5146, %v5148
      %v5162 = vsel %vm342, %v5148, %v5150
      %v5163 = vsel %vm342, %v5150, %v5152
      %v5164 = vsel %vm342, %v5152, %v5154
      %v5165 = vsel %vm342, %v5154, %v5156
      %v5166 = vsel %vm342, %v5156, %v5158
      %v5176 = vpack.c.bf16 %v5159, %v5123
      %v5177 = vpack.c.bf16 %v5160, %v5124
      %v5178 = vpack.c.bf16 %v5161, %v5125
      %v5179 = vpack.c.bf16 %v5162, %v5126
      %v5180 = vpack.c.bf16 %v5163, %v5127
      %v5181 = vpack.c.bf16 %v5164, %v5128
      %v5182 = vpack.c.bf16 %v5165, %v5129
      %v5183 = vpack.c.bf16 %v5166, %v5130
      %v5184 = vpack.c.bf16 %v5158, %v5131
      %5194 = vrot.lane.b32.xlu0 %v5176, 118
      %v5195 = vpop.permute.xlu0 %5194
      %5196 = vrot.lane.b32.xlu0 %v5177, 118
      %v5197 = vpop.permute.xlu0 %5196
      %5198 = vrot.lane.b32.xlu0 %v5178, 118
      %v5199 = vpop.permute.xlu0 %5198
      %5200 = vrot.lane.b32.xlu0 %v5179, 118
      %v5201 = vpop.permute.xlu0 %5200
      %5202 = vrot.lane.b32.xlu0 %v5180, 118
      %v5203 = vpop.permute.xlu0 %5202
      %5204 = vrot.lane.b32.xlu0 %v5181, 118
      %v5205 = vpop.permute.xlu0 %5204
      %5206 = vrot.lane.b32.xlu0 %v5182, 118
      %v5207 = vpop.permute.xlu0 %5206
      %5208 = vrot.lane.b32.xlu0 %v5183, 118
      %v5209 = vpop.permute.xlu0 %5208
      %5210 = vrot.lane.b32.xlu0 %v5184, 118
      %v5211 = vpop.permute.xlu0 %5210
      %v5212 = vsel %vm1306, %v5195, %v5197
      %v5213 = vsel %vm1306, %v5197, %v5199
      %v5214 = vsel %vm1306, %v5199, %v5201
      %v5215 = vsel %vm1306, %v5201, %v5203
      %v5216 = vsel %vm1306, %v5203, %v5205
      %v5217 = vsel %vm1306, %v5205, %v5207
      %v5218 = vsel %vm1306, %v5207, %v5209
      %v5219 = vsel %vm1306, %v5209, %v5211
      %5228 = vst [vmem:[#allocation2 + $0x200] sm:$0xff] %v5212
      %5229 = vst [vmem:[#allocation2 + $0x208] sm:$0xff] %v5213
      %5230 = vst [vmem:[#allocation2 + $0x210] sm:$0xff] %v5214
      %5231 = vst [vmem:[#allocation2 + $0x218] sm:$0xff] %v5215
      %5232 = vst [vmem:[#allocation2 + $0x220] sm:$0xff] %v5216
      %5233 = vst [vmem:[#allocation2 + $0x228] sm:$0xff] %v5217
      %5234 = vst [vmem:[#allocation2 + $0x230] sm:$0xff] %v5218
      %5235 = vst [vmem:[#allocation2 + $0x238] sm:$0xff] %v5219
      %v5236 = vld [vmem:[#allocation3 + $0x8] sm:$0xff]
      %v5237 = vld [vmem:[#allocation3 + $0x10] sm:$0xff]
      %v5238 = vld [vmem:[#allocation3 + $0x18] sm:$0xff]
      %v5239 = vld [vmem:[#allocation3 + $0x20] sm:$0xff]
      %v5240 = vld [vmem:[#allocation3 + $0x28] sm:$0xff]
      %v5241 = vld [vmem:[#allocation3 + $0x30] sm:$0xff]
      %v5242 = vld [vmem:[#allocation3 + $0x38] sm:$0xff]
      %v5243 = vld [vmem:[#allocation3 + $0x40] sm:$0xff]
      %v5244 = vld [vmem:[#allocation3 + $0x48] sm:$0xff]
      %5254 = vrot.lane.b32.xlu0 %v5236, 127
      %v5255 = vpop.permute.xlu0 %5254
      %5256 = vrot.lane.b32.xlu0 %v5237, 127
      %v5257 = vpop.permute.xlu0 %5256
      %5258 = vrot.lane.b32.xlu0 %v5238, 127
      %v5259 = vpop.permute.xlu0 %5258
      %5260 = vrot.lane.b32.xlu0 %v5239, 127
      %v5261 = vpop.permute.xlu0 %5260
      %5262 = vrot.lane.b32.xlu0 %v5240, 127
      %v5263 = vpop.permute.xlu0 %5262
      %5264 = vrot.lane.b32.xlu0 %v5241, 127
      %v5265 = vpop.permute.xlu0 %5264
      %5266 = vrot.lane.b32.xlu0 %v5242, 127
      %v5267 = vpop.permute.xlu0 %5266
      %5268 = vrot.lane.b32.xlu0 %v5243, 127
      %v5269 = vpop.permute.xlu0 %5268
      %5270 = vrot.lane.b32.xlu0 %v5244, 127
      %v5271 = vpop.permute.xlu0 %5270
      %v5272 = vsel %vm342, %v5255, %v5257
      %v5273 = vsel %vm342, %v5257, %v5259
      %v5274 = vsel %vm342, %v5259, %v5261
      %v5275 = vsel %vm342, %v5261, %v5263
      %v5276 = vsel %vm342, %v5263, %v5265
      %v5277 = vsel %vm342, %v5265, %v5267
      %v5278 = vsel %vm342, %v5267, %v5269
      %v5279 = vsel %vm342, %v5269, %v5271
      %v5289 = vpack.c.bf16 %v5272, %v5236
      %v5290 = vpack.c.bf16 %v5273, %v5237
      %v5291 = vpack.c.bf16 %v5274, %v5238
      %v5292 = vpack.c.bf16 %v5275, %v5239
      %v5293 = vpack.c.bf16 %v5276, %v5240
      %v5294 = vpack.c.bf16 %v5277, %v5241
      %v5295 = vpack.c.bf16 %v5278, %v5242
      %v5296 = vpack.c.bf16 %v5279, %v5243
      %v5297 = vpack.c.bf16 %v5271, %v5244
      %5307 = vrot.lane.b32.xlu0 %v5289, 39
      %v5308 = vpop.permute.xlu0 %5307
      %5309 = vrot.lane.b32.xlu0 %v5290, 39
      %v5310 = vpop.permute.xlu0 %5309
      %5311 = vrot.lane.b32.xlu0 %v5291, 39
      %v5312 = vpop.permute.xlu0 %5311
      %5313 = vrot.lane.b32.xlu0 %v5292, 39
      %v5314 = vpop.permute.xlu0 %5313
      %5315 = vrot.lane.b32.xlu0 %v5293, 39
      %v5316 = vpop.permute.xlu0 %5315
      %5317 = vrot.lane.b32.xlu0 %v5294, 39
      %v5318 = vpop.permute.xlu0 %5317
      %5319 = vrot.lane.b32.xlu0 %v5295, 39
      %v5320 = vpop.permute.xlu0 %5319
      %5321 = vrot.lane.b32.xlu0 %v5296, 39
      %v5322 = vpop.permute.xlu0 %5321
      %5323 = vrot.lane.b32.xlu0 %v5297, 39
      %v5324 = vpop.permute.xlu0 %5323
      %v5325 = vsel %vm1420, %v5308, %v5310
      %v5326 = vsel %vm1420, %v5310, %v5312
      %v5327 = vsel %vm1420, %v5312, %v5314
      %v5328 = vsel %vm1420, %v5314, %v5316
      %v5329 = vsel %vm1420, %v5316, %v5318
      %v5330 = vsel %vm1420, %v5318, %v5320
      %v5331 = vsel %vm1420, %v5320, %v5322
      %v5332 = vsel %vm1420, %v5322, %v5324
      %5341 = vst [vmem:[#allocation2 + $0x240] sm:$0xff] %v5325
      %5342 = vst [vmem:[#allocation2 + $0x248] sm:$0xff] %v5326
      %5343 = vst [vmem:[#allocation2 + $0x250] sm:$0xff] %v5327
      %5344 = vst [vmem:[#allocation2 + $0x258] sm:$0xff] %v5328
      %5345 = vst [vmem:[#allocation2 + $0x260] sm:$0xff] %v5329
      %5346 = vst [vmem:[#allocation2 + $0x268] sm:$0xff] %v5330
      %5347 = vst [vmem:[#allocation2 + $0x270] sm:$0xff] %v5331
      %5348 = vst [vmem:[#allocation2 + $0x278] sm:$0xff] %v5332
      %v5349 = vld [vmem:[#allocation3 + $0x8] sm:$0xff]
      %v5350 = vld [vmem:[#allocation3 + $0x10] sm:$0xff]
      %v5351 = vld [vmem:[#allocation3 + $0x18] sm:$0xff]
      %v5352 = vld [vmem:[#allocation3 + $0x20] sm:$0xff]
      %v5353 = vld [vmem:[#allocation3 + $0x28] sm:$0xff]
      %v5354 = vld [vmem:[#allocation3 + $0x30] sm:$0xff]
      %v5355 = vld [vmem:[#allocation3 + $0x38] sm:$0xff]
      %v5356 = vld [vmem:[#allocation3 + $0x40] sm:$0xff]
      %v5357 = vld [vmem:[#allocation3 + $0x48] sm:$0xff]
      %5367 = vrot.lane.b32.xlu0 %v5349, 120
      %v5368 = vpop.permute.xlu0 %5367
      %5369 = vrot.lane.b32.xlu0 %v5350, 120
      %v5370 = vpop.permute.xlu0 %5369
      %5371 = vrot.lane.b32.xlu0 %v5351, 120
      %v5372 = vpop.permute.xlu0 %5371
      %5373 = vrot.lane.b32.xlu0 %v5352, 120
      %v5374 = vpop.permute.xlu0 %5373
      %5375 = vrot.lane.b32.xlu0 %v5353, 120
      %v5376 = vpop.permute.xlu0 %5375
      %5377 = vrot.lane.b32.xlu0 %v5354, 120
      %v5378 = vpop.permute.xlu0 %5377
      %5379 = vrot.lane.b32.xlu0 %v5355, 120
      %v5380 = vpop.permute.xlu0 %5379
      %5381 = vrot.lane.b32.xlu0 %v5356, 120
      %v5382 = vpop.permute.xlu0 %5381
      %5383 = vrot.lane.b32.xlu0 %v5357, 120
      %v5384 = vpop.permute.xlu0 %5383
      %v5385 = vsel %vm457, %v5368, %v5370
      %v5386 = vsel %vm457, %v5370, %v5372
      %v5387 = vsel %vm457, %v5372, %v5374
      %v5388 = vsel %vm457, %v5374, %v5376
      %v5389 = vsel %vm457, %v5376, %v5378
      %v5390 = vsel %vm457, %v5378, %v5380
      %v5391 = vsel %vm457, %v5380, %v5382
      %v5392 = vsel %vm457, %v5382, %v5384
      %v5402 = vpack.c.bf16 %v5385, %v5349
      %v5403 = vpack.c.bf16 %v5386, %v5350
      %v5404 = vpack.c.bf16 %v5387, %v5351
      %v5405 = vpack.c.bf16 %v5388, %v5352
      %v5406 = vpack.c.bf16 %v5389, %v5353
      %v5407 = vpack.c.bf16 %v5390, %v5354
      %v5408 = vpack.c.bf16 %v5391, %v5355
      %v5409 = vpack.c.bf16 %v5392, %v5356
      %v5410 = vpack.c.bf16 %v5384, %v5357
      %5420 = vrot.lane.b32.xlu0 %v5402, 37
      %v5421 = vpop.permute.xlu0 %5420
      %5422 = vrot.lane.b32.xlu0 %v5403, 37
      %v5423 = vpop.permute.xlu0 %5422
      %5424 = vrot.lane.b32.xlu0 %v5404, 37
      %v5425 = vpop.permute.xlu0 %5424
      %5426 = vrot.lane.b32.xlu0 %v5405, 37
      %v5427 = vpop.permute.xlu0 %5426
      %5428 = vrot.lane.b32.xlu0 %v5406, 37
      %v5429 = vpop.permute.xlu0 %5428
      %5430 = vrot.lane.b32.xlu0 %v5407, 37
      %v5431 = vpop.permute.xlu0 %5430
      %5432 = vrot.lane.b32.xlu0 %v5408, 37
      %v5433 = vpop.permute.xlu0 %5432
      %5434 = vrot.lane.b32.xlu0 %v5409, 37
      %v5435 = vpop.permute.xlu0 %5434
      %5436 = vrot.lane.b32.xlu0 %v5410, 37
      %v5437 = vpop.permute.xlu0 %5436
      %v5438 = vsel %vm1534, %v5421, %v5423
      %v5439 = vsel %vm1534, %v5423, %v5425
      %v5440 = vsel %vm1534, %v5425, %v5427
      %v5441 = vsel %vm1534, %v5427, %v5429
      %v5442 = vsel %vm1534, %v5429, %v5431
      %v5443 = vsel %vm1534, %v5431, %v5433
      %v5444 = vsel %vm1534, %v5433, %v5435
      %v5445 = vsel %vm1534, %v5435, %v5437
      %5454 = vst [vmem:[#allocation2 + $0x280] sm:$0xff] %v5438
      %5455 = vst [vmem:[#allocation2 + $0x288] sm:$0xff] %v5439
      %5456 = vst [vmem:[#allocation2 + $0x290] sm:$0xff] %v5440
      %5457 = vst [vmem:[#allocation2 + $0x298] sm:$0xff] %v5441
      %5458 = vst [vmem:[#allocation2 + $0x2a0] sm:$0xff] %v5442
      %5459 = vst [vmem:[#allocation2 + $0x2a8] sm:$0xff] %v5443
      %5460 = vst [vmem:[#allocation2 + $0x2b0] sm:$0xff] %v5444
      %5461 = vst [vmem:[#allocation2 + $0x2b8] sm:$0xff] %v5445
      %v5462 = vld [vmem:[#allocation3 + $0x8] sm:$0xff]
      %v5463 = vld [vmem:[#allocation3 + $0x10] sm:$0xff]
      %v5464 = vld [vmem:[#allocation3 + $0x18] sm:$0xff]
      %v5465 = vld [vmem:[#allocation3 + $0x20] sm:$0xff]
      %v5466 = vld [vmem:[#allocation3 + $0x28] sm:$0xff]
      %v5467 = vld [vmem:[#allocation3 + $0x30] sm:$0xff]
      %v5468 = vld [vmem:[#allocation3 + $0x38] sm:$0xff]
      %v5469 = vld [vmem:[#allocation3 + $0x40] sm:$0xff]
      %v5470 = vld [vmem:[#allocation3 + $0x48] sm:$0xff]
      %5480 = vrot.lane.b32.xlu0 %v5462, 127
      %v5481 = vpop.permute.xlu0 %5480
      %5482 = vrot.lane.b32.xlu0 %v5463, 127
      %v5483 = vpop.permute.xlu0 %5482
      %5484 = vrot.lane.b32.xlu0 %v5464, 127
      %v5485 = vpop.permute.xlu0 %5484
      %5486 = vrot.lane.b32.xlu0 %v5465, 127
      %v5487 = vpop.permute.xlu0 %5486
      %5488 = vrot.lane.b32.xlu0 %v5466, 127
      %v5489 = vpop.permute.xlu0 %5488
      %5490 = vrot.lane.b32.xlu0 %v5467, 127
      %v5491 = vpop.permute.xlu0 %5490
      %5492 = vrot.lane.b32.xlu0 %v5468, 127
      %v5493 = vpop.permute.xlu0 %5492
      %5494 = vrot.lane.b32.xlu0 %v5469, 127
      %v5495 = vpop.permute.xlu0 %5494
      %5496 = vrot.lane.b32.xlu0 %v5470, 127
      %v5497 = vpop.permute.xlu0 %5496
      %v5498 = vsel %vm342, %v5481, %v5483
      %v5499 = vsel %vm342, %v5483, %v5485
      %v5500 = vsel %vm342, %v5485, %v5487
      %v5501 = vsel %vm342, %v5487, %v5489
      %v5502 = vsel %vm342, %v5489, %v5491
      %v5503 = vsel %vm342, %v5491, %v5493
      %v5504 = vsel %vm342, %v5493, %v5495
      %v5505 = vsel %vm342, %v5495, %v5497
      %v5515 = vpack.c.bf16 %v5498, %v5462
      %v5516 = vpack.c.bf16 %v5499, %v5463
      %v5517 = vpack.c.bf16 %v5500, %v5464
      %v5518 = vpack.c.bf16 %v5501, %v5465
      %v5519 = vpack.c.bf16 %v5502, %v5466
      %v5520 = vpack.c.bf16 %v5503, %v5467
      %v5521 = vpack.c.bf16 %v5504, %v5468
      %v5522 = vpack.c.bf16 %v5505, %v5469
      %v5523 = vpack.c.bf16 %v5497, %v5470
      %5533 = vrot.lane.b32.xlu0 %v5515, 28
      %v5534 = vpop.permute.xlu0 %5533
      %5535 = vrot.lane.b32.xlu0 %v5516, 28
      %v5536 = vpop.permute.xlu0 %5535
      %5537 = vrot.lane.b32.xlu0 %v5517, 28
      %v5538 = vpop.permute.xlu0 %5537
      %5539 = vrot.lane.b32.xlu0 %v5518, 28
      %v5540 = vpop.permute.xlu0 %5539
      %5541 = vrot.lane.b32.xlu0 %v5519, 28
      %v5542 = vpop.permute.xlu0 %5541
      %5543 = vrot.lane.b32.xlu0 %v5520, 28
      %v5544 = vpop.permute.xlu0 %5543
      %5545 = vrot.lane.b32.xlu0 %v5521, 28
      %v5546 = vpop.permute.xlu0 %5545
      %5547 = vrot.lane.b32.xlu0 %v5522, 28
      %v5548 = vpop.permute.xlu0 %5547
      %5549 = vrot.lane.b32.xlu0 %v5523, 28
      %v5550 = vpop.permute.xlu0 %5549
      %v5551 = vsel %vm1648, %v5534, %v5536
      %v5552 = vsel %vm1648, %v5536, %v5538
      %v5553 = vsel %vm1648, %v5538, %v5540
      %v5554 = vsel %vm1648, %v5540, %v5542
      %v5555 = vsel %vm1648, %v5542, %v5544
      %v5556 = vsel %vm1648, %v5544, %v5546
      %v5557 = vsel %vm1648, %v5546, %v5548
      %v5558 = vsel %vm1648, %v5548, %v5550
      %5567 = vst [vmem:[#allocation2 + $0x2c0] sm:$0xff] %v5551
      %5568 = vst [vmem:[#allocation2 + $0x2c8] sm:$0xff] %v5552
      %5569 = vst [vmem:[#allocation2 + $0x2d0] sm:$0xff] %v5553
      %5570 = vst [vmem:[#allocation2 + $0x2d8] sm:$0xff] %v5554
      %5571 = vst [vmem:[#allocation2 + $0x2e0] sm:$0xff] %v5555
      %5572 = vst [vmem:[#allocation2 + $0x2e8] sm:$0xff] %v5556
      %5573 = vst [vmem:[#allocation2 + $0x2f0] sm:$0xff] %v5557
      %5574 = vst [vmem:[#allocation2 + $0x2f8] sm:$0xff] %v5558
      %v5575 = vld [vmem:[#allocation3 + $0x8] sm:$0xff]
      %v5576 = vld [vmem:[#allocation3 + $0x10] sm:$0xff]
      %v5577 = vld [vmem:[#allocation3 + $0x18] sm:$0xff]
      %v5578 = vld [vmem:[#allocation3 + $0x20] sm:$0xff]
      %v5579 = vld [vmem:[#allocation3 + $0x28] sm:$0xff]
      %v5580 = vld [vmem:[#allocation3 + $0x30] sm:$0xff]
      %v5581 = vld [vmem:[#allocation3 + $0x38] sm:$0xff]
      %v5582 = vld [vmem:[#allocation3 + $0x40] sm:$0xff]
      %v5583 = vld [vmem:[#allocation3 + $0x48] sm:$0xff]
      %5593 = vrot.lane.b32.xlu0 %v5575, 127
      %v5594 = vpop.permute.xlu0 %5593
      %5595 = vrot.lane.b32.xlu0 %v5576, 127
      %v5596 = vpop.permute.xlu0 %5595
      %5597 = vrot.lane.b32.xlu0 %v5577, 127
      %v5598 = vpop.permute.xlu0 %5597
      %5599 = vrot.lane.b32.xlu0 %v5578, 127
      %v5600 = vpop.permute.xlu0 %5599
      %5601 = vrot.lane.b32.xlu0 %v5579, 127
      %v5602 = vpop.permute.xlu0 %5601
      %5603 = vrot.lane.b32.xlu0 %v5580, 127
      %v5604 = vpop.permute.xlu0 %5603
      %5605 = vrot.lane.b32.xlu0 %v5581, 127
      %v5606 = vpop.permute.xlu0 %5605
      %5607 = vrot.lane.b32.xlu0 %v5582, 127
      %v5608 = vpop.permute.xlu0 %5607
      %5609 = vrot.lane.b32.xlu0 %v5583, 127
      %v5610 = vpop.permute.xlu0 %5609
      %v5611 = vsel %vm342, %v5594, %v5596
      %v5612 = vsel %vm342, %v5596, %v5598
      %v5613 = vsel %vm342, %v5598, %v5600
      %v5614 = vsel %vm342, %v5600, %v5602
      %v5615 = vsel %vm342, %v5602, %v5604
      %v5616 = vsel %vm342, %v5604, %v5606
      %v5617 = vsel %vm342, %v5606, %v5608
      %v5618 = vsel %vm342, %v5608, %v5610
      %v5628 = vpack.c.bf16 %v5611, %v5575
      %v5629 = vpack.c.bf16 %v5612, %v5576
      %v5630 = vpack.c.bf16 %v5613, %v5577
      %v5631 = vpack.c.bf16 %v5614, %v5578
      %v5632 = vpack.c.bf16 %v5615, %v5579
      %v5633 = vpack.c.bf16 %v5616, %v5580
      %v5634 = vpack.c.bf16 %v5617, %v5581
      %v5635 = vpack.c.bf16 %v5618, %v5582
      %v5636 = vpack.c.bf16 %v5610, %v5583
      %5646 = vrot.lane.b32.xlu0 %v5628, 19
      %v5647 = vpop.permute.xlu0 %5646
      %5648 = vrot.lane.b32.xlu0 %v5629, 19
      %v5649 = vpop.permute.xlu0 %5648
      %5650 = vrot.lane.b32.xlu0 %v5630, 19
      %v5651 = vpop.permute.xlu0 %5650
      %5652 = vrot.lane.b32.xlu0 %v5631, 19
      %v5653 = vpop.permute.xlu0 %5652
      %5654 = vrot.lane.b32.xlu0 %v5632, 19
      %v5655 = vpop.permute.xlu0 %5654
      %5656 = vrot.lane.b32.xlu0 %v5633, 19
      %v5657 = vpop.permute.xlu0 %5656
      %5658 = vrot.lane.b32.xlu0 %v5634, 19
      %v5659 = vpop.permute.xlu0 %5658
      %5660 = vrot.lane.b32.xlu0 %v5635, 19
      %v5661 = vpop.permute.xlu0 %5660
      %5662 = vrot.lane.b32.xlu0 %v5636, 19
      %v5663 = vpop.permute.xlu0 %5662
      %v5664 = vsel %vm1762, %v5647, %v5649
      %v5665 = vsel %vm1762, %v5649, %v5651
      %v5666 = vsel %vm1762, %v5651, %v5653
      %v5667 = vsel %vm1762, %v5653, %v5655
      %v5668 = vsel %vm1762, %v5655, %v5657
      %v5669 = vsel %vm1762, %v5657, %v5659
      %v5670 = vsel %vm1762, %v5659, %v5661
      %v5671 = vsel %vm1762, %v5661, %v5663
      %5680 = vst [vmem:[#allocation2 + $0x300] sm:$0xff] %v5664
      %5681 = vst [vmem:[#allocation2 + $0x308] sm:$0xff] %v5665
      %5682 = vst [vmem:[#allocation2 + $0x310] sm:$0xff] %v5666
      %5683 = vst [vmem:[#allocation2 + $0x318] sm:$0xff] %v5667
      %5684 = vst [vmem:[#allocation2 + $0x320] sm:$0xff] %v5668
      %5685 = vst [vmem:[#allocation2 + $0x328] sm:$0xff] %v5669
      %5686 = vst [vmem:[#allocation2 + $0x330] sm:$0xff] %v5670
      %5687 = vst [vmem:[#allocation2 + $0x338] sm:$0xff] %v5671
      %v5688 = vld [vmem:[#allocation3 + $0x8] sm:$0xff]
      %v5689 = vld [vmem:[#allocation3 + $0x10] sm:$0xff]
      %v5690 = vld [vmem:[#allocation3 + $0x18] sm:$0xff]
      %v5691 = vld [vmem:[#allocation3 + $0x20] sm:$0xff]
      %v5692 = vld [vmem:[#allocation3 + $0x28] sm:$0xff]
      %v5693 = vld [vmem:[#allocation3 + $0x30] sm:$0xff]
      %v5694 = vld [vmem:[#allocation3 + $0x38] sm:$0xff]
      %v5695 = vld [vmem:[#allocation3 + $0x40] sm:$0xff]
      %v5696 = vld [vmem:[#allocation3 + $0x48] sm:$0xff]
      %v5697 = vpack.c.bf16 0.0, %v5688
      %v5698 = vpack.c.bf16 0.0, %v5689
      %v5699 = vpack.c.bf16 0.0, %v5690
      %v5700 = vpack.c.bf16 0.0, %v5691
      %v5701 = vpack.c.bf16 0.0, %v5692
      %v5702 = vpack.c.bf16 0.0, %v5693
      %v5703 = vpack.c.bf16 0.0, %v5694
      %v5704 = vpack.c.bf16 0.0, %v5695
      %v5705 = vpack.c.bf16 0.0, %v5696
      %5715 = vrot.lane.b32.xlu0 %v5697, 17
      %v5716 = vpop.permute.xlu0 %5715
      %5717 = vrot.lane.b32.xlu0 %v5698, 17
      %v5718 = vpop.permute.xlu0 %5717
      %5719 = vrot.lane.b32.xlu0 %v5699, 17
      %v5720 = vpop.permute.xlu0 %5719
      %5721 = vrot.lane.b32.xlu0 %v5700, 17
      %v5722 = vpop.permute.xlu0 %5721
      %5723 = vrot.lane.b32.xlu0 %v5701, 17
      %v5724 = vpop.permute.xlu0 %5723
      %5725 = vrot.lane.b32.xlu0 %v5702, 17
      %v5726 = vpop.permute.xlu0 %5725
      %5727 = vrot.lane.b32.xlu0 %v5703, 17
      %v5728 = vpop.permute.xlu0 %5727
      %5729 = vrot.lane.b32.xlu0 %v5704, 17
      %v5730 = vpop.permute.xlu0 %5729
      %5731 = vrot.lane.b32.xlu0 %v5705, 17
      %v5732 = vpop.permute.xlu0 %5731
      %v5733 = vsel %vm1832, %v5716, %v5718
      %v5734 = vsel %vm1832, %v5718, %v5720
      %v5735 = vsel %vm1832, %v5720, %v5722
      %v5736 = vsel %vm1832, %v5722, %v5724
      %v5737 = vsel %vm1832, %v5724, %v5726
      %v5738 = vsel %vm1832, %v5726, %v5728
      %v5739 = vsel %vm1832, %v5728, %v5730
      %v5740 = vsel %vm1832, %v5730, %v5732
      %5749 = vst [vmem:[#allocation2 + $0x340] sm:$0xff] %v5733
      %5750 = vst [vmem:[#allocation2 + $0x348] sm:$0xff] %v5734
      %5751 = vst [vmem:[#allocation2 + $0x350] sm:$0xff] %v5735
      %5752 = vst [vmem:[#allocation2 + $0x358] sm:$0xff] %v5736
      %5753 = vst [vmem:[#allocation2 + $0x360] sm:$0xff] %v5737
      %5754 = vst [vmem:[#allocation2 + $0x368] sm:$0xff] %v5738
      %5755 = vst [vmem:[#allocation2 + $0x370] sm:$0xff] %v5739
      %5756 = vst [vmem:[#allocation2 + $0x378] sm:$0xff] %v5740
      %v5757 = vld [vmem:[%s4] sm:$0xff]
      %v5758 = vld [vmem:[#allocation2] sm:$0xff]
      %v5759 = vld [vmem:[#allocation2 + $0x8] sm:$0xff]
      %v5760 = vld [vmem:[#allocation2 + $0x10] sm:$0xff]
      %v5761 = vld [vmem:[#allocation2 + $0x18] sm:$0xff]
      %v5762 = vld [vmem:[#allocation2 + $0x20] sm:$0xff]
      %v5763 = vld [vmem:[#allocation2 + $0x28] sm:$0xff]
      %v5764 = vld [vmem:[#allocation2 + $0x30] sm:$0xff]
      %v5765 = vld [vmem:[#allocation2 + $0x38] sm:$0xff]
      %v5766 = vld [vmem:[#allocation2 + $0x40] sm:$0xff]
      %v5767 = vld [vmem:[#allocation2 + $0x48] sm:$0xff]
      %v5768 = vld [vmem:[#allocation2 + $0x50] sm:$0xff]
      %v5769 = vld [vmem:[#allocation2 + $0x58] sm:$0xff]
      %v5770 = vld [vmem:[#allocation2 + $0x60] sm:$0xff]
      %v5771 = vld [vmem:[#allocation2 + $0x68] sm:$0xff]
      %v5772 = vld [vmem:[#allocation2 + $0x70] sm:$0xff]
      %v5773 = vld [vmem:[#allocation2 + $0x78] sm:$0xff]
      %v5774 = vld [vmem:[#allocation2 + $0x80] sm:$0xff]
      %v5775 = vld [vmem:[#allocation2 + $0x88] sm:$0xff]
      %v5776 = vld [vmem:[#allocation2 + $0x90] sm:$0xff]
      %v5777 = vld [vmem:[#allocation2 + $0x98] sm:$0xff]
      %v5778 = vld [vmem:[#allocation2 + $0xa0] sm:$0xff]
      %v5779 = vld [vmem:[#allocation2 + $0xa8] sm:$0xff]
      %v5780 = vld [vmem:[#allocation2 + $0xb0] sm:$0xff]
      %v5781 = vld [vmem:[#allocation2 + $0xb8] sm:$0xff]
      %v5782 = vld [vmem:[#allocation2 + $0xc0] sm:$0xff]
      %v5783 = vld [vmem:[#allocation2 + $0xc8] sm:$0xff]
      %v5784 = vld [vmem:[#allocation2 + $0xd0] sm:$0xff]
      %v5785 = vld [vmem:[#allocation2 + $0xd8] sm:$0xff]
      %v5786 = vld [vmem:[#allocation2 + $0xe0] sm:$0xff]
      %v5787 = vld [vmem:[#allocation2 + $0xe8] sm:$0xff]
      %v5788 = vld [vmem:[#allocation2 + $0xf0] sm:$0xff]
      %v5789 = vld [vmem:[#allocation2 + $0xf8] sm:$0xff]
      %v5790 = vld [vmem:[#allocation2 + $0x100] sm:$0xff]
      %v5791 = vld [vmem:[#allocation2 + $0x108] sm:$0xff]
      %v5792 = vld [vmem:[#allocation2 + $0x110] sm:$0xff]
      %v5793 = vld [vmem:[#allocation2 + $0x118] sm:$0xff]
      %v5794 = vld [vmem:[#allocation2 + $0x120] sm:$0xff]
      %v5795 = vld [vmem:[#allocation2 + $0x128] sm:$0xff]
      %v5796 = vld [vmem:[#allocation2 + $0x130] sm:$0xff]
      %v5797 = vld [vmem:[#allocation2 + $0x138] sm:$0xff]
      %v5798 = vld [vmem:[#allocation2 + $0x140] sm:$0xff]
      %v5799 = vld [vmem:[#allocation2 + $0x148] sm:$0xff]
      %v5800 = vld [vmem:[#allocation2 + $0x150] sm:$0xff]
      %v5801 = vld [vmem:[#allocation2 + $0x158] sm:$0xff]
      %v5802 = vld [vmem:[#allocation2 + $0x160] sm:$0xff]
      %v5803 = vld [vmem:[#allocation2 + $0x168] sm:$0xff]
      %v5804 = vld [vmem:[#allocation2 + $0x170] sm:$0xff]
      %v5805 = vld [vmem:[#allocation2 + $0x178] sm:$0xff]
      %v5806 = vld [vmem:[#allocation2 + $0x180] sm:$0xff]
      %v5807 = vld [vmem:[#allocation2 + $0x188] sm:$0xff]
      %v5808 = vld [vmem:[#allocation2 + $0x190] sm:$0xff]
      %v5809 = vld [vmem:[#allocation2 + $0x198] sm:$0xff]
      %v5810 = vld [vmem:[#allocation2 + $0x1a0] sm:$0xff]
      %v5811 = vld [vmem:[#allocation2 + $0x1a8] sm:$0xff]
      %v5812 = vld [vmem:[#allocation2 + $0x1b0] sm:$0xff]
      %v5813 = vld [vmem:[#allocation2 + $0x1b8] sm:$0xff]
      %v5814 = vld [vmem:[#allocation2 + $0x1c0] sm:$0xff]
      %v5815 = vld [vmem:[#allocation2 + $0x1c8] sm:$0xff]
      %v5816 = vld [vmem:[#allocation2 + $0x1d0] sm:$0xff]
      %v5817 = vld [vmem:[#allocation2 + $0x1d8] sm:$0xff]
      %v5818 = vld [vmem:[#allocation2 + $0x1e0] sm:$0xff]
      %v5819 = vld [vmem:[#allocation2 + $0x1e8] sm:$0xff]
      %v5820 = vld [vmem:[#allocation2 + $0x1f0] sm:$0xff]
      %v5821 = vld [vmem:[#allocation2 + $0x1f8] sm:$0xff]
      %v5822 = vld [vmem:[#allocation2 + $0x200] sm:$0xff]
      %v5823 = vld [vmem:[#allocation2 + $0x208] sm:$0xff]
      %v5824 = vld [vmem:[#allocation2 + $0x210] sm:$0xff]
      %v5825 = vld [vmem:[#allocation2 + $0x218] sm:$0xff]
      %v5826 = vld [vmem:[#allocation2 + $0x220] sm:$0xff]
      %v5827 = vld [vmem:[#allocation2 + $0x228] sm:$0xff]
      %v5828 = vld [vmem:[#allocation2 + $0x230] sm:$0xff]
      %v5829 = vld [vmem:[#allocation2 + $0x238] sm:$0xff]
      %v5830 = vld [vmem:[#allocation2 + $0x240] sm:$0xff]
      %v5831 = vld [vmem:[#allocation2 + $0x248] sm:$0xff]
      %v5832 = vld [vmem:[#allocation2 + $0x250] sm:$0xff]
      %v5833 = vld [vmem:[#allocation2 + $0x258] sm:$0xff]
      %v5834 = vld [vmem:[#allocation2 + $0x260] sm:$0xff]
      %v5835 = vld [vmem:[#allocation2 + $0x268] sm:$0xff]
      %v5836 = vld [vmem:[#allocation2 + $0x270] sm:$0xff]
      %v5837 = vld [vmem:[#allocation2 + $0x278] sm:$0xff]
      %v5838 = vld [vmem:[#allocation2 + $0x280] sm:$0xff]
      %v5839 = vld [vmem:[#allocation2 + $0x288] sm:$0xff]
      %v5840 = vld [vmem:[#allocation2 + $0x290] sm:$0xff]
      %v5841 = vld [vmem:[#allocation2 + $0x298] sm:$0xff]
      %v5842 = vld [vmem:[#allocation2 + $0x2a0] sm:$0xff]
      %v5843 = vld [vmem:[#allocation2 + $0x2a8] sm:$0xff]
      %v5844 = vld [vmem:[#allocation2 + $0x2b0] sm:$0xff]
      %v5845 = vld [vmem:[#allocation2 + $0x2b8] sm:$0xff]
      %v5846 = vld [vmem:[#allocation2 + $0x2c0] sm:$0xff]
      %v5847 = vld [vmem:[#allocation2 + $0x2c8] sm:$0xff]
      %v5848 = vld [vmem:[#allocation2 + $0x2d0] sm:$0xff]
      %v5849 = vld [vmem:[#allocation2 + $0x2d8] sm:$0xff]
      %v5850 = vld [vmem:[#allocation2 + $0x2e0] sm:$0xff]
      %v5851 = vld [vmem:[#allocation2 + $0x2e8] sm:$0xff]
      %v5852 = vld [vmem:[#allocation2 + $0x2f0] sm:$0xff]
      %v5853 = vld [vmem:[#allocation2 + $0x2f8] sm:$0xff]
      %v5854 = vld [vmem:[#allocation2 + $0x300] sm:$0xff]
      %v5855 = vld [vmem:[#allocation2 + $0x308] sm:$0xff]
      %v5856 = vld [vmem:[#allocation2 + $0x310] sm:$0xff]
      %v5857 = vld [vmem:[#allocation2 + $0x318] sm:$0xff]
      %v5858 = vld [vmem:[#allocation2 + $0x320] sm:$0xff]
      %v5859 = vld [vmem:[#allocation2 + $0x328] sm:$0xff]
      %v5860 = vld [vmem:[#allocation2 + $0x330] sm:$0xff]
      %v5861 = vld [vmem:[#allocation2 + $0x338] sm:$0xff]
      %v5862 = vld [vmem:[#allocation2 + $0x340] sm:$0xff]
      %v5863 = vld [vmem:[#allocation2 + $0x348] sm:$0xff]
      %v5864 = vld [vmem:[#allocation2 + $0x350] sm:$0xff]
      %v5865 = vld [vmem:[#allocation2 + $0x358] sm:$0xff]
      %v5866 = vld [vmem:[#allocation2 + $0x360] sm:$0xff]
      %v5867 = vld [vmem:[#allocation2 + $0x368] sm:$0xff]
      %v5868 = vld [vmem:[#allocation2 + $0x370] sm:$0xff]
      %v5869 = vld [vmem:[#allocation2 + $0x378] sm:$0xff]
      %5870 = vset.pattern.permute.xlu0 6
      %5871 = vperm.xlu0 %5870, %v295
      %v5872 = vpop.permute.xlu0 %5871
      %v5875 = vunpack.c.l.b16 %v5757
      %v5876 = vunpack.c.h.b16 %v5757
      %v5877 = vpack.c.b16 %v5875, %v5875
      %v5878 = vpack.c.b16 %v5876, %v5876
      %v5881 = vsel %vm1981, %v5878, 0
      %5883 = vmatprep.subr.bf16.mxu0 %v5759
      %5884 = vmatpush1.bf16.msra.mxu0 %v5758
      %5885 = vmatprep.subr.bf16.mxu0 %v5767
      %5886 = vmatpush1.bf16.msra.mxu0 %v5766
      %5887 = vmatprep.subr.bf16.mxu0 %v5775
      %5888 = vmatpush1.bf16.msra.mxu0 %v5774
      %5889 = vmatprep.subr.bf16.mxu0 %v5783
      %5890 = vmatpush1.bf16.msra.mxu0 %v5782
      %5891 = vmatprep.subr.bf16.mxu0 %v5791
      %5892 = vmatpush1.bf16.msra.mxu0 %v5790
      %5893 = vmatprep.subr.bf16.mxu0 %v5799
      %5894 = vmatpush1.bf16.msra.mxu0 %v5798
      %5895 = vmatprep.subr.bf16.mxu0 %v5807
      %5896 = vmatpush1.bf16.msra.mxu0 %v5806
      %5897 = vmatprep.subr.bf16.mxu0 %v5815
      %5898 = vmatpush1.bf16.msra.mxu0 %v5814
      %5899 = vmatprep.subr.bf16.mxu0 %v5823
      %5900 = vmatpush1.bf16.msra.mxu0 %v5822
      %5901 = vmatprep.subr.bf16.mxu0 %v5831
      %5902 = vmatpush1.bf16.msra.mxu0 %v5830
      %5903 = vmatprep.subr.bf16.mxu0 %v5839
      %5904 = vmatpush1.bf16.msra.mxu0 %v5838
      %5905 = vmatprep.subr.bf16.mxu0 %v5847
      %5906 = vmatpush1.bf16.msra.mxu0 %v5846
      %5907 = vmatprep.subr.bf16.mxu0 %v5855
      %5908 = vmatpush1.bf16.msra.mxu0 %v5854
      %5909 = vmatprep.subr.bf16.mxu0 %v5863
      %5910 = vmatpush1.bf16.msra.mxu0 %v5862
      %5911 = vmatprep.subr.bf16.mxu0 0
      %5912 = vmatpush1.bf16.msra.mxu0 0
      %5913 = vmatprep.subr.bf16.mxu0 0
      %5914 = vmatpush1.bf16.msra.mxu0 0
      %5915 = vmatprep.mubr.bf16.mxu0 %v5881
      %5916 = vmatmul.mubr.bf16.gmra.mrb[0].mxu0 %v5877
      %v5917 = vpop.f32.mrb[0].mxu0
      %v5918 = vadd.f32 %v5872, %v5917
      %v5919 = vpop.f32.mrb[0].mxu0
      %v5920 = vadd.f32 %v5872, %v5919
      %v5921 = vpop.f32.mrb[0].mxu0
      %v5922 = vpop.f32.mrb[0].mxu0
      %5923 = vdwg.mxu0
      %5924 = vmatprep.subr.bf16.mxu0 %v5761
      %5925 = vmatpush1.bf16.msra.mxu0 %v5760
      %5926 = vmatprep.subr.bf16.mxu0 %v5769
      %5927 = vmatpush1.bf16.msra.mxu0 %v5768
      %5928 = vmatprep.subr.bf16.mxu0 %v5777
      %5929 = vmatpush1.bf16.msra.mxu0 %v5776
      %5930 = vmatprep.subr.bf16.mxu0 %v5785
      %5931 = vmatpush1.bf16.msra.mxu0 %v5784
      %5932 = vmatprep.subr.bf16.mxu0 %v5793
      %5933 = vmatpush1.bf16.msra.mxu0 %v5792
      %5934 = vmatprep.subr.bf16.mxu0 %v5801
      %5935 = vmatpush1.bf16.msra.mxu0 %v5800
      %5936 = vmatprep.subr.bf16.mxu0 %v5809
      %5937 = vmatpush1.bf16.msra.mxu0 %v5808
      %5938 = vmatprep.subr.bf16.mxu0 %v5817
      %5939 = vmatpush1.bf16.msra.mxu0 %v5816
      %5940 = vmatprep.subr.bf16.mxu0 %v5825
      %5941 = vmatpush1.bf16.msra.mxu0 %v5824
      %5942 = vmatprep.subr.bf16.mxu0 %v5833
      %5943 = vmatpush1.bf16.msra.mxu0 %v5832
      %5944 = vmatprep.subr.bf16.mxu0 %v5841
      %5945 = vmatpush1.bf16.msra.mxu0 %v5840
      %5946 = vmatprep.subr.bf16.mxu0 %v5849
      %5947 = vmatpush1.bf16.msra.mxu0 %v5848
      %5948 = vmatprep.subr.bf16.mxu0 %v5857
      %5949 = vmatpush1.bf16.msra.mxu0 %v5856
      %5950 = vmatprep.subr.bf16.mxu0 %v5865
      %5951 = vmatpush1.bf16.msra.mxu0 %v5864
      %5952 = vmatprep.subr.bf16.mxu0 0
      %5953 = vmatpush1.bf16.msra.mxu0 0
      %5954 = vmatprep.subr.bf16.mxu0 0
      %5955 = vmatpush1.bf16.msra.mxu0 0
      %5956 = vmatprep.mubr.bf16.mxu0 %v5881
      %5957 = vmatmul.mubr.bf16.gmra.mrb[0].mxu0 %v5877
      %v5958 = vpop.f32.mrb[0].mxu0
      %v5959 = vadd.f32 %v5872, %v5958
      %v5960 = vpop.f32.mrb[0].mxu0
      %v5961 = vadd.f32 %v5872, %v5960
      %v5962 = vpop.f32.mrb[0].mxu0
      %v5963 = vpop.f32.mrb[0].mxu0
      %5964 = vdwg.mxu0
      %5965 = vmatprep.subr.bf16.mxu0 %v5763
      %5966 = vmatpush1.bf16.msra.mxu0 %v5762
      %5967 = vmatprep.subr.bf16.mxu0 %v5771
      %5968 = vmatpush1.bf16.msra.mxu0 %v5770
      %5969 = vmatprep.subr.bf16.mxu0 %v5779
      %5970 = vmatpush1.bf16.msra.mxu0 %v5778
      %5971 = vmatprep.subr.bf16.mxu0 %v5787
      %5972 = vmatpush1.bf16.msra.mxu0 %v5786
      %5973 = vmatprep.subr.bf16.mxu0 %v5795
      %5974 = vmatpush1.bf16.msra.mxu0 %v5794
      %5975 = vmatprep.subr.bf16.mxu0 %v5803
      %5976 = vmatpush1.bf16.msra.mxu0 %v5802
      %5977 = vmatprep.subr.bf16.mxu0 %v5811
      %5978 = vmatpush1.bf16.msra.mxu0 %v5810
      %5979 = vmatprep.subr.bf16.mxu0 %v5819
      %5980 = vmatpush1.bf16.msra.mxu0 %v5818
      %5981 = vmatprep.subr.bf16.mxu0 %v5827
      %5982 = vmatpush1.bf16.msra.mxu0 %v5826
      %5983 = vmatprep.subr.bf16.mxu0 %v5835
      %5984 = vmatpush1.bf16.msra.mxu0 %v5834
      %5985 = vmatprep.subr.bf16.mxu0 %v5843
      %5986 = vmatpush1.bf16.msra.mxu0 %v5842
      %5987 = vmatprep.subr.bf16.mxu0 %v5851
      %5988 = vmatpush1.bf16.msra.mxu0 %v5850
      %5989 = vmatprep.subr.bf16.mxu0 %v5859
      %5990 = vmatpush1.bf16.msra.mxu0 %v5858
      %5991 = vmatprep.subr.bf16.mxu0 %v5867
      %5992 = vmatpush1.bf16.msra.mxu0 %v5866
      %5993 = vmatprep.subr.bf16.mxu0 0
      %5994 = vmatpush1.bf16.msra.mxu0 0
      %5995 = vmatprep.subr.bf16.mxu0 0
      %5996 = vmatpush1.bf16.msra.mxu0 0
      %5997 = vmatprep.mubr.bf16.mxu0 %v5881
      %5998 = vmatmul.mubr.bf16.gmra.mrb[0].mxu0 %v5877
      %v5999 = vpop.f32.mrb[0].mxu0
      %v6000 = vadd.f32 %v5872, %v5999
      %v6001 = vpop.f32.mrb[0].mxu0
      %v6002 = vadd.f32 %v5872, %v6001
      %v6003 = vpop.f32.mrb[0].mxu0
      %v6004 = vpop.f32.mrb[0].mxu0
      %6005 = vdwg.mxu0
      %6006 = vmatprep.subr.bf16.mxu0 %v5765
      %6007 = vmatpush1.bf16.msra.mxu0 %v5764
      %6008 = vmatprep.subr.bf16.mxu0 %v5773
      %6009 = vmatpush1.bf16.msra.mxu0 %v5772
      %6010 = vmatprep.subr.bf16.mxu0 %v5781
      %6011 = vmatpush1.bf16.msra.mxu0 %v5780
      %6012 = vmatprep.subr.bf16.mxu0 %v5789
      %6013 = vmatpush1.bf16.msra.mxu0 %v5788
      %6014 = vmatprep.subr.bf16.mxu0 %v5797
      %6015 = vmatpush1.bf16.msra.mxu0 %v5796
      %6016 = vmatprep.subr.bf16.mxu0 %v5805
      %6017 = vmatpush1.bf16.msra.mxu0 %v5804
      %6018 = vmatprep.subr.bf16.mxu0 %v5813
      %6019 = vmatpush1.bf16.msra.mxu0 %v5812
      %6020 = vmatprep.subr.bf16.mxu0 %v5821
      %6021 = vmatpush1.bf16.msra.mxu0 %v5820
      %6022 = vmatprep.subr.bf16.mxu0 %v5829
      %6023 = vmatpush1.bf16.msra.mxu0 %v5828
      %6024 = vmatprep.subr.bf16.mxu0 %v5837
      %6025 = vmatpush1.bf16.msra.mxu0 %v5836
      %6026 = vmatprep.subr.bf16.mxu0 %v5845
      %6027 = vmatpush1.bf16.msra.mxu0 %v5844
      %6028 = vmatprep.subr.bf16.mxu0 %v5853
      %6029 = vmatpush1.bf16.msra.mxu0 %v5852
      %6030 = vmatprep.subr.bf16.mxu0 %v5861
      %6031 = vmatpush1.bf16.msra.mxu0 %v5860
      %6032 = vmatprep.subr.bf16.mxu0 %v5869
      %6033 = vmatpush1.bf16.msra.mxu0 %v5868
      %6034 = vmatprep.subr.bf16.mxu0 0
      %6035 = vmatpush1.bf16.msra.mxu0 0
      %6036 = vmatprep.subr.bf16.mxu0 0
      %6037 = vmatpush1.bf16.msra.mxu0 0
      %6038 = vmatprep.mubr.bf16.mxu0 %v5881
      %6039 = vmatmul.mubr.bf16.gmra.mrb[0].mxu0 %v5877
      %v6040 = vpop.f32.mrb[0].mxu0
      %v6041 = vadd.f32 %v5872, %v6040
      %v6042 = vpop.f32.mrb[0].mxu0
      %v6043 = vadd.f32 %v5872, %v6042
      %v6044 = vpop.f32.mrb[0].mxu0
      %v6045 = vpop.f32.mrb[0].mxu0
      %6046 = vdwg.mxu0
      %v6047 = vmul.f32 %v5918, %v258
      %v6048 = vmul.f32 %v5920, %v262
      %v6049 = vmul.f32 %v5959, %v266
      %v6050 = vmul.f32 %v5961, %v270
      %v6051 = vmul.f32 %v6000, %v274
      %v6052 = vmul.f32 %v6002, %v278
      %v6053 = vmul.f32 %v6041, %v282
      %v6054 = vmul.f32 %v6043, %v286
      %v6055 = vadd.f32 %v6047, %v6048
      %v6056 = vadd.f32 %v6055, %v6049
      %v6057 = vadd.f32 %v6056, %v6050
      %v6058 = vadd.f32 %v6057, %v6051
      %v6059 = vadd.f32 %v6058, %v6052
      %v6060 = vadd.f32 %v6059, %v6053
      %v6061 = vadd.f32 %v6060, %v6054
      %6062 = vadd.xlane.f32.xlu0 %v6061
      %v6063 = vpop.xlane.xlu0 %6062
      %v6064 = vmul.f32 %v6063, 0.001953125
      %v6065 = vmul.f32 %v6047, %v5918
      %v6066 = vmul.f32 %v6048, %v5920
      %v6067 = vmul.f32 %v6049, %v5959
      %v6068 = vmul.f32 %v6050, %v5961
      %v6069 = vmul.f32 %v6051, %v6000
      %v6070 = vmul.f32 %v6052, %v6002
      %v6071 = vmul.f32 %v6053, %v6041
      %v6072 = vmul.f32 %v6054, %v6043
      %v6073 = vadd.f32 %v6065, %v6066
      %v6074 = vadd.f32 %v6073, %v6067
      %v6075 = vadd.f32 %v6074, %v6068
      %v6076 = vadd.f32 %v6075, %v6069
      %v6077 = vadd.f32 %v6076, %v6070
      %v6078 = vadd.f32 %v6077, %v6071
      %v6079 = vadd.f32 %v6078, %v6072
      %6080 = vadd.xlane.f32.xlu0 %v6079
      %v6081 = vpop.xlane.xlu0 %6080
      %v6082 = vmul.f32 %v6081, 0.001953125
      %v6083 = vmul.f32 %v6064, %v6064
      %v6084 = vsub.f32 %v6082, %v6083
      %v6085 = vmax.f32 %v6084, 0.0
      %v6086 = vsub.f32 %v5918, %v6064
      %v6087 = vsub.f32 %v5920, %v6064
      %v6088 = vsub.f32 %v5959, %v6064
      %v6089 = vsub.f32 %v5961, %v6064
      %v6090 = vsub.f32 %v6000, %v6064
      %v6091 = vsub.f32 %v6002, %v6064
      %v6092 = vsub.f32 %v6041, %v6064
      %v6093 = vsub.f32 %v6043, %v6064
      %v6094 = vadd.f32 %v6085, 1e-05
      %v6095 = vrsqrt.pop %v6094
      %v6096 = vmul.f32 %v6086, %v6095
      %v6097 = vmul.f32 %v6087, %v6095
      %v6098 = vmul.f32 %v6088, %v6095
      %v6099 = vmul.f32 %v6089, %v6095
      %v6100 = vmul.f32 %v6090, %v6095
      %v6101 = vmul.f32 %v6091, %v6095
      %v6102 = vmul.f32 %v6092, %v6095
      %v6103 = vmul.f32 %v6093, %v6095
      %6104 = vset.pattern.permute.xlu0 7
      %6105 = vperm.xlu0 %6104, %v295
      %v6106 = vpop.permute.xlu0 %6105
      %v6108 = vmul.f32 %v6096, %v6106
      %v6109 = vmul.f32 %v6097, %v6106
      %v6110 = vmul.f32 %v6098, %v6106
      %v6111 = vmul.f32 %v6099, %v6106
      %v6112 = vmul.f32 %v6100, %v6106
      %v6113 = vmul.f32 %v6101, %v6106
      %v6114 = vmul.f32 %v6102, %v6106
      %v6115 = vmul.f32 %v6103, %v6106
      %6116 = vset.pattern.permute.xlu0 8
      %6117 = vperm.xlu0 %6116, %v295
      %v6118 = vpop.permute.xlu0 %6117
      %v6120 = vadd.f32 %v6108, %v6118
      %v6121 = vadd.f32 %v6109, %v6118
      %v6122 = vadd.f32 %v6110, %v6118
      %v6123 = vadd.f32 %v6111, %v6118
      %v6124 = vadd.f32 %v6112, %v6118
      %v6125 = vadd.f32 %v6113, %v6118
      %v6126 = vadd.f32 %v6114, %v6118
      %v6127 = vadd.f32 %v6115, %v6118
      %vm6128 = vcmp.ge.f32.partialorder %v6120, 0.0
      %vm6129 = vcmp.ge.f32.partialorder %v6121, 0.0
      %vm6130 = vcmp.ge.f32.partialorder %v6122, 0.0
      %vm6131 = vcmp.ge.f32.partialorder %v6123, 0.0
      %vm6132 = vcmp.ge.f32.partialorder %v6124, 0.0
      %vm6133 = vcmp.ge.f32.partialorder %v6125, 0.0
      %vm6134 = vcmp.ge.f32.partialorder %v6126, 0.0
      %vm6135 = vcmp.ge.f32.partialorder %v6127, 0.0
      %v6136 = vmul.f32 %v6120, 0.22916667
      %v6137 = vmul.f32 %v6121, 0.22916667
      %v6138 = vmul.f32 %v6122, 0.22916667
      %v6139 = vmul.f32 %v6123, 0.22916667
      %v6140 = vmul.f32 %v6124, 0.22916667
      %v6141 = vmul.f32 %v6125, 0.22916667
      %v6142 = vmul.f32 %v6126, 0.22916667
      %v6143 = vmul.f32 %v6127, 0.22916667
      %v6144 = vsel %vm6128, %v6120, %v6136
      %v6145 = vsel %vm6129, %v6121, %v6137
      %v6146 = vsel %vm6130, %v6122, %v6138
      %v6147 = vsel %vm6131, %v6123, %v6139
      %v6148 = vsel %vm6132, %v6124, %v6140
      %v6149 = vsel %vm6133, %v6125, %v6141
      %v6150 = vsel %vm6134, %v6126, %v6142
      %v6151 = vsel %vm6135, %v6127, %v6143
      %6152 = vst [vmem:[%s251] sm:$0xff] %v6144
      %6153 = vst [vmem:[%s251 + $0x8] sm:$0xff] %v6145
      %6154 = vst [vmem:[%s251 + $0x10] sm:$0xff] %v6146
      %6155 = vst [vmem:[%s251 + $0x18] sm:$0xff] %v6147
      %6156 = vst [vmem:[%s251 + $0x20] sm:$0xff] %v6148
      %6157 = vst [vmem:[%s251 + $0x28] sm:$0xff] %v6149
      %6158 = vst [vmem:[%s251 + $0x30] sm:$0xff] %v6150
      %6159 = vst [vmem:[%s251 + $0x38] sm:$0xff] %v6151
      %p6160 = scmp.lt.s32.totalorder %s17, 1
      %s6161 = scalar_select %p6160, %s17, 1
      %s6162 = smul.addr %s6161, 8
      %s6163 = smul.addr %s6162, 8
      %s6164 = scalar_lea.vmem %s6, %s6163
      // Predicated region
      $region45: #{res_conv_block_forward.1} parent=43 // pred_check
        %p6165 = pneg %p166
      $region46: #{res_conv_block_forward.1} parent=43 // pred_check_branch
        %6167 = sbr.rel (%p6165) target = $region48
      $region47: #{res_conv_block_forward.1} parent=43 // pred_region
        _
      $region48: #{res_conv_block_forward.1} parent=43 // pred_fallthru
        _
    $region44: #{res_conv_block_forward.1} parent=5 // pred_fallthru
      _
    %p6168 = scmp.le.s32.totalorder 2, %s12
    // Predicated region
    $region49: #{res_conv_block_forward.1} parent=5 // pred_check
      %p6169 = pneg %p6168
    $region50: #{res_conv_block_forward.1} parent=5 // pred_check_branch
      %6171 = sbr.rel (%p6169) target = $region52
    $region51: #{res_conv_block_forward.1} parent=5 // pred_region
      %s6172 = ssub.s32 %s12, 2
      // Predicated region
      $region53: #{res_conv_block_forward.1} parent=51 // pred_check
        %p6173 = pneg %p172
      $region54: #{res_conv_block_forward.1} parent=51 // pred_check_branch
        %6175 = sbr.rel (%p6173) target = $region56
      $region55: #{res_conv_block_forward.1} parent=51 // pred_region
        %p6176 = scmp.lt.s32.totalorder %s18, 1
        %s6177 = scalar_select %p6176, %s18, 1
        %s6178 = smul.addr %s6177, 8
        %s6179 = smul.addr %s6178, 8
        %s6180 = scalar_lea.vmem %s6, %s6179
      $region56: #{res_conv_block_forward.1} parent=51 // pred_fallthru
        _
    $region52: #{res_conv_block_forward.1} parent=5 // pred_fallthru
      _
  $region6: #{res_conv_block_forward.1} parent=0 // loop_footer
    %s16 = sadd.s32 1, %s12
  $region7: #{res_conv_block_forward.1} parent=0 // loop_footer_branch
    %11 = sbr.rel target = $region3
  $region8: #{res_conv_block_forward.1} parent=0 // loop_exit
    _

</llo_original>
